<compile_context>
chip_gen: v7x
topology: tpu7x:2x2x1
jax: 0.10.0
libtpu: 0.0.40
codegen_flags: <defaults>
</compile_context>

<pallas_src>
import jax
import jax.numpy as jnp
from jax.experimental import pallas as pl
from jax.experimental.pallas import tpu as pltpu

N, H, W = 2, 8, 8          # small batch / spatial (channels fixed by the module)
C_IN, C_MID = 512, 256
EPS = 1e-5
NEG_SLOPE = 0.1


def _leaky(x):
    return jnp.where(x > 0, x, NEG_SLOPE * x)


def _bn_train(y2d, gamma, beta):
    # y2d: (M, C). Training-mode BN over the M axis, biased variance.
    # Single pass: sum and sum-of-squares accumulated together, folded
    # per-channel scale/shift, all in f32.
    m = y2d.shape[0]
    inv_m = jnp.float32(1.0 / m)
    s1 = jnp.sum(y2d, axis=0, keepdims=True)
    s2 = jnp.sum(y2d * y2d, axis=0, keepdims=True)
    mu = s1 * inv_m                                   # (1, C)
    var = s2 * inv_m - mu * mu                        # (1, C)
    scale = jax.lax.rsqrt(var + EPS) * gamma          # (1, C)
    shift = beta - mu * scale                         # (1, C)
    return y2d * scale + shift


# --------------------- fused kernel ---------------------
def resblock_fused_kernel(x_ref, w1_ref, g1_ref, be1_ref,
                          w2_hbm_ref, g2_ref, be2_ref,
                          o_ref,
                          ypad_ref, col_ref, w2_vmem_ref, w2_sem):
    n, h, w, c_in = x_ref.shape
    c_mid = w1_ref.shape[1]
    m = n * h * w

    # Kick off the 2.25 MiB w2 HBM->VMEM DMA immediately; it overlaps with the
    # whole conv1 path below and is only waited on before the 3x3 matmul.
    w2_copy = pltpu.make_async_copy(w2_hbm_ref, w2_vmem_ref, w2_sem)
    w2_copy.start()

    # ---- conv 1x1 (bf16 MXU operands, f32 accumulation) + BN1 + LeakyReLU ----
    y1 = jnp.dot(x_ref[...].reshape(m, c_in).astype(jnp.bfloat16), w1_ref[...],
                 preferred_element_type=jnp.float32)  # (m, 256) f32
    y1 = _leaky(_bn_train(y1, g1_ref[...], be1_ref[...]))

    # ---- zero-pad y1 (pad=1 on H and W) into a bf16 VMEM scratch ----
    # Only the halo needs zeroing; the interior is fully overwritten.
    zrow = jnp.zeros((n, 1, w + 2, c_mid), jnp.bfloat16)
    ypad_ref[:, 0:1, :, :] = zrow
    ypad_ref[:, h + 1:h + 2, :, :] = zrow
    zcol = jnp.zeros((n, h, 1, c_mid), jnp.bfloat16)
    ypad_ref[:, 1:1 + h, 0:1, :] = zcol
    ypad_ref[:, 1:1 + h, w + 1:w + 2, :] = zcol
    # y1 is cast to bf16 exactly once, here.
    ypad_ref[:, 1:1 + h, 1:1 + w, :] = (
        y1.reshape(n, h, w, c_mid).astype(jnp.bfloat16))

    # ---- im2col: nine taps sliced straight from the ref (bf16 in / bf16 out) ----
    for ky in range(3):
        for kx in range(3):
            t = ky * 3 + kx
            col_ref[:, t * c_mid:(t + 1) * c_mid] = (
                ypad_ref[:, ky:ky + h, kx:kx + w, :].reshape(m, c_mid))

    # ---- conv 3x3 as ONE K=2304 matmul + BN2 + LeakyReLU ----
    w2_copy.wait()                                    # w2 now resident in VMEM
    y2 = jnp.dot(col_ref[...], w2_vmem_ref[...],
                 preferred_element_type=jnp.float32)  # (m, 512) f32
    y2 = _leaky(_bn_train(y2, g2_ref[...], be2_ref[...]))

    # ---- residual add in f32 (re-read x_ref to keep live ranges short) ----
    o_ref[...] = x_ref[...] + y2.reshape(n, h, w, c_in)


_VMEM = pl.BlockSpec(memory_space=pltpu.MemorySpace.VMEM)
_HBM = pl.BlockSpec(memory_space=pl.ANY)


def resblock4_child_forward_nhwc(x_nhwc, p):
    """Core fused forward. x_nhwc: (N, H, W, 512) f32 -> (N, H, W, 512) f32."""
    n, h, w, _ = x_nhwc.shape
    return pl.pallas_call(
        resblock_fused_kernel,
        out_shape=jax.ShapeDtypeStruct((n, h, w, C_IN), jnp.float32),
        in_specs=[_VMEM, _VMEM, _VMEM, _VMEM, _HBM, _VMEM, _VMEM],
        out_specs=_VMEM,
        scratch_shapes=[
            pltpu.VMEM((n, h + 2, w + 2, C_MID), jnp.bfloat16),   # padded y1
            pltpu.VMEM((n * h * w, 9 * C_MID), jnp.bfloat16),     # im2col
            pltpu.VMEM((9 * C_MID, C_IN), jnp.bfloat16),          # w2 landing buf
            pltpu.SemaphoreType.DMA(()),                          # w2 DMA sem
        ],
    )(x_nhwc, p["w1_bf16"], p["g1"], p["be1"], p["w2_bf16"], p["g2"], p["be2"])


def resblock4_child_forward(x_nchw, p):
    """NCHW adapter matching the PyTorch interface.

    In an NHWC model, call resblock4_child_forward_nhwc directly and drop both
    transposes (they exist only for layout parity with the PyTorch module).
    """
    x = jnp.transpose(x_nchw, (0, 2, 3, 1)).astype(jnp.float32)   # NCHW -> NHWC
    out = resblock4_child_forward_nhwc(x, p)
    return jnp.transpose(out, (0, 3, 1, 2))                       # NHWC -> NCHW


def init_params(key):
    ks = jax.random.split(key, 8)
    # conv1: torch weight (256, 512, 1, 1) stored as (Cin, Cout) = (512, 256)
    w1 = 0.05 * jax.random.normal(ks[0], (C_IN, C_MID), jnp.float32)
    # conv2: torch weight (512, 256, 3, 3) stored as (kh*kw, Cin, Cout) = (9, 256, 512)
    w2 = 0.05 * jax.random.normal(ks[4], (9, C_MID, C_IN), jnp.float32)
    return dict(
        # f32 weights kept only for the pure-JAX reference.
        w1=w1,
        w2=w2,
        b1=0.05 * jax.random.normal(ks[1], (1, C_MID), jnp.float32),
        b2=0.05 * jax.random.normal(ks[5], (1, C_IN), jnp.float32),
        g1=1.0 + 0.1 * jax.random.normal(ks[2], (1, C_MID), jnp.float32),
        be1=0.1 * jax.random.normal(ks[3], (1, C_MID), jnp.float32),
        g2=1.0 + 0.1 * jax.random.normal(ks[6], (1, C_IN), jnp.float32),
        be2=0.1 * jax.random.normal(ks[7], (1, C_IN), jnp.float32),
        # Kernel-ready forms, cast/reshaped ONCE at init (not per forward call).
        w1_bf16=w1.astype(jnp.bfloat16),
        w2_bf16=w2.reshape(9 * C_MID, C_IN).astype(jnp.bfloat16),
    )


# ---------------- pure-JAX f32 reference (correctness check) ----------------
def _bn_train_ref(y, gamma, beta):
    mu = jnp.mean(y, axis=(0, 1, 2), keepdims=True)
    var = jnp.mean((y - mu) ** 2, axis=(0, 1, 2), keepdims=True)
    return (y - mu) * jax.lax.rsqrt(var + EPS) * gamma.reshape(1, 1, 1, -1) \
        + beta.reshape(1, 1, 1, -1)


def reference_forward(x_nchw, p):
    # Full-precision reference, *with* conv biases (training-mode BN cancels them).
    x = jnp.transpose(x_nchw, (0, 2, 3, 1)).astype(jnp.float32)
    dn = ("NHWC", "HWIO", "NHWC")
    y = jax.lax.conv_general_dilated(
        x, p["w1"].reshape(1, 1, C_IN, C_MID), (1, 1), "VALID",
        dimension_numbers=dn) + p["b1"].reshape(1, 1, 1, -1)
    y = _leaky(_bn_train_ref(y, p["g1"], p["be1"]))
    y = jax.lax.conv_general_dilated(
        y, p["w2"].reshape(3, 3, C_MID, C_IN), (1, 1), "SAME",
        dimension_numbers=dn) + p["b2"].reshape(1, 1, 1, -1)
    y = _leaky(_bn_train_ref(y, p["g2"], p["be2"]))
    return jnp.transpose(x + y, (0, 3, 1, 2))


if __name__ == "__main__":
    key = jax.random.PRNGKey(0)
    kx, kp = jax.random.split(key)
    x = jax.random.normal(kx, (N, C_IN, H, W), jnp.float32)   # NCHW like PyTorch
    params = init_params(kp)

    out = jax.block_until_ready(resblock4_child_forward(x, params))
    ref = jax.block_until_ready(reference_forward(x, params))

    max_err = float(jnp.max(jnp.abs(out - ref)))
    mean_err = float(jnp.mean(jnp.abs(out - ref)))
    assert out.shape == (N, C_IN, H, W)
    # bf16 MXU operands (f32 accumulation) vs a pure-f32 reference: allow a
    # small absolute tolerance on O(1)-magnitude outputs.
    assert max_err < 8e-2, f"mismatch vs reference: max={max_err} mean={mean_err}"
    assert mean_err < 1e-2, f"mismatch vs reference: max={max_err} mean={mean_err}"
    print("KERNEL_OK")
</pallas_src>

<mosaic_0001>
module attributes {stable_mosaic.version = 11 : i64} {
  func.func @resblock_fused_kernel(%arg0: memref<2x8x8x512xf32, #tpu.memory_space<vmem>>, %arg1: memref<512x256xbf16, #tpu.memory_space<vmem>>, %arg2: memref<1x256xf32, #tpu.memory_space<vmem>>, %arg3: memref<1x256xf32, #tpu.memory_space<vmem>>, %arg4: memref<2304x512xbf16, #tpu.memory_space<any>>, %arg5: memref<1x512xf32, #tpu.memory_space<vmem>>, %arg6: memref<1x512xf32, #tpu.memory_space<vmem>>, %arg7: memref<2x8x8x512xf32, #tpu.memory_space<vmem>>, %arg8: memref<2x10x10x256xbf16, #tpu.memory_space<vmem>>, %arg9: memref<128x2304xbf16, #tpu.memory_space<vmem>>, %arg10: memref<2304x512xbf16, #tpu.memory_space<vmem>>, %arg11: memref<!tpu.dma_semaphore, #tpu.memory_space<semaphore_mem>>) attributes {dimension_semantics = [], scalar_prefetch = 0 : i64, scratch_operands = 4 : i64, tpu.core_type = #tpu.core_type<tc>} {
    tpu.enqueue_dma source(%arg4 : memref<2304x512xbf16, #tpu.memory_space<any>>) target(%arg10 : memref<2304x512xbf16, #tpu.memory_space<vmem>>) target_semaphore(%arg11 : memref<!tpu.dma_semaphore, #tpu.memory_space<semaphore_mem>>)
    %c0 = arith.constant 0 : index
    %c0_0 = arith.constant 0 : index
    %c0_1 = arith.constant 0 : index
    %c0_2 = arith.constant 0 : index
    %0 = vector.load %arg0[%c0, %c0_0, %c0_1, %c0_2] : memref<2x8x8x512xf32, #tpu.memory_space<vmem>>, vector<2x8x8x512xf32>
    %1 = vector.shape_cast %0 : vector<2x8x8x512xf32> to vector<128x512xf32>
    %2 = arith.truncf %1 : vector<128x512xf32> to vector<128x512xbf16>
    %c0_3 = arith.constant 0 : index
    %c0_4 = arith.constant 0 : index
    %3 = vector.load %arg1[%c0_3, %c0_4] : memref<512x256xbf16, #tpu.memory_space<vmem>>, vector<512x256xbf16>
    %cst = arith.constant dense<0.000000e+00> : vector<128x256xf32>
    %4 = tpu.matmul %2, %3, %cst {dimension_numbers = #tpu.dot_dimension_numbers<[1], [0], [0], [1], [0, 0, 1, 1], [], []>} : vector<128x512xbf16>, vector<512x256xbf16>, vector<128x256xf32> -> vector<128x256xf32>
    %c0_5 = arith.constant 0 : index
    %c0_6 = arith.constant 0 : index
    %5 = vector.load %arg2[%c0_5, %c0_6] : memref<1x256xf32, #tpu.memory_space<vmem>>, vector<1x256xf32>
    %c0_7 = arith.constant 0 : index
    %c0_8 = arith.constant 0 : index
    %6 = vector.load %arg3[%c0_7, %c0_8] : memref<1x256xf32, #tpu.memory_space<vmem>>, vector<1x256xf32>
    %cst_9 = arith.constant dense<0.000000e+00> : vector<256xf32>
    %7 = vector.multi_reduction <add>, %4, %cst_9 [0] : vector<128x256xf32> to vector<256xf32>
    %8 = vector.shape_cast %7 : vector<256xf32> to vector<1x256xf32>
    %9 = arith.mulf %4, %4 : vector<128x256xf32>
    %cst_10 = arith.constant dense<0.000000e+00> : vector<256xf32>
    %10 = vector.multi_reduction <add>, %9, %cst_10 [0] : vector<128x256xf32> to vector<256xf32>
    %11 = vector.shape_cast %10 : vector<256xf32> to vector<1x256xf32>
    %cst_11 = arith.constant 7.812500e-03 : f32
    %12 = vector.broadcast %cst_11 : f32 to vector<1x256xf32>
    %13 = arith.mulf %8, %12 : vector<1x256xf32>
    %cst_12 = arith.constant 7.812500e-03 : f32
    %14 = vector.broadcast %cst_12 : f32 to vector<1x256xf32>
    %15 = arith.mulf %11, %14 : vector<1x256xf32>
    %16 = arith.mulf %13, %13 : vector<1x256xf32>
    %17 = arith.subf %15, %16 : vector<1x256xf32>
    %cst_13 = arith.constant 9.99999974E-6 : f32
    %18 = vector.broadcast %cst_13 : f32 to vector<1x256xf32>
    %19 = arith.addf %17, %18 : vector<1x256xf32>
    %20 = math.rsqrt %19 : vector<1x256xf32>
    %21 = arith.mulf %20, %5 : vector<1x256xf32>
    %22 = arith.mulf %13, %21 : vector<1x256xf32>
    %23 = arith.subf %6, %22 : vector<1x256xf32>
    %24 = vector.broadcast %21 : vector<1x256xf32> to vector<128x256xf32>
    %25 = arith.mulf %4, %24 : vector<128x256xf32>
    %26 = vector.broadcast %23 : vector<1x256xf32> to vector<128x256xf32>
    %27 = arith.addf %25, %26 : vector<128x256xf32>
    %cst_14 = arith.constant 0.000000e+00 : f32
    %28 = vector.broadcast %cst_14 : f32 to vector<128x256xf32>
    %29 = arith.cmpf ogt, %27, %28 : vector<128x256xf32>
    %cst_15 = arith.constant 1.000000e-01 : f32
    %30 = vector.broadcast %cst_15 : f32 to vector<128x256xf32>
    %31 = arith.mulf %30, %27 : vector<128x256xf32>
    %32 = arith.select %29, %27, %31 : vector<128x256xi1>, vector<128x256xf32>
    %cst_16 = arith.constant 0.000000e+00 : bf16
    %33 = vector.broadcast %cst_16 : bf16 to vector<2x1x10x256xbf16>
    %c0_17 = arith.constant 0 : index
    %c0_18 = arith.constant 0 : index
    %c0_19 = arith.constant 0 : index
    %c0_20 = arith.constant 0 : index
    %34 = vector.load %arg8[%c0_17, %c0_18, %c0_19, %c0_20] : memref<2x10x10x256xbf16, #tpu.memory_space<vmem>>, vector<2x1x10x256xbf16>
    tpu.vector_store %arg8[%c0_17, %c0_18, %c0_19, %c0_20], %33 {strides = array<i32>} : memref<2x10x10x256xbf16, #tpu.memory_space<vmem>>, vector<2x1x10x256xbf16>,
    %c0_21 = arith.constant 0 : index
    %c9 = arith.constant 9 : index
    %c0_22 = arith.constant 0 : index
    %c0_23 = arith.constant 0 : index
    %35 = vector.load %arg8[%c0_21, %c9, %c0_22, %c0_23] : memref<2x10x10x256xbf16, #tpu.memory_space<vmem>>, vector<2x1x10x256xbf16>
    tpu.vector_store %arg8[%c0_21, %c9, %c0_22, %c0_23], %33 {strides = array<i32>} : memref<2x10x10x256xbf16, #tpu.memory_space<vmem>>, vector<2x1x10x256xbf16>,
    %cst_24 = arith.constant 0.000000e+00 : bf16
    %36 = vector.broadcast %cst_24 : bf16 to vector<2x8x1x256xbf16>
    %c0_25 = arith.constant 0 : index
    %c1 = arith.constant 1 : index
    %c0_26 = arith.constant 0 : index
    %c0_27 = arith.constant 0 : index
    %37 = vector.load %arg8[%c0_25, %c1, %c0_26, %c0_27] : memref<2x10x10x256xbf16, #tpu.memory_space<vmem>>, vector<2x8x1x256xbf16>
    tpu.vector_store %arg8[%c0_25, %c1, %c0_26, %c0_27], %36 {strides = array<i32>} : memref<2x10x10x256xbf16, #tpu.memory_space<vmem>>, vector<2x8x1x256xbf16>,
    %c0_28 = arith.constant 0 : index
    %c1_29 = arith.constant 1 : index
    %c9_30 = arith.constant 9 : index
    %c0_31 = arith.constant 0 : index
    %38 = vector.load %arg8[%c0_28, %c1_29, %c9_30, %c0_31] : memref<2x10x10x256xbf16, #tpu.memory_space<vmem>>, vector<2x8x1x256xbf16>
    tpu.vector_store %arg8[%c0_28, %c1_29, %c9_30, %c0_31], %36 {strides = array<i32>} : memref<2x10x10x256xbf16, #tpu.memory_space<vmem>>, vector<2x8x1x256xbf16>,
    %39 = vector.shape_cast %32 : vector<128x256xf32> to vector<2x8x8x256xf32>
    %40 = arith.truncf %39 : vector<2x8x8x256xf32> to vector<2x8x8x256xbf16>
    %c0_32 = arith.constant 0 : index
    %c1_33 = arith.constant 1 : index
    %c1_34 = arith.constant 1 : index
    %c0_35 = arith.constant 0 : index
    %41 = vector.load %arg8[%c0_32, %c1_33, %c1_34, %c0_35] : memref<2x10x10x256xbf16, #tpu.memory_space<vmem>>, vector<2x8x8x256xbf16>
    tpu.vector_store %arg8[%c0_32, %c1_33, %c1_34, %c0_35], %40 {strides = array<i32>} : memref<2x10x10x256xbf16, #tpu.memory_space<vmem>>, vector<2x8x8x256xbf16>,
    %c0_36 = arith.constant 0 : index
    %c0_37 = arith.constant 0 : index
    %c0_38 = arith.constant 0 : index
    %c0_39 = arith.constant 0 : index
    %42 = vector.load %arg8[%c0_36, %c0_37, %c0_38, %c0_39] : memref<2x10x10x256xbf16, #tpu.memory_space<vmem>>, vector<2x8x8x256xbf16>
    %43 = vector.shape_cast %42 : vector<2x8x8x256xbf16> to vector<128x256xbf16>
    %c0_40 = arith.constant 0 : index
    %c0_41 = arith.constant 0 : index
    %44 = vector.load %arg9[%c0_40, %c0_41] : memref<128x2304xbf16, #tpu.memory_space<vmem>>, vector<128x256xbf16>
    tpu.vector_store %arg9[%c0_40, %c0_41], %43 {strides = array<i32>} : memref<128x2304xbf16, #tpu.memory_space<vmem>>, vector<128x256xbf16>,
    %c0_42 = arith.constant 0 : index
    %c0_43 = arith.constant 0 : index
    %c1_44 = arith.constant 1 : index
    %c0_45 = arith.constant 0 : index
    %45 = vector.load %arg8[%c0_42, %c0_43, %c1_44, %c0_45] : memref<2x10x10x256xbf16, #tpu.memory_space<vmem>>, vector<2x8x8x256xbf16>
    %46 = vector.shape_cast %45 : vector<2x8x8x256xbf16> to vector<128x256xbf16>
    %c0_46 = arith.constant 0 : index
    %c256 = arith.constant 256 : index
    %47 = vector.load %arg9[%c0_46, %c256] : memref<128x2304xbf16, #tpu.memory_space<vmem>>, vector<128x256xbf16>
    tpu.vector_store %arg9[%c0_46, %c256], %46 {strides = array<i32>} : memref<128x2304xbf16, #tpu.memory_space<vmem>>, vector<128x256xbf16>,
    %c0_47 = arith.constant 0 : index
    %c0_48 = arith.constant 0 : index
    %c2 = arith.constant 2 : index
    %c0_49 = arith.constant 0 : index
    %48 = vector.load %arg8[%c0_47, %c0_48, %c2, %c0_49] : memref<2x10x10x256xbf16, #tpu.memory_space<vmem>>, vector<2x8x8x256xbf16>
    %49 = vector.shape_cast %48 : vector<2x8x8x256xbf16> to vector<128x256xbf16>
    %c0_50 = arith.constant 0 : index
    %c512 = arith.constant 512 : index
    %50 = vector.load %arg9[%c0_50, %c512] : memref<128x2304xbf16, #tpu.memory_space<vmem>>, vector<128x256xbf16>
    tpu.vector_store %arg9[%c0_50, %c512], %49 {strides = array<i32>} : memref<128x2304xbf16, #tpu.memory_space<vmem>>, vector<128x256xbf16>,
    %c0_51 = arith.constant 0 : index
    %c1_52 = arith.constant 1 : index
    %c0_53 = arith.constant 0 : index
    %c0_54 = arith.constant 0 : index
    %51 = vector.load %arg8[%c0_51, %c1_52, %c0_53, %c0_54] : memref<2x10x10x256xbf16, #tpu.memory_space<vmem>>, vector<2x8x8x256xbf16>
    %52 = vector.shape_cast %51 : vector<2x8x8x256xbf16> to vector<128x256xbf16>
    %c0_55 = arith.constant 0 : index
    %c768 = arith.constant 768 : index
    %53 = vector.load %arg9[%c0_55, %c768] : memref<128x2304xbf16, #tpu.memory_space<vmem>>, vector<128x256xbf16>
    tpu.vector_store %arg9[%c0_55, %c768], %52 {strides = array<i32>} : memref<128x2304xbf16, #tpu.memory_space<vmem>>, vector<128x256xbf16>,
    %c0_56 = arith.constant 0 : index
    %c1_57 = arith.constant 1 : index
    %c1_58 = arith.constant 1 : index
    %c0_59 = arith.constant 0 : index
    %54 = vector.load %arg8[%c0_56, %c1_57, %c1_58, %c0_59] : memref<2x10x10x256xbf16, #tpu.memory_space<vmem>>, vector<2x8x8x256xbf16>
    %55 = vector.shape_cast %54 : vector<2x8x8x256xbf16> to vector<128x256xbf16>
    %c0_60 = arith.constant 0 : index
    %c1024 = arith.constant 1024 : index
    %56 = vector.load %arg9[%c0_60, %c1024] : memref<128x2304xbf16, #tpu.memory_space<vmem>>, vector<128x256xbf16>
    tpu.vector_store %arg9[%c0_60, %c1024], %55 {strides = array<i32>} : memref<128x2304xbf16, #tpu.memory_space<vmem>>, vector<128x256xbf16>,
    %c0_61 = arith.constant 0 : index
    %c1_62 = arith.constant 1 : index
    %c2_63 = arith.constant 2 : index
    %c0_64 = arith.constant 0 : index
    %57 = vector.load %arg8[%c0_61, %c1_62, %c2_63, %c0_64] : memref<2x10x10x256xbf16, #tpu.memory_space<vmem>>, vector<2x8x8x256xbf16>
    %58 = vector.shape_cast %57 : vector<2x8x8x256xbf16> to vector<128x256xbf16>
    %c0_65 = arith.constant 0 : index
    %c1280 = arith.constant 1280 : index
    %59 = vector.load %arg9[%c0_65, %c1280] : memref<128x2304xbf16, #tpu.memory_space<vmem>>, vector<128x256xbf16>
    tpu.vector_store %arg9[%c0_65, %c1280], %58 {strides = array<i32>} : memref<128x2304xbf16, #tpu.memory_space<vmem>>, vector<128x256xbf16>,
    %c0_66 = arith.constant 0 : index
    %c2_67 = arith.constant 2 : index
    %c0_68 = arith.constant 0 : index
    %c0_69 = arith.constant 0 : index
    %60 = vector.load %arg8[%c0_66, %c2_67, %c0_68, %c0_69] : memref<2x10x10x256xbf16, #tpu.memory_space<vmem>>, vector<2x8x8x256xbf16>
    %61 = vector.shape_cast %60 : vector<2x8x8x256xbf16> to vector<128x256xbf16>
    %c0_70 = arith.constant 0 : index
    %c1536 = arith.constant 1536 : index
    %62 = vector.load %arg9[%c0_70, %c1536] : memref<128x2304xbf16, #tpu.memory_space<vmem>>, vector<128x256xbf16>
    tpu.vector_store %arg9[%c0_70, %c1536], %61 {strides = array<i32>} : memref<128x2304xbf16, #tpu.memory_space<vmem>>, vector<128x256xbf16>,
    %c0_71 = arith.constant 0 : index
    %c2_72 = arith.constant 2 : index
    %c1_73 = arith.constant 1 : index
    %c0_74 = arith.constant 0 : index
    %63 = vector.load %arg8[%c0_71, %c2_72, %c1_73, %c0_74] : memref<2x10x10x256xbf16, #tpu.memory_space<vmem>>, vector<2x8x8x256xbf16>
    %64 = vector.shape_cast %63 : vector<2x8x8x256xbf16> to vector<128x256xbf16>
    %c0_75 = arith.constant 0 : index
    %c1792 = arith.constant 1792 : index
    %65 = vector.load %arg9[%c0_75, %c1792] : memref<128x2304xbf16, #tpu.memory_space<vmem>>, vector<128x256xbf16>
    tpu.vector_store %arg9[%c0_75, %c1792], %64 {strides = array<i32>} : memref<128x2304xbf16, #tpu.memory_space<vmem>>, vector<128x256xbf16>,
    %c0_76 = arith.constant 0 : index
    %c2_77 = arith.constant 2 : index
    %c2_78 = arith.constant 2 : index
    %c0_79 = arith.constant 0 : index
    %66 = vector.load %arg8[%c0_76, %c2_77, %c2_78, %c0_79] : memref<2x10x10x256xbf16, #tpu.memory_space<vmem>>, vector<2x8x8x256xbf16>
    %67 = vector.shape_cast %66 : vector<2x8x8x256xbf16> to vector<128x256xbf16>
    %c0_80 = arith.constant 0 : index
    %c2048 = arith.constant 2048 : index
    %68 = vector.load %arg9[%c0_80, %c2048] : memref<128x2304xbf16, #tpu.memory_space<vmem>>, vector<128x256xbf16>
    tpu.vector_store %arg9[%c0_80, %c2048], %67 {strides = array<i32>} : memref<128x2304xbf16, #tpu.memory_space<vmem>>, vector<128x256xbf16>,
    tpu.wait_dma2 semaphore(%arg11 : memref<!tpu.dma_semaphore, #tpu.memory_space<semaphore_mem>>) src(%arg4 : memref<2304x512xbf16, #tpu.memory_space<any>>) dst(%arg10 : memref<2304x512xbf16, #tpu.memory_space<vmem>>)
    %c0_81 = arith.constant 0 : index
    %c0_82 = arith.constant 0 : index
    %69 = vector.load %arg9[%c0_81, %c0_82] : memref<128x2304xbf16, #tpu.memory_space<vmem>>, vector<128x2304xbf16>
    %c0_83 = arith.constant 0 : index
    %c0_84 = arith.constant 0 : index
    %70 = vector.load %arg10[%c0_83, %c0_84] : memref<2304x512xbf16, #tpu.memory_space<vmem>>, vector<2304x512xbf16>
    %cst_85 = arith.constant dense<0.000000e+00> : vector<128x512xf32>
    %71 = tpu.matmul %69, %70, %cst_85 {dimension_numbers = #tpu.dot_dimension_numbers<[1], [0], [0], [1], [0, 0, 1, 1], [], []>} : vector<128x2304xbf16>, vector<2304x512xbf16>, vector<128x512xf32> -> vector<128x512xf32>
    %c0_86 = arith.constant 0 : index
    %c0_87 = arith.constant 0 : index
    %72 = vector.load %arg5[%c0_86, %c0_87] : memref<1x512xf32, #tpu.memory_space<vmem>>, vector<1x512xf32>
    %c0_88 = arith.constant 0 : index
    %c0_89 = arith.constant 0 : index
    %73 = vector.load %arg6[%c0_88, %c0_89] : memref<1x512xf32, #tpu.memory_space<vmem>>, vector<1x512xf32>
    %cst_90 = arith.constant dense<0.000000e+00> : vector<512xf32>
    %74 = vector.multi_reduction <add>, %71, %cst_90 [0] : vector<128x512xf32> to vector<512xf32>
    %75 = vector.shape_cast %74 : vector<512xf32> to vector<1x512xf32>
    %76 = arith.mulf %71, %71 : vector<128x512xf32>
    %cst_91 = arith.constant dense<0.000000e+00> : vector<512xf32>
    %77 = vector.multi_reduction <add>, %76, %cst_91 [0] : vector<128x512xf32> to vector<512xf32>
    %78 = vector.shape_cast %77 : vector<512xf32> to vector<1x512xf32>
    %cst_92 = arith.constant 7.812500e-03 : f32
    %79 = vector.broadcast %cst_92 : f32 to vector<1x512xf32>
    %80 = arith.mulf %75, %79 : vector<1x512xf32>
    %cst_93 = arith.constant 7.812500e-03 : f32
    %81 = vector.broadcast %cst_93 : f32 to vector<1x512xf32>
    %82 = arith.mulf %78, %81 : vector<1x512xf32>
    %83 = arith.mulf %80, %80 : vector<1x512xf32>
    %84 = arith.subf %82, %83 : vector<1x512xf32>
    %cst_94 = arith.constant 9.99999974E-6 : f32
    %85 = vector.broadcast %cst_94 : f32 to vector<1x512xf32>
    %86 = arith.addf %84, %85 : vector<1x512xf32>
    %87 = math.rsqrt %86 : vector<1x512xf32>
    %88 = arith.mulf %87, %72 : vector<1x512xf32>
    %89 = arith.mulf %80, %88 : vector<1x512xf32>
    %90 = arith.subf %73, %89 : vector<1x512xf32>
    %91 = vector.broadcast %88 : vector<1x512xf32> to vector<128x512xf32>
    %92 = arith.mulf %71, %91 : vector<128x512xf32>
    %93 = vector.broadcast %90 : vector<1x512xf32> to vector<128x512xf32>
    %94 = arith.addf %92, %93 : vector<128x512xf32>
    %cst_95 = arith.constant 0.000000e+00 : f32
    %95 = vector.broadcast %cst_95 : f32 to vector<128x512xf32>
    %96 = arith.cmpf ogt, %94, %95 : vector<128x512xf32>
    %cst_96 = arith.constant 1.000000e-01 : f32
    %97 = vector.broadcast %cst_96 : f32 to vector<128x512xf32>
    %98 = arith.mulf %97, %94 : vector<128x512xf32>
    %99 = arith.select %96, %94, %98 : vector<128x512xi1>, vector<128x512xf32>
    %c0_97 = arith.constant 0 : index
    %c0_98 = arith.constant 0 : index
    %c0_99 = arith.constant 0 : index
    %c0_100 = arith.constant 0 : index
    %100 = vector.load %arg0[%c0_97, %c0_98, %c0_99, %c0_100] : memref<2x8x8x512xf32, #tpu.memory_space<vmem>>, vector<2x8x8x512xf32>
    %101 = vector.shape_cast %99 : vector<128x512xf32> to vector<2x8x8x512xf32>
    %102 = arith.addf %100, %101 : vector<2x8x8x512xf32>
    %c0_101 = arith.constant 0 : index
    %c0_102 = arith.constant 0 : index
    %c0_103 = arith.constant 0 : index
    %c0_104 = arith.constant 0 : index
    %103 = vector.load %arg7[%c0_101, %c0_102, %c0_103, %c0_104] : memref<2x8x8x512xf32, #tpu.memory_space<vmem>>, vector<2x8x8x512xf32>
    tpu.vector_store %arg7[%c0_101, %c0_102, %c0_103, %c0_104], %102 {strides = array<i32>} : memref<2x8x8x512xf32, #tpu.memory_space<vmem>>, vector<2x8x8x512xf32>,
    return
  }
}

</mosaic_0001>

<llo_original>
// kernel: tpu_custom_call.1
$region0: #{tpu_custom_call.1}
  #allocation0 [shape = 'u32[]', space=smem, size = 0x4, offset = 0x4, fixed_abs, tag = 'smem constant byte address 0x4 - core index']
  #allocation1 [shape = 'u32[144,128]{1,0:T(1,128)}', space=vmem, size = 0x12000, scoped, tag = 'internal scratch']
  #allocation2 [shape = 'bf16[2,10,10,256]{3,2,1,0:T(8,128)(2,1)}', space=vmem, size = 0x28000, scoped, tag = 'scratch operand']
  #allocation3 [shape = 'bf16[128,2304]{1,0:T(16,128)(2,1)}', space=vmem, size = 0x90000, scoped, tag = 'scratch operand']
  #allocation4 [shape = 'bf16[2304,512]{1,0:T(16,128)(2,1)}', space=vmem, size = 0x240000, scoped, tag = 'scratch operand']
  #allocation5 [shape = 's32[1]{0}', space=sflag, size = 0x4, scoped, tag = 'scratch operand']
  #allocation18 [shape = 's32[]', space=sflag, size = 0x4, offset = 0, fixed_abs, tag = 'sflag constant byte address 0x0 - dummy sync flag']
  %s0 = inlined_call_operand.hbm [shape: f32[2,8,8,512], index: 0, kind: input, shape index: {}]
  %s1 = inlined_call_operand.hbm [shape: bf16[512,256], index: 1, kind: input, shape index: {}]
  %s2 = inlined_call_operand.hbm [shape: f32[1,256], index: 2, kind: input, shape index: {}]
  %s3 = inlined_call_operand.hbm [shape: f32[1,256], index: 3, kind: input, shape index: {}]
  %s4 = inlined_call_operand.hbm [shape: bf16[2304,512], index: 4, kind: input, shape index: {}]
  %s5 = inlined_call_operand.hbm [shape: f32[1,512], index: 5, kind: input, shape index: {}]
  %s6 = inlined_call_operand.hbm [shape: f32[1,512], index: 6, kind: input, shape index: {}]
  %s7 = inlined_call_operand.hbm [shape: f32[2,8,8,512], index: 7, kind: output, shape index: {}]
  %s8 = sld [smem:[#allocation0]]
  $region58: #{tpu_custom_call.1} parent=0
    _
  %s10 = ssub.s32 1, %s8
  %s11 = scalar_select 0, %s10, %s8
  $region1: #{tpu_custom_call.1} parent=0
    #allocation6 [shape = 'u8[262144]{0}', space=vmem, size = 0x40000, scoped, tag = 'input window, operand 0, single buffered']
    #allocation7 [shape = 's32[1]{0}', space=sflag, size = 0x4, scoped, tag = 'scoped memory for tpu_custom_call.1']
    #allocation8 [shape = 's32[1]{0}', space=sflag, size = 0x4, scoped, tag = 'scoped memory for tpu_custom_call.1']
    #allocation9 [shape = 'u8[262144]{0}', space=vmem, size = 0x40000, scoped, tag = 'input window, operand 1, single buffered']
    #allocation10 [shape = 's32[1]{0}', space=sflag, size = 0x4, scoped, tag = 'scoped memory for tpu_custom_call.1']
    #allocation11 [shape = 'u8[1024]{0}', space=vmem, size = 0x400, scoped, tag = 'input window, operand 2, single buffered']
    #allocation12 [shape = 'u8[1024]{0}', space=vmem, size = 0x400, scoped, tag = 'input window, operand 3, single buffered']
    #allocation13 [shape = 's32[1]{0}', space=sflag, size = 0x4, scoped, tag = 'scoped memory for tpu_custom_call.1']
    #allocation14 [shape = 'u8[2048]{0}', space=vmem, size = 0x800, scoped, tag = 'input window, operand 5, single buffered']
    #allocation15 [shape = 'u8[2048]{0}', space=vmem, size = 0x800, scoped, tag = 'input window, operand 6, single buffered']
    #allocation16 [shape = 's32[1]{0}', space=sflag, size = 0x4, scoped, tag = 'scoped memory for tpu_custom_call.1']
    #allocation17 [shape = 'u8[262144]{0}', space=vmem, size = 0x40000, scoped, tag = 'output window, operand 0, single buffered']
    #allocation19 [shape = 'u32[9]{0}', space=smem, size = 0x24, scoped, tag = 'DMA stride descriptor']
    %12 = vsyncpa [#allocation7], 0
    %13 = vsyncpa [#allocation10], 0
    %14 = vsyncpa [#allocation13], 0
    %15 = vsyncpa [#allocation16], 0
    %16 = vsyncpa [#allocation8], 0
    // Predicated region
    $region2: #{tpu_custom_call.1} parent=1 // pred_check
      _
    $region3: #{tpu_custom_call.1} parent=1 // pred_check_branch
      %18 = sbr.rel (0) target = $region5
    $region4: #{tpu_custom_call.1} parent=1 // pred_region
      %s20 = ssub.s32 8192, 8192
      %21 = vsyncadd [#allocation7], %s20
      %s22 = sshll.u32 [#allocation6], 4
      %s23 = int_to_ptr.vmem [resolvable:$true] %s22
      %28 = dma.hbm_to_vmem [thread:$0]  %s0, 8192, %s23, [#allocation7], 512, 512, 32
    $region5: #{tpu_custom_call.1} parent=1 // pred_fallthru
      _
    // Predicated region
    $region6: #{tpu_custom_call.1} parent=1 // pred_check
      _
    $region7: #{tpu_custom_call.1} parent=1 // pred_check_branch
      %30 = sbr.rel (0) target = $region9
    $region8: #{tpu_custom_call.1} parent=1 // pred_region
      %s32 = ssub.s32 8192, 8192
      %33 = vsyncadd [#allocation10], %s32
      %s34 = sshll.u32 [#allocation9], 4
      %s35 = int_to_ptr.vmem [resolvable:$true] %s34
      %40 = dma.hbm_to_vmem [thread:$0]  %s1, 8192, %s35, [#allocation10], 128, 128, 8
    $region9: #{tpu_custom_call.1} parent=1 // pred_fallthru
      _
    // Predicated region
    $region10: #{tpu_custom_call.1} parent=1 // pred_check
      _
    $region11: #{tpu_custom_call.1} parent=1 // pred_check_branch
      %42 = sbr.rel (0) target = $region13
    $region12: #{tpu_custom_call.1} parent=1 // pred_region
      %s44 = ssub.s32 32, 32
      %45 = vsyncadd [#allocation10], %s44
      %s47 = sshll.u32 [#allocation11], 4
      %s48 = int_to_ptr.vmem [resolvable:$true] %s47
      %50 = dma.hbm_to_vmem [thread:$0]  %s2, 32, %s48, [#allocation10]
    $region13: #{tpu_custom_call.1} parent=1 // pred_fallthru
      _
    // Predicated region
    $region14: #{tpu_custom_call.1} parent=1 // pred_check
      _
    $region15: #{tpu_custom_call.1} parent=1 // pred_check_branch
      %52 = sbr.rel (0) target = $region17
    $region16: #{tpu_custom_call.1} parent=1 // pred_region
      %s54 = ssub.s32 32, 32
      %55 = vsyncadd [#allocation13], %s54
      %s57 = sshll.u32 [#allocation12], 4
      %s58 = int_to_ptr.vmem [resolvable:$true] %s57
      %60 = dma.hbm_to_vmem [thread:$0]  %s3, 32, %s58, [#allocation13]
    $region17: #{tpu_custom_call.1} parent=1 // pred_fallthru
      _
    // Predicated region
    $region18: #{tpu_custom_call.1} parent=1 // pred_check
      _
    $region19: #{tpu_custom_call.1} parent=1 // pred_check_branch
      %62 = sbr.rel (0) target = $region21
    $region20: #{tpu_custom_call.1} parent=1 // pred_region
      %s64 = ssub.s32 64, 64
      %65 = vsyncadd [#allocation13], %s64
      %s67 = sshll.u32 [#allocation14], 4
      %s68 = int_to_ptr.vmem [resolvable:$true] %s67
      %70 = dma.hbm_to_vmem [thread:$0]  %s5, 64, %s68, [#allocation13]
    $region21: #{tpu_custom_call.1} parent=1 // pred_fallthru
      _
    // Predicated region
    $region22: #{tpu_custom_call.1} parent=1 // pred_check
      _
    $region23: #{tpu_custom_call.1} parent=1 // pred_check_branch
      %72 = sbr.rel (0) target = $region25
    $region24: #{tpu_custom_call.1} parent=1 // pred_region
      %s74 = ssub.s32 64, 64
      %75 = vsyncadd [#allocation16], %s74
      %s77 = sshll.u32 [#allocation15], 4
      %s78 = int_to_ptr.vmem [resolvable:$true] %s77
      %80 = dma.hbm_to_vmem [thread:$0]  %s6, 64, %s78, [#allocation16]
    $region25: #{tpu_custom_call.1} parent=1 // pred_fallthru
      _
    // Predicated region
    $region26: #{tpu_custom_call.1} parent=1 // pred_check
      _
    $region27: #{tpu_custom_call.1} parent=1 // pred_check_branch
      %82 = sbr.rel (0) target = $region29
    $region28: #{tpu_custom_call.1} parent=1 // pred_region
      %83 = dma.done [#allocation7], 8192
    $region29: #{tpu_custom_call.1} parent=1 // pred_fallthru
      _
    // Predicated region
    $region30: #{tpu_custom_call.1} parent=1 // pred_check
      _
    $region31: #{tpu_custom_call.1} parent=1 // pred_check_branch
      %85 = sbr.rel (0) target = $region33
    $region32: #{tpu_custom_call.1} parent=1 // pred_region
      %86 = dma.done [#allocation10], 8192
    $region33: #{tpu_custom_call.1} parent=1 // pred_fallthru
      _
    // Predicated region
    $region34: #{tpu_custom_call.1} parent=1 // pred_check
      _
    $region35: #{tpu_custom_call.1} parent=1 // pred_check_branch
      %88 = sbr.rel (0) target = $region37
    $region36: #{tpu_custom_call.1} parent=1 // pred_region
      %89 = dma.done [#allocation10], 32
    $region37: #{tpu_custom_call.1} parent=1 // pred_fallthru
      _
    // Predicated region
    $region38: #{tpu_custom_call.1} parent=1 // pred_check
      _
    $region39: #{tpu_custom_call.1} parent=1 // pred_check_branch
      %91 = sbr.rel (0) target = $region41
    $region40: #{tpu_custom_call.1} parent=1 // pred_region
      %92 = dma.done [#allocation13], 32
    $region41: #{tpu_custom_call.1} parent=1 // pred_fallthru
      _
    // Predicated region
    $region42: #{tpu_custom_call.1} parent=1 // pred_check
      _
    $region43: #{tpu_custom_call.1} parent=1 // pred_check_branch
      %94 = sbr.rel (0) target = $region45
    $region44: #{tpu_custom_call.1} parent=1 // pred_region
      %95 = dma.done [#allocation13], 64
    $region45: #{tpu_custom_call.1} parent=1 // pred_fallthru
      _
    // Predicated region
    $region46: #{tpu_custom_call.1} parent=1 // pred_check
      _
    $region47: #{tpu_custom_call.1} parent=1 // pred_check_branch
      %97 = sbr.rel (0) target = $region49
    $region48: #{tpu_custom_call.1} parent=1 // pred_region
      %98 = dma.done [#allocation16], 64
    $region49: #{tpu_custom_call.1} parent=1 // pred_fallthru
      _
    %s101 = sshll.u32 1, 14
    %s102 = sxor.u32 4294967295, %s101
    %s104 = sld [smem:[#allocation0]]
    %s105 = sadd.s32 2, %s104
    %s107 = sshll.u32 7, 26
    %s108 = sxor.u32 4294967295, %s107
    %s109 = sand.u32 0, %s108
    %s110 = sshll.u32 %s105, 26
    %s111 = sor.u32 %s109, %s110
    %s112 = sshll.u32 [#allocation4], 4
    %s113 = int_to_ptr.vmem [resolvable:$true] %s112
    %116 = sst [smem:[#allocation19]] 512
    %s117 = scalar_lea.smem [#allocation19], 1
    %118 = sst [smem:[%s117]] 512
    %s119 = scalar_lea.smem [#allocation19], 2
    %120 = sst [smem:[%s119]] 4
    %s121 = scalar_lea.smem [#allocation19], 3
    %122 = sst [smem:[%s121]] 64
    %s123 = scalar_lea.smem [#allocation19], 4
    %124 = sst [smem:[%s123]] 128
    %s125 = scalar_lea.smem [#allocation19], 5
    %126 = sst [smem:[%s125]] 2
    %s127 = scalar_lea.smem [#allocation19], 6
    %128 = sst [smem:[%s127]] 256
    %s129 = scalar_lea.smem [#allocation19], 7
    %130 = sst [smem:[%s129]] 64
    %s131 = scalar_lea.smem [#allocation19], 8
    %132 = sst [smem:[%s131]] 4
    %134 = dma.general %s4, 73728, %s113, [#allocation5], [#allocation18], [#allocation19], %s111, 0
    %v135 = vld [vmem:[#allocation6] sm:$0xff]
    %v136 = vld [vmem:[#allocation6 + $0x8] sm:$0xff]
    %v137 = vld [vmem:[#allocation6 + $0x10] sm:$0xff]
    %v138 = vld [vmem:[#allocation6 + $0x18] sm:$0xff]
    %v139 = vld [vmem:[#allocation6 + $0x20] sm:$0xff]
    %v140 = vld [vmem:[#allocation6 + $0x28] sm:$0xff]
    %v141 = vld [vmem:[#allocation6 + $0x30] sm:$0xff]
    %v142 = vld [vmem:[#allocation6 + $0x38] sm:$0xff]
    %v143 = vld [vmem:[#allocation6 + $0x40] sm:$0xff]
    %v144 = vld [vmem:[#allocation6 + $0x48] sm:$0xff]
    %v145 = vld [vmem:[#allocation6 + $0x50] sm:$0xff]
    %v146 = vld [vmem:[#allocation6 + $0x58] sm:$0xff]
    %v147 = vld [vmem:[#allocation6 + $0x60] sm:$0xff]
    %v148 = vld [vmem:[#allocation6 + $0x68] sm:$0xff]
    %v149 = vld [vmem:[#allocation6 + $0x70] sm:$0xff]
    %v150 = vld [vmem:[#allocation6 + $0x78] sm:$0xff]
    %v151 = vld [vmem:[#allocation6 + $0x80] sm:$0xff]
    %v152 = vld [vmem:[#allocation6 + $0x88] sm:$0xff]
    %v153 = vld [vmem:[#allocation6 + $0x90] sm:$0xff]
    %v154 = vld [vmem:[#allocation6 + $0x98] sm:$0xff]
    %v155 = vld [vmem:[#allocation6 + $0xa0] sm:$0xff]
    %v156 = vld [vmem:[#allocation6 + $0xa8] sm:$0xff]
    %v157 = vld [vmem:[#allocation6 + $0xb0] sm:$0xff]
    %v158 = vld [vmem:[#allocation6 + $0xb8] sm:$0xff]
    %v159 = vld [vmem:[#allocation6 + $0xc0] sm:$0xff]
    %v160 = vld [vmem:[#allocation6 + $0xc8] sm:$0xff]
    %v161 = vld [vmem:[#allocation6 + $0xd0] sm:$0xff]
    %v162 = vld [vmem:[#allocation6 + $0xd8] sm:$0xff]
    %v163 = vld [vmem:[#allocation6 + $0xe0] sm:$0xff]
    %v164 = vld [vmem:[#allocation6 + $0xe8] sm:$0xff]
    %v165 = vld [vmem:[#allocation6 + $0xf0] sm:$0xff]
    %v166 = vld [vmem:[#allocation6 + $0xf8] sm:$0xff]
    %v167 = vld [vmem:[#allocation6 + $0x100] sm:$0xff]
    %v168 = vld [vmem:[#allocation6 + $0x108] sm:$0xff]
    %v169 = vld [vmem:[#allocation6 + $0x110] sm:$0xff]
    %v170 = vld [vmem:[#allocation6 + $0x118] sm:$0xff]
    %v171 = vld [vmem:[#allocation6 + $0x120] sm:$0xff]
    %v172 = vld [vmem:[#allocation6 + $0x128] sm:$0xff]
    %v173 = vld [vmem:[#allocation6 + $0x130] sm:$0xff]
    %v174 = vld [vmem:[#allocation6 + $0x138] sm:$0xff]
    %v175 = vld [vmem:[#allocation6 + $0x140] sm:$0xff]
    %v176 = vld [vmem:[#allocation6 + $0x148] sm:$0xff]
    %v177 = vld [vmem:[#allocation6 + $0x150] sm:$0xff]
    %v178 = vld [vmem:[#allocation6 + $0x158] sm:$0xff]
    %v179 = vld [vmem:[#allocation6 + $0x160] sm:$0xff]
    %v180 = vld [vmem:[#allocation6 + $0x168] sm:$0xff]
    %v181 = vld [vmem:[#allocation6 + $0x170] sm:$0xff]
    %v182 = vld [vmem:[#allocation6 + $0x178] sm:$0xff]
    %v183 = vld [vmem:[#allocation6 + $0x180] sm:$0xff]
    %v184 = vld [vmem:[#allocation6 + $0x188] sm:$0xff]
    %v185 = vld [vmem:[#allocation6 + $0x190] sm:$0xff]
    %v186 = vld [vmem:[#allocation6 + $0x198] sm:$0xff]
    %v187 = vld [vmem:[#allocation6 + $0x1a0] sm:$0xff]
    %v188 = vld [vmem:[#allocation6 + $0x1a8] sm:$0xff]
    %v189 = vld [vmem:[#allocation6 + $0x1b0] sm:$0xff]
    %v190 = vld [vmem:[#allocation6 + $0x1b8] sm:$0xff]
    %v191 = vld [vmem:[#allocation6 + $0x1c0] sm:$0xff]
    %v192 = vld [vmem:[#allocation6 + $0x1c8] sm:$0xff]
    %v193 = vld [vmem:[#allocation6 + $0x1d0] sm:$0xff]
    %v194 = vld [vmem:[#allocation6 + $0x1d8] sm:$0xff]
    %v195 = vld [vmem:[#allocation6 + $0x1e0] sm:$0xff]
    %v196 = vld [vmem:[#allocation6 + $0x1e8] sm:$0xff]
    %v197 = vld [vmem:[#allocation6 + $0x1f0] sm:$0xff]
    %v198 = vld [vmem:[#allocation6 + $0x1f8] sm:$0xff]
    %v199 = vpack.c.bf16 %v139, %v135
    %v200 = vpack.c.bf16 %v140, %v136
    %v201 = vpack.c.bf16 %v141, %v137
    %v202 = vpack.c.bf16 %v142, %v138
    %v203 = vpack.c.bf16 %v147, %v143
    %v204 = vpack.c.bf16 %v148, %v144
    %v205 = vpack.c.bf16 %v149, %v145
    %v206 = vpack.c.bf16 %v150, %v146
    %v207 = vpack.c.bf16 %v155, %v151
    %v208 = vpack.c.bf16 %v156, %v152
    %v209 = vpack.c.bf16 %v157, %v153
    %v210 = vpack.c.bf16 %v158, %v154
    %v211 = vpack.c.bf16 %v163, %v159
    %v212 = vpack.c.bf16 %v164, %v160
    %v213 = vpack.c.bf16 %v165, %v161
    %v214 = vpack.c.bf16 %v166, %v162
    %v215 = vpack.c.bf16 %v171, %v167
    %v216 = vpack.c.bf16 %v172, %v168
    %v217 = vpack.c.bf16 %v173, %v169
    %v218 = vpack.c.bf16 %v174, %v170
    %v219 = vpack.c.bf16 %v179, %v175
    %v220 = vpack.c.bf16 %v180, %v176
    %v221 = vpack.c.bf16 %v181, %v177
    %v222 = vpack.c.bf16 %v182, %v178
    %v223 = vpack.c.bf16 %v187, %v183
    %v224 = vpack.c.bf16 %v188, %v184
    %v225 = vpack.c.bf16 %v189, %v185
    %v226 = vpack.c.bf16 %v190, %v186
    %v227 = vpack.c.bf16 %v195, %v191
    %v228 = vpack.c.bf16 %v196, %v192
    %v229 = vpack.c.bf16 %v197, %v193
    %v230 = vpack.c.bf16 %v198, %v194
    %v231 = vld [vmem:[#allocation9] sm:$0xff]
    %v232 = vld [vmem:[#allocation9 + $0x8] sm:$0xff]
    %v233 = vld [vmem:[#allocation9 + $0x10] sm:$0xff]
    %v234 = vld [vmem:[#allocation9 + $0x18] sm:$0xff]
    %v235 = vld [vmem:[#allocation9 + $0x20] sm:$0xff]
    %v236 = vld [vmem:[#allocation9 + $0x28] sm:$0xff]
    %v237 = vld [vmem:[#allocation9 + $0x30] sm:$0xff]
    %v238 = vld [vmem:[#allocation9 + $0x38] sm:$0xff]
    %v239 = vld [vmem:[#allocation9 + $0x40] sm:$0xff]
    %v240 = vld [vmem:[#allocation9 + $0x48] sm:$0xff]
    %v241 = vld [vmem:[#allocation9 + $0x50] sm:$0xff]
    %v242 = vld [vmem:[#allocation9 + $0x58] sm:$0xff]
    %v243 = vld [vmem:[#allocation9 + $0x60] sm:$0xff]
    %v244 = vld [vmem:[#allocation9 + $0x68] sm:$0xff]
    %v245 = vld [vmem:[#allocation9 + $0x70] sm:$0xff]
    %v246 = vld [vmem:[#allocation9 + $0x78] sm:$0xff]
    %v247 = vld [vmem:[#allocation9 + $0x80] sm:$0xff]
    %v248 = vld [vmem:[#allocation9 + $0x88] sm:$0xff]
    %v249 = vld [vmem:[#allocation9 + $0x90] sm:$0xff]
    %v250 = vld [vmem:[#allocation9 + $0x98] sm:$0xff]
    %v251 = vld [vmem:[#allocation9 + $0xa0] sm:$0xff]
    %v252 = vld [vmem:[#allocation9 + $0xa8] sm:$0xff]
    %v253 = vld [vmem:[#allocation9 + $0xb0] sm:$0xff]
    %v254 = vld [vmem:[#allocation9 + $0xb8] sm:$0xff]
    %v255 = vld [vmem:[#allocation9 + $0xc0] sm:$0xff]
    %v256 = vld [vmem:[#allocation9 + $0xc8] sm:$0xff]
    %v257 = vld [vmem:[#allocation9 + $0xd0] sm:$0xff]
    %v258 = vld [vmem:[#allocation9 + $0xd8] sm:$0xff]
    %v259 = vld [vmem:[#allocation9 + $0xe0] sm:$0xff]
    %v260 = vld [vmem:[#allocation9 + $0xe8] sm:$0xff]
    %v261 = vld [vmem:[#allocation9 + $0xf0] sm:$0xff]
    %v262 = vld [vmem:[#allocation9 + $0xf8] sm:$0xff]
    %v263 = vld [vmem:[#allocation9 + $0x100] sm:$0xff]
    %v264 = vld [vmem:[#allocation9 + $0x108] sm:$0xff]
    %v265 = vld [vmem:[#allocation9 + $0x110] sm:$0xff]
    %v266 = vld [vmem:[#allocation9 + $0x118] sm:$0xff]
    %v267 = vld [vmem:[#allocation9 + $0x120] sm:$0xff]
    %v268 = vld [vmem:[#allocation9 + $0x128] sm:$0xff]
    %v269 = vld [vmem:[#allocation9 + $0x130] sm:$0xff]
    %v270 = vld [vmem:[#allocation9 + $0x138] sm:$0xff]
    %v271 = vld [vmem:[#allocation9 + $0x140] sm:$0xff]
    %v272 = vld [vmem:[#allocation9 + $0x148] sm:$0xff]
    %v273 = vld [vmem:[#allocation9 + $0x150] sm:$0xff]
    %v274 = vld [vmem:[#allocation9 + $0x158] sm:$0xff]
    %v275 = vld [vmem:[#allocation9 + $0x160] sm:$0xff]
    %v276 = vld [vmem:[#allocation9 + $0x168] sm:$0xff]
    %v277 = vld [vmem:[#allocation9 + $0x170] sm:$0xff]
    %v278 = vld [vmem:[#allocation9 + $0x178] sm:$0xff]
    %v279 = vld [vmem:[#allocation9 + $0x180] sm:$0xff]
    %v280 = vld [vmem:[#allocation9 + $0x188] sm:$0xff]
    %v281 = vld [vmem:[#allocation9 + $0x190] sm:$0xff]
    %v282 = vld [vmem:[#allocation9 + $0x198] sm:$0xff]
    %v283 = vld [vmem:[#allocation9 + $0x1a0] sm:$0xff]
    %v284 = vld [vmem:[#allocation9 + $0x1a8] sm:$0xff]
    %v285 = vld [vmem:[#allocation9 + $0x1b0] sm:$0xff]
    %v286 = vld [vmem:[#allocation9 + $0x1b8] sm:$0xff]
    %v287 = vld [vmem:[#allocation9 + $0x1c0] sm:$0xff]
    %v288 = vld [vmem:[#allocation9 + $0x1c8] sm:$0xff]
    %v289 = vld [vmem:[#allocation9 + $0x1d0] sm:$0xff]
    %v290 = vld [vmem:[#allocation9 + $0x1d8] sm:$0xff]
    %v291 = vld [vmem:[#allocation9 + $0x1e0] sm:$0xff]
    %v292 = vld [vmem:[#allocation9 + $0x1e8] sm:$0xff]
    %v293 = vld [vmem:[#allocation9 + $0x1f0] sm:$0xff]
    %v294 = vld [vmem:[#allocation9 + $0x1f8] sm:$0xff]
    %v359 = vunpack.c.l.b16 %v231
    %v360 = vunpack.c.h.b16 %v231
    %v361 = vunpack.c.l.b16 %v232
    %v362 = vunpack.c.h.b16 %v232
    %v363 = vunpack.c.l.b16 %v233
    %v364 = vunpack.c.h.b16 %v233
    %v365 = vunpack.c.l.b16 %v234
    %v366 = vunpack.c.h.b16 %v234
    %v367 = vunpack.c.l.b16 %v235
    %v368 = vunpack.c.h.b16 %v235
    %v369 = vunpack.c.l.b16 %v236
    %v370 = vunpack.c.h.b16 %v236
    %v371 = vunpack.c.l.b16 %v237
    %v372 = vunpack.c.h.b16 %v237
    %v373 = vunpack.c.l.b16 %v238
    %v374 = vunpack.c.h.b16 %v238
    %v375 = vunpack.c.l.b16 %v239
    %v376 = vunpack.c.h.b16 %v239
    %v377 = vunpack.c.l.b16 %v240
    %v378 = vunpack.c.h.b16 %v240
    %v379 = vunpack.c.l.b16 %v241
    %v380 = vunpack.c.h.b16 %v241
    %v381 = vunpack.c.l.b16 %v242
    %v382 = vunpack.c.h.b16 %v242
    %v383 = vunpack.c.l.b16 %v243
    %v384 = vunpack.c.h.b16 %v243
    %v385 = vunpack.c.l.b16 %v244
    %v386 = vunpack.c.h.b16 %v244
    %v387 = vunpack.c.l.b16 %v245
    %v388 = vunpack.c.h.b16 %v245
    %v389 = vunpack.c.l.b16 %v246
    %v390 = vunpack.c.h.b16 %v246
    %v391 = vunpack.c.l.b16 %v247
    %v392 = vunpack.c.h.b16 %v247
    %v393 = vunpack.c.l.b16 %v248
    %v394 = vunpack.c.h.b16 %v248
    %v395 = vunpack.c.l.b16 %v249
    %v396 = vunpack.c.h.b16 %v249
    %v397 = vunpack.c.l.b16 %v250
    %v398 = vunpack.c.h.b16 %v250
    %v399 = vunpack.c.l.b16 %v251
    %v400 = vunpack.c.h.b16 %v251
    %v401 = vunpack.c.l.b16 %v252
    %v402 = vunpack.c.h.b16 %v252
    %v403 = vunpack.c.l.b16 %v253
    %v404 = vunpack.c.h.b16 %v253
    %v405 = vunpack.c.l.b16 %v254
    %v406 = vunpack.c.h.b16 %v254
    %v407 = vunpack.c.l.b16 %v255
    %v408 = vunpack.c.h.b16 %v255
    %v409 = vunpack.c.l.b16 %v256
    %v410 = vunpack.c.h.b16 %v256
    %v411 = vunpack.c.l.b16 %v257
    %v412 = vunpack.c.h.b16 %v257
    %v413 = vunpack.c.l.b16 %v258
    %v414 = vunpack.c.h.b16 %v258
    %v415 = vunpack.c.l.b16 %v259
    %v416 = vunpack.c.h.b16 %v259
    %v417 = vunpack.c.l.b16 %v260
    %v418 = vunpack.c.h.b16 %v260
    %v419 = vunpack.c.l.b16 %v261
    %v420 = vunpack.c.h.b16 %v261
    %v421 = vunpack.c.l.b16 %v262
    %v422 = vunpack.c.h.b16 %v262
    %v423 = vunpack.c.l.b16 %v263
    %v424 = vunpack.c.h.b16 %v263
    %v425 = vunpack.c.l.b16 %v264
    %v426 = vunpack.c.h.b16 %v264
    %v427 = vunpack.c.l.b16 %v265
    %v428 = vunpack.c.h.b16 %v265
    %v429 = vunpack.c.l.b16 %v266
    %v430 = vunpack.c.h.b16 %v266
    %v431 = vunpack.c.l.b16 %v267
    %v432 = vunpack.c.h.b16 %v267
    %v433 = vunpack.c.l.b16 %v268
    %v434 = vunpack.c.h.b16 %v268
    %v435 = vunpack.c.l.b16 %v269
    %v436 = vunpack.c.h.b16 %v269
    %v437 = vunpack.c.l.b16 %v270
    %v438 = vunpack.c.h.b16 %v270
    %v439 = vunpack.c.l.b16 %v271
    %v440 = vunpack.c.h.b16 %v271
    %v441 = vunpack.c.l.b16 %v272
    %v442 = vunpack.c.h.b16 %v272
    %v443 = vunpack.c.l.b16 %v273
    %v444 = vunpack.c.h.b16 %v273
    %v445 = vunpack.c.l.b16 %v274
    %v446 = vunpack.c.h.b16 %v274
    %v447 = vunpack.c.l.b16 %v275
    %v448 = vunpack.c.h.b16 %v275
    %v449 = vunpack.c.l.b16 %v276
    %v450 = vunpack.c.h.b16 %v276
    %v451 = vunpack.c.l.b16 %v277
    %v452 = vunpack.c.h.b16 %v277
    %v453 = vunpack.c.l.b16 %v278
    %v454 = vunpack.c.h.b16 %v278
    %v455 = vunpack.c.l.b16 %v279
    %v456 = vunpack.c.h.b16 %v279
    %v457 = vunpack.c.l.b16 %v280
    %v458 = vunpack.c.h.b16 %v280
    %v459 = vunpack.c.l.b16 %v281
    %v460 = vunpack.c.h.b16 %v281
    %v461 = vunpack.c.l.b16 %v282
    %v462 = vunpack.c.h.b16 %v282
    %v463 = vunpack.c.l.b16 %v283
    %v464 = vunpack.c.h.b16 %v283
    %v465 = vunpack.c.l.b16 %v284
    %v466 = vunpack.c.h.b16 %v284
    %v467 = vunpack.c.l.b16 %v285
    %v468 = vunpack.c.h.b16 %v285
    %v469 = vunpack.c.l.b16 %v286
    %v470 = vunpack.c.h.b16 %v286
    %v471 = vunpack.c.l.b16 %v287
    %v472 = vunpack.c.h.b16 %v287
    %v473 = vunpack.c.l.b16 %v288
    %v474 = vunpack.c.h.b16 %v288
    %v475 = vunpack.c.l.b16 %v289
    %v476 = vunpack.c.h.b16 %v289
    %v477 = vunpack.c.l.b16 %v290
    %v478 = vunpack.c.h.b16 %v290
    %v479 = vunpack.c.l.b16 %v291
    %v480 = vunpack.c.h.b16 %v291
    %v481 = vunpack.c.l.b16 %v292
    %v482 = vunpack.c.h.b16 %v292
    %v483 = vunpack.c.l.b16 %v293
    %v484 = vunpack.c.h.b16 %v293
    %v485 = vunpack.c.l.b16 %v294
    %v486 = vunpack.c.h.b16 %v294
    %v487 = vpack.c.b16 %v361, %v359
    %v488 = vpack.c.b16 %v362, %v360
    %v489 = vpack.c.b16 %v365, %v363
    %v490 = vpack.c.b16 %v366, %v364
    %v491 = vpack.c.b16 %v369, %v367
    %v492 = vpack.c.b16 %v370, %v368
    %v493 = vpack.c.b16 %v373, %v371
    %v494 = vpack.c.b16 %v374, %v372
    %v495 = vpack.c.b16 %v377, %v375
    %v496 = vpack.c.b16 %v378, %v376
    %v497 = vpack.c.b16 %v381, %v379
    %v498 = vpack.c.b16 %v382, %v380
    %v499 = vpack.c.b16 %v385, %v383
    %v500 = vpack.c.b16 %v386, %v384
    %v501 = vpack.c.b16 %v389, %v387
    %v502 = vpack.c.b16 %v390, %v388
    %v503 = vpack.c.b16 %v393, %v391
    %v504 = vpack.c.b16 %v394, %v392
    %v505 = vpack.c.b16 %v397, %v395
    %v506 = vpack.c.b16 %v398, %v396
    %v507 = vpack.c.b16 %v401, %v399
    %v508 = vpack.c.b16 %v402, %v400
    %v509 = vpack.c.b16 %v405, %v403
    %v510 = vpack.c.b16 %v406, %v404
    %v511 = vpack.c.b16 %v409, %v407
    %v512 = vpack.c.b16 %v410, %v408
    %v513 = vpack.c.b16 %v413, %v411
    %v514 = vpack.c.b16 %v414, %v412
    %v515 = vpack.c.b16 %v417, %v415
    %v516 = vpack.c.b16 %v418, %v416
    %v517 = vpack.c.b16 %v421, %v419
    %v518 = vpack.c.b16 %v422, %v420
    %v519 = vpack.c.b16 %v425, %v423
    %v520 = vpack.c.b16 %v426, %v424
    %v521 = vpack.c.b16 %v429, %v427
    %v522 = vpack.c.b16 %v430, %v428
    %v523 = vpack.c.b16 %v433, %v431
    %v524 = vpack.c.b16 %v434, %v432
    %v525 = vpack.c.b16 %v437, %v435
    %v526 = vpack.c.b16 %v438, %v436
    %v527 = vpack.c.b16 %v441, %v439
    %v528 = vpack.c.b16 %v442, %v440
    %v529 = vpack.c.b16 %v445, %v443
    %v530 = vpack.c.b16 %v446, %v444
    %v531 = vpack.c.b16 %v449, %v447
    %v532 = vpack.c.b16 %v450, %v448
    %v533 = vpack.c.b16 %v453, %v451
    %v534 = vpack.c.b16 %v454, %v452
    %v535 = vpack.c.b16 %v457, %v455
    %v536 = vpack.c.b16 %v458, %v456
    %v537 = vpack.c.b16 %v461, %v459
    %v538 = vpack.c.b16 %v462, %v460
    %v539 = vpack.c.b16 %v465, %v463
    %v540 = vpack.c.b16 %v466, %v464
    %v541 = vpack.c.b16 %v469, %v467
    %v542 = vpack.c.b16 %v470, %v468
    %v543 = vpack.c.b16 %v473, %v471
    %v544 = vpack.c.b16 %v474, %v472
    %v545 = vpack.c.b16 %v477, %v475
    %v546 = vpack.c.b16 %v478, %v476
    %v547 = vpack.c.b16 %v481, %v479
    %v548 = vpack.c.b16 %v482, %v480
    %v549 = vpack.c.b16 %v485, %v483
    %v550 = vpack.c.b16 %v486, %v484
    %615 = vmatprep.subr.bf16.mxu0 %v488
    %616 = vmatpush1.bf16.msra.mxu0 %v487
    %617 = vmatprep.subr.bf16.mxu0 %v490
    %618 = vmatpush1.bf16.msra.mxu0 %v489
    %619 = vmatprep.subr.bf16.mxu0 %v492
    %620 = vmatpush1.bf16.msra.mxu0 %v491
    %621 = vmatprep.subr.bf16.mxu0 %v494
    %622 = vmatpush1.bf16.msra.mxu0 %v493
    %623 = vmatprep.subr.bf16.mxu0 %v496
    %624 = vmatpush1.bf16.msra.mxu0 %v495
    %625 = vmatprep.subr.bf16.mxu0 %v498
    %626 = vmatpush1.bf16.msra.mxu0 %v497
    %627 = vmatprep.subr.bf16.mxu0 %v500
    %628 = vmatpush1.bf16.msra.mxu0 %v499
    %629 = vmatprep.subr.bf16.mxu0 %v502
    %630 = vmatpush1.bf16.msra.mxu0 %v501
    %631 = vmatprep.subr.bf16.mxu0 %v504
    %632 = vmatpush1.bf16.msra.mxu0 %v503
    %633 = vmatprep.subr.bf16.mxu0 %v506
    %634 = vmatpush1.bf16.msra.mxu0 %v505
    %635 = vmatprep.subr.bf16.mxu0 %v508
    %636 = vmatpush1.bf16.msra.mxu0 %v507
    %637 = vmatprep.subr.bf16.mxu0 %v510
    %638 = vmatpush1.bf16.msra.mxu0 %v509
    %639 = vmatprep.subr.bf16.mxu0 %v512
    %640 = vmatpush1.bf16.msra.mxu0 %v511
    %641 = vmatprep.subr.bf16.mxu0 %v514
    %642 = vmatpush1.bf16.msra.mxu0 %v513
    %643 = vmatprep.subr.bf16.mxu0 %v516
    %644 = vmatpush1.bf16.msra.mxu0 %v515
    %645 = vmatprep.subr.bf16.mxu0 %v518
    %646 = vmatpush1.bf16.msra.mxu0 %v517
    %647 = vmatprep.mubr.bf16.mxu0 %v200
    %648 = vmatmul.mubr.bf16.gmra.mrb[0].mxu0 %v199
    %v649 = vpop.f32.mrb[0].mxu0
    %v650 = vadd.f32 0.0, %v649
    %v651 = vpop.f32.mrb[0].mxu0
    %v652 = vadd.f32 0.0, %v651
    %v653 = vpop.f32.mrb[0].mxu0
    %v654 = vadd.f32 0.0, %v653
    %v655 = vpop.f32.mrb[0].mxu0
    %v656 = vadd.f32 0.0, %v655
    %657 = vmatprep.mubr.bf16.mxu0 %v204
    %658 = vmatmul.mubr.bf16.gmra.mrb[0].mxu0 %v203
    %v659 = vpop.f32.mrb[0].mxu0
    %v660 = vadd.f32 0.0, %v659
    %v661 = vpop.f32.mrb[0].mxu0
    %v662 = vadd.f32 0.0, %v661
    %v663 = vpop.f32.mrb[0].mxu0
    %v664 = vadd.f32 0.0, %v663
    %v665 = vpop.f32.mrb[0].mxu0
    %v666 = vadd.f32 0.0, %v665
    %667 = vmatprep.mubr.bf16.mxu0 %v208
    %668 = vmatmul.mubr.bf16.gmra.mrb[0].mxu0 %v207
    %v669 = vpop.f32.mrb[0].mxu0
    %v670 = vadd.f32 0.0, %v669
    %v671 = vpop.f32.mrb[0].mxu0
    %v672 = vadd.f32 0.0, %v671
    %v673 = vpop.f32.mrb[0].mxu0
    %v674 = vadd.f32 0.0, %v673
    %v675 = vpop.f32.mrb[0].mxu0
    %v676 = vadd.f32 0.0, %v675
    %677 = vmatprep.mubr.bf16.mxu0 %v212
    %678 = vmatmul.mubr.bf16.gmra.mrb[0].mxu0 %v211
    %v679 = vpop.f32.mrb[0].mxu0
    %v680 = vadd.f32 0.0, %v679
    %v681 = vpop.f32.mrb[0].mxu0
    %v682 = vadd.f32 0.0, %v681
    %v683 = vpop.f32.mrb[0].mxu0
    %v684 = vadd.f32 0.0, %v683
    %v685 = vpop.f32.mrb[0].mxu0
    %v686 = vadd.f32 0.0, %v685
    %687 = vmatprep.mubr.bf16.mxu0 %v216
    %688 = vmatmul.mubr.bf16.gmra.mrb[0].mxu0 %v215
    %v689 = vpop.f32.mrb[0].mxu0
    %v690 = vadd.f32 0.0, %v689
    %v691 = vpop.f32.mrb[0].mxu0
    %v692 = vadd.f32 0.0, %v691
    %v693 = vpop.f32.mrb[0].mxu0
    %v694 = vadd.f32 0.0, %v693
    %v695 = vpop.f32.mrb[0].mxu0
    %v696 = vadd.f32 0.0, %v695
    %697 = vmatprep.mubr.bf16.mxu0 %v220
    %698 = vmatmul.mubr.bf16.gmra.mrb[0].mxu0 %v219
    %v699 = vpop.f32.mrb[0].mxu0
    %v700 = vadd.f32 0.0, %v699
    %v701 = vpop.f32.mrb[0].mxu0
    %v702 = vadd.f32 0.0, %v701
    %v703 = vpop.f32.mrb[0].mxu0
    %v704 = vadd.f32 0.0, %v703
    %v705 = vpop.f32.mrb[0].mxu0
    %v706 = vadd.f32 0.0, %v705
    %707 = vmatprep.mubr.bf16.mxu0 %v224
    %708 = vmatmul.mubr.bf16.gmra.mrb[0].mxu0 %v223
    %v709 = vpop.f32.mrb[0].mxu0
    %v710 = vadd.f32 0.0, %v709
    %v711 = vpop.f32.mrb[0].mxu0
    %v712 = vadd.f32 0.0, %v711
    %v713 = vpop.f32.mrb[0].mxu0
    %v714 = vadd.f32 0.0, %v713
    %v715 = vpop.f32.mrb[0].mxu0
    %v716 = vadd.f32 0.0, %v715
    %717 = vmatprep.mubr.bf16.mxu0 %v228
    %718 = vmatmul.mubr.bf16.gmra.mrb[0].mxu0 %v227
    %v719 = vpop.f32.mrb[0].mxu0
    %v720 = vadd.f32 0.0, %v719
    %v721 = vpop.f32.mrb[0].mxu0
    %v722 = vadd.f32 0.0, %v721
    %v723 = vpop.f32.mrb[0].mxu0
    %v724 = vadd.f32 0.0, %v723
    %v725 = vpop.f32.mrb[0].mxu0
    %v726 = vadd.f32 0.0, %v725
    %727 = vdwg.mxu0
    %728 = vmatprep.subr.bf16.mxu0 %v520
    %729 = vmatpush1.bf16.msra.mxu0 %v519
    %730 = vmatprep.subr.bf16.mxu0 %v522
    %731 = vmatpush1.bf16.msra.mxu0 %v521
    %732 = vmatprep.subr.bf16.mxu0 %v524
    %733 = vmatpush1.bf16.msra.mxu0 %v523
    %734 = vmatprep.subr.bf16.mxu0 %v526
    %735 = vmatpush1.bf16.msra.mxu0 %v525
    %736 = vmatprep.subr.bf16.mxu0 %v528
    %737 = vmatpush1.bf16.msra.mxu0 %v527
    %738 = vmatprep.subr.bf16.mxu0 %v530
    %739 = vmatpush1.bf16.msra.mxu0 %v529
    %740 = vmatprep.subr.bf16.mxu0 %v532
    %741 = vmatpush1.bf16.msra.mxu0 %v531
    %742 = vmatprep.subr.bf16.mxu0 %v534
    %743 = vmatpush1.bf16.msra.mxu0 %v533
    %744 = vmatprep.subr.bf16.mxu0 %v536
    %745 = vmatpush1.bf16.msra.mxu0 %v535
    %746 = vmatprep.subr.bf16.mxu0 %v538
    %747 = vmatpush1.bf16.msra.mxu0 %v537
    %748 = vmatprep.subr.bf16.mxu0 %v540
    %749 = vmatpush1.bf16.msra.mxu0 %v539
    %750 = vmatprep.subr.bf16.mxu0 %v542
    %751 = vmatpush1.bf16.msra.mxu0 %v541
    %752 = vmatprep.subr.bf16.mxu0 %v544
    %753 = vmatpush1.bf16.msra.mxu0 %v543
    %754 = vmatprep.subr.bf16.mxu0 %v546
    %755 = vmatpush1.bf16.msra.mxu0 %v545
    %756 = vmatprep.subr.bf16.mxu0 %v548
    %757 = vmatpush1.bf16.msra.mxu0 %v547
    %758 = vmatprep.subr.bf16.mxu0 %v550
    %759 = vmatpush1.bf16.msra.mxu0 %v549
    %760 = vmatprep.mubr.bf16.mxu0 %v202
    %761 = vmatmul.mubr.bf16.gmra.mrb[0].mxu0 %v201
    %v762 = vpop.f32.mrb[0].mxu0
    %v763 = vadd.f32 %v650, %v762
    %v764 = vpop.f32.mrb[0].mxu0
    %v765 = vadd.f32 %v652, %v764
    %v766 = vpop.f32.mrb[0].mxu0
    %v767 = vadd.f32 %v654, %v766
    %v768 = vpop.f32.mrb[0].mxu0
    %v769 = vadd.f32 %v656, %v768
    %770 = vmatprep.mubr.bf16.mxu0 %v206
    %771 = vmatmul.mubr.bf16.gmra.mrb[0].mxu0 %v205
    %v772 = vpop.f32.mrb[0].mxu0
    %v773 = vadd.f32 %v660, %v772
    %v774 = vpop.f32.mrb[0].mxu0
    %v775 = vadd.f32 %v662, %v774
    %v776 = vpop.f32.mrb[0].mxu0
    %v777 = vadd.f32 %v664, %v776
    %v778 = vpop.f32.mrb[0].mxu0
    %v779 = vadd.f32 %v666, %v778
    %780 = vmatprep.mubr.bf16.mxu0 %v210
    %781 = vmatmul.mubr.bf16.gmra.mrb[0].mxu0 %v209
    %v782 = vpop.f32.mrb[0].mxu0
    %v783 = vadd.f32 %v670, %v782
    %v784 = vpop.f32.mrb[0].mxu0
    %v785 = vadd.f32 %v672, %v784
    %v786 = vpop.f32.mrb[0].mxu0
    %v787 = vadd.f32 %v674, %v786
    %v788 = vpop.f32.mrb[0].mxu0
    %v789 = vadd.f32 %v676, %v788
    %790 = vmatprep.mubr.bf16.mxu0 %v214
    %791 = vmatmul.mubr.bf16.gmra.mrb[0].mxu0 %v213
    %v792 = vpop.f32.mrb[0].mxu0
    %v793 = vadd.f32 %v680, %v792
    %v794 = vpop.f32.mrb[0].mxu0
    %v795 = vadd.f32 %v682, %v794
    %v796 = vpop.f32.mrb[0].mxu0
    %v797 = vadd.f32 %v684, %v796
    %v798 = vpop.f32.mrb[0].mxu0
    %v799 = vadd.f32 %v686, %v798
    %800 = vmatprep.mubr.bf16.mxu0 %v218
    %801 = vmatmul.mubr.bf16.gmra.mrb[0].mxu0 %v217
    %v802 = vpop.f32.mrb[0].mxu0
    %v803 = vadd.f32 %v690, %v802
    %v804 = vpop.f32.mrb[0].mxu0
    %v805 = vadd.f32 %v692, %v804
    %v806 = vpop.f32.mrb[0].mxu0
    %v807 = vadd.f32 %v694, %v806
    %v808 = vpop.f32.mrb[0].mxu0
    %v809 = vadd.f32 %v696, %v808
    %810 = vmatprep.mubr.bf16.mxu0 %v222
    %811 = vmatmul.mubr.bf16.gmra.mrb[0].mxu0 %v221
    %v812 = vpop.f32.mrb[0].mxu0
    %v813 = vadd.f32 %v700, %v812
    %v814 = vpop.f32.mrb[0].mxu0
    %v815 = vadd.f32 %v702, %v814
    %v816 = vpop.f32.mrb[0].mxu0
    %v817 = vadd.f32 %v704, %v816
    %v818 = vpop.f32.mrb[0].mxu0
    %v819 = vadd.f32 %v706, %v818
    %820 = vmatprep.mubr.bf16.mxu0 %v226
    %821 = vmatmul.mubr.bf16.gmra.mrb[0].mxu0 %v225
    %v822 = vpop.f32.mrb[0].mxu0
    %v823 = vadd.f32 %v710, %v822
    %v824 = vpop.f32.mrb[0].mxu0
    %v825 = vadd.f32 %v712, %v824
    %v826 = vpop.f32.mrb[0].mxu0
    %v827 = vadd.f32 %v714, %v826
    %v828 = vpop.f32.mrb[0].mxu0
    %v829 = vadd.f32 %v716, %v828
    %830 = vmatprep.mubr.bf16.mxu0 %v230
    %831 = vmatmul.mubr.bf16.gmra.mrb[0].mxu0 %v229
    %v832 = vpop.f32.mrb[0].mxu0
    %v833 = vadd.f32 %v720, %v832
    %v834 = vpop.f32.mrb[0].mxu0
    %v835 = vadd.f32 %v722, %v834
    %v836 = vpop.f32.mrb[0].mxu0
    %v837 = vadd.f32 %v724, %v836
    %v838 = vpop.f32.mrb[0].mxu0
    %v839 = vadd.f32 %v726, %v838
    %840 = vdwg.mxu0
    %v841 = vld [vmem:[#allocation11] sm:$0x3]
    %v842 = vld [vmem:[#allocation12] sm:$0x3]
    %v843 = vadd.f32 %v763, %v767
    %v844 = vadd.f32 %v843, %v773
    %v845 = vadd.f32 %v844, %v777
    %v846 = vadd.f32 %v845, %v783
    %v847 = vadd.f32 %v846, %v787
    %v848 = vadd.f32 %v847, %v793
    %v849 = vadd.f32 %v848, %v797
    %v850 = vadd.f32 %v849, %v803
    %v851 = vadd.f32 %v850, %v807
    %v852 = vadd.f32 %v851, %v813
    %v853 = vadd.f32 %v852, %v817
    %v854 = vadd.f32 %v853, %v823
    %v855 = vadd.f32 %v854, %v827
    %v856 = vadd.f32 %v855, %v833
    %v857 = vadd.f32 %v856, %v837
    %v858 = vrot.slane %v857, 4
    %v859 = vadd.f32 %v857, %v858
    %v860 = vrot.slane %v859, 2
    %v861 = vadd.f32 %v859, %v860
    %v862 = vrot.slane %v861, 1
    %v863 = vadd.f32 %v861, %v862
    %v864 = vadd.f32 %v765, %v769
    %v865 = vadd.f32 %v864, %v775
    %v866 = vadd.f32 %v865, %v779
    %v867 = vadd.f32 %v866, %v785
    %v868 = vadd.f32 %v867, %v789
    %v869 = vadd.f32 %v868, %v795
    %v870 = vadd.f32 %v869, %v799
    %v871 = vadd.f32 %v870, %v805
    %v872 = vadd.f32 %v871, %v809
    %v873 = vadd.f32 %v872, %v815
    %v874 = vadd.f32 %v873, %v819
    %v875 = vadd.f32 %v874, %v825
    %v876 = vadd.f32 %v875, %v829
    %v877 = vadd.f32 %v876, %v835
    %v878 = vadd.f32 %v877, %v839
    %v879 = vrot.slane %v878, 4
    %v880 = vadd.f32 %v878, %v879
    %v881 = vrot.slane %v880, 2
    %v882 = vadd.f32 %v880, %v881
    %v883 = vrot.slane %v882, 1
    %v884 = vadd.f32 %v882, %v883
    %v885 = vmul.f32 %v763, %v763
    %v886 = vmul.f32 %v765, %v765
    %v887 = vmul.f32 %v767, %v767
    %v888 = vmul.f32 %v769, %v769
    %v889 = vmul.f32 %v773, %v773
    %v890 = vmul.f32 %v775, %v775
    %v891 = vmul.f32 %v777, %v777
    %v892 = vmul.f32 %v779, %v779
    %v893 = vmul.f32 %v783, %v783
    %v894 = vmul.f32 %v785, %v785
    %v895 = vmul.f32 %v787, %v787
    %v896 = vmul.f32 %v789, %v789
    %v897 = vmul.f32 %v793, %v793
    %v898 = vmul.f32 %v795, %v795
    %v899 = vmul.f32 %v797, %v797
    %v900 = vmul.f32 %v799, %v799
    %v901 = vmul.f32 %v803, %v803
    %v902 = vmul.f32 %v805, %v805
    %v903 = vmul.f32 %v807, %v807
    %v904 = vmul.f32 %v809, %v809
    %v905 = vmul.f32 %v813, %v813
    %v906 = vmul.f32 %v815, %v815
    %v907 = vmul.f32 %v817, %v817
    %v908 = vmul.f32 %v819, %v819
    %v909 = vmul.f32 %v823, %v823
    %v910 = vmul.f32 %v825, %v825
    %v911 = vmul.f32 %v827, %v827
    %v912 = vmul.f32 %v829, %v829
    %v913 = vmul.f32 %v833, %v833
    %v914 = vmul.f32 %v835, %v835
    %v915 = vmul.f32 %v837, %v837
    %v916 = vmul.f32 %v839, %v839
    %v917 = vadd.f32 %v885, %v887
    %v918 = vadd.f32 %v917, %v889
    %v919 = vadd.f32 %v918, %v891
    %v920 = vadd.f32 %v919, %v893
    %v921 = vadd.f32 %v920, %v895
    %v922 = vadd.f32 %v921, %v897
    %v923 = vadd.f32 %v922, %v899
    %v924 = vadd.f32 %v923, %v901
    %v925 = vadd.f32 %v924, %v903
    %v926 = vadd.f32 %v925, %v905
    %v927 = vadd.f32 %v926, %v907
    %v928 = vadd.f32 %v927, %v909
    %v929 = vadd.f32 %v928, %v911
    %v930 = vadd.f32 %v929, %v913
    %v931 = vadd.f32 %v930, %v915
    %v932 = vrot.slane %v931, 4
    %v933 = vadd.f32 %v931, %v932
    %v934 = vrot.slane %v933, 2
    %v935 = vadd.f32 %v933, %v934
    %v936 = vrot.slane %v935, 1
    %v937 = vadd.f32 %v935, %v936
    %v938 = vadd.f32 %v886, %v888
    %v939 = vadd.f32 %v938, %v890
    %v940 = vadd.f32 %v939, %v892
    %v941 = vadd.f32 %v940, %v894
    %v942 = vadd.f32 %v941, %v896
    %v943 = vadd.f32 %v942, %v898
    %v944 = vadd.f32 %v943, %v900
    %v945 = vadd.f32 %v944, %v902
    %v946 = vadd.f32 %v945, %v904
    %v947 = vadd.f32 %v946, %v906
    %v948 = vadd.f32 %v947, %v908
    %v949 = vadd.f32 %v948, %v910
    %v950 = vadd.f32 %v949, %v912
    %v951 = vadd.f32 %v950, %v914
    %v952 = vadd.f32 %v951, %v916
    %v953 = vrot.slane %v952, 4
    %v954 = vadd.f32 %v952, %v953
    %v955 = vrot.slane %v954, 2
    %v956 = vadd.f32 %v954, %v955
    %v957 = vrot.slane %v956, 1
    %v958 = vadd.f32 %v956, %v957
    %v959 = vmul.f32 %v863, 0.0078125
    %v960 = vmul.f32 %v884, 0.0078125
    %v961 = vmul.f32 %v937, 0.0078125
    %v962 = vmul.f32 %v958, 0.0078125
    %v963 = vmul.f32 %v959, %v959
    %v964 = vmul.f32 %v960, %v960
    %v965 = vsub.f32 %v961, %v963
    %v966 = vsub.f32 %v962, %v964
    %v967 = vadd.f32 %v965, 1e-05
    %v968 = vadd.f32 %v966, 1e-05
    %v969 = vrsqrt.pop %v967
    %v970 = vrsqrt.pop %v968
    %v972 = vlaneseq
    %v973 = vshrl.u32 %v972, 7
    %v974 = vsub.s32 0, %v973
    %v975 = vrot.slane %v841, %v974
    %v976 = vlaneseq
    %v977 = vshrl.u32 %v976, 7
    %v978 = vsub.s32 1, %v977
    %v979 = vrot.slane %v841, %v978
    %v982 = vmul.f32 %v969, %v975
    %v983 = vmul.f32 %v970, %v979
    %v984 = vmul.f32 %v959, %v982
    %v985 = vmul.f32 %v960, %v983
    %v988 = vcombine.low %v984, %v985
    %v990 = vunpack.c.l.s4 1966171168
    %v991 = vunpack.c.0.s8 %v990
    %v992 = vlaneseq
    %v993 = vshrl.u32 %v992, 7
    %v994 = vsub.s32 %v991, %v993
    %v995 = vrot.slane %v988, %v994
    %v997 = vunpack.c.l.s4 1966171168
    %v998 = vunpack.c.0.s8 %v997
    %v999 = vlaneseq
    %v1000 = vshrl.u32 %v999, 7
    %v1001 = vsub.s32 %v998, %v1000
    %v1002 = vrot.slane %v995, %v1001
    %v1004 = vsub.f32 %v842, %v1002
    %v1005 = vlaneseq
    %v1006 = vshrl.u32 %v1005, 7
    %v1007 = vsub.s32 0, %v1006
    %v1008 = vrot.slane %v982, %v1007
    %v1009 = vlaneseq
    %v1010 = vshrl.u32 %v1009, 7
    %v1011 = vsub.s32 0, %v1010
    %v1012 = vrot.slane %v983, %v1011
    %v1013 = vmul.f32 %v763, %v1008
    %v1014 = vmul.f32 %v765, %v1012
    %v1015 = vmul.f32 %v767, %v1008
    %v1016 = vmul.f32 %v769, %v1012
    %v1017 = vmul.f32 %v773, %v1008
    %v1018 = vmul.f32 %v775, %v1012
    %v1019 = vmul.f32 %v777, %v1008
    %v1020 = vmul.f32 %v779, %v1012
    %v1021 = vmul.f32 %v783, %v1008
    %v1022 = vmul.f32 %v785, %v1012
    %v1023 = vmul.f32 %v787, %v1008
    %v1024 = vmul.f32 %v789, %v1012
    %v1025 = vmul.f32 %v793, %v1008
    %v1026 = vmul.f32 %v795, %v1012
    %v1027 = vmul.f32 %v797, %v1008
    %v1028 = vmul.f32 %v799, %v1012
    %v1029 = vmul.f32 %v803, %v1008
    %v1030 = vmul.f32 %v805, %v1012
    %v1031 = vmul.f32 %v807, %v1008
    %v1032 = vmul.f32 %v809, %v1012
    %v1033 = vmul.f32 %v813, %v1008
    %v1034 = vmul.f32 %v815, %v1012
    %v1035 = vmul.f32 %v817, %v1008
    %v1036 = vmul.f32 %v819, %v1012
    %v1037 = vmul.f32 %v823, %v1008
    %v1038 = vmul.f32 %v825, %v1012
    %v1039 = vmul.f32 %v827, %v1008
    %v1040 = vmul.f32 %v829, %v1012
    %v1041 = vmul.f32 %v833, %v1008
    %v1042 = vmul.f32 %v835, %v1012
    %v1043 = vmul.f32 %v837, %v1008
    %v1044 = vmul.f32 %v839, %v1012
    %v1046 = vlaneseq
    %v1047 = vshrl.u32 %v1046, 7
    %v1048 = vsub.s32 0, %v1047
    %v1049 = vrot.slane %v1004, %v1048
    %v1050 = vlaneseq
    %v1051 = vshrl.u32 %v1050, 7
    %v1052 = vsub.s32 1, %v1051
    %v1053 = vrot.slane %v1004, %v1052
    %v1056 = vadd.f32 %v1013, %v1049
    %v1057 = vadd.f32 %v1014, %v1053
    %v1058 = vadd.f32 %v1015, %v1049
    %v1059 = vadd.f32 %v1016, %v1053
    %v1060 = vadd.f32 %v1017, %v1049
    %v1061 = vadd.f32 %v1018, %v1053
    %v1062 = vadd.f32 %v1019, %v1049
    %v1063 = vadd.f32 %v1020, %v1053
    %v1064 = vadd.f32 %v1021, %v1049
    %v1065 = vadd.f32 %v1022, %v1053
    %v1066 = vadd.f32 %v1023, %v1049
    %v1067 = vadd.f32 %v1024, %v1053
    %v1068 = vadd.f32 %v1025, %v1049
    %v1069 = vadd.f32 %v1026, %v1053
    %v1070 = vadd.f32 %v1027, %v1049
    %v1071 = vadd.f32 %v1028, %v1053
    %v1072 = vadd.f32 %v1029, %v1049
    %v1073 = vadd.f32 %v1030, %v1053
    %v1074 = vadd.f32 %v1031, %v1049
    %v1075 = vadd.f32 %v1032, %v1053
    %v1076 = vadd.f32 %v1033, %v1049
    %v1077 = vadd.f32 %v1034, %v1053
    %v1078 = vadd.f32 %v1035, %v1049
    %v1079 = vadd.f32 %v1036, %v1053
    %v1080 = vadd.f32 %v1037, %v1049
    %v1081 = vadd.f32 %v1038, %v1053
    %v1082 = vadd.f32 %v1039, %v1049
    %v1083 = vadd.f32 %v1040, %v1053
    %v1084 = vadd.f32 %v1041, %v1049
    %v1085 = vadd.f32 %v1042, %v1053
    %v1086 = vadd.f32 %v1043, %v1049
    %v1087 = vadd.f32 %v1044, %v1053
    %vm1088 = vcmp.gt.f32.partialorder %v1056, 0.0
    %vm1089 = vcmp.gt.f32.partialorder %v1057, 0.0
    %vm1090 = vcmp.gt.f32.partialorder %v1058, 0.0
    %vm1091 = vcmp.gt.f32.partialorder %v1059, 0.0
    %vm1092 = vcmp.gt.f32.partialorder %v1060, 0.0
    %vm1093 = vcmp.gt.f32.partialorder %v1061, 0.0
    %vm1094 = vcmp.gt.f32.partialorder %v1062, 0.0
    %vm1095 = vcmp.gt.f32.partialorder %v1063, 0.0
    %vm1096 = vcmp.gt.f32.partialorder %v1064, 0.0
    %vm1097 = vcmp.gt.f32.partialorder %v1065, 0.0
    %vm1098 = vcmp.gt.f32.partialorder %v1066, 0.0
    %vm1099 = vcmp.gt.f32.partialorder %v1067, 0.0
    %vm1100 = vcmp.gt.f32.partialorder %v1068, 0.0
    %vm1101 = vcmp.gt.f32.partialorder %v1069, 0.0
    %vm1102 = vcmp.gt.f32.partialorder %v1070, 0.0
    %vm1103 = vcmp.gt.f32.partialorder %v1071, 0.0
    %vm1104 = vcmp.gt.f32.partialorder %v1072, 0.0
    %vm1105 = vcmp.gt.f32.partialorder %v1073, 0.0
    %vm1106 = vcmp.gt.f32.partialorder %v1074, 0.0
    %vm1107 = vcmp.gt.f32.partialorder %v1075, 0.0
    %vm1108 = vcmp.gt.f32.partialorder %v1076, 0.0
    %vm1109 = vcmp.gt.f32.partialorder %v1077, 0.0
    %vm1110 = vcmp.gt.f32.partialorder %v1078, 0.0
    %vm1111 = vcmp.gt.f32.partialorder %v1079, 0.0
    %vm1112 = vcmp.gt.f32.partialorder %v1080, 0.0
    %vm1113 = vcmp.gt.f32.partialorder %v1081, 0.0
    %vm1114 = vcmp.gt.f32.partialorder %v1082, 0.0
    %vm1115 = vcmp.gt.f32.partialorder %v1083, 0.0
    %vm1116 = vcmp.gt.f32.partialorder %v1084, 0.0
    %vm1117 = vcmp.gt.f32.partialorder %v1085, 0.0
    %vm1118 = vcmp.gt.f32.partialorder %v1086, 0.0
    %vm1119 = vcmp.gt.f32.partialorder %v1087, 0.0
    %v1120 = vmul.f32 %v1056, 0.1
    %v1121 = vmul.f32 %v1057, 0.1
    %v1122 = vmul.f32 %v1058, 0.1
    %v1123 = vmul.f32 %v1059, 0.1
    %v1124 = vmul.f32 %v1060, 0.1
    %v1125 = vmul.f32 %v1061, 0.1
    %v1126 = vmul.f32 %v1062, 0.1
    %v1127 = vmul.f32 %v1063, 0.1
    %v1128 = vmul.f32 %v1064, 0.1
    %v1129 = vmul.f32 %v1065, 0.1
    %v1130 = vmul.f32 %v1066, 0.1
    %v1131 = vmul.f32 %v1067, 0.1
    %v1132 = vmul.f32 %v1068, 0.1
    %v1133 = vmul.f32 %v1069, 0.1
    %v1134 = vmul.f32 %v1070, 0.1
    %v1135 = vmul.f32 %v1071, 0.1
    %v1136 = vmul.f32 %v1072, 0.1
    %v1137 = vmul.f32 %v1073, 0.1
    %v1138 = vmul.f32 %v1074, 0.1
    %v1139 = vmul.f32 %v1075, 0.1
    %v1140 = vmul.f32 %v1076, 0.1
    %v1141 = vmul.f32 %v1077, 0.1
    %v1142 = vmul.f32 %v1078, 0.1
    %v1143 = vmul.f32 %v1079, 0.1
    %v1144 = vmul.f32 %v1080, 0.1
    %v1145 = vmul.f32 %v1081, 0.1
    %v1146 = vmul.f32 %v1082, 0.1
    %v1147 = vmul.f32 %v1083, 0.1
    %v1148 = vmul.f32 %v1084, 0.1
    %v1149 = vmul.f32 %v1085, 0.1
    %v1150 = vmul.f32 %v1086, 0.1
    %v1151 = vmul.f32 %v1087, 0.1
    %v1152 = vsel %vm1088, %v1056, %v1120
    %v1153 = vsel %vm1089, %v1057, %v1121
    %v1154 = vsel %vm1090, %v1058, %v1122
    %v1155 = vsel %vm1091, %v1059, %v1123
    %v1156 = vsel %vm1092, %v1060, %v1124
    %v1157 = vsel %vm1093, %v1061, %v1125
    %v1158 = vsel %vm1094, %v1062, %v1126
    %v1159 = vsel %vm1095, %v1063, %v1127
    %v1160 = vsel %vm1096, %v1064, %v1128
    %v1161 = vsel %vm1097, %v1065, %v1129
    %v1162 = vsel %vm1098, %v1066, %v1130
    %v1163 = vsel %vm1099, %v1067, %v1131
    %v1164 = vsel %vm1100, %v1068, %v1132
    %v1165 = vsel %vm1101, %v1069, %v1133
    %v1166 = vsel %vm1102, %v1070, %v1134
    %v1167 = vsel %vm1103, %v1071, %v1135
    %v1168 = vsel %vm1104, %v1072, %v1136
    %v1169 = vsel %vm1105, %v1073, %v1137
    %v1170 = vsel %vm1106, %v1074, %v1138
    %v1171 = vsel %vm1107, %v1075, %v1139
    %v1172 = vsel %vm1108, %v1076, %v1140
    %v1173 = vsel %vm1109, %v1077, %v1141
    %v1174 = vsel %vm1110, %v1078, %v1142
    %v1175 = vsel %vm1111, %v1079, %v1143
    %v1176 = vsel %vm1112, %v1080, %v1144
    %v1177 = vsel %vm1113, %v1081, %v1145
    %v1178 = vsel %vm1114, %v1082, %v1146
    %v1179 = vsel %vm1115, %v1083, %v1147
    %v1180 = vsel %vm1116, %v1084, %v1148
    %v1181 = vsel %vm1117, %v1085, %v1149
    %v1182 = vsel %vm1118, %v1086, %v1150
    %v1183 = vsel %vm1119, %v1087, %v1151
    %1184 = vst [vmem:[#allocation2] sm:$0xff] 0
    %1185 = vst [vmem:[#allocation2 + $0x8] sm:$0x11] 0
    %1186 = vst [vmem:[#allocation2 + $0xa0] sm:$0xff] 0
    %1187 = vst [vmem:[#allocation2 + $0xa8] sm:$0x11] 0
    %s1188 = scalar_lea.vmem [#allocation2], 144
    %1189 = vst [vmem:[%s1188] sm:$0xff] 0
    %1190 = vst [vmem:[%s1188 + $0x8] sm:$0x11] 0
    %1191 = vst [vmem:[%s1188 + $0xa0] sm:$0xff] 0
    %1192 = vst [vmem:[%s1188 + $0xa8] sm:$0x11] 0
    %s1193 = scalar_lea.vmem [#allocation2], 16
    %vm1194 = vcmask 1040384
    %vm1195 = vsmask.f32 256
    %vm1196 = vmand %vm1194, %vm1195
    %vm1197 = vcmask 1044484
    %vm1198 = vsmask.f32 4352
    %vm1199 = vmand %vm1197, %vm1198
    %vm1200 = vmor %vm1199, %vm1196
    %v1201 = vld [vmem:[%s1193] sm:$0x11]
    %v1202 = vsel %vm1200, 0, %v1201
    %1203 = vst [vmem:[%s1193] sm:$0x11] %v1202
    %v1204 = vld [vmem:[%s1193 + $0x10] sm:$0x11]
    %v1205 = vsel %vm1200, 0, %v1204
    %1206 = vst [vmem:[%s1193 + $0x10] sm:$0x11] %v1205
    %v1207 = vld [vmem:[%s1193 + $0x20] sm:$0x11]
    %v1208 = vsel %vm1200, 0, %v1207
    %1209 = vst [vmem:[%s1193 + $0x20] sm:$0x11] %v1208
    %v1210 = vld [vmem:[%s1193 + $0x30] sm:$0x11]
    %v1211 = vsel %vm1200, 0, %v1210
    %1212 = vst [vmem:[%s1193 + $0x30] sm:$0x11] %v1211
    %v1213 = vld [vmem:[%s1193 + $0x40] sm:$0x11]
    %v1214 = vsel %vm1200, 0, %v1213
    %1215 = vst [vmem:[%s1193 + $0x40] sm:$0x11] %v1214
    %v1216 = vld [vmem:[%s1193 + $0x50] sm:$0x11]
    %v1217 = vsel %vm1200, 0, %v1216
    %1218 = vst [vmem:[%s1193 + $0x50] sm:$0x11] %v1217
    %v1219 = vld [vmem:[%s1193 + $0x60] sm:$0x11]
    %v1220 = vsel %vm1200, 0, %v1219
    %1221 = vst [vmem:[%s1193 + $0x60] sm:$0x11] %v1220
    %v1222 = vld [vmem:[%s1193 + $0x70] sm:$0x11]
    %v1223 = vsel %vm1200, 0, %v1222
    %1224 = vst [vmem:[%s1193 + $0x70] sm:$0x11] %v1223
    %v1225 = vld [vmem:[%s1193 + $0xa0] sm:$0x11]
    %v1226 = vsel %vm1200, 0, %v1225
    %1227 = vst [vmem:[%s1193 + $0xa0] sm:$0x11] %v1226
    %v1228 = vld [vmem:[%s1193 + $0xb0] sm:$0x11]
    %v1229 = vsel %vm1200, 0, %v1228
    %1230 = vst [vmem:[%s1193 + $0xb0] sm:$0x11] %v1229
    %v1231 = vld [vmem:[%s1193 + $0xc0] sm:$0x11]
    %v1232 = vsel %vm1200, 0, %v1231
    %1233 = vst [vmem:[%s1193 + $0xc0] sm:$0x11] %v1232
    %v1234 = vld [vmem:[%s1193 + $0xd0] sm:$0x11]
    %v1235 = vsel %vm1200, 0, %v1234
    %1236 = vst [vmem:[%s1193 + $0xd0] sm:$0x11] %v1235
    %v1237 = vld [vmem:[%s1193 + $0xe0] sm:$0x11]
    %v1238 = vsel %vm1200, 0, %v1237
    %1239 = vst [vmem:[%s1193 + $0xe0] sm:$0x11] %v1238
    %v1240 = vld [vmem:[%s1193 + $0xf0] sm:$0x11]
    %v1241 = vsel %vm1200, 0, %v1240
    %1242 = vst [vmem:[%s1193 + $0xf0] sm:$0x11] %v1241
    %v1243 = vld [vmem:[%s1193 + $0x100] sm:$0x11]
    %v1244 = vsel %vm1200, 0, %v1243
    %1245 = vst [vmem:[%s1193 + $0x100] sm:$0x11] %v1244
    %v1246 = vld [vmem:[%s1193 + $0x110] sm:$0x11]
    %v1247 = vsel %vm1200, 0, %v1246
    %1248 = vst [vmem:[%s1193 + $0x110] sm:$0x11] %v1247
    %vm1249 = vsmask.f32 7938
    %vm1250 = vmand %vm1194, %vm1249
    %vm1251 = vsmask.f32 7954
    %vm1252 = vmand %vm1197, %vm1251
    %vm1253 = vmor %vm1252, %vm1250
    %v1254 = vld [vmem:[%s1193 + $0x8] sm:$0x11]
    %v1255 = vsel %vm1253, 0, %v1254
    %1256 = vst [vmem:[%s1193 + $0x8] sm:$0x11] %v1255
    %v1257 = vld [vmem:[%s1193 + $0x18] sm:$0x11]
    %v1258 = vsel %vm1253, 0, %v1257
    %1259 = vst [vmem:[%s1193 + $0x18] sm:$0x11] %v1258
    %v1260 = vld [vmem:[%s1193 + $0x28] sm:$0x11]
    %v1261 = vsel %vm1253, 0, %v1260
    %1262 = vst [vmem:[%s1193 + $0x28] sm:$0x11] %v1261
    %v1263 = vld [vmem:[%s1193 + $0x38] sm:$0x11]
    %v1264 = vsel %vm1253, 0, %v1263
    %1265 = vst [vmem:[%s1193 + $0x38] sm:$0x11] %v1264
    %v1266 = vld [vmem:[%s1193 + $0x48] sm:$0x11]
    %v1267 = vsel %vm1253, 0, %v1266
    %1268 = vst [vmem:[%s1193 + $0x48] sm:$0x11] %v1267
    %v1269 = vld [vmem:[%s1193 + $0x58] sm:$0x11]
    %v1270 = vsel %vm1253, 0, %v1269
    %1271 = vst [vmem:[%s1193 + $0x58] sm:$0x11] %v1270
    %v1272 = vld [vmem:[%s1193 + $0x68] sm:$0x11]
    %v1273 = vsel %vm1253, 0, %v1272
    %1274 = vst [vmem:[%s1193 + $0x68] sm:$0x11] %v1273
    %v1275 = vld [vmem:[%s1193 + $0x78] sm:$0x11]
    %v1276 = vsel %vm1253, 0, %v1275
    %1277 = vst [vmem:[%s1193 + $0x78] sm:$0x11] %v1276
    %v1278 = vld [vmem:[%s1193 + $0xa8] sm:$0x11]
    %v1279 = vsel %vm1253, 0, %v1278
    %1280 = vst [vmem:[%s1193 + $0xa8] sm:$0x11] %v1279
    %v1281 = vld [vmem:[%s1193 + $0xb8] sm:$0x11]
    %v1282 = vsel %vm1253, 0, %v1281
    %1283 = vst [vmem:[%s1193 + $0xb8] sm:$0x11] %v1282
    %v1284 = vld [vmem:[%s1193 + $0xc8] sm:$0x11]
    %v1285 = vsel %vm1253, 0, %v1284
    %1286 = vst [vmem:[%s1193 + $0xc8] sm:$0x11] %v1285
    %v1287 = vld [vmem:[%s1193 + $0xd8] sm:$0x11]
    %v1288 = vsel %vm1253, 0, %v1287
    %1289 = vst [vmem:[%s1193 + $0xd8] sm:$0x11] %v1288
    %v1290 = vld [vmem:[%s1193 + $0xe8] sm:$0x11]
    %v1291 = vsel %vm1253, 0, %v1290
    %1292 = vst [vmem:[%s1193 + $0xe8] sm:$0x11] %v1291
    %v1293 = vld [vmem:[%s1193 + $0xf8] sm:$0x11]
    %v1294 = vsel %vm1253, 0, %v1293
    %1295 = vst [vmem:[%s1193 + $0xf8] sm:$0x11] %v1294
    %v1296 = vld [vmem:[%s1193 + $0x108] sm:$0x11]
    %v1297 = vsel %vm1253, 0, %v1296
    %1298 = vst [vmem:[%s1193 + $0x108] sm:$0x11] %v1297
    %v1299 = vld [vmem:[%s1193 + $0x118] sm:$0x11]
    %v1300 = vsel %vm1253, 0, %v1299
    %1301 = vst [vmem:[%s1193 + $0x118] sm:$0x11] %v1300
    %v1302 = vpack.c.bf16 %v1152, %v1152
    %v1303 = vpack.c.bf16 %v1153, %v1153
    %v1304 = vpack.c.bf16 %v1154, %v1154
    %v1305 = vpack.c.bf16 %v1155, %v1155
    %v1306 = vpack.c.bf16 %v1156, %v1156
    %v1307 = vpack.c.bf16 %v1157, %v1157
    %v1308 = vpack.c.bf16 %v1158, %v1158
    %v1309 = vpack.c.bf16 %v1159, %v1159
    %v1310 = vpack.c.bf16 %v1160, %v1160
    %v1311 = vpack.c.bf16 %v1161, %v1161
    %v1312 = vpack.c.bf16 %v1162, %v1162
    %v1313 = vpack.c.bf16 %v1163, %v1163
    %v1314 = vpack.c.bf16 %v1164, %v1164
    %v1315 = vpack.c.bf16 %v1165, %v1165
    %v1316 = vpack.c.bf16 %v1166, %v1166
    %v1317 = vpack.c.bf16 %v1167, %v1167
    %v1318 = vpack.c.bf16 %v1168, %v1168
    %v1319 = vpack.c.bf16 %v1169, %v1169
    %v1320 = vpack.c.bf16 %v1170, %v1170
    %v1321 = vpack.c.bf16 %v1171, %v1171
    %v1322 = vpack.c.bf16 %v1172, %v1172
    %v1323 = vpack.c.bf16 %v1173, %v1173
    %v1324 = vpack.c.bf16 %v1174, %v1174
    %v1325 = vpack.c.bf16 %v1175, %v1175
    %v1326 = vpack.c.bf16 %v1176, %v1176
    %v1327 = vpack.c.bf16 %v1177, %v1177
    %v1328 = vpack.c.bf16 %v1178, %v1178
    %v1329 = vpack.c.bf16 %v1179, %v1179
    %v1330 = vpack.c.bf16 %v1180, %v1180
    %v1331 = vpack.c.bf16 %v1181, %v1181
    %v1332 = vpack.c.bf16 %v1182, %v1182
    %v1333 = vpack.c.bf16 %v1183, %v1183
    %v1366 = vunpack.c.l.b16 %v1302
    %v1367 = vunpack.c.l.b16 %v1303
    %v1368 = vunpack.c.l.b16 %v1304
    %v1369 = vunpack.c.l.b16 %v1305
    %v1370 = vunpack.c.l.b16 %v1306
    %v1371 = vunpack.c.l.b16 %v1307
    %v1372 = vunpack.c.l.b16 %v1308
    %v1373 = vunpack.c.l.b16 %v1309
    %v1374 = vunpack.c.l.b16 %v1310
    %v1375 = vunpack.c.l.b16 %v1311
    %v1376 = vunpack.c.l.b16 %v1312
    %v1377 = vunpack.c.l.b16 %v1313
    %v1378 = vunpack.c.l.b16 %v1314
    %v1379 = vunpack.c.l.b16 %v1315
    %v1380 = vunpack.c.l.b16 %v1316
    %v1381 = vunpack.c.l.b16 %v1317
    %v1382 = vunpack.c.l.b16 %v1318
    %v1383 = vunpack.c.l.b16 %v1319
    %v1384 = vunpack.c.l.b16 %v1320
    %v1385 = vunpack.c.l.b16 %v1321
    %v1386 = vunpack.c.l.b16 %v1322
    %v1387 = vunpack.c.l.b16 %v1323
    %v1388 = vunpack.c.l.b16 %v1324
    %v1389 = vunpack.c.l.b16 %v1325
    %v1390 = vunpack.c.l.b16 %v1326
    %v1391 = vunpack.c.l.b16 %v1327
    %v1392 = vunpack.c.l.b16 %v1328
    %v1393 = vunpack.c.l.b16 %v1329
    %v1394 = vunpack.c.l.b16 %v1330
    %v1395 = vunpack.c.l.b16 %v1331
    %v1396 = vunpack.c.l.b16 %v1332
    %v1397 = vunpack.c.l.b16 %v1333
    %v1398 = vpack.c.b16 %v1367, %v1366
    %v1399 = vpack.c.b16 %v1369, %v1368
    %v1400 = vpack.c.b16 %v1371, %v1370
    %v1401 = vpack.c.b16 %v1373, %v1372
    %v1402 = vpack.c.b16 %v1375, %v1374
    %v1403 = vpack.c.b16 %v1377, %v1376
    %v1404 = vpack.c.b16 %v1379, %v1378
    %v1405 = vpack.c.b16 %v1381, %v1380
    %v1406 = vpack.c.b16 %v1383, %v1382
    %v1407 = vpack.c.b16 %v1385, %v1384
    %v1408 = vpack.c.b16 %v1387, %v1386
    %v1409 = vpack.c.b16 %v1389, %v1388
    %v1410 = vpack.c.b16 %v1391, %v1390
    %v1411 = vpack.c.b16 %v1393, %v1392
    %v1412 = vpack.c.b16 %v1395, %v1394
    %v1413 = vpack.c.b16 %v1397, %v1396
    %v1415 = vshrl.u32 %v1398, 16
    %v1417 = vrot.slane %v1415, 7
    %v1418 = vshll.u32 %v1398, 16
    %v1420 = vor.u32 %v1417, %v1418
    %v1421 = vrot.slane %v1417, 4
    %v1423 = vshrl.u32 %v1399, 16
    %v1425 = vrot.slane %v1423, 7
    %v1426 = vshll.u32 %v1399, 16
    %v1428 = vor.u32 %v1425, %v1426
    %v1429 = vrot.slane %v1425, 4
    %v1431 = vshrl.u32 %v1400, 16
    %v1433 = vrot.slane %v1431, 7
    %v1434 = vshll.u32 %v1400, 16
    %v1436 = vor.u32 %v1433, %v1434
    %v1437 = vrot.slane %v1433, 4
    %v1439 = vshrl.u32 %v1401, 16
    %v1441 = vrot.slane %v1439, 7
    %v1442 = vshll.u32 %v1401, 16
    %v1444 = vor.u32 %v1441, %v1442
    %v1445 = vrot.slane %v1441, 4
    %v1447 = vshrl.u32 %v1402, 16
    %v1449 = vrot.slane %v1447, 7
    %v1450 = vshll.u32 %v1402, 16
    %v1452 = vor.u32 %v1449, %v1450
    %v1453 = vrot.slane %v1449, 4
    %v1455 = vshrl.u32 %v1403, 16
    %v1457 = vrot.slane %v1455, 7
    %v1458 = vshll.u32 %v1403, 16
    %v1460 = vor.u32 %v1457, %v1458
    %v1461 = vrot.slane %v1457, 4
    %v1463 = vshrl.u32 %v1404, 16
    %v1465 = vrot.slane %v1463, 7
    %v1466 = vshll.u32 %v1404, 16
    %v1468 = vor.u32 %v1465, %v1466
    %v1469 = vrot.slane %v1465, 4
    %v1471 = vshrl.u32 %v1405, 16
    %v1473 = vrot.slane %v1471, 7
    %v1474 = vshll.u32 %v1405, 16
    %v1476 = vor.u32 %v1473, %v1474
    %v1477 = vrot.slane %v1473, 4
    %v1479 = vshrl.u32 %v1406, 16
    %v1481 = vrot.slane %v1479, 7
    %v1482 = vshll.u32 %v1406, 16
    %v1484 = vor.u32 %v1481, %v1482
    %v1485 = vrot.slane %v1481, 4
    %v1487 = vshrl.u32 %v1407, 16
    %v1489 = vrot.slane %v1487, 7
    %v1490 = vshll.u32 %v1407, 16
    %v1492 = vor.u32 %v1489, %v1490
    %v1493 = vrot.slane %v1489, 4
    %v1495 = vshrl.u32 %v1408, 16
    %v1497 = vrot.slane %v1495, 7
    %v1498 = vshll.u32 %v1408, 16
    %v1500 = vor.u32 %v1497, %v1498
    %v1501 = vrot.slane %v1497, 4
    %v1503 = vshrl.u32 %v1409, 16
    %v1505 = vrot.slane %v1503, 7
    %v1506 = vshll.u32 %v1409, 16
    %v1508 = vor.u32 %v1505, %v1506
    %v1509 = vrot.slane %v1505, 4
    %v1511 = vshrl.u32 %v1410, 16
    %v1513 = vrot.slane %v1511, 7
    %v1514 = vshll.u32 %v1410, 16
    %v1516 = vor.u32 %v1513, %v1514
    %v1517 = vrot.slane %v1513, 4
    %v1519 = vshrl.u32 %v1411, 16
    %v1521 = vrot.slane %v1519, 7
    %v1522 = vshll.u32 %v1411, 16
    %v1524 = vor.u32 %v1521, %v1522
    %v1525 = vrot.slane %v1521, 4
    %v1527 = vshrl.u32 %v1412, 16
    %v1529 = vrot.slane %v1527, 7
    %v1530 = vshll.u32 %v1412, 16
    %v1532 = vor.u32 %v1529, %v1530
    %v1533 = vrot.slane %v1529, 4
    %v1535 = vshrl.u32 %v1413, 16
    %v1537 = vrot.slane %v1535, 7
    %v1538 = vshll.u32 %v1413, 16
    %v1540 = vor.u32 %v1537, %v1538
    %v1541 = vrot.slane %v1537, 4
    %vm1574 = vcmask 1043456
    %vm1575 = vmand %vm1574, %vm1249
    %vm1576 = vcmask 1047556
    %vm1577 = vmand %vm1576, %vm1251
    %vm1578 = vmor %vm1577, %vm1575
    %v1579 = vld [vmem:[%s1193] sm:$0xff]
    %v1580 = vsel %vm1578, %v1420, %v1579
    %1581 = vst [vmem:[%s1193] sm:$0xff] %v1580
    %v1582 = vld [vmem:[%s1193 + $0x8] sm:$0x11]
    %v1583 = vsel %vm1200, %v1421, %v1582
    %1584 = vst [vmem:[%s1193 + $0x8] sm:$0x11] %v1583
    %v1585 = vld [vmem:[%s1193 + $0x10] sm:$0xff]
    %v1586 = vsel %vm1578, %v1428, %v1585
    %1587 = vst [vmem:[%s1193 + $0x10] sm:$0xff] %v1586
    %v1588 = vld [vmem:[%s1193 + $0x18] sm:$0x11]
    %v1589 = vsel %vm1200, %v1429, %v1588
    %1590 = vst [vmem:[%s1193 + $0x18] sm:$0x11] %v1589
    %v1591 = vld [vmem:[%s1193 + $0x20] sm:$0xff]
    %v1592 = vsel %vm1578, %v1436, %v1591
    %1593 = vst [vmem:[%s1193 + $0x20] sm:$0xff] %v1592
    %v1594 = vld [vmem:[%s1193 + $0x28] sm:$0x11]
    %v1595 = vsel %vm1200, %v1437, %v1594
    %1596 = vst [vmem:[%s1193 + $0x28] sm:$0x11] %v1595
    %v1597 = vld [vmem:[%s1193 + $0x30] sm:$0xff]
    %v1598 = vsel %vm1578, %v1444, %v1597
    %1599 = vst [vmem:[%s1193 + $0x30] sm:$0xff] %v1598
    %v1600 = vld [vmem:[%s1193 + $0x38] sm:$0x11]
    %v1601 = vsel %vm1200, %v1445, %v1600
    %1602 = vst [vmem:[%s1193 + $0x38] sm:$0x11] %v1601
    %v1603 = vld [vmem:[%s1193 + $0x40] sm:$0xff]
    %v1604 = vsel %vm1578, %v1452, %v1603
    %1605 = vst [vmem:[%s1193 + $0x40] sm:$0xff] %v1604
    %v1606 = vld [vmem:[%s1193 + $0x48] sm:$0x11]
    %v1607 = vsel %vm1200, %v1453, %v1606
    %1608 = vst [vmem:[%s1193 + $0x48] sm:$0x11] %v1607
    %v1609 = vld [vmem:[%s1193 + $0x50] sm:$0xff]
    %v1610 = vsel %vm1578, %v1460, %v1609
    %1611 = vst [vmem:[%s1193 + $0x50] sm:$0xff] %v1610
    %v1612 = vld [vmem:[%s1193 + $0x58] sm:$0x11]
    %v1613 = vsel %vm1200, %v1461, %v1612
    %1614 = vst [vmem:[%s1193 + $0x58] sm:$0x11] %v1613
    %v1615 = vld [vmem:[%s1193 + $0x60] sm:$0xff]
    %v1616 = vsel %vm1578, %v1468, %v1615
    %1617 = vst [vmem:[%s1193 + $0x60] sm:$0xff] %v1616
    %v1618 = vld [vmem:[%s1193 + $0x68] sm:$0x11]
    %v1619 = vsel %vm1200, %v1469, %v1618
    %1620 = vst [vmem:[%s1193 + $0x68] sm:$0x11] %v1619
    %v1621 = vld [vmem:[%s1193 + $0x70] sm:$0xff]
    %v1622 = vsel %vm1578, %v1476, %v1621
    %1623 = vst [vmem:[%s1193 + $0x70] sm:$0xff] %v1622
    %v1624 = vld [vmem:[%s1193 + $0x78] sm:$0x11]
    %v1625 = vsel %vm1200, %v1477, %v1624
    %1626 = vst [vmem:[%s1193 + $0x78] sm:$0x11] %v1625
    %v1627 = vld [vmem:[%s1193 + $0xa0] sm:$0xff]
    %v1628 = vsel %vm1578, %v1484, %v1627
    %1629 = vst [vmem:[%s1193 + $0xa0] sm:$0xff] %v1628
    %v1630 = vld [vmem:[%s1193 + $0xa8] sm:$0x11]
    %v1631 = vsel %vm1200, %v1485, %v1630
    %1632 = vst [vmem:[%s1193 + $0xa8] sm:$0x11] %v1631
    %v1633 = vld [vmem:[%s1193 + $0xb0] sm:$0xff]
    %v1634 = vsel %vm1578, %v1492, %v1633
    %1635 = vst [vmem:[%s1193 + $0xb0] sm:$0xff] %v1634
    %v1636 = vld [vmem:[%s1193 + $0xb8] sm:$0x11]
    %v1637 = vsel %vm1200, %v1493, %v1636
    %1638 = vst [vmem:[%s1193 + $0xb8] sm:$0x11] %v1637
    %v1639 = vld [vmem:[%s1193 + $0xc0] sm:$0xff]
    %v1640 = vsel %vm1578, %v1500, %v1639
    %1641 = vst [vmem:[%s1193 + $0xc0] sm:$0xff] %v1640
    %v1642 = vld [vmem:[%s1193 + $0xc8] sm:$0x11]
    %v1643 = vsel %vm1200, %v1501, %v1642
    %1644 = vst [vmem:[%s1193 + $0xc8] sm:$0x11] %v1643
    %v1645 = vld [vmem:[%s1193 + $0xd0] sm:$0xff]
    %v1646 = vsel %vm1578, %v1508, %v1645
    %1647 = vst [vmem:[%s1193 + $0xd0] sm:$0xff] %v1646
    %v1648 = vld [vmem:[%s1193 + $0xd8] sm:$0x11]
    %v1649 = vsel %vm1200, %v1509, %v1648
    %1650 = vst [vmem:[%s1193 + $0xd8] sm:$0x11] %v1649
    %v1651 = vld [vmem:[%s1193 + $0xe0] sm:$0xff]
    %v1652 = vsel %vm1578, %v1516, %v1651
    %1653 = vst [vmem:[%s1193 + $0xe0] sm:$0xff] %v1652
    %v1654 = vld [vmem:[%s1193 + $0xe8] sm:$0x11]
    %v1655 = vsel %vm1200, %v1517, %v1654
    %1656 = vst [vmem:[%s1193 + $0xe8] sm:$0x11] %v1655
    %v1657 = vld [vmem:[%s1193 + $0xf0] sm:$0xff]
    %v1658 = vsel %vm1578, %v1524, %v1657
    %1659 = vst [vmem:[%s1193 + $0xf0] sm:$0xff] %v1658
    %v1660 = vld [vmem:[%s1193 + $0xf8] sm:$0x11]
    %v1661 = vsel %vm1200, %v1525, %v1660
    %1662 = vst [vmem:[%s1193 + $0xf8] sm:$0x11] %v1661
    %v1663 = vld [vmem:[%s1193 + $0x100] sm:$0xff]
    %v1664 = vsel %vm1578, %v1532, %v1663
    %1665 = vst [vmem:[%s1193 + $0x100] sm:$0xff] %v1664
    %v1666 = vld [vmem:[%s1193 + $0x108] sm:$0x11]
    %v1667 = vsel %vm1200, %v1533, %v1666
    %1668 = vst [vmem:[%s1193 + $0x108] sm:$0x11] %v1667
    %v1669 = vld [vmem:[%s1193 + $0x110] sm:$0xff]
    %v1670 = vsel %vm1578, %v1540, %v1669
    %1671 = vst [vmem:[%s1193 + $0x110] sm:$0xff] %v1670
    %v1672 = vld [vmem:[%s1193 + $0x118] sm:$0x11]
    %v1673 = vsel %vm1200, %v1541, %v1672
    %1674 = vst [vmem:[%s1193 + $0x118] sm:$0x11] %v1673
    %v1675 = vld [vmem:[#allocation2] sm:$0xff]
    %v1676 = vld [vmem:[#allocation2 + $0x10] sm:$0xff]
    %v1677 = vld [vmem:[#allocation2 + $0x20] sm:$0xff]
    %v1678 = vld [vmem:[#allocation2 + $0x30] sm:$0xff]
    %v1679 = vld [vmem:[#allocation2 + $0x40] sm:$0xff]
    %v1680 = vld [vmem:[#allocation2 + $0x50] sm:$0xff]
    %v1681 = vld [vmem:[#allocation2 + $0x60] sm:$0xff]
    %v1682 = vld [vmem:[#allocation2 + $0x70] sm:$0xff]
    %v1683 = vld [vmem:[#allocation2 + $0xa0] sm:$0xff]
    %v1684 = vld [vmem:[#allocation2 + $0xb0] sm:$0xff]
    %v1685 = vld [vmem:[#allocation2 + $0xc0] sm:$0xff]
    %v1686 = vld [vmem:[#allocation2 + $0xd0] sm:$0xff]
    %v1687 = vld [vmem:[#allocation2 + $0xe0] sm:$0xff]
    %v1688 = vld [vmem:[#allocation2 + $0xf0] sm:$0xff]
    %v1689 = vld [vmem:[#allocation2 + $0x100] sm:$0xff]
    %v1690 = vld [vmem:[#allocation2 + $0x110] sm:$0xff]
    %v1707 = vunpack.c.l.b16 %v1675
    %v1708 = vunpack.c.h.b16 %v1675
    %v1709 = vunpack.c.l.b16 %v1676
    %v1710 = vunpack.c.h.b16 %v1676
    %v1711 = vunpack.c.l.b16 %v1677
    %v1712 = vunpack.c.h.b16 %v1677
    %v1713 = vunpack.c.l.b16 %v1678
    %v1714 = vunpack.c.h.b16 %v1678
    %v1715 = vunpack.c.l.b16 %v1679
    %v1716 = vunpack.c.h.b16 %v1679
    %v1717 = vunpack.c.l.b16 %v1680
    %v1718 = vunpack.c.h.b16 %v1680
    %v1719 = vunpack.c.l.b16 %v1681
    %v1720 = vunpack.c.h.b16 %v1681
    %v1721 = vunpack.c.l.b16 %v1682
    %v1722 = vunpack.c.h.b16 %v1682
    %v1723 = vunpack.c.l.b16 %v1683
    %v1724 = vunpack.c.h.b16 %v1683
    %v1725 = vunpack.c.l.b16 %v1684
    %v1726 = vunpack.c.h.b16 %v1684
    %v1727 = vunpack.c.l.b16 %v1685
    %v1728 = vunpack.c.h.b16 %v1685
    %v1729 = vunpack.c.l.b16 %v1686
    %v1730 = vunpack.c.h.b16 %v1686
    %v1731 = vunpack.c.l.b16 %v1687
    %v1732 = vunpack.c.h.b16 %v1687
    %v1733 = vunpack.c.l.b16 %v1688
    %v1734 = vunpack.c.h.b16 %v1688
    %v1735 = vunpack.c.l.b16 %v1689
    %v1736 = vunpack.c.h.b16 %v1689
    %v1737 = vunpack.c.l.b16 %v1690
    %v1738 = vunpack.c.h.b16 %v1690
    %v1739 = vpack.c.b16 %v1709, %v1707
    %v1740 = vpack.c.b16 %v1710, %v1708
    %v1741 = vpack.c.b16 %v1713, %v1711
    %v1742 = vpack.c.b16 %v1714, %v1712
    %v1743 = vpack.c.b16 %v1717, %v1715
    %v1744 = vpack.c.b16 %v1718, %v1716
    %v1745 = vpack.c.b16 %v1721, %v1719
    %v1746 = vpack.c.b16 %v1722, %v1720
    %v1747 = vpack.c.b16 %v1725, %v1723
    %v1748 = vpack.c.b16 %v1726, %v1724
    %v1749 = vpack.c.b16 %v1729, %v1727
    %v1750 = vpack.c.b16 %v1730, %v1728
    %v1751 = vpack.c.b16 %v1733, %v1731
    %v1752 = vpack.c.b16 %v1734, %v1732
    %v1753 = vpack.c.b16 %v1737, %v1735
    %v1754 = vpack.c.b16 %v1738, %v1736
    %1771 = vst [vmem:[#allocation3] sm:$0xff] %v1739
    %1772 = vst [vmem:[#allocation3 + $0x8] sm:$0xff] %v1740
    %1773 = vst [vmem:[#allocation3 + $0x90] sm:$0xff] %v1741
    %1774 = vst [vmem:[#allocation3 + $0x98] sm:$0xff] %v1742
    %1775 = vst [vmem:[#allocation3 + $0x120] sm:$0xff] %v1743
    %1776 = vst [vmem:[#allocation3 + $0x128] sm:$0xff] %v1744
    %1777 = vst [vmem:[#allocation3 + $0x1b0] sm:$0xff] %v1745
    %1778 = vst [vmem:[#allocation3 + $0x1b8] sm:$0xff] %v1746
    %1779 = vst [vmem:[#allocation3 + $0x240] sm:$0xff] %v1747
    %1780 = vst [vmem:[#allocation3 + $0x248] sm:$0xff] %v1748
    %1781 = vst [vmem:[#allocation3 + $0x2d0] sm:$0xff] %v1749
    %1782 = vst [vmem:[#allocation3 + $0x2d8] sm:$0xff] %v1750
    %1783 = vst [vmem:[#allocation3 + $0x360] sm:$0xff] %v1751
    %1784 = vst [vmem:[#allocation3 + $0x368] sm:$0xff] %v1752
    %1785 = vst [vmem:[#allocation3 + $0x3f0] sm:$0xff] %v1753
    %1786 = vst [vmem:[#allocation3 + $0x3f8] sm:$0xff] %v1754
    %v1787 = vld [vmem:[#allocation2] sm:$0xff]
    %v1788 = vld [vmem:[#allocation2 + $0x8] sm:$0x11]
    %v1789 = vld [vmem:[#allocation2 + $0x10] sm:$0xff]
    %v1790 = vld [vmem:[#allocation2 + $0x18] sm:$0x11]
    %v1791 = vld [vmem:[#allocation2 + $0x20] sm:$0xff]
    %v1792 = vld [vmem:[#allocation2 + $0x28] sm:$0x11]
    %v1793 = vld [vmem:[#allocation2 + $0x30] sm:$0xff]
    %v1794 = vld [vmem:[#allocation2 + $0x38] sm:$0x11]
    %v1795 = vld [vmem:[#allocation2 + $0x40] sm:$0xff]
    %v1796 = vld [vmem:[#allocation2 + $0x48] sm:$0x11]
    %v1797 = vld [vmem:[#allocation2 + $0x50] sm:$0xff]
    %v1798 = vld [vmem:[#allocation2 + $0x58] sm:$0x11]
    %v1799 = vld [vmem:[#allocation2 + $0x60] sm:$0xff]
    %v1800 = vld [vmem:[#allocation2 + $0x68] sm:$0x11]
    %v1801 = vld [vmem:[#allocation2 + $0x70] sm:$0xff]
    %v1802 = vld [vmem:[#allocation2 + $0x78] sm:$0x11]
    %v1803 = vld [vmem:[#allocation2 + $0xa0] sm:$0xff]
    %v1804 = vld [vmem:[#allocation2 + $0xa8] sm:$0x11]
    %v1805 = vld [vmem:[#allocation2 + $0xb0] sm:$0xff]
    %v1806 = vld [vmem:[#allocation2 + $0xb8] sm:$0x11]
    %v1807 = vld [vmem:[#allocation2 + $0xc0] sm:$0xff]
    %v1808 = vld [vmem:[#allocation2 + $0xc8] sm:$0x11]
    %v1809 = vld [vmem:[#allocation2 + $0xd0] sm:$0xff]
    %v1810 = vld [vmem:[#allocation2 + $0xd8] sm:$0x11]
    %v1811 = vld [vmem:[#allocation2 + $0xe0] sm:$0xff]
    %v1812 = vld [vmem:[#allocation2 + $0xe8] sm:$0x11]
    %v1813 = vld [vmem:[#allocation2 + $0xf0] sm:$0xff]
    %v1814 = vld [vmem:[#allocation2 + $0xf8] sm:$0x11]
    %v1815 = vld [vmem:[#allocation2 + $0x100] sm:$0xff]
    %v1816 = vld [vmem:[#allocation2 + $0x108] sm:$0x11]
    %v1817 = vld [vmem:[#allocation2 + $0x110] sm:$0xff]
    %v1818 = vld [vmem:[#allocation2 + $0x118] sm:$0x11]
    %vm1819 = vsmask.f32 3328
    %vm1820 = vsmask.f32 7440
    %vm1821 = vmor %vm1819, %vm1820
    %v1823 = vshrl.u32 %v1787, 16
    %v1825 = vrot.slane %v1823, 4
    %v1826 = vshll.u32 %v1787, 16
    %v1828 = vrot.slane %v1826, 5
    %v1829 = vor.u32 %v1825, %v1828
    %v1830 = vrot.slane %v1829, 4
    %v1832 = vshll.u32 %v1788, 16
    %v1834 = vrot.slane %v1832, 5
    %v1835 = vsel %vm1821, %v1830, %v1834
    %v1837 = vshrl.u32 %v1789, 16
    %v1839 = vrot.slane %v1837, 4
    %v1840 = vshll.u32 %v1789, 16
    %v1842 = vrot.slane %v1840, 5
    %v1843 = vor.u32 %v1839, %v1842
    %v1844 = vrot.slane %v1843, 4
    %v1846 = vshll.u32 %v1790, 16
    %v1848 = vrot.slane %v1846, 5
    %v1849 = vsel %vm1821, %v1844, %v1848
    %v1851 = vshrl.u32 %v1791, 16
    %v1853 = vrot.slane %v1851, 4
    %v1854 = vshll.u32 %v1791, 16
    %v1856 = vrot.slane %v1854, 5
    %v1857 = vor.u32 %v1853, %v1856
    %v1858 = vrot.slane %v1857, 4
    %v1860 = vshll.u32 %v1792, 16
    %v1862 = vrot.slane %v1860, 5
    %v1863 = vsel %vm1821, %v1858, %v1862
    %v1865 = vshrl.u32 %v1793, 16
    %v1867 = vrot.slane %v1865, 4
    %v1868 = vshll.u32 %v1793, 16
    %v1870 = vrot.slane %v1868, 5
    %v1871 = vor.u32 %v1867, %v1870
    %v1872 = vrot.slane %v1871, 4
    %v1874 = vshll.u32 %v1794, 16
    %v1876 = vrot.slane %v1874, 5
    %v1877 = vsel %vm1821, %v1872, %v1876
    %v1879 = vshrl.u32 %v1795, 16
    %v1881 = vrot.slane %v1879, 4
    %v1882 = vshll.u32 %v1795, 16
    %v1884 = vrot.slane %v1882, 5
    %v1885 = vor.u32 %v1881, %v1884
    %v1886 = vrot.slane %v1885, 4
    %v1888 = vshll.u32 %v1796, 16
    %v1890 = vrot.slane %v1888, 5
    %v1891 = vsel %vm1821, %v1886, %v1890
    %v1893 = vshrl.u32 %v1797, 16
    %v1895 = vrot.slane %v1893, 4
    %v1896 = vshll.u32 %v1797, 16
    %v1898 = vrot.slane %v1896, 5
    %v1899 = vor.u32 %v1895, %v1898
    %v1900 = vrot.slane %v1899, 4
    %v1902 = vshll.u32 %v1798, 16
    %v1904 = vrot.slane %v1902, 5
    %v1905 = vsel %vm1821, %v1900, %v1904
    %v1907 = vshrl.u32 %v1799, 16
    %v1909 = vrot.slane %v1907, 4
    %v1910 = vshll.u32 %v1799, 16
    %v1912 = vrot.slane %v1910, 5
    %v1913 = vor.u32 %v1909, %v1912
    %v1914 = vrot.slane %v1913, 4
    %v1916 = vshll.u32 %v1800, 16
    %v1918 = vrot.slane %v1916, 5
    %v1919 = vsel %vm1821, %v1914, %v1918
    %v1921 = vshrl.u32 %v1801, 16
    %v1923 = vrot.slane %v1921, 4
    %v1924 = vshll.u32 %v1801, 16
    %v1926 = vrot.slane %v1924, 5
    %v1927 = vor.u32 %v1923, %v1926
    %v1928 = vrot.slane %v1927, 4
    %v1930 = vshll.u32 %v1802, 16
    %v1932 = vrot.slane %v1930, 5
    %v1933 = vsel %vm1821, %v1928, %v1932
    %v1935 = vshrl.u32 %v1803, 16
    %v1937 = vrot.slane %v1935, 4
    %v1938 = vshll.u32 %v1803, 16
    %v1940 = vrot.slane %v1938, 5
    %v1941 = vor.u32 %v1937, %v1940
    %v1942 = vrot.slane %v1941, 4
    %v1944 = vshll.u32 %v1804, 16
    %v1946 = vrot.slane %v1944, 5
    %v1947 = vsel %vm1821, %v1942, %v1946
    %v1949 = vshrl.u32 %v1805, 16
    %v1951 = vrot.slane %v1949, 4
    %v1952 = vshll.u32 %v1805, 16
    %v1954 = vrot.slane %v1952, 5
    %v1955 = vor.u32 %v1951, %v1954
    %v1956 = vrot.slane %v1955, 4
    %v1958 = vshll.u32 %v1806, 16
    %v1960 = vrot.slane %v1958, 5
    %v1961 = vsel %vm1821, %v1956, %v1960
    %v1963 = vshrl.u32 %v1807, 16
    %v1965 = vrot.slane %v1963, 4
    %v1966 = vshll.u32 %v1807, 16
    %v1968 = vrot.slane %v1966, 5
    %v1969 = vor.u32 %v1965, %v1968
    %v1970 = vrot.slane %v1969, 4
    %v1972 = vshll.u32 %v1808, 16
    %v1974 = vrot.slane %v1972, 5
    %v1975 = vsel %vm1821, %v1970, %v1974
    %v1977 = vshrl.u32 %v1809, 16
    %v1979 = vrot.slane %v1977, 4
    %v1980 = vshll.u32 %v1809, 16
    %v1982 = vrot.slane %v1980, 5
    %v1983 = vor.u32 %v1979, %v1982
    %v1984 = vrot.slane %v1983, 4
    %v1986 = vshll.u32 %v1810, 16
    %v1988 = vrot.slane %v1986, 5
    %v1989 = vsel %vm1821, %v1984, %v1988
    %v1991 = vshrl.u32 %v1811, 16
    %v1993 = vrot.slane %v1991, 4
    %v1994 = vshll.u32 %v1811, 16
    %v1996 = vrot.slane %v1994, 5
    %v1997 = vor.u32 %v1993, %v1996
    %v1998 = vrot.slane %v1997, 4
    %v2000 = vshll.u32 %v1812, 16
    %v2002 = vrot.slane %v2000, 5
    %v2003 = vsel %vm1821, %v1998, %v2002
    %v2005 = vshrl.u32 %v1813, 16
    %v2007 = vrot.slane %v2005, 4
    %v2008 = vshll.u32 %v1813, 16
    %v2010 = vrot.slane %v2008, 5
    %v2011 = vor.u32 %v2007, %v2010
    %v2012 = vrot.slane %v2011, 4
    %v2014 = vshll.u32 %v1814, 16
    %v2016 = vrot.slane %v2014, 5
    %v2017 = vsel %vm1821, %v2012, %v2016
    %v2019 = vshrl.u32 %v1815, 16
    %v2021 = vrot.slane %v2019, 4
    %v2022 = vshll.u32 %v1815, 16
    %v2024 = vrot.slane %v2022, 5
    %v2025 = vor.u32 %v2021, %v2024
    %v2026 = vrot.slane %v2025, 4
    %v2028 = vshll.u32 %v1816, 16
    %v2030 = vrot.slane %v2028, 5
    %v2031 = vsel %vm1821, %v2026, %v2030
    %v2033 = vshrl.u32 %v1817, 16
    %v2035 = vrot.slane %v2033, 4
    %v2036 = vshll.u32 %v1817, 16
    %v2038 = vrot.slane %v2036, 5
    %v2039 = vor.u32 %v2035, %v2038
    %v2040 = vrot.slane %v2039, 4
    %v2042 = vshll.u32 %v1818, 16
    %v2044 = vrot.slane %v2042, 5
    %v2045 = vsel %vm1821, %v2040, %v2044
    %v2046 = vunpack.c.l.b16 %v1835
    %v2047 = vunpack.c.h.b16 %v1835
    %v2048 = vunpack.c.l.b16 %v1849
    %v2049 = vunpack.c.h.b16 %v1849
    %v2050 = vunpack.c.l.b16 %v1863
    %v2051 = vunpack.c.h.b16 %v1863
    %v2052 = vunpack.c.l.b16 %v1877
    %v2053 = vunpack.c.h.b16 %v1877
    %v2054 = vunpack.c.l.b16 %v1891
    %v2055 = vunpack.c.h.b16 %v1891
    %v2056 = vunpack.c.l.b16 %v1905
    %v2057 = vunpack.c.h.b16 %v1905
    %v2058 = vunpack.c.l.b16 %v1919
    %v2059 = vunpack.c.h.b16 %v1919
    %v2060 = vunpack.c.l.b16 %v1933
    %v2061 = vunpack.c.h.b16 %v1933
    %v2062 = vunpack.c.l.b16 %v1947
    %v2063 = vunpack.c.h.b16 %v1947
    %v2064 = vunpack.c.l.b16 %v1961
    %v2065 = vunpack.c.h.b16 %v1961
    %v2066 = vunpack.c.l.b16 %v1975
    %v2067 = vunpack.c.h.b16 %v1975
    %v2068 = vunpack.c.l.b16 %v1989
    %v2069 = vunpack.c.h.b16 %v1989
    %v2070 = vunpack.c.l.b16 %v2003
    %v2071 = vunpack.c.h.b16 %v2003
    %v2072 = vunpack.c.l.b16 %v2017
    %v2073 = vunpack.c.h.b16 %v2017
    %v2074 = vunpack.c.l.b16 %v2031
    %v2075 = vunpack.c.h.b16 %v2031
    %v2076 = vunpack.c.l.b16 %v2045
    %v2077 = vunpack.c.h.b16 %v2045
    %v2078 = vpack.c.b16 %v2048, %v2046
    %v2079 = vpack.c.b16 %v2049, %v2047
    %v2080 = vpack.c.b16 %v2052, %v2050
    %v2081 = vpack.c.b16 %v2053, %v2051
    %v2082 = vpack.c.b16 %v2056, %v2054
    %v2083 = vpack.c.b16 %v2057, %v2055
    %v2084 = vpack.c.b16 %v2060, %v2058
    %v2085 = vpack.c.b16 %v2061, %v2059
    %v2086 = vpack.c.b16 %v2064, %v2062
    %v2087 = vpack.c.b16 %v2065, %v2063
    %v2088 = vpack.c.b16 %v2068, %v2066
    %v2089 = vpack.c.b16 %v2069, %v2067
    %v2090 = vpack.c.b16 %v2072, %v2070
    %v2091 = vpack.c.b16 %v2073, %v2071
    %v2092 = vpack.c.b16 %v2076, %v2074
    %v2093 = vpack.c.b16 %v2077, %v2075
    %2110 = vst [vmem:[#allocation3 + $0x10] sm:$0xff] %v2078
    %2111 = vst [vmem:[#allocation3 + $0x18] sm:$0xff] %v2079
    %2112 = vst [vmem:[#allocation3 + $0xa0] sm:$0xff] %v2080
    %2113 = vst [vmem:[#allocation3 + $0xa8] sm:$0xff] %v2081
    %2114 = vst [vmem:[#allocation3 + $0x130] sm:$0xff] %v2082
    %2115 = vst [vmem:[#allocation3 + $0x138] sm:$0xff] %v2083
    %2116 = vst [vmem:[#allocation3 + $0x1c0] sm:$0xff] %v2084
    %2117 = vst [vmem:[#allocation3 + $0x1c8] sm:$0xff] %v2085
    %2118 = vst [vmem:[#allocation3 + $0x250] sm:$0xff] %v2086
    %2119 = vst [vmem:[#allocation3 + $0x258] sm:$0xff] %v2087
    %2120 = vst [vmem:[#allocation3 + $0x2e0] sm:$0xff] %v2088
    %2121 = vst [vmem:[#allocation3 + $0x2e8] sm:$0xff] %v2089
    %2122 = vst [vmem:[#allocation3 + $0x370] sm:$0xff] %v2090
    %2123 = vst [vmem:[#allocation3 + $0x378] sm:$0xff] %v2091
    %2124 = vst [vmem:[#allocation3 + $0x400] sm:$0xff] %v2092
    %2125 = vst [vmem:[#allocation3 + $0x408] sm:$0xff] %v2093
    %v2126 = vld [vmem:[#allocation2] sm:$0xee]
    %v2127 = vld [vmem:[#allocation2 + $0x8] sm:$0x11]
    %v2128 = vld [vmem:[#allocation2 + $0x10] sm:$0xee]
    %v2129 = vld [vmem:[#allocation2 + $0x18] sm:$0x11]
    %v2130 = vld [vmem:[#allocation2 + $0x20] sm:$0xee]
    %v2131 = vld [vmem:[#allocation2 + $0x28] sm:$0x11]
    %v2132 = vld [vmem:[#allocation2 + $0x30] sm:$0xee]
    %v2133 = vld [vmem:[#allocation2 + $0x38] sm:$0x11]
    %v2134 = vld [vmem:[#allocation2 + $0x40] sm:$0xee]
    %v2135 = vld [vmem:[#allocation2 + $0x48] sm:$0x11]
    %v2136 = vld [vmem:[#allocation2 + $0x50] sm:$0xee]
    %v2137 = vld [vmem:[#allocation2 + $0x58] sm:$0x11]
    %v2138 = vld [vmem:[#allocation2 + $0x60] sm:$0xee]
    %v2139 = vld [vmem:[#allocation2 + $0x68] sm:$0x11]
    %v2140 = vld [vmem:[#allocation2 + $0x70] sm:$0xee]
    %v2141 = vld [vmem:[#allocation2 + $0x78] sm:$0x11]
    %v2142 = vld [vmem:[#allocation2 + $0xa0] sm:$0xee]
    %v2143 = vld [vmem:[#allocation2 + $0xa8] sm:$0x11]
    %v2144 = vld [vmem:[#allocation2 + $0xb0] sm:$0xee]
    %v2145 = vld [vmem:[#allocation2 + $0xb8] sm:$0x11]
    %v2146 = vld [vmem:[#allocation2 + $0xc0] sm:$0xee]
    %v2147 = vld [vmem:[#allocation2 + $0xc8] sm:$0x11]
    %v2148 = vld [vmem:[#allocation2 + $0xd0] sm:$0xee]
    %v2149 = vld [vmem:[#allocation2 + $0xd8] sm:$0x11]
    %v2150 = vld [vmem:[#allocation2 + $0xe0] sm:$0xee]
    %v2151 = vld [vmem:[#allocation2 + $0xe8] sm:$0x11]
    %v2152 = vld [vmem:[#allocation2 + $0xf0] sm:$0xee]
    %v2153 = vld [vmem:[#allocation2 + $0xf8] sm:$0x11]
    %v2154 = vld [vmem:[#allocation2 + $0x100] sm:$0xee]
    %v2155 = vld [vmem:[#allocation2 + $0x108] sm:$0x11]
    %v2156 = vld [vmem:[#allocation2 + $0x110] sm:$0xee]
    %v2157 = vld [vmem:[#allocation2 + $0x118] sm:$0x11]
    %vm2190 = vcmask 1042432
    %vm2191 = vcmask 1046532
    %vm2192 = vmor %vm2190, %vm2191
    %v2193 = vrot.slane %v2126, 5
    %v2194 = vrot.slane %v2193, 4
    %v2195 = vrot.slane %v2127, 5
    %v2196 = vsel %vm2192, %v2194, %v2195
    %v2197 = vrot.slane %v2128, 5
    %v2198 = vrot.slane %v2197, 4
    %v2199 = vrot.slane %v2129, 5
    %v2200 = vsel %vm2192, %v2198, %v2199
    %v2201 = vrot.slane %v2130, 5
    %v2202 = vrot.slane %v2201, 4
    %v2203 = vrot.slane %v2131, 5
    %v2204 = vsel %vm2192, %v2202, %v2203
    %v2205 = vrot.slane %v2132, 5
    %v2206 = vrot.slane %v2205, 4
    %v2207 = vrot.slane %v2133, 5
    %v2208 = vsel %vm2192, %v2206, %v2207
    %v2209 = vrot.slane %v2134, 5
    %v2210 = vrot.slane %v2209, 4
    %v2211 = vrot.slane %v2135, 5
    %v2212 = vsel %vm2192, %v2210, %v2211
    %v2213 = vrot.slane %v2136, 5
    %v2214 = vrot.slane %v2213, 4
    %v2215 = vrot.slane %v2137, 5
    %v2216 = vsel %vm2192, %v2214, %v2215
    %v2217 = vrot.slane %v2138, 5
    %v2218 = vrot.slane %v2217, 4
    %v2219 = vrot.slane %v2139, 5
    %v2220 = vsel %vm2192, %v2218, %v2219
    %v2221 = vrot.slane %v2140, 5
    %v2222 = vrot.slane %v2221, 4
    %v2223 = vrot.slane %v2141, 5
    %v2224 = vsel %vm2192, %v2222, %v2223
    %v2225 = vrot.slane %v2142, 5
    %v2226 = vrot.slane %v2225, 4
    %v2227 = vrot.slane %v2143, 5
    %v2228 = vsel %vm2192, %v2226, %v2227
    %v2229 = vrot.slane %v2144, 5
    %v2230 = vrot.slane %v2229, 4
    %v2231 = vrot.slane %v2145, 5
    %v2232 = vsel %vm2192, %v2230, %v2231
    %v2233 = vrot.slane %v2146, 5
    %v2234 = vrot.slane %v2233, 4
    %v2235 = vrot.slane %v2147, 5
    %v2236 = vsel %vm2192, %v2234, %v2235
    %v2237 = vrot.slane %v2148, 5
    %v2238 = vrot.slane %v2237, 4
    %v2239 = vrot.slane %v2149, 5
    %v2240 = vsel %vm2192, %v2238, %v2239
    %v2241 = vrot.slane %v2150, 5
    %v2242 = vrot.slane %v2241, 4
    %v2243 = vrot.slane %v2151, 5
    %v2244 = vsel %vm2192, %v2242, %v2243
    %v2245 = vrot.slane %v2152, 5
    %v2246 = vrot.slane %v2245, 4
    %v2247 = vrot.slane %v2153, 5
    %v2248 = vsel %vm2192, %v2246, %v2247
    %v2249 = vrot.slane %v2154, 5
    %v2250 = vrot.slane %v2249, 4
    %v2251 = vrot.slane %v2155, 5
    %v2252 = vsel %vm2192, %v2250, %v2251
    %v2253 = vrot.slane %v2156, 5
    %v2254 = vrot.slane %v2253, 4
    %v2255 = vrot.slane %v2157, 5
    %v2256 = vsel %vm2192, %v2254, %v2255
    %v2257 = vunpack.c.l.b16 %v2196
    %v2258 = vunpack.c.h.b16 %v2196
    %v2259 = vunpack.c.l.b16 %v2200
    %v2260 = vunpack.c.h.b16 %v2200
    %v2261 = vunpack.c.l.b16 %v2204
    %v2262 = vunpack.c.h.b16 %v2204
    %v2263 = vunpack.c.l.b16 %v2208
    %v2264 = vunpack.c.h.b16 %v2208
    %v2265 = vunpack.c.l.b16 %v2212
    %v2266 = vunpack.c.h.b16 %v2212
    %v2267 = vunpack.c.l.b16 %v2216
    %v2268 = vunpack.c.h.b16 %v2216
    %v2269 = vunpack.c.l.b16 %v2220
    %v2270 = vunpack.c.h.b16 %v2220
    %v2271 = vunpack.c.l.b16 %v2224
    %v2272 = vunpack.c.h.b16 %v2224
    %v2273 = vunpack.c.l.b16 %v2228
    %v2274 = vunpack.c.h.b16 %v2228
    %v2275 = vunpack.c.l.b16 %v2232
    %v2276 = vunpack.c.h.b16 %v2232
    %v2277 = vunpack.c.l.b16 %v2236
    %v2278 = vunpack.c.h.b16 %v2236
    %v2279 = vunpack.c.l.b16 %v2240
    %v2280 = vunpack.c.h.b16 %v2240
    %v2281 = vunpack.c.l.b16 %v2244
    %v2282 = vunpack.c.h.b16 %v2244
    %v2283 = vunpack.c.l.b16 %v2248
    %v2284 = vunpack.c.h.b16 %v2248
    %v2285 = vunpack.c.l.b16 %v2252
    %v2286 = vunpack.c.h.b16 %v2252
    %v2287 = vunpack.c.l.b16 %v2256
    %v2288 = vunpack.c.h.b16 %v2256
    %v2289 = vpack.c.b16 %v2259, %v2257
    %v2290 = vpack.c.b16 %v2260, %v2258
    %v2291 = vpack.c.b16 %v2263, %v2261
    %v2292 = vpack.c.b16 %v2264, %v2262
    %v2293 = vpack.c.b16 %v2267, %v2265
    %v2294 = vpack.c.b16 %v2268, %v2266
    %v2295 = vpack.c.b16 %v2271, %v2269
    %v2296 = vpack.c.b16 %v2272, %v2270
    %v2297 = vpack.c.b16 %v2275, %v2273
    %v2298 = vpack.c.b16 %v2276, %v2274
    %v2299 = vpack.c.b16 %v2279, %v2277
    %v2300 = vpack.c.b16 %v2280, %v2278
    %v2301 = vpack.c.b16 %v2283, %v2281
    %v2302 = vpack.c.b16 %v2284, %v2282
    %v2303 = vpack.c.b16 %v2287, %v2285
    %v2304 = vpack.c.b16 %v2288, %v2286
    %2321 = vst [vmem:[#allocation3 + $0x20] sm:$0xff] %v2289
    %2322 = vst [vmem:[#allocation3 + $0x28] sm:$0xff] %v2290
    %2323 = vst [vmem:[#allocation3 + $0xb0] sm:$0xff] %v2291
    %2324 = vst [vmem:[#allocation3 + $0xb8] sm:$0xff] %v2292
    %2325 = vst [vmem:[#allocation3 + $0x140] sm:$0xff] %v2293
    %2326 = vst [vmem:[#allocation3 + $0x148] sm:$0xff] %v2294
    %2327 = vst [vmem:[#allocation3 + $0x1d0] sm:$0xff] %v2295
    %2328 = vst [vmem:[#allocation3 + $0x1d8] sm:$0xff] %v2296
    %2329 = vst [vmem:[#allocation3 + $0x260] sm:$0xff] %v2297
    %2330 = vst [vmem:[#allocation3 + $0x268] sm:$0xff] %v2298
    %2331 = vst [vmem:[#allocation3 + $0x2f0] sm:$0xff] %v2299
    %2332 = vst [vmem:[#allocation3 + $0x2f8] sm:$0xff] %v2300
    %2333 = vst [vmem:[#allocation3 + $0x380] sm:$0xff] %v2301
    %2334 = vst [vmem:[#allocation3 + $0x388] sm:$0xff] %v2302
    %2335 = vst [vmem:[#allocation3 + $0x410] sm:$0xff] %v2303
    %2336 = vst [vmem:[#allocation3 + $0x418] sm:$0xff] %v2304
    %v2337 = vld [vmem:[%s1193] sm:$0xff]
    %v2338 = vld [vmem:[%s1193 + $0x10] sm:$0xff]
    %v2339 = vld [vmem:[%s1193 + $0x20] sm:$0xff]
    %v2340 = vld [vmem:[%s1193 + $0x30] sm:$0xff]
    %v2341 = vld [vmem:[%s1193 + $0x40] sm:$0xff]
    %v2342 = vld [vmem:[%s1193 + $0x50] sm:$0xff]
    %v2343 = vld [vmem:[%s1193 + $0x60] sm:$0xff]
    %v2344 = vld [vmem:[%s1193 + $0x70] sm:$0xff]
    %v2345 = vld [vmem:[%s1193 + $0xa0] sm:$0xff]
    %v2346 = vld [vmem:[%s1193 + $0xb0] sm:$0xff]
    %v2347 = vld [vmem:[%s1193 + $0xc0] sm:$0xff]
    %v2348 = vld [vmem:[%s1193 + $0xd0] sm:$0xff]
    %v2349 = vld [vmem:[%s1193 + $0xe0] sm:$0xff]
    %v2350 = vld [vmem:[%s1193 + $0xf0] sm:$0xff]
    %v2351 = vld [vmem:[%s1193 + $0x100] sm:$0xff]
    %v2352 = vld [vmem:[%s1193 + $0x110] sm:$0xff]
    %v2369 = vunpack.c.l.b16 %v2337
    %v2370 = vunpack.c.h.b16 %v2337
    %v2371 = vunpack.c.l.b16 %v2338
    %v2372 = vunpack.c.h.b16 %v2338
    %v2373 = vunpack.c.l.b16 %v2339
    %v2374 = vunpack.c.h.b16 %v2339
    %v2375 = vunpack.c.l.b16 %v2340
    %v2376 = vunpack.c.h.b16 %v2340
    %v2377 = vunpack.c.l.b16 %v2341
    %v2378 = vunpack.c.h.b16 %v2341
    %v2379 = vunpack.c.l.b16 %v2342
    %v2380 = vunpack.c.h.b16 %v2342
    %v2381 = vunpack.c.l.b16 %v2343
    %v2382 = vunpack.c.h.b16 %v2343
    %v2383 = vunpack.c.l.b16 %v2344
    %v2384 = vunpack.c.h.b16 %v2344
    %v2385 = vunpack.c.l.b16 %v2345
    %v2386 = vunpack.c.h.b16 %v2345
    %v2387 = vunpack.c.l.b16 %v2346
    %v2388 = vunpack.c.h.b16 %v2346
    %v2389 = vunpack.c.l.b16 %v2347
    %v2390 = vunpack.c.h.b16 %v2347
    %v2391 = vunpack.c.l.b16 %v2348
    %v2392 = vunpack.c.h.b16 %v2348
    %v2393 = vunpack.c.l.b16 %v2349
    %v2394 = vunpack.c.h.b16 %v2349
    %v2395 = vunpack.c.l.b16 %v2350
    %v2396 = vunpack.c.h.b16 %v2350
    %v2397 = vunpack.c.l.b16 %v2351
    %v2398 = vunpack.c.h.b16 %v2351
    %v2399 = vunpack.c.l.b16 %v2352
    %v2400 = vunpack.c.h.b16 %v2352
    %v2401 = vpack.c.b16 %v2371, %v2369
    %v2402 = vpack.c.b16 %v2372, %v2370
    %v2403 = vpack.c.b16 %v2375, %v2373
    %v2404 = vpack.c.b16 %v2376, %v2374
    %v2405 = vpack.c.b16 %v2379, %v2377
    %v2406 = vpack.c.b16 %v2380, %v2378
    %v2407 = vpack.c.b16 %v2383, %v2381
    %v2408 = vpack.c.b16 %v2384, %v2382
    %v2409 = vpack.c.b16 %v2387, %v2385
    %v2410 = vpack.c.b16 %v2388, %v2386
    %v2411 = vpack.c.b16 %v2391, %v2389
    %v2412 = vpack.c.b16 %v2392, %v2390
    %v2413 = vpack.c.b16 %v2395, %v2393
    %v2414 = vpack.c.b16 %v2396, %v2394
    %v2415 = vpack.c.b16 %v2399, %v2397
    %v2416 = vpack.c.b16 %v2400, %v2398
    %2433 = vst [vmem:[#allocation3 + $0x30] sm:$0xff] %v2401
    %2434 = vst [vmem:[#allocation3 + $0x38] sm:$0xff] %v2402
    %2435 = vst [vmem:[#allocation3 + $0xc0] sm:$0xff] %v2403
    %2436 = vst [vmem:[#allocation3 + $0xc8] sm:$0xff] %v2404
    %2437 = vst [vmem:[#allocation3 + $0x150] sm:$0xff] %v2405
    %2438 = vst [vmem:[#allocation3 + $0x158] sm:$0xff] %v2406
    %2439 = vst [vmem:[#allocation3 + $0x1e0] sm:$0xff] %v2407
    %2440 = vst [vmem:[#allocation3 + $0x1e8] sm:$0xff] %v2408
    %2441 = vst [vmem:[#allocation3 + $0x270] sm:$0xff] %v2409
    %2442 = vst [vmem:[#allocation3 + $0x278] sm:$0xff] %v2410
    %2443 = vst [vmem:[#allocation3 + $0x300] sm:$0xff] %v2411
    %2444 = vst [vmem:[#allocation3 + $0x308] sm:$0xff] %v2412
    %2445 = vst [vmem:[#allocation3 + $0x390] sm:$0xff] %v2413
    %2446 = vst [vmem:[#allocation3 + $0x398] sm:$0xff] %v2414
    %2447 = vst [vmem:[#allocation3 + $0x420] sm:$0xff] %v2415
    %2448 = vst [vmem:[#allocation3 + $0x428] sm:$0xff] %v2416
    %v2449 = vld [vmem:[%s1193] sm:$0xff]
    %v2450 = vld [vmem:[%s1193 + $0x8] sm:$0x11]
    %v2451 = vld [vmem:[%s1193 + $0x10] sm:$0xff]
    %v2452 = vld [vmem:[%s1193 + $0x18] sm:$0x11]
    %v2453 = vld [vmem:[%s1193 + $0x20] sm:$0xff]
    %v2454 = vld [vmem:[%s1193 + $0x28] sm:$0x11]
    %v2455 = vld [vmem:[%s1193 + $0x30] sm:$0xff]
    %v2456 = vld [vmem:[%s1193 + $0x38] sm:$0x11]
    %v2457 = vld [vmem:[%s1193 + $0x40] sm:$0xff]
    %v2458 = vld [vmem:[%s1193 + $0x48] sm:$0x11]
    %v2459 = vld [vmem:[%s1193 + $0x50] sm:$0xff]
    %v2460 = vld [vmem:[%s1193 + $0x58] sm:$0x11]
    %v2461 = vld [vmem:[%s1193 + $0x60] sm:$0xff]
    %v2462 = vld [vmem:[%s1193 + $0x68] sm:$0x11]
    %v2463 = vld [vmem:[%s1193 + $0x70] sm:$0xff]
    %v2464 = vld [vmem:[%s1193 + $0x78] sm:$0x11]
    %v2465 = vld [vmem:[%s1193 + $0xa0] sm:$0xff]
    %v2466 = vld [vmem:[%s1193 + $0xa8] sm:$0x11]
    %v2467 = vld [vmem:[%s1193 + $0xb0] sm:$0xff]
    %v2468 = vld [vmem:[%s1193 + $0xb8] sm:$0x11]
    %v2469 = vld [vmem:[%s1193 + $0xc0] sm:$0xff]
    %v2470 = vld [vmem:[%s1193 + $0xc8] sm:$0x11]
    %v2471 = vld [vmem:[%s1193 + $0xd0] sm:$0xff]
    %v2472 = vld [vmem:[%s1193 + $0xd8] sm:$0x11]
    %v2473 = vld [vmem:[%s1193 + $0xe0] sm:$0xff]
    %v2474 = vld [vmem:[%s1193 + $0xe8] sm:$0x11]
    %v2475 = vld [vmem:[%s1193 + $0xf0] sm:$0xff]
    %v2476 = vld [vmem:[%s1193 + $0xf8] sm:$0x11]
    %v2477 = vld [vmem:[%s1193 + $0x100] sm:$0xff]
    %v2478 = vld [vmem:[%s1193 + $0x108] sm:$0x11]
    %v2479 = vld [vmem:[%s1193 + $0x110] sm:$0xff]
    %v2480 = vld [vmem:[%s1193 + $0x118] sm:$0x11]
    %v2482 = vshrl.u32 %v2449, 16
    %v2484 = vrot.slane %v2482, 4
    %v2485 = vshll.u32 %v2449, 16
    %v2487 = vrot.slane %v2485, 5
    %v2488 = vor.u32 %v2484, %v2487
    %v2489 = vrot.slane %v2488, 4
    %v2491 = vshll.u32 %v2450, 16
    %v2493 = vrot.slane %v2491, 5
    %v2494 = vsel %vm1821, %v2489, %v2493
    %v2496 = vshrl.u32 %v2451, 16
    %v2498 = vrot.slane %v2496, 4
    %v2499 = vshll.u32 %v2451, 16
    %v2501 = vrot.slane %v2499, 5
    %v2502 = vor.u32 %v2498, %v2501
    %v2503 = vrot.slane %v2502, 4
    %v2505 = vshll.u32 %v2452, 16
    %v2507 = vrot.slane %v2505, 5
    %v2508 = vsel %vm1821, %v2503, %v2507
    %v2510 = vshrl.u32 %v2453, 16
    %v2512 = vrot.slane %v2510, 4
    %v2513 = vshll.u32 %v2453, 16
    %v2515 = vrot.slane %v2513, 5
    %v2516 = vor.u32 %v2512, %v2515
    %v2517 = vrot.slane %v2516, 4
    %v2519 = vshll.u32 %v2454, 16
    %v2521 = vrot.slane %v2519, 5
    %v2522 = vsel %vm1821, %v2517, %v2521
    %v2524 = vshrl.u32 %v2455, 16
    %v2526 = vrot.slane %v2524, 4
    %v2527 = vshll.u32 %v2455, 16
    %v2529 = vrot.slane %v2527, 5
    %v2530 = vor.u32 %v2526, %v2529
    %v2531 = vrot.slane %v2530, 4
    %v2533 = vshll.u32 %v2456, 16
    %v2535 = vrot.slane %v2533, 5
    %v2536 = vsel %vm1821, %v2531, %v2535
    %v2538 = vshrl.u32 %v2457, 16
    %v2540 = vrot.slane %v2538, 4
    %v2541 = vshll.u32 %v2457, 16
    %v2543 = vrot.slane %v2541, 5
    %v2544 = vor.u32 %v2540, %v2543
    %v2545 = vrot.slane %v2544, 4
    %v2547 = vshll.u32 %v2458, 16
    %v2549 = vrot.slane %v2547, 5
    %v2550 = vsel %vm1821, %v2545, %v2549
    %v2552 = vshrl.u32 %v2459, 16
    %v2554 = vrot.slane %v2552, 4
    %v2555 = vshll.u32 %v2459, 16
    %v2557 = vrot.slane %v2555, 5
    %v2558 = vor.u32 %v2554, %v2557
    %v2559 = vrot.slane %v2558, 4
    %v2561 = vshll.u32 %v2460, 16
    %v2563 = vrot.slane %v2561, 5
    %v2564 = vsel %vm1821, %v2559, %v2563
    %v2566 = vshrl.u32 %v2461, 16
    %v2568 = vrot.slane %v2566, 4
    %v2569 = vshll.u32 %v2461, 16
    %v2571 = vrot.slane %v2569, 5
    %v2572 = vor.u32 %v2568, %v2571
    %v2573 = vrot.slane %v2572, 4
    %v2575 = vshll.u32 %v2462, 16
    %v2577 = vrot.slane %v2575, 5
    %v2578 = vsel %vm1821, %v2573, %v2577
    %v2580 = vshrl.u32 %v2463, 16
    %v2582 = vrot.slane %v2580, 4
    %v2583 = vshll.u32 %v2463, 16
    %v2585 = vrot.slane %v2583, 5
    %v2586 = vor.u32 %v2582, %v2585
    %v2587 = vrot.slane %v2586, 4
    %v2589 = vshll.u32 %v2464, 16
    %v2591 = vrot.slane %v2589, 5
    %v2592 = vsel %vm1821, %v2587, %v2591
    %v2594 = vshrl.u32 %v2465, 16
    %v2596 = vrot.slane %v2594, 4
    %v2597 = vshll.u32 %v2465, 16
    %v2599 = vrot.slane %v2597, 5
    %v2600 = vor.u32 %v2596, %v2599
    %v2601 = vrot.slane %v2600, 4
    %v2603 = vshll.u32 %v2466, 16
    %v2605 = vrot.slane %v2603, 5
    %v2606 = vsel %vm1821, %v2601, %v2605
    %v2608 = vshrl.u32 %v2467, 16
    %v2610 = vrot.slane %v2608, 4
    %v2611 = vshll.u32 %v2467, 16
    %v2613 = vrot.slane %v2611, 5
    %v2614 = vor.u32 %v2610, %v2613
    %v2615 = vrot.slane %v2614, 4
    %v2617 = vshll.u32 %v2468, 16
    %v2619 = vrot.slane %v2617, 5
    %v2620 = vsel %vm1821, %v2615, %v2619
    %v2622 = vshrl.u32 %v2469, 16
    %v2624 = vrot.slane %v2622, 4
    %v2625 = vshll.u32 %v2469, 16
    %v2627 = vrot.slane %v2625, 5
    %v2628 = vor.u32 %v2624, %v2627
    %v2629 = vrot.slane %v2628, 4
    %v2631 = vshll.u32 %v2470, 16
    %v2633 = vrot.slane %v2631, 5
    %v2634 = vsel %vm1821, %v2629, %v2633
    %v2636 = vshrl.u32 %v2471, 16
    %v2638 = vrot.slane %v2636, 4
    %v2639 = vshll.u32 %v2471, 16
    %v2641 = vrot.slane %v2639, 5
    %v2642 = vor.u32 %v2638, %v2641
    %v2643 = vrot.slane %v2642, 4
    %v2645 = vshll.u32 %v2472, 16
    %v2647 = vrot.slane %v2645, 5
    %v2648 = vsel %vm1821, %v2643, %v2647
    %v2650 = vshrl.u32 %v2473, 16
    %v2652 = vrot.slane %v2650, 4
    %v2653 = vshll.u32 %v2473, 16
    %v2655 = vrot.slane %v2653, 5
    %v2656 = vor.u32 %v2652, %v2655
    %v2657 = vrot.slane %v2656, 4
    %v2659 = vshll.u32 %v2474, 16
    %v2661 = vrot.slane %v2659, 5
    %v2662 = vsel %vm1821, %v2657, %v2661
    %v2664 = vshrl.u32 %v2475, 16
    %v2666 = vrot.slane %v2664, 4
    %v2667 = vshll.u32 %v2475, 16
    %v2669 = vrot.slane %v2667, 5
    %v2670 = vor.u32 %v2666, %v2669
    %v2671 = vrot.slane %v2670, 4
    %v2673 = vshll.u32 %v2476, 16
    %v2675 = vrot.slane %v2673, 5
    %v2676 = vsel %vm1821, %v2671, %v2675
    %v2678 = vshrl.u32 %v2477, 16
    %v2680 = vrot.slane %v2678, 4
    %v2681 = vshll.u32 %v2477, 16
    %v2683 = vrot.slane %v2681, 5
    %v2684 = vor.u32 %v2680, %v2683
    %v2685 = vrot.slane %v2684, 4
    %v2687 = vshll.u32 %v2478, 16
    %v2689 = vrot.slane %v2687, 5
    %v2690 = vsel %vm1821, %v2685, %v2689
    %v2692 = vshrl.u32 %v2479, 16
    %v2694 = vrot.slane %v2692, 4
    %v2695 = vshll.u32 %v2479, 16
    %v2697 = vrot.slane %v2695, 5
    %v2698 = vor.u32 %v2694, %v2697
    %v2699 = vrot.slane %v2698, 4
    %v2701 = vshll.u32 %v2480, 16
    %v2703 = vrot.slane %v2701, 5
    %v2704 = vsel %vm1821, %v2699, %v2703
    %v2705 = vunpack.c.l.b16 %v2494
    %v2706 = vunpack.c.h.b16 %v2494
    %v2707 = vunpack.c.l.b16 %v2508
    %v2708 = vunpack.c.h.b16 %v2508
    %v2709 = vunpack.c.l.b16 %v2522
    %v2710 = vunpack.c.h.b16 %v2522
    %v2711 = vunpack.c.l.b16 %v2536
    %v2712 = vunpack.c.h.b16 %v2536
    %v2713 = vunpack.c.l.b16 %v2550
    %v2714 = vunpack.c.h.b16 %v2550
    %v2715 = vunpack.c.l.b16 %v2564
    %v2716 = vunpack.c.h.b16 %v2564
    %v2717 = vunpack.c.l.b16 %v2578
    %v2718 = vunpack.c.h.b16 %v2578
    %v2719 = vunpack.c.l.b16 %v2592
    %v2720 = vunpack.c.h.b16 %v2592
    %v2721 = vunpack.c.l.b16 %v2606
    %v2722 = vunpack.c.h.b16 %v2606
    %v2723 = vunpack.c.l.b16 %v2620
    %v2724 = vunpack.c.h.b16 %v2620
    %v2725 = vunpack.c.l.b16 %v2634
    %v2726 = vunpack.c.h.b16 %v2634
    %v2727 = vunpack.c.l.b16 %v2648
    %v2728 = vunpack.c.h.b16 %v2648
    %v2729 = vunpack.c.l.b16 %v2662
    %v2730 = vunpack.c.h.b16 %v2662
    %v2731 = vunpack.c.l.b16 %v2676
    %v2732 = vunpack.c.h.b16 %v2676
    %v2733 = vunpack.c.l.b16 %v2690
    %v2734 = vunpack.c.h.b16 %v2690
    %v2735 = vunpack.c.l.b16 %v2704
    %v2736 = vunpack.c.h.b16 %v2704
    %v2737 = vpack.c.b16 %v2707, %v2705
    %v2738 = vpack.c.b16 %v2708, %v2706
    %v2739 = vpack.c.b16 %v2711, %v2709
    %v2740 = vpack.c.b16 %v2712, %v2710
    %v2741 = vpack.c.b16 %v2715, %v2713
    %v2742 = vpack.c.b16 %v2716, %v2714
    %v2743 = vpack.c.b16 %v2719, %v2717
    %v2744 = vpack.c.b16 %v2720, %v2718
    %v2745 = vpack.c.b16 %v2723, %v2721
    %v2746 = vpack.c.b16 %v2724, %v2722
    %v2747 = vpack.c.b16 %v2727, %v2725
    %v2748 = vpack.c.b16 %v2728, %v2726
    %v2749 = vpack.c.b16 %v2731, %v2729
    %v2750 = vpack.c.b16 %v2732, %v2730
    %v2751 = vpack.c.b16 %v2735, %v2733
    %v2752 = vpack.c.b16 %v2736, %v2734
    %2769 = vst [vmem:[#allocation3 + $0x40] sm:$0xff] %v2737
    %2770 = vst [vmem:[#allocation3 + $0x48] sm:$0xff] %v2738
    %2771 = vst [vmem:[#allocation3 + $0xd0] sm:$0xff] %v2739
    %2772 = vst [vmem:[#allocation3 + $0xd8] sm:$0xff] %v2740
    %2773 = vst [vmem:[#allocation3 + $0x160] sm:$0xff] %v2741
    %2774 = vst [vmem:[#allocation3 + $0x168] sm:$0xff] %v2742
    %2775 = vst [vmem:[#allocation3 + $0x1f0] sm:$0xff] %v2743
    %2776 = vst [vmem:[#allocation3 + $0x1f8] sm:$0xff] %v2744
    %2777 = vst [vmem:[#allocation3 + $0x280] sm:$0xff] %v2745
    %2778 = vst [vmem:[#allocation3 + $0x288] sm:$0xff] %v2746
    %2779 = vst [vmem:[#allocation3 + $0x310] sm:$0xff] %v2747
    %2780 = vst [vmem:[#allocation3 + $0x318] sm:$0xff] %v2748
    %2781 = vst [vmem:[#allocation3 + $0x3a0] sm:$0xff] %v2749
    %2782 = vst [vmem:[#allocation3 + $0x3a8] sm:$0xff] %v2750
    %2783 = vst [vmem:[#allocation3 + $0x430] sm:$0xff] %v2751
    %2784 = vst [vmem:[#allocation3 + $0x438] sm:$0xff] %v2752
    %v2785 = vld [vmem:[%s1193] sm:$0xee]
    %v2786 = vld [vmem:[%s1193 + $0x8] sm:$0x11]
    %v2787 = vld [vmem:[%s1193 + $0x10] sm:$0xee]
    %v2788 = vld [vmem:[%s1193 + $0x18] sm:$0x11]
    %v2789 = vld [vmem:[%s1193 + $0x20] sm:$0xee]
    %v2790 = vld [vmem:[%s1193 + $0x28] sm:$0x11]
    %v2791 = vld [vmem:[%s1193 + $0x30] sm:$0xee]
    %v2792 = vld [vmem:[%s1193 + $0x38] sm:$0x11]
    %v2793 = vld [vmem:[%s1193 + $0x40] sm:$0xee]
    %v2794 = vld [vmem:[%s1193 + $0x48] sm:$0x11]
    %v2795 = vld [vmem:[%s1193 + $0x50] sm:$0xee]
    %v2796 = vld [vmem:[%s1193 + $0x58] sm:$0x11]
    %v2797 = vld [vmem:[%s1193 + $0x60] sm:$0xee]
    %v2798 = vld [vmem:[%s1193 + $0x68] sm:$0x11]
    %v2799 = vld [vmem:[%s1193 + $0x70] sm:$0xee]
    %v2800 = vld [vmem:[%s1193 + $0x78] sm:$0x11]
    %v2801 = vld [vmem:[%s1193 + $0xa0] sm:$0xee]
    %v2802 = vld [vmem:[%s1193 + $0xa8] sm:$0x11]
    %v2803 = vld [vmem:[%s1193 + $0xb0] sm:$0xee]
    %v2804 = vld [vmem:[%s1193 + $0xb8] sm:$0x11]
    %v2805 = vld [vmem:[%s1193 + $0xc0] sm:$0xee]
    %v2806 = vld [vmem:[%s1193 + $0xc8] sm:$0x11]
    %v2807 = vld [vmem:[%s1193 + $0xd0] sm:$0xee]
    %v2808 = vld [vmem:[%s1193 + $0xd8] sm:$0x11]
    %v2809 = vld [vmem:[%s1193 + $0xe0] sm:$0xee]
    %v2810 = vld [vmem:[%s1193 + $0xe8] sm:$0x11]
    %v2811 = vld [vmem:[%s1193 + $0xf0] sm:$0xee]
    %v2812 = vld [vmem:[%s1193 + $0xf8] sm:$0x11]
    %v2813 = vld [vmem:[%s1193 + $0x100] sm:$0xee]
    %v2814 = vld [vmem:[%s1193 + $0x108] sm:$0x11]
    %v2815 = vld [vmem:[%s1193 + $0x110] sm:$0xee]
    %v2816 = vld [vmem:[%s1193 + $0x118] sm:$0x11]
    %v2849 = vrot.slane %v2785, 5
    %v2850 = vrot.slane %v2849, 4
    %v2851 = vrot.slane %v2786, 5
    %v2852 = vsel %vm2192, %v2850, %v2851
    %v2853 = vrot.slane %v2787, 5
    %v2854 = vrot.slane %v2853, 4
    %v2855 = vrot.slane %v2788, 5
    %v2856 = vsel %vm2192, %v2854, %v2855
    %v2857 = vrot.slane %v2789, 5
    %v2858 = vrot.slane %v2857, 4
    %v2859 = vrot.slane %v2790, 5
    %v2860 = vsel %vm2192, %v2858, %v2859
    %v2861 = vrot.slane %v2791, 5
    %v2862 = vrot.slane %v2861, 4
    %v2863 = vrot.slane %v2792, 5
    %v2864 = vsel %vm2192, %v2862, %v2863
    %v2865 = vrot.slane %v2793, 5
    %v2866 = vrot.slane %v2865, 4
    %v2867 = vrot.slane %v2794, 5
    %v2868 = vsel %vm2192, %v2866, %v2867
    %v2869 = vrot.slane %v2795, 5
    %v2870 = vrot.slane %v2869, 4
    %v2871 = vrot.slane %v2796, 5
    %v2872 = vsel %vm2192, %v2870, %v2871
    %v2873 = vrot.slane %v2797, 5
    %v2874 = vrot.slane %v2873, 4
    %v2875 = vrot.slane %v2798, 5
    %v2876 = vsel %vm2192, %v2874, %v2875
    %v2877 = vrot.slane %v2799, 5
    %v2878 = vrot.slane %v2877, 4
    %v2879 = vrot.slane %v2800, 5
    %v2880 = vsel %vm2192, %v2878, %v2879
    %v2881 = vrot.slane %v2801, 5
    %v2882 = vrot.slane %v2881, 4
    %v2883 = vrot.slane %v2802, 5
    %v2884 = vsel %vm2192, %v2882, %v2883
    %v2885 = vrot.slane %v2803, 5
    %v2886 = vrot.slane %v2885, 4
    %v2887 = vrot.slane %v2804, 5
    %v2888 = vsel %vm2192, %v2886, %v2887
    %v2889 = vrot.slane %v2805, 5
    %v2890 = vrot.slane %v2889, 4
    %v2891 = vrot.slane %v2806, 5
    %v2892 = vsel %vm2192, %v2890, %v2891
    %v2893 = vrot.slane %v2807, 5
    %v2894 = vrot.slane %v2893, 4
    %v2895 = vrot.slane %v2808, 5
    %v2896 = vsel %vm2192, %v2894, %v2895
    %v2897 = vrot.slane %v2809, 5
    %v2898 = vrot.slane %v2897, 4
    %v2899 = vrot.slane %v2810, 5
    %v2900 = vsel %vm2192, %v2898, %v2899
    %v2901 = vrot.slane %v2811, 5
    %v2902 = vrot.slane %v2901, 4
    %v2903 = vrot.slane %v2812, 5
    %v2904 = vsel %vm2192, %v2902, %v2903
    %v2905 = vrot.slane %v2813, 5
    %v2906 = vrot.slane %v2905, 4
    %v2907 = vrot.slane %v2814, 5
    %v2908 = vsel %vm2192, %v2906, %v2907
    %v2909 = vrot.slane %v2815, 5
    %v2910 = vrot.slane %v2909, 4
    %v2911 = vrot.slane %v2816, 5
    %v2912 = vsel %vm2192, %v2910, %v2911
    %v2913 = vunpack.c.l.b16 %v2852
    %v2914 = vunpack.c.h.b16 %v2852
    %v2915 = vunpack.c.l.b16 %v2856
    %v2916 = vunpack.c.h.b16 %v2856
    %v2917 = vunpack.c.l.b16 %v2860
    %v2918 = vunpack.c.h.b16 %v2860
    %v2919 = vunpack.c.l.b16 %v2864
    %v2920 = vunpack.c.h.b16 %v2864
    %v2921 = vunpack.c.l.b16 %v2868
    %v2922 = vunpack.c.h.b16 %v2868
    %v2923 = vunpack.c.l.b16 %v2872
    %v2924 = vunpack.c.h.b16 %v2872
    %v2925 = vunpack.c.l.b16 %v2876
    %v2926 = vunpack.c.h.b16 %v2876
    %v2927 = vunpack.c.l.b16 %v2880
    %v2928 = vunpack.c.h.b16 %v2880
    %v2929 = vunpack.c.l.b16 %v2884
    %v2930 = vunpack.c.h.b16 %v2884
    %v2931 = vunpack.c.l.b16 %v2888
    %v2932 = vunpack.c.h.b16 %v2888
    %v2933 = vunpack.c.l.b16 %v2892
    %v2934 = vunpack.c.h.b16 %v2892
    %v2935 = vunpack.c.l.b16 %v2896
    %v2936 = vunpack.c.h.b16 %v2896
    %v2937 = vunpack.c.l.b16 %v2900
    %v2938 = vunpack.c.h.b16 %v2900
    %v2939 = vunpack.c.l.b16 %v2904
    %v2940 = vunpack.c.h.b16 %v2904
    %v2941 = vunpack.c.l.b16 %v2908
    %v2942 = vunpack.c.h.b16 %v2908
    %v2943 = vunpack.c.l.b16 %v2912
    %v2944 = vunpack.c.h.b16 %v2912
    %v2945 = vpack.c.b16 %v2915, %v2913
    %v2946 = vpack.c.b16 %v2916, %v2914
    %v2947 = vpack.c.b16 %v2919, %v2917
    %v2948 = vpack.c.b16 %v2920, %v2918
    %v2949 = vpack.c.b16 %v2923, %v2921
    %v2950 = vpack.c.b16 %v2924, %v2922
    %v2951 = vpack.c.b16 %v2927, %v2925
    %v2952 = vpack.c.b16 %v2928, %v2926
    %v2953 = vpack.c.b16 %v2931, %v2929
    %v2954 = vpack.c.b16 %v2932, %v2930
    %v2955 = vpack.c.b16 %v2935, %v2933
    %v2956 = vpack.c.b16 %v2936, %v2934
    %v2957 = vpack.c.b16 %v2939, %v2937
    %v2958 = vpack.c.b16 %v2940, %v2938
    %v2959 = vpack.c.b16 %v2943, %v2941
    %v2960 = vpack.c.b16 %v2944, %v2942
    %2977 = vst [vmem:[#allocation3 + $0x50] sm:$0xff] %v2945
    %2978 = vst [vmem:[#allocation3 + $0x58] sm:$0xff] %v2946
    %2979 = vst [vmem:[#allocation3 + $0xe0] sm:$0xff] %v2947
    %2980 = vst [vmem:[#allocation3 + $0xe8] sm:$0xff] %v2948
    %2981 = vst [vmem:[#allocation3 + $0x170] sm:$0xff] %v2949
    %2982 = vst [vmem:[#allocation3 + $0x178] sm:$0xff] %v2950
    %2983 = vst [vmem:[#allocation3 + $0x200] sm:$0xff] %v2951
    %2984 = vst [vmem:[#allocation3 + $0x208] sm:$0xff] %v2952
    %2985 = vst [vmem:[#allocation3 + $0x290] sm:$0xff] %v2953
    %2986 = vst [vmem:[#allocation3 + $0x298] sm:$0xff] %v2954
    %2987 = vst [vmem:[#allocation3 + $0x320] sm:$0xff] %v2955
    %2988 = vst [vmem:[#allocation3 + $0x328] sm:$0xff] %v2956
    %2989 = vst [vmem:[#allocation3 + $0x3b0] sm:$0xff] %v2957
    %2990 = vst [vmem:[#allocation3 + $0x3b8] sm:$0xff] %v2958
    %2991 = vst [vmem:[#allocation3 + $0x440] sm:$0xff] %v2959
    %2992 = vst [vmem:[#allocation3 + $0x448] sm:$0xff] %v2960
    %s2993 = scalar_lea.vmem [#allocation2], 32
    %v2994 = vld [vmem:[%s2993] sm:$0xff]
    %v2995 = vld [vmem:[%s2993 + $0x10] sm:$0xff]
    %v2996 = vld [vmem:[%s2993 + $0x20] sm:$0xff]
    %v2997 = vld [vmem:[%s2993 + $0x30] sm:$0xff]
    %v2998 = vld [vmem:[%s2993 + $0x40] sm:$0xff]
    %v2999 = vld [vmem:[%s2993 + $0x50] sm:$0xff]
    %v3000 = vld [vmem:[%s2993 + $0x60] sm:$0xff]
    %v3001 = vld [vmem:[%s2993 + $0x70] sm:$0xff]
    %v3002 = vld [vmem:[%s2993 + $0xa0] sm:$0xff]
    %v3003 = vld [vmem:[%s2993 + $0xb0] sm:$0xff]
    %v3004 = vld [vmem:[%s2993 + $0xc0] sm:$0xff]
    %v3005 = vld [vmem:[%s2993 + $0xd0] sm:$0xff]
    %v3006 = vld [vmem:[%s2993 + $0xe0] sm:$0xff]
    %v3007 = vld [vmem:[%s2993 + $0xf0] sm:$0xff]
    %v3008 = vld [vmem:[%s2993 + $0x100] sm:$0xff]
    %v3009 = vld [vmem:[%s2993 + $0x110] sm:$0xff]
    %v3026 = vunpack.c.l.b16 %v2994
    %v3027 = vunpack.c.h.b16 %v2994
    %v3028 = vunpack.c.l.b16 %v2995
    %v3029 = vunpack.c.h.b16 %v2995
    %v3030 = vunpack.c.l.b16 %v2996
    %v3031 = vunpack.c.h.b16 %v2996
    %v3032 = vunpack.c.l.b16 %v2997
    %v3033 = vunpack.c.h.b16 %v2997
    %v3034 = vunpack.c.l.b16 %v2998
    %v3035 = vunpack.c.h.b16 %v2998
    %v3036 = vunpack.c.l.b16 %v2999
    %v3037 = vunpack.c.h.b16 %v2999
    %v3038 = vunpack.c.l.b16 %v3000
    %v3039 = vunpack.c.h.b16 %v3000
    %v3040 = vunpack.c.l.b16 %v3001
    %v3041 = vunpack.c.h.b16 %v3001
    %v3042 = vunpack.c.l.b16 %v3002
    %v3043 = vunpack.c.h.b16 %v3002
    %v3044 = vunpack.c.l.b16 %v3003
    %v3045 = vunpack.c.h.b16 %v3003
    %v3046 = vunpack.c.l.b16 %v3004
    %v3047 = vunpack.c.h.b16 %v3004
    %v3048 = vunpack.c.l.b16 %v3005
    %v3049 = vunpack.c.h.b16 %v3005
    %v3050 = vunpack.c.l.b16 %v3006
    %v3051 = vunpack.c.h.b16 %v3006
    %v3052 = vunpack.c.l.b16 %v3007
    %v3053 = vunpack.c.h.b16 %v3007
    %v3054 = vunpack.c.l.b16 %v3008
    %v3055 = vunpack.c.h.b16 %v3008
    %v3056 = vunpack.c.l.b16 %v3009
    %v3057 = vunpack.c.h.b16 %v3009
    %v3058 = vpack.c.b16 %v3028, %v3026
    %v3059 = vpack.c.b16 %v3029, %v3027
    %v3060 = vpack.c.b16 %v3032, %v3030
    %v3061 = vpack.c.b16 %v3033, %v3031
    %v3062 = vpack.c.b16 %v3036, %v3034
    %v3063 = vpack.c.b16 %v3037, %v3035
    %v3064 = vpack.c.b16 %v3040, %v3038
    %v3065 = vpack.c.b16 %v3041, %v3039
    %v3066 = vpack.c.b16 %v3044, %v3042
    %v3067 = vpack.c.b16 %v3045, %v3043
    %v3068 = vpack.c.b16 %v3048, %v3046
    %v3069 = vpack.c.b16 %v3049, %v3047
    %v3070 = vpack.c.b16 %v3052, %v3050
    %v3071 = vpack.c.b16 %v3053, %v3051
    %v3072 = vpack.c.b16 %v3056, %v3054
    %v3073 = vpack.c.b16 %v3057, %v3055
    %3090 = vst [vmem:[#allocation3 + $0x60] sm:$0xff] %v3058
    %3091 = vst [vmem:[#allocation3 + $0x68] sm:$0xff] %v3059
    %3092 = vst [vmem:[#allocation3 + $0xf0] sm:$0xff] %v3060
    %3093 = vst [vmem:[#allocation3 + $0xf8] sm:$0xff] %v3061
    %3094 = vst [vmem:[#allocation3 + $0x180] sm:$0xff] %v3062
    %3095 = vst [vmem:[#allocation3 + $0x188] sm:$0xff] %v3063
    %3096 = vst [vmem:[#allocation3 + $0x210] sm:$0xff] %v3064
    %3097 = vst [vmem:[#allocation3 + $0x218] sm:$0xff] %v3065
    %3098 = vst [vmem:[#allocation3 + $0x2a0] sm:$0xff] %v3066
    %3099 = vst [vmem:[#allocation3 + $0x2a8] sm:$0xff] %v3067
    %3100 = vst [vmem:[#allocation3 + $0x330] sm:$0xff] %v3068
    %3101 = vst [vmem:[#allocation3 + $0x338] sm:$0xff] %v3069
    %3102 = vst [vmem:[#allocation3 + $0x3c0] sm:$0xff] %v3070
    %3103 = vst [vmem:[#allocation3 + $0x3c8] sm:$0xff] %v3071
    %3104 = vst [vmem:[#allocation3 + $0x450] sm:$0xff] %v3072
    %3105 = vst [vmem:[#allocation3 + $0x458] sm:$0xff] %v3073
    %v3106 = vld [vmem:[%s2993] sm:$0xff]
    %v3107 = vld [vmem:[%s2993 + $0x8] sm:$0x11]
    %v3108 = vld [vmem:[%s2993 + $0x10] sm:$0xff]
    %v3109 = vld [vmem:[%s2993 + $0x18] sm:$0x11]
    %v3110 = vld [vmem:[%s2993 + $0x20] sm:$0xff]
    %v3111 = vld [vmem:[%s2993 + $0x28] sm:$0x11]
    %v3112 = vld [vmem:[%s2993 + $0x30] sm:$0xff]
    %v3113 = vld [vmem:[%s2993 + $0x38] sm:$0x11]
    %v3114 = vld [vmem:[%s2993 + $0x40] sm:$0xff]
    %v3115 = vld [vmem:[%s2993 + $0x48] sm:$0x11]
    %v3116 = vld [vmem:[%s2993 + $0x50] sm:$0xff]
    %v3117 = vld [vmem:[%s2993 + $0x58] sm:$0x11]
    %v3118 = vld [vmem:[%s2993 + $0x60] sm:$0xff]
    %v3119 = vld [vmem:[%s2993 + $0x68] sm:$0x11]
    %v3120 = vld [vmem:[%s2993 + $0x70] sm:$0xff]
    %v3121 = vld [vmem:[%s2993 + $0x78] sm:$0x11]
    %v3122 = vld [vmem:[%s2993 + $0xa0] sm:$0xff]
    %v3123 = vld [vmem:[%s2993 + $0xa8] sm:$0x11]
    %v3124 = vld [vmem:[%s2993 + $0xb0] sm:$0xff]
    %v3125 = vld [vmem:[%s2993 + $0xb8] sm:$0x11]
    %v3126 = vld [vmem:[%s2993 + $0xc0] sm:$0xff]
    %v3127 = vld [vmem:[%s2993 + $0xc8] sm:$0x11]
    %v3128 = vld [vmem:[%s2993 + $0xd0] sm:$0xff]
    %v3129 = vld [vmem:[%s2993 + $0xd8] sm:$0x11]
    %v3130 = vld [vmem:[%s2993 + $0xe0] sm:$0xff]
    %v3131 = vld [vmem:[%s2993 + $0xe8] sm:$0x11]
    %v3132 = vld [vmem:[%s2993 + $0xf0] sm:$0xff]
    %v3133 = vld [vmem:[%s2993 + $0xf8] sm:$0x11]
    %v3134 = vld [vmem:[%s2993 + $0x100] sm:$0xff]
    %v3135 = vld [vmem:[%s2993 + $0x108] sm:$0x11]
    %v3136 = vld [vmem:[%s2993 + $0x110] sm:$0xff]
    %v3137 = vld [vmem:[%s2993 + $0x118] sm:$0x11]
    %v3139 = vshrl.u32 %v3106, 16
    %v3141 = vrot.slane %v3139, 4
    %v3142 = vshll.u32 %v3106, 16
    %v3144 = vrot.slane %v3142, 5
    %v3145 = vor.u32 %v3141, %v3144
    %v3146 = vrot.slane %v3145, 4
    %v3148 = vshll.u32 %v3107, 16
    %v3150 = vrot.slane %v3148, 5
    %v3151 = vsel %vm1821, %v3146, %v3150
    %v3153 = vshrl.u32 %v3108, 16
    %v3155 = vrot.slane %v3153, 4
    %v3156 = vshll.u32 %v3108, 16
    %v3158 = vrot.slane %v3156, 5
    %v3159 = vor.u32 %v3155, %v3158
    %v3160 = vrot.slane %v3159, 4
    %v3162 = vshll.u32 %v3109, 16
    %v3164 = vrot.slane %v3162, 5
    %v3165 = vsel %vm1821, %v3160, %v3164
    %v3167 = vshrl.u32 %v3110, 16
    %v3169 = vrot.slane %v3167, 4
    %v3170 = vshll.u32 %v3110, 16
    %v3172 = vrot.slane %v3170, 5
    %v3173 = vor.u32 %v3169, %v3172
    %v3174 = vrot.slane %v3173, 4
    %v3176 = vshll.u32 %v3111, 16
    %v3178 = vrot.slane %v3176, 5
    %v3179 = vsel %vm1821, %v3174, %v3178
    %v3181 = vshrl.u32 %v3112, 16
    %v3183 = vrot.slane %v3181, 4
    %v3184 = vshll.u32 %v3112, 16
    %v3186 = vrot.slane %v3184, 5
    %v3187 = vor.u32 %v3183, %v3186
    %v3188 = vrot.slane %v3187, 4
    %v3190 = vshll.u32 %v3113, 16
    %v3192 = vrot.slane %v3190, 5
    %v3193 = vsel %vm1821, %v3188, %v3192
    %v3195 = vshrl.u32 %v3114, 16
    %v3197 = vrot.slane %v3195, 4
    %v3198 = vshll.u32 %v3114, 16
    %v3200 = vrot.slane %v3198, 5
    %v3201 = vor.u32 %v3197, %v3200
    %v3202 = vrot.slane %v3201, 4
    %v3204 = vshll.u32 %v3115, 16
    %v3206 = vrot.slane %v3204, 5
    %v3207 = vsel %vm1821, %v3202, %v3206
    %v3209 = vshrl.u32 %v3116, 16
    %v3211 = vrot.slane %v3209, 4
    %v3212 = vshll.u32 %v3116, 16
    %v3214 = vrot.slane %v3212, 5
    %v3215 = vor.u32 %v3211, %v3214
    %v3216 = vrot.slane %v3215, 4
    %v3218 = vshll.u32 %v3117, 16
    %v3220 = vrot.slane %v3218, 5
    %v3221 = vsel %vm1821, %v3216, %v3220
    %v3223 = vshrl.u32 %v3118, 16
    %v3225 = vrot.slane %v3223, 4
    %v3226 = vshll.u32 %v3118, 16
    %v3228 = vrot.slane %v3226, 5
    %v3229 = vor.u32 %v3225, %v3228
    %v3230 = vrot.slane %v3229, 4
    %v3232 = vshll.u32 %v3119, 16
    %v3234 = vrot.slane %v3232, 5
    %v3235 = vsel %vm1821, %v3230, %v3234
    %v3237 = vshrl.u32 %v3120, 16
    %v3239 = vrot.slane %v3237, 4
    %v3240 = vshll.u32 %v3120, 16
    %v3242 = vrot.slane %v3240, 5
    %v3243 = vor.u32 %v3239, %v3242
    %v3244 = vrot.slane %v3243, 4
    %v3246 = vshll.u32 %v3121, 16
    %v3248 = vrot.slane %v3246, 5
    %v3249 = vsel %vm1821, %v3244, %v3248
    %v3251 = vshrl.u32 %v3122, 16
    %v3253 = vrot.slane %v3251, 4
    %v3254 = vshll.u32 %v3122, 16
    %v3256 = vrot.slane %v3254, 5
    %v3257 = vor.u32 %v3253, %v3256
    %v3258 = vrot.slane %v3257, 4
    %v3260 = vshll.u32 %v3123, 16
    %v3262 = vrot.slane %v3260, 5
    %v3263 = vsel %vm1821, %v3258, %v3262
    %v3265 = vshrl.u32 %v3124, 16
    %v3267 = vrot.slane %v3265, 4
    %v3268 = vshll.u32 %v3124, 16
    %v3270 = vrot.slane %v3268, 5
    %v3271 = vor.u32 %v3267, %v3270
    %v3272 = vrot.slane %v3271, 4
    %v3274 = vshll.u32 %v3125, 16
    %v3276 = vrot.slane %v3274, 5
    %v3277 = vsel %vm1821, %v3272, %v3276
    %v3279 = vshrl.u32 %v3126, 16
    %v3281 = vrot.slane %v3279, 4
    %v3282 = vshll.u32 %v3126, 16
    %v3284 = vrot.slane %v3282, 5
    %v3285 = vor.u32 %v3281, %v3284
    %v3286 = vrot.slane %v3285, 4
    %v3288 = vshll.u32 %v3127, 16
    %v3290 = vrot.slane %v3288, 5
    %v3291 = vsel %vm1821, %v3286, %v3290
    %v3293 = vshrl.u32 %v3128, 16
    %v3295 = vrot.slane %v3293, 4
    %v3296 = vshll.u32 %v3128, 16
    %v3298 = vrot.slane %v3296, 5
    %v3299 = vor.u32 %v3295, %v3298
    %v3300 = vrot.slane %v3299, 4
    %v3302 = vshll.u32 %v3129, 16
    %v3304 = vrot.slane %v3302, 5
    %v3305 = vsel %vm1821, %v3300, %v3304
    %v3307 = vshrl.u32 %v3130, 16
    %v3309 = vrot.slane %v3307, 4
    %v3310 = vshll.u32 %v3130, 16
    %v3312 = vrot.slane %v3310, 5
    %v3313 = vor.u32 %v3309, %v3312
    %v3314 = vrot.slane %v3313, 4
    %v3316 = vshll.u32 %v3131, 16
    %v3318 = vrot.slane %v3316, 5
    %v3319 = vsel %vm1821, %v3314, %v3318
    %v3321 = vshrl.u32 %v3132, 16
    %v3323 = vrot.slane %v3321, 4
    %v3324 = vshll.u32 %v3132, 16
    %v3326 = vrot.slane %v3324, 5
    %v3327 = vor.u32 %v3323, %v3326
    %v3328 = vrot.slane %v3327, 4
    %v3330 = vshll.u32 %v3133, 16
    %v3332 = vrot.slane %v3330, 5
    %v3333 = vsel %vm1821, %v3328, %v3332
    %v3335 = vshrl.u32 %v3134, 16
    %v3337 = vrot.slane %v3335, 4
    %v3338 = vshll.u32 %v3134, 16
    %v3340 = vrot.slane %v3338, 5
    %v3341 = vor.u32 %v3337, %v3340
    %v3342 = vrot.slane %v3341, 4
    %v3344 = vshll.u32 %v3135, 16
    %v3346 = vrot.slane %v3344, 5
    %v3347 = vsel %vm1821, %v3342, %v3346
    %v3349 = vshrl.u32 %v3136, 16
    %v3351 = vrot.slane %v3349, 4
    %v3352 = vshll.u32 %v3136, 16
    %v3354 = vrot.slane %v3352, 5
    %v3355 = vor.u32 %v3351, %v3354
    %v3356 = vrot.slane %v3355, 4
    %v3358 = vshll.u32 %v3137, 16
    %v3360 = vrot.slane %v3358, 5
    %v3361 = vsel %vm1821, %v3356, %v3360
    %v3362 = vunpack.c.l.b16 %v3151
    %v3363 = vunpack.c.h.b16 %v3151
    %v3364 = vunpack.c.l.b16 %v3165
    %v3365 = vunpack.c.h.b16 %v3165
    %v3366 = vunpack.c.l.b16 %v3179
    %v3367 = vunpack.c.h.b16 %v3179
    %v3368 = vunpack.c.l.b16 %v3193
    %v3369 = vunpack.c.h.b16 %v3193
    %v3370 = vunpack.c.l.b16 %v3207
    %v3371 = vunpack.c.h.b16 %v3207
    %v3372 = vunpack.c.l.b16 %v3221
    %v3373 = vunpack.c.h.b16 %v3221
    %v3374 = vunpack.c.l.b16 %v3235
    %v3375 = vunpack.c.h.b16 %v3235
    %v3376 = vunpack.c.l.b16 %v3249
    %v3377 = vunpack.c.h.b16 %v3249
    %v3378 = vunpack.c.l.b16 %v3263
    %v3379 = vunpack.c.h.b16 %v3263
    %v3380 = vunpack.c.l.b16 %v3277
    %v3381 = vunpack.c.h.b16 %v3277
    %v3382 = vunpack.c.l.b16 %v3291
    %v3383 = vunpack.c.h.b16 %v3291
    %v3384 = vunpack.c.l.b16 %v3305
    %v3385 = vunpack.c.h.b16 %v3305
    %v3386 = vunpack.c.l.b16 %v3319
    %v3387 = vunpack.c.h.b16 %v3319
    %v3388 = vunpack.c.l.b16 %v3333
    %v3389 = vunpack.c.h.b16 %v3333
    %v3390 = vunpack.c.l.b16 %v3347
    %v3391 = vunpack.c.h.b16 %v3347
    %v3392 = vunpack.c.l.b16 %v3361
    %v3393 = vunpack.c.h.b16 %v3361
    %v3394 = vpack.c.b16 %v3364, %v3362
    %v3395 = vpack.c.b16 %v3365, %v3363
    %v3396 = vpack.c.b16 %v3368, %v3366
    %v3397 = vpack.c.b16 %v3369, %v3367
    %v3398 = vpack.c.b16 %v3372, %v3370
    %v3399 = vpack.c.b16 %v3373, %v3371
    %v3400 = vpack.c.b16 %v3376, %v3374
    %v3401 = vpack.c.b16 %v3377, %v3375
    %v3402 = vpack.c.b16 %v3380, %v3378
    %v3403 = vpack.c.b16 %v3381, %v3379
    %v3404 = vpack.c.b16 %v3384, %v3382
    %v3405 = vpack.c.b16 %v3385, %v3383
    %v3406 = vpack.c.b16 %v3388, %v3386
    %v3407 = vpack.c.b16 %v3389, %v3387
    %v3408 = vpack.c.b16 %v3392, %v3390
    %v3409 = vpack.c.b16 %v3393, %v3391
    %3426 = vst [vmem:[#allocation3 + $0x70] sm:$0xff] %v3394
    %3427 = vst [vmem:[#allocation3 + $0x78] sm:$0xff] %v3395
    %3428 = vst [vmem:[#allocation3 + $0x100] sm:$0xff] %v3396
    %3429 = vst [vmem:[#allocation3 + $0x108] sm:$0xff] %v3397
    %3430 = vst [vmem:[#allocation3 + $0x190] sm:$0xff] %v3398
    %3431 = vst [vmem:[#allocation3 + $0x198] sm:$0xff] %v3399
    %3432 = vst [vmem:[#allocation3 + $0x220] sm:$0xff] %v3400
    %3433 = vst [vmem:[#allocation3 + $0x228] sm:$0xff] %v3401
    %3434 = vst [vmem:[#allocation3 + $0x2b0] sm:$0xff] %v3402
    %3435 = vst [vmem:[#allocation3 + $0x2b8] sm:$0xff] %v3403
    %3436 = vst [vmem:[#allocation3 + $0x340] sm:$0xff] %v3404
    %3437 = vst [vmem:[#allocation3 + $0x348] sm:$0xff] %v3405
    %3438 = vst [vmem:[#allocation3 + $0x3d0] sm:$0xff] %v3406
    %3439 = vst [vmem:[#allocation3 + $0x3d8] sm:$0xff] %v3407
    %3440 = vst [vmem:[#allocation3 + $0x460] sm:$0xff] %v3408
    %3441 = vst [vmem:[#allocation3 + $0x468] sm:$0xff] %v3409
    %v3442 = vld [vmem:[%s2993] sm:$0xee]
    %v3443 = vld [vmem:[%s2993 + $0x8] sm:$0x11]
    %v3444 = vld [vmem:[%s2993 + $0x10] sm:$0xee]
    %v3445 = vld [vmem:[%s2993 + $0x18] sm:$0x11]
    %v3446 = vld [vmem:[%s2993 + $0x20] sm:$0xee]
    %v3447 = vld [vmem:[%s2993 + $0x28] sm:$0x11]
    %v3448 = vld [vmem:[%s2993 + $0x30] sm:$0xee]
    %v3449 = vld [vmem:[%s2993 + $0x38] sm:$0x11]
    %v3450 = vld [vmem:[%s2993 + $0x40] sm:$0xee]
    %v3451 = vld [vmem:[%s2993 + $0x48] sm:$0x11]
    %v3452 = vld [vmem:[%s2993 + $0x50] sm:$0xee]
    %v3453 = vld [vmem:[%s2993 + $0x58] sm:$0x11]
    %v3454 = vld [vmem:[%s2993 + $0x60] sm:$0xee]
    %v3455 = vld [vmem:[%s2993 + $0x68] sm:$0x11]
    %v3456 = vld [vmem:[%s2993 + $0x70] sm:$0xee]
    %v3457 = vld [vmem:[%s2993 + $0x78] sm:$0x11]
    %v3458 = vld [vmem:[%s2993 + $0xa0] sm:$0xee]
    %v3459 = vld [vmem:[%s2993 + $0xa8] sm:$0x11]
    %v3460 = vld [vmem:[%s2993 + $0xb0] sm:$0xee]
    %v3461 = vld [vmem:[%s2993 + $0xb8] sm:$0x11]
    %v3462 = vld [vmem:[%s2993 + $0xc0] sm:$0xee]
    %v3463 = vld [vmem:[%s2993 + $0xc8] sm:$0x11]
    %v3464 = vld [vmem:[%s2993 + $0xd0] sm:$0xee]
    %v3465 = vld [vmem:[%s2993 + $0xd8] sm:$0x11]
    %v3466 = vld [vmem:[%s2993 + $0xe0] sm:$0xee]
    %v3467 = vld [vmem:[%s2993 + $0xe8] sm:$0x11]
    %v3468 = vld [vmem:[%s2993 + $0xf0] sm:$0xee]
    %v3469 = vld [vmem:[%s2993 + $0xf8] sm:$0x11]
    %v3470 = vld [vmem:[%s2993 + $0x100] sm:$0xee]
    %v3471 = vld [vmem:[%s2993 + $0x108] sm:$0x11]
    %v3472 = vld [vmem:[%s2993 + $0x110] sm:$0xee]
    %v3473 = vld [vmem:[%s2993 + $0x118] sm:$0x11]
    %v3506 = vrot.slane %v3442, 5
    %v3507 = vrot.slane %v3506, 4
    %v3508 = vrot.slane %v3443, 5
    %v3509 = vsel %vm2192, %v3507, %v3508
    %v3510 = vrot.slane %v3444, 5
    %v3511 = vrot.slane %v3510, 4
    %v3512 = vrot.slane %v3445, 5
    %v3513 = vsel %vm2192, %v3511, %v3512
    %v3514 = vrot.slane %v3446, 5
    %v3515 = vrot.slane %v3514, 4
    %v3516 = vrot.slane %v3447, 5
    %v3517 = vsel %vm2192, %v3515, %v3516
    %v3518 = vrot.slane %v3448, 5
    %v3519 = vrot.slane %v3518, 4
    %v3520 = vrot.slane %v3449, 5
    %v3521 = vsel %vm2192, %v3519, %v3520
    %v3522 = vrot.slane %v3450, 5
    %v3523 = vrot.slane %v3522, 4
    %v3524 = vrot.slane %v3451, 5
    %v3525 = vsel %vm2192, %v3523, %v3524
    %v3526 = vrot.slane %v3452, 5
    %v3527 = vrot.slane %v3526, 4
    %v3528 = vrot.slane %v3453, 5
    %v3529 = vsel %vm2192, %v3527, %v3528
    %v3530 = vrot.slane %v3454, 5
    %v3531 = vrot.slane %v3530, 4
    %v3532 = vrot.slane %v3455, 5
    %v3533 = vsel %vm2192, %v3531, %v3532
    %v3534 = vrot.slane %v3456, 5
    %v3535 = vrot.slane %v3534, 4
    %v3536 = vrot.slane %v3457, 5
    %v3537 = vsel %vm2192, %v3535, %v3536
    %v3538 = vrot.slane %v3458, 5
    %v3539 = vrot.slane %v3538, 4
    %v3540 = vrot.slane %v3459, 5
    %v3541 = vsel %vm2192, %v3539, %v3540
    %v3542 = vrot.slane %v3460, 5
    %v3543 = vrot.slane %v3542, 4
    %v3544 = vrot.slane %v3461, 5
    %v3545 = vsel %vm2192, %v3543, %v3544
    %v3546 = vrot.slane %v3462, 5
    %v3547 = vrot.slane %v3546, 4
    %v3548 = vrot.slane %v3463, 5
    %v3549 = vsel %vm2192, %v3547, %v3548
    %v3550 = vrot.slane %v3464, 5
    %v3551 = vrot.slane %v3550, 4
    %v3552 = vrot.slane %v3465, 5
    %v3553 = vsel %vm2192, %v3551, %v3552
    %v3554 = vrot.slane %v3466, 5
    %v3555 = vrot.slane %v3554, 4
    %v3556 = vrot.slane %v3467, 5
    %v3557 = vsel %vm2192, %v3555, %v3556
    %v3558 = vrot.slane %v3468, 5
    %v3559 = vrot.slane %v3558, 4
    %v3560 = vrot.slane %v3469, 5
    %v3561 = vsel %vm2192, %v3559, %v3560
    %v3562 = vrot.slane %v3470, 5
    %v3563 = vrot.slane %v3562, 4
    %v3564 = vrot.slane %v3471, 5
    %v3565 = vsel %vm2192, %v3563, %v3564
    %v3566 = vrot.slane %v3472, 5
    %v3567 = vrot.slane %v3566, 4
    %v3568 = vrot.slane %v3473, 5
    %v3569 = vsel %vm2192, %v3567, %v3568
    %v3570 = vunpack.c.l.b16 %v3509
    %v3571 = vunpack.c.h.b16 %v3509
    %v3572 = vunpack.c.l.b16 %v3513
    %v3573 = vunpack.c.h.b16 %v3513
    %v3574 = vunpack.c.l.b16 %v3517
    %v3575 = vunpack.c.h.b16 %v3517
    %v3576 = vunpack.c.l.b16 %v3521
    %v3577 = vunpack.c.h.b16 %v3521
    %v3578 = vunpack.c.l.b16 %v3525
    %v3579 = vunpack.c.h.b16 %v3525
    %v3580 = vunpack.c.l.b16 %v3529
    %v3581 = vunpack.c.h.b16 %v3529
    %v3582 = vunpack.c.l.b16 %v3533
    %v3583 = vunpack.c.h.b16 %v3533
    %v3584 = vunpack.c.l.b16 %v3537
    %v3585 = vunpack.c.h.b16 %v3537
    %v3586 = vunpack.c.l.b16 %v3541
    %v3587 = vunpack.c.h.b16 %v3541
    %v3588 = vunpack.c.l.b16 %v3545
    %v3589 = vunpack.c.h.b16 %v3545
    %v3590 = vunpack.c.l.b16 %v3549
    %v3591 = vunpack.c.h.b16 %v3549
    %v3592 = vunpack.c.l.b16 %v3553
    %v3593 = vunpack.c.h.b16 %v3553
    %v3594 = vunpack.c.l.b16 %v3557
    %v3595 = vunpack.c.h.b16 %v3557
    %v3596 = vunpack.c.l.b16 %v3561
    %v3597 = vunpack.c.h.b16 %v3561
    %v3598 = vunpack.c.l.b16 %v3565
    %v3599 = vunpack.c.h.b16 %v3565
    %v3600 = vunpack.c.l.b16 %v3569
    %v3601 = vunpack.c.h.b16 %v3569
    %v3602 = vpack.c.b16 %v3572, %v3570
    %v3603 = vpack.c.b16 %v3573, %v3571
    %v3604 = vpack.c.b16 %v3576, %v3574
    %v3605 = vpack.c.b16 %v3577, %v3575
    %v3606 = vpack.c.b16 %v3580, %v3578
    %v3607 = vpack.c.b16 %v3581, %v3579
    %v3608 = vpack.c.b16 %v3584, %v3582
    %v3609 = vpack.c.b16 %v3585, %v3583
    %v3610 = vpack.c.b16 %v3588, %v3586
    %v3611 = vpack.c.b16 %v3589, %v3587
    %v3612 = vpack.c.b16 %v3592, %v3590
    %v3613 = vpack.c.b16 %v3593, %v3591
    %v3614 = vpack.c.b16 %v3596, %v3594
    %v3615 = vpack.c.b16 %v3597, %v3595
    %v3616 = vpack.c.b16 %v3600, %v3598
    %v3617 = vpack.c.b16 %v3601, %v3599
    %3634 = vst [vmem:[#allocation3 + $0x80] sm:$0xff] %v3602
    %3635 = vst [vmem:[#allocation3 + $0x88] sm:$0xff] %v3603
    %3636 = vst [vmem:[#allocation3 + $0x110] sm:$0xff] %v3604
    %3637 = vst [vmem:[#allocation3 + $0x118] sm:$0xff] %v3605
    %3638 = vst [vmem:[#allocation3 + $0x1a0] sm:$0xff] %v3606
    %3639 = vst [vmem:[#allocation3 + $0x1a8] sm:$0xff] %v3607
    %3640 = vst [vmem:[#allocation3 + $0x230] sm:$0xff] %v3608
    %3641 = vst [vmem:[#allocation3 + $0x238] sm:$0xff] %v3609
    %3642 = vst [vmem:[#allocation3 + $0x2c0] sm:$0xff] %v3610
    %3643 = vst [vmem:[#allocation3 + $0x2c8] sm:$0xff] %v3611
    %3644 = vst [vmem:[#allocation3 + $0x350] sm:$0xff] %v3612
    %3645 = vst [vmem:[#allocation3 + $0x358] sm:$0xff] %v3613
    %3646 = vst [vmem:[#allocation3 + $0x3e0] sm:$0xff] %v3614
    %3647 = vst [vmem:[#allocation3 + $0x3e8] sm:$0xff] %v3615
    %3648 = vst [vmem:[#allocation3 + $0x470] sm:$0xff] %v3616
    %3649 = vst [vmem:[#allocation3 + $0x478] sm:$0xff] %v3617
    %s3650 = smul.u32 4, 288
    %s3651 = smul.u32 %s3650, 4
    %s3652 = sshll.u32 %s3651, 4
    %3653 = dma.done [#allocation5], %s3652
    %v3654 = vld [vmem:[#allocation3] sm:$0xff]
    %v3655 = vld [vmem:[#allocation3 + $0x8] sm:$0xff]
    %v3656 = vld [vmem:[#allocation3 + $0x10] sm:$0xff]
    %v3657 = vld [vmem:[#allocation3 + $0x18] sm:$0xff]
    %v3658 = vld [vmem:[#allocation3 + $0x20] sm:$0xff]
    %v3659 = vld [vmem:[#allocation3 + $0x28] sm:$0xff]
    %v3660 = vld [vmem:[#allocation3 + $0x30] sm:$0xff]
    %v3661 = vld [vmem:[#allocation3 + $0x38] sm:$0xff]
    %v3662 = vld [vmem:[#allocation3 + $0x40] sm:$0xff]
    %v3663 = vld [vmem:[#allocation3 + $0x48] sm:$0xff]
    %v3664 = vld [vmem:[#allocation3 + $0x50] sm:$0xff]
    %v3665 = vld [vmem:[#allocation3 + $0x58] sm:$0xff]
    %v3666 = vld [vmem:[#allocation3 + $0x60] sm:$0xff]
    %v3667 = vld [vmem:[#allocation3 + $0x68] sm:$0xff]
    %v3668 = vld [vmem:[#allocation3 + $0x70] sm:$0xff]
    %v3669 = vld [vmem:[#allocation3 + $0x78] sm:$0xff]
    %v3670 = vld [vmem:[#allocation3 + $0x80] sm:$0xff]
    %v3671 = vld [vmem:[#allocation3 + $0x88] sm:$0xff]
    %v3672 = vld [vmem:[#allocation3 + $0x90] sm:$0xff]
    %v3673 = vld [vmem:[#allocation3 + $0x98] sm:$0xff]
    %v3674 = vld [vmem:[#allocation3 + $0xa0] sm:$0xff]
    %v3675 = vld [vmem:[#allocation3 + $0xa8] sm:$0xff]
    %v3676 = vld [vmem:[#allocation3 + $0xb0] sm:$0xff]
    %v3677 = vld [vmem:[#allocation3 + $0xb8] sm:$0xff]
    %v3678 = vld [vmem:[#allocation3 + $0xc0] sm:$0xff]
    %v3679 = vld [vmem:[#allocation3 + $0xc8] sm:$0xff]
    %v3680 = vld [vmem:[#allocation3 + $0xd0] sm:$0xff]
    %v3681 = vld [vmem:[#allocation3 + $0xd8] sm:$0xff]
    %v3682 = vld [vmem:[#allocation3 + $0xe0] sm:$0xff]
    %v3683 = vld [vmem:[#allocation3 + $0xe8] sm:$0xff]
    %v3684 = vld [vmem:[#allocation3 + $0xf0] sm:$0xff]
    %v3685 = vld [vmem:[#allocation3 + $0xf8] sm:$0xff]
    %v3686 = vld [vmem:[#allocation3 + $0x100] sm:$0xff]
    %v3687 = vld [vmem:[#allocation3 + $0x108] sm:$0xff]
    %v3688 = vld [vmem:[#allocation3 + $0x110] sm:$0xff]
    %v3689 = vld [vmem:[#allocation3 + $0x118] sm:$0xff]
    %v3690 = vld [vmem:[#allocation3 + $0x120] sm:$0xff]
    %v3691 = vld [vmem:[#allocation3 + $0x128] sm:$0xff]
    %v3692 = vld [vmem:[#allocation3 + $0x130] sm:$0xff]
    %v3693 = vld [vmem:[#allocation3 + $0x138] sm:$0xff]
    %v3694 = vld [vmem:[#allocation3 + $0x140] sm:$0xff]
    %v3695 = vld [vmem:[#allocation3 + $0x148] sm:$0xff]
    %v3696 = vld [vmem:[#allocation3 + $0x150] sm:$0xff]
    %v3697 = vld [vmem:[#allocation3 + $0x158] sm:$0xff]
    %v3698 = vld [vmem:[#allocation3 + $0x160] sm:$0xff]
    %v3699 = vld [vmem:[#allocation3 + $0x168] sm:$0xff]
    %v3700 = vld [vmem:[#allocation3 + $0x170] sm:$0xff]
    %v3701 = vld [vmem:[#allocation3 + $0x178] sm:$0xff]
    %v3702 = vld [vmem:[#allocation3 + $0x180] sm:$0xff]
    %v3703 = vld [vmem:[#allocation3 + $0x188] sm:$0xff]
    %v3704 = vld [vmem:[#allocation3 + $0x190] sm:$0xff]
    %v3705 = vld [vmem:[#allocation3 + $0x198] sm:$0xff]
    %v3706 = vld [vmem:[#allocation3 + $0x1a0] sm:$0xff]
    %v3707 = vld [vmem:[#allocation3 + $0x1a8] sm:$0xff]
    %v3708 = vld [vmem:[#allocation3 + $0x1b0] sm:$0xff]
    %v3709 = vld [vmem:[#allocation3 + $0x1b8] sm:$0xff]
    %v3710 = vld [vmem:[#allocation3 + $0x1c0] sm:$0xff]
    %v3711 = vld [vmem:[#allocation3 + $0x1c8] sm:$0xff]
    %v3712 = vld [vmem:[#allocation3 + $0x1d0] sm:$0xff]
    %v3713 = vld [vmem:[#allocation3 + $0x1d8] sm:$0xff]
    %v3714 = vld [vmem:[#allocation3 + $0x1e0] sm:$0xff]
    %v3715 = vld [vmem:[#allocation3 + $0x1e8] sm:$0xff]
    %v3716 = vld [vmem:[#allocation3 + $0x1f0] sm:$0xff]
    %v3717 = vld [vmem:[#allocation3 + $0x1f8] sm:$0xff]
    %v3718 = vld [vmem:[#allocation3 + $0x200] sm:$0xff]
    %v3719 = vld [vmem:[#allocation3 + $0x208] sm:$0xff]
    %v3720 = vld [vmem:[#allocation3 + $0x210] sm:$0xff]
    %v3721 = vld [vmem:[#allocation3 + $0x218] sm:$0xff]
    %v3722 = vld [vmem:[#allocation3 + $0x220] sm:$0xff]
    %v3723 = vld [vmem:[#allocation3 + $0x228] sm:$0xff]
    %v3724 = vld [vmem:[#allocation3 + $0x230] sm:$0xff]
    %v3725 = vld [vmem:[#allocation3 + $0x238] sm:$0xff]
    %v3726 = vld [vmem:[#allocation3 + $0x240] sm:$0xff]
    %v3727 = vld [vmem:[#allocation3 + $0x248] sm:$0xff]
    %v3728 = vld [vmem:[#allocation3 + $0x250] sm:$0xff]
    %v3729 = vld [vmem:[#allocation3 + $0x258] sm:$0xff]
    %v3730 = vld [vmem:[#allocation3 + $0x260] sm:$0xff]
    %v3731 = vld [vmem:[#allocation3 + $0x268] sm:$0xff]
    %v3732 = vld [vmem:[#allocation3 + $0x270] sm:$0xff]
    %v3733 = vld [vmem:[#allocation3 + $0x278] sm:$0xff]
    %v3734 = vld [vmem:[#allocation3 + $0x280] sm:$0xff]
    %v3735 = vld [vmem:[#allocation3 + $0x288] sm:$0xff]
    %v3736 = vld [vmem:[#allocation3 + $0x290] sm:$0xff]
    %v3737 = vld [vmem:[#allocation3 + $0x298] sm:$0xff]
    %v3738 = vld [vmem:[#allocation3 + $0x2a0] sm:$0xff]
    %v3739 = vld [vmem:[#allocation3 + $0x2a8] sm:$0xff]
    %v3740 = vld [vmem:[#allocation3 + $0x2b0] sm:$0xff]
    %v3741 = vld [vmem:[#allocation3 + $0x2b8] sm:$0xff]
    %v3742 = vld [vmem:[#allocation3 + $0x2c0] sm:$0xff]
    %v3743 = vld [vmem:[#allocation3 + $0x2c8] sm:$0xff]
    %v3744 = vld [vmem:[#allocation3 + $0x2d0] sm:$0xff]
    %v3745 = vld [vmem:[#allocation3 + $0x2d8] sm:$0xff]
    %v3746 = vld [vmem:[#allocation3 + $0x2e0] sm:$0xff]
    %v3747 = vld [vmem:[#allocation3 + $0x2e8] sm:$0xff]
    %v3748 = vld [vmem:[#allocation3 + $0x2f0] sm:$0xff]
    %v3749 = vld [vmem:[#allocation3 + $0x2f8] sm:$0xff]
    %v3750 = vld [vmem:[#allocation3 + $0x300] sm:$0xff]
    %v3751 = vld [vmem:[#allocation3 + $0x308] sm:$0xff]
    %v3752 = vld [vmem:[#allocation3 + $0x310] sm:$0xff]
    %v3753 = vld [vmem:[#allocation3 + $0x318] sm:$0xff]
    %v3754 = vld [vmem:[#allocation3 + $0x320] sm:$0xff]
    %v3755 = vld [vmem:[#allocation3 + $0x328] sm:$0xff]
    %v3756 = vld [vmem:[#allocation3 + $0x330] sm:$0xff]
    %v3757 = vld [vmem:[#allocation3 + $0x338] sm:$0xff]
    %v3758 = vld [vmem:[#allocation3 + $0x340] sm:$0xff]
    %v3759 = vld [vmem:[#allocation3 + $0x348] sm:$0xff]
    %v3760 = vld [vmem:[#allocation3 + $0x350] sm:$0xff]
    %v3761 = vld [vmem:[#allocation3 + $0x358] sm:$0xff]
    %v3762 = vld [vmem:[#allocation3 + $0x360] sm:$0xff]
    %v3763 = vld [vmem:[#allocation3 + $0x368] sm:$0xff]
    %v3764 = vld [vmem:[#allocation3 + $0x370] sm:$0xff]
    %v3765 = vld [vmem:[#allocation3 + $0x378] sm:$0xff]
    %v3766 = vld [vmem:[#allocation3 + $0x380] sm:$0xff]
    %v3767 = vld [vmem:[#allocation3 + $0x388] sm:$0xff]
    %v3768 = vld [vmem:[#allocation3 + $0x390] sm:$0xff]
    %v3769 = vld [vmem:[#allocation3 + $0x398] sm:$0xff]
    %v3770 = vld [vmem:[#allocation3 + $0x3a0] sm:$0xff]
    %v3771 = vld [vmem:[#allocation3 + $0x3a8] sm:$0xff]
    %v3772 = vld [vmem:[#allocation3 + $0x3b0] sm:$0xff]
    %v3773 = vld [vmem:[#allocation3 + $0x3b8] sm:$0xff]
    %v3774 = vld [vmem:[#allocation3 + $0x3c0] sm:$0xff]
    %v3775 = vld [vmem:[#allocation3 + $0x3c8] sm:$0xff]
    %v3776 = vld [vmem:[#allocation3 + $0x3d0] sm:$0xff]
    %v3777 = vld [vmem:[#allocation3 + $0x3d8] sm:$0xff]
    %v3778 = vld [vmem:[#allocation3 + $0x3e0] sm:$0xff]
    %v3779 = vld [vmem:[#allocation3 + $0x3e8] sm:$0xff]
    %v3780 = vld [vmem:[#allocation3 + $0x3f0] sm:$0xff]
    %v3781 = vld [vmem:[#allocation3 + $0x3f8] sm:$0xff]
    %v3782 = vld [vmem:[#allocation3 + $0x400] sm:$0xff]
    %v3783 = vld [vmem:[#allocation3 + $0x408] sm:$0xff]
    %v3784 = vld [vmem:[#allocation3 + $0x410] sm:$0xff]
    %v3785 = vld [vmem:[#allocation3 + $0x418] sm:$0xff]
    %v3786 = vld [vmem:[#allocation3 + $0x420] sm:$0xff]
    %v3787 = vld [vmem:[#allocation3 + $0x428] sm:$0xff]
    %v3788 = vld [vmem:[#allocation3 + $0x430] sm:$0xff]
    %v3789 = vld [vmem:[#allocation3 + $0x438] sm:$0xff]
    %v3790 = vld [vmem:[#allocation3 + $0x440] sm:$0xff]
    %v3791 = vld [vmem:[#allocation3 + $0x448] sm:$0xff]
    %v3792 = vld [vmem:[#allocation3 + $0x450] sm:$0xff]
    %v3793 = vld [vmem:[#allocation3 + $0x458] sm:$0xff]
    %v3794 = vld [vmem:[#allocation3 + $0x460] sm:$0xff]
    %v3795 = vld [vmem:[#allocation3 + $0x468] sm:$0xff]
    %v3796 = vld [vmem:[#allocation3 + $0x470] sm:$0xff]
    %v3797 = vld [vmem:[#allocation3 + $0x478] sm:$0xff]
    %v3798 = vld [vmem:[#allocation4] sm:$0xff]
    %v3799 = vld [vmem:[#allocation4 + $0x8] sm:$0xff]
    %v3800 = vld [vmem:[#allocation4 + $0x10] sm:$0xff]
    %v3801 = vld [vmem:[#allocation4 + $0x18] sm:$0xff]
    %v3802 = vld [vmem:[#allocation4 + $0x20] sm:$0xff]
    %v3803 = vld [vmem:[#allocation4 + $0x28] sm:$0xff]
    %v3804 = vld [vmem:[#allocation4 + $0x30] sm:$0xff]
    %v3805 = vld [vmem:[#allocation4 + $0x38] sm:$0xff]
    %v3806 = vld [vmem:[#allocation4 + $0x40] sm:$0xff]
    %v3807 = vld [vmem:[#allocation4 + $0x48] sm:$0xff]
    %v3808 = vld [vmem:[#allocation4 + $0x50] sm:$0xff]
    %v3809 = vld [vmem:[#allocation4 + $0x58] sm:$0xff]
    %v3810 = vld [vmem:[#allocation4 + $0x60] sm:$0xff]
    %v3811 = vld [vmem:[#allocation4 + $0x68] sm:$0xff]
    %v3812 = vld [vmem:[#allocation4 + $0x70] sm:$0xff]
    %v3813 = vld [vmem:[#allocation4 + $0x78] sm:$0xff]
    %v3814 = vld [vmem:[#allocation4 + $0x80] sm:$0xff]
    %v3815 = vld [vmem:[#allocation4 + $0x88] sm:$0xff]
    %v3816 = vld [vmem:[#allocation4 + $0x90] sm:$0xff]
    %v3817 = vld [vmem:[#allocation4 + $0x98] sm:$0xff]
    %v3818 = vld [vmem:[#allocation4 + $0xa0] sm:$0xff]
    %v3819 = vld [vmem:[#allocation4 + $0xa8] sm:$0xff]
    %v3820 = vld [vmem:[#allocation4 + $0xb0] sm:$0xff]
    %v3821 = vld [vmem:[#allocation4 + $0xb8] sm:$0xff]
    %v3822 = vld [vmem:[#allocation4 + $0xc0] sm:$0xff]
    %v3823 = vld [vmem:[#allocation4 + $0xc8] sm:$0xff]
    %v3824 = vld [vmem:[#allocation4 + $0xd0] sm:$0xff]
    %v3825 = vld [vmem:[#allocation4 + $0xd8] sm:$0xff]
    %v3826 = vld [vmem:[#allocation4 + $0xe0] sm:$0xff]
    %v3827 = vld [vmem:[#allocation4 + $0xe8] sm:$0xff]
    %v3828 = vld [vmem:[#allocation4 + $0xf0] sm:$0xff]
    %v3829 = vld [vmem:[#allocation4 + $0xf8] sm:$0xff]
    %v3830 = vld [vmem:[#allocation4 + $0x100] sm:$0xff]
    %v3831 = vld [vmem:[#allocation4 + $0x108] sm:$0xff]
    %v3832 = vld [vmem:[#allocation4 + $0x110] sm:$0xff]
    %v3833 = vld [vmem:[#allocation4 + $0x118] sm:$0xff]
    %v3834 = vld [vmem:[#allocation4 + $0x120] sm:$0xff]
    %v3835 = vld [vmem:[#allocation4 + $0x128] sm:$0xff]
    %v3836 = vld [vmem:[#allocation4 + $0x130] sm:$0xff]
    %v3837 = vld [vmem:[#allocation4 + $0x138] sm:$0xff]
    %v3838 = vld [vmem:[#allocation4 + $0x140] sm:$0xff]
    %v3839 = vld [vmem:[#allocation4 + $0x148] sm:$0xff]
    %v3840 = vld [vmem:[#allocation4 + $0x150] sm:$0xff]
    %v3841 = vld [vmem:[#allocation4 + $0x158] sm:$0xff]
    %v3842 = vld [vmem:[#allocation4 + $0x160] sm:$0xff]
    %v3843 = vld [vmem:[#allocation4 + $0x168] sm:$0xff]
    %v3844 = vld [vmem:[#allocation4 + $0x170] sm:$0xff]
    %v3845 = vld [vmem:[#allocation4 + $0x178] sm:$0xff]
    %v3846 = vld [vmem:[#allocation4 + $0x180] sm:$0xff]
    %v3847 = vld [vmem:[#allocation4 + $0x188] sm:$0xff]
    %v3848 = vld [vmem:[#allocation4 + $0x190] sm:$0xff]
    %v3849 = vld [vmem:[#allocation4 + $0x198] sm:$0xff]
    %v3850 = vld [vmem:[#allocation4 + $0x1a0] sm:$0xff]
    %v3851 = vld [vmem:[#allocation4 + $0x1a8] sm:$0xff]
    %v3852 = vld [vmem:[#allocation4 + $0x1b0] sm:$0xff]
    %v3853 = vld [vmem:[#allocation4 + $0x1b8] sm:$0xff]
    %v3854 = vld [vmem:[#allocation4 + $0x1c0] sm:$0xff]
    %v3855 = vld [vmem:[#allocation4 + $0x1c8] sm:$0xff]
    %v3856 = vld [vmem:[#allocation4 + $0x1d0] sm:$0xff]
    %v3857 = vld [vmem:[#allocation4 + $0x1d8] sm:$0xff]
    %v3858 = vld [vmem:[#allocation4 + $0x1e0] sm:$0xff]
    %v3859 = vld [vmem:[#allocation4 + $0x1e8] sm:$0xff]
    %v3860 = vld [vmem:[#allocation4 + $0x1f0] sm:$0xff]
    %v3861 = vld [vmem:[#allocation4 + $0x1f8] sm:$0xff]
    %v3862 = vld [vmem:[#allocation4 + $0x200] sm:$0xff]
    %v3863 = vld [vmem:[#allocation4 + $0x208] sm:$0xff]
    %v3864 = vld [vmem:[#allocation4 + $0x210] sm:$0xff]
    %v3865 = vld [vmem:[#allocation4 + $0x218] sm:$0xff]
    %v3866 = vld [vmem:[#allocation4 + $0x220] sm:$0xff]
    %v3867 = vld [vmem:[#allocation4 + $0x228] sm:$0xff]
    %v3868 = vld [vmem:[#allocation4 + $0x230] sm:$0xff]
    %v3869 = vld [vmem:[#allocation4 + $0x238] sm:$0xff]
    %v3870 = vld [vmem:[#allocation4 + $0x240] sm:$0xff]
    %v3871 = vld [vmem:[#allocation4 + $0x248] sm:$0xff]
    %v3872 = vld [vmem:[#allocation4 + $0x250] sm:$0xff]
    %v3873 = vld [vmem:[#allocation4 + $0x258] sm:$0xff]
    %v3874 = vld [vmem:[#allocation4 + $0x260] sm:$0xff]
    %v3875 = vld [vmem:[#allocation4 + $0x268] sm:$0xff]
    %v3876 = vld [vmem:[#allocation4 + $0x270] sm:$0xff]
    %v3877 = vld [vmem:[#allocation4 + $0x278] sm:$0xff]
    %v3878 = vld [vmem:[#allocation4 + $0x280] sm:$0xff]
    %v3879 = vld [vmem:[#allocation4 + $0x288] sm:$0xff]
    %v3880 = vld [vmem:[#allocation4 + $0x290] sm:$0xff]
    %v3881 = vld [vmem:[#allocation4 + $0x298] sm:$0xff]
    %v3882 = vld [vmem:[#allocation4 + $0x2a0] sm:$0xff]
    %v3883 = vld [vmem:[#allocation4 + $0x2a8] sm:$0xff]
    %v3884 = vld [vmem:[#allocation4 + $0x2b0] sm:$0xff]
    %v3885 = vld [vmem:[#allocation4 + $0x2b8] sm:$0xff]
    %v3886 = vld [vmem:[#allocation4 + $0x2c0] sm:$0xff]
    %v3887 = vld [vmem:[#allocation4 + $0x2c8] sm:$0xff]
    %v3888 = vld [vmem:[#allocation4 + $0x2d0] sm:$0xff]
    %v3889 = vld [vmem:[#allocation4 + $0x2d8] sm:$0xff]
    %v3890 = vld [vmem:[#allocation4 + $0x2e0] sm:$0xff]
    %v3891 = vld [vmem:[#allocation4 + $0x2e8] sm:$0xff]
    %v3892 = vld [vmem:[#allocation4 + $0x2f0] sm:$0xff]
    %v3893 = vld [vmem:[#allocation4 + $0x2f8] sm:$0xff]
    %v3894 = vld [vmem:[#allocation4 + $0x300] sm:$0xff]
    %v3895 = vld [vmem:[#allocation4 + $0x308] sm:$0xff]
    %v3896 = vld [vmem:[#allocation4 + $0x310] sm:$0xff]
    %v3897 = vld [vmem:[#allocation4 + $0x318] sm:$0xff]
    %v3898 = vld [vmem:[#allocation4 + $0x320] sm:$0xff]
    %v3899 = vld [vmem:[#allocation4 + $0x328] sm:$0xff]
    %v3900 = vld [vmem:[#allocation4 + $0x330] sm:$0xff]
    %v3901 = vld [vmem:[#allocation4 + $0x338] sm:$0xff]
    %v3902 = vld [vmem:[#allocation4 + $0x340] sm:$0xff]
    %v3903 = vld [vmem:[#allocation4 + $0x348] sm:$0xff]
    %v3904 = vld [vmem:[#allocation4 + $0x350] sm:$0xff]
    %v3905 = vld [vmem:[#allocation4 + $0x358] sm:$0xff]
    %v3906 = vld [vmem:[#allocation4 + $0x360] sm:$0xff]
    %v3907 = vld [vmem:[#allocation4 + $0x368] sm:$0xff]
    %v3908 = vld [vmem:[#allocation4 + $0x370] sm:$0xff]
    %v3909 = vld [vmem:[#allocation4 + $0x378] sm:$0xff]
    %v3910 = vld [vmem:[#allocation4 + $0x380] sm:$0xff]
    %v3911 = vld [vmem:[#allocation4 + $0x388] sm:$0xff]
    %v3912 = vld [vmem:[#allocation4 + $0x390] sm:$0xff]
    %v3913 = vld [vmem:[#allocation4 + $0x398] sm:$0xff]
    %v3914 = vld [vmem:[#allocation4 + $0x3a0] sm:$0xff]
    %v3915 = vld [vmem:[#allocation4 + $0x3a8] sm:$0xff]
    %v3916 = vld [vmem:[#allocation4 + $0x3b0] sm:$0xff]
    %v3917 = vld [vmem:[#allocation4 + $0x3b8] sm:$0xff]
    %v3918 = vld [vmem:[#allocation4 + $0x3c0] sm:$0xff]
    %v3919 = vld [vmem:[#allocation4 + $0x3c8] sm:$0xff]
    %v3920 = vld [vmem:[#allocation4 + $0x3d0] sm:$0xff]
    %v3921 = vld [vmem:[#allocation4 + $0x3d8] sm:$0xff]
    %v3922 = vld [vmem:[#allocation4 + $0x3e0] sm:$0xff]
    %v3923 = vld [vmem:[#allocation4 + $0x3e8] sm:$0xff]
    %v3924 = vld [vmem:[#allocation4 + $0x3f0] sm:$0xff]
    %v3925 = vld [vmem:[#allocation4 + $0x3f8] sm:$0xff]
    %v3926 = vld [vmem:[#allocation4 + $0x400] sm:$0xff]
    %v3927 = vld [vmem:[#allocation4 + $0x408] sm:$0xff]
    %v3928 = vld [vmem:[#allocation4 + $0x410] sm:$0xff]
    %v3929 = vld [vmem:[#allocation4 + $0x418] sm:$0xff]
    %v3930 = vld [vmem:[#allocation4 + $0x420] sm:$0xff]
    %v3931 = vld [vmem:[#allocation4 + $0x428] sm:$0xff]
    %v3932 = vld [vmem:[#allocation4 + $0x430] sm:$0xff]
    %v3933 = vld [vmem:[#allocation4 + $0x438] sm:$0xff]
    %v3934 = vld [vmem:[#allocation4 + $0x440] sm:$0xff]
    %v3935 = vld [vmem:[#allocation4 + $0x448] sm:$0xff]
    %v3936 = vld [vmem:[#allocation4 + $0x450] sm:$0xff]
    %v3937 = vld [vmem:[#allocation4 + $0x458] sm:$0xff]
    %v3938 = vld [vmem:[#allocation4 + $0x460] sm:$0xff]
    %v3939 = vld [vmem:[#allocation4 + $0x468] sm:$0xff]
    %v3940 = vld [vmem:[#allocation4 + $0x470] sm:$0xff]
    %v3941 = vld [vmem:[#allocation4 + $0x478] sm:$0xff]
    %v3942 = vld [vmem:[#allocation4 + $0x480] sm:$0xff]
    %v3943 = vld [vmem:[#allocation4 + $0x488] sm:$0xff]
    %v3944 = vld [vmem:[#allocation4 + $0x490] sm:$0xff]
    %v3945 = vld [vmem:[#allocation4 + $0x498] sm:$0xff]
    %v3946 = vld [vmem:[#allocation4 + $0x4a0] sm:$0xff]
    %v3947 = vld [vmem:[#allocation4 + $0x4a8] sm:$0xff]
    %v3948 = vld [vmem:[#allocation4 + $0x4b0] sm:$0xff]
    %v3949 = vld [vmem:[#allocation4 + $0x4b8] sm:$0xff]
    %v3950 = vld [vmem:[#allocation4 + $0x4c0] sm:$0xff]
    %v3951 = vld [vmem:[#allocation4 + $0x4c8] sm:$0xff]
    %v3952 = vld [vmem:[#allocation4 + $0x4d0] sm:$0xff]
    %v3953 = vld [vmem:[#allocation4 + $0x4d8] sm:$0xff]
    %v3954 = vld [vmem:[#allocation4 + $0x4e0] sm:$0xff]
    %v3955 = vld [vmem:[#allocation4 + $0x4e8] sm:$0xff]
    %v3956 = vld [vmem:[#allocation4 + $0x4f0] sm:$0xff]
    %v3957 = vld [vmem:[#allocation4 + $0x4f8] sm:$0xff]
    %v3958 = vld [vmem:[#allocation4 + $0x500] sm:$0xff]
    %v3959 = vld [vmem:[#allocation4 + $0x508] sm:$0xff]
    %v3960 = vld [vmem:[#allocation4 + $0x510] sm:$0xff]
    %v3961 = vld [vmem:[#allocation4 + $0x518] sm:$0xff]
    %v3962 = vld [vmem:[#allocation4 + $0x520] sm:$0xff]
    %v3963 = vld [vmem:[#allocation4 + $0x528] sm:$0xff]
    %v3964 = vld [vmem:[#allocation4 + $0x530] sm:$0xff]
    %v3965 = vld [vmem:[#allocation4 + $0x538] sm:$0xff]
    %v3966 = vld [vmem:[#allocation4 + $0x540] sm:$0xff]
    %v3967 = vld [vmem:[#allocation4 + $0x548] sm:$0xff]
    %v3968 = vld [vmem:[#allocation4 + $0x550] sm:$0xff]
    %v3969 = vld [vmem:[#allocation4 + $0x558] sm:$0xff]
    %v3970 = vld [vmem:[#allocation4 + $0x560] sm:$0xff]
    %v3971 = vld [vmem:[#allocation4 + $0x568] sm:$0xff]
    %v3972 = vld [vmem:[#allocation4 + $0x570] sm:$0xff]
    %v3973 = vld [vmem:[#allocation4 + $0x578] sm:$0xff]
    %v3974 = vld [vmem:[#allocation4 + $0x580] sm:$0xff]
    %v3975 = vld [vmem:[#allocation4 + $0x588] sm:$0xff]
    %v3976 = vld [vmem:[#allocation4 + $0x590] sm:$0xff]
    %v3977 = vld [vmem:[#allocation4 + $0x598] sm:$0xff]
    %v3978 = vld [vmem:[#allocation4 + $0x5a0] sm:$0xff]
    %v3979 = vld [vmem:[#allocation4 + $0x5a8] sm:$0xff]
    %v3980 = vld [vmem:[#allocation4 + $0x5b0] sm:$0xff]
    %v3981 = vld [vmem:[#allocation4 + $0x5b8] sm:$0xff]
    %v3982 = vld [vmem:[#allocation4 + $0x5c0] sm:$0xff]
    %v3983 = vld [vmem:[#allocation4 + $0x5c8] sm:$0xff]
    %v3984 = vld [vmem:[#allocation4 + $0x5d0] sm:$0xff]
    %v3985 = vld [vmem:[#allocation4 + $0x5d8] sm:$0xff]
    %v3986 = vld [vmem:[#allocation4 + $0x5e0] sm:$0xff]
    %v3987 = vld [vmem:[#allocation4 + $0x5e8] sm:$0xff]
    %v3988 = vld [vmem:[#allocation4 + $0x5f0] sm:$0xff]
    %v3989 = vld [vmem:[#allocation4 + $0x5f8] sm:$0xff]
    %v3990 = vld [vmem:[#allocation4 + $0x600] sm:$0xff]
    %v3991 = vld [vmem:[#allocation4 + $0x608] sm:$0xff]
    %v3992 = vld [vmem:[#allocation4 + $0x610] sm:$0xff]
    %v3993 = vld [vmem:[#allocation4 + $0x618] sm:$0xff]
    %v3994 = vld [vmem:[#allocation4 + $0x620] sm:$0xff]
    %v3995 = vld [vmem:[#allocation4 + $0x628] sm:$0xff]
    %v3996 = vld [vmem:[#allocation4 + $0x630] sm:$0xff]
    %v3997 = vld [vmem:[#allocation4 + $0x638] sm:$0xff]
    %v3998 = vld [vmem:[#allocation4 + $0x640] sm:$0xff]
    %v3999 = vld [vmem:[#allocation4 + $0x648] sm:$0xff]
    %v4000 = vld [vmem:[#allocation4 + $0x650] sm:$0xff]
    %v4001 = vld [vmem:[#allocation4 + $0x658] sm:$0xff]
    %v4002 = vld [vmem:[#allocation4 + $0x660] sm:$0xff]
    %v4003 = vld [vmem:[#allocation4 + $0x668] sm:$0xff]
    %v4004 = vld [vmem:[#allocation4 + $0x670] sm:$0xff]
    %v4005 = vld [vmem:[#allocation4 + $0x678] sm:$0xff]
    %v4006 = vld [vmem:[#allocation4 + $0x680] sm:$0xff]
    %v4007 = vld [vmem:[#allocation4 + $0x688] sm:$0xff]
    %v4008 = vld [vmem:[#allocation4 + $0x690] sm:$0xff]
    %v4009 = vld [vmem:[#allocation4 + $0x698] sm:$0xff]
    %v4010 = vld [vmem:[#allocation4 + $0x6a0] sm:$0xff]
    %v4011 = vld [vmem:[#allocation4 + $0x6a8] sm:$0xff]
    %v4012 = vld [vmem:[#allocation4 + $0x6b0] sm:$0xff]
    %v4013 = vld [vmem:[#allocation4 + $0x6b8] sm:$0xff]
    %v4014 = vld [vmem:[#allocation4 + $0x6c0] sm:$0xff]
    %v4015 = vld [vmem:[#allocation4 + $0x6c8] sm:$0xff]
    %v4016 = vld [vmem:[#allocation4 + $0x6d0] sm:$0xff]
    %v4017 = vld [vmem:[#allocation4 + $0x6d8] sm:$0xff]
    %v4018 = vld [vmem:[#allocation4 + $0x6e0] sm:$0xff]
    %v4019 = vld [vmem:[#allocation4 + $0x6e8] sm:$0xff]
    %v4020 = vld [vmem:[#allocation4 + $0x6f0] sm:$0xff]
    %v4021 = vld [vmem:[#allocation4 + $0x6f8] sm:$0xff]
    %v4022 = vld [vmem:[#allocation4 + $0x700] sm:$0xff]
    %v4023 = vld [vmem:[#allocation4 + $0x708] sm:$0xff]
    %v4024 = vld [vmem:[#allocation4 + $0x710] sm:$0xff]
    %v4025 = vld [vmem:[#allocation4 + $0x718] sm:$0xff]
    %v4026 = vld [vmem:[#allocation4 + $0x720] sm:$0xff]
    %v4027 = vld [vmem:[#allocation4 + $0x728] sm:$0xff]
    %v4028 = vld [vmem:[#allocation4 + $0x730] sm:$0xff]
    %v4029 = vld [vmem:[#allocation4 + $0x738] sm:$0xff]
    %v4030 = vld [vmem:[#allocation4 + $0x740] sm:$0xff]
    %v4031 = vld [vmem:[#allocation4 + $0x748] sm:$0xff]
    %v4032 = vld [vmem:[#allocation4 + $0x750] sm:$0xff]
    %v4033 = vld [vmem:[#allocation4 + $0x758] sm:$0xff]
    %v4034 = vld [vmem:[#allocation4 + $0x760] sm:$0xff]
    %v4035 = vld [vmem:[#allocation4 + $0x768] sm:$0xff]
    %v4036 = vld [vmem:[#allocation4 + $0x770] sm:$0xff]
    %v4037 = vld [vmem:[#allocation4 + $0x778] sm:$0xff]
    %v4038 = vld [vmem:[#allocation4 + $0x780] sm:$0xff]
    %v4039 = vld [vmem:[#allocation4 + $0x788] sm:$0xff]
    %v4040 = vld [vmem:[#allocation4 + $0x790] sm:$0xff]
    %v4041 = vld [vmem:[#allocation4 + $0x798] sm:$0xff]
    %v4042 = vld [vmem:[#allocation4 + $0x7a0] sm:$0xff]
    %v4043 = vld [vmem:[#allocation4 + $0x7a8] sm:$0xff]
    %v4044 = vld [vmem:[#allocation4 + $0x7b0] sm:$0xff]
    %v4045 = vld [vmem:[#allocation4 + $0x7b8] sm:$0xff]
    %v4046 = vld [vmem:[#allocation4 + $0x7c0] sm:$0xff]
    %v4047 = vld [vmem:[#allocation4 + $0x7c8] sm:$0xff]
    %v4048 = vld [vmem:[#allocation4 + $0x7d0] sm:$0xff]
    %v4049 = vld [vmem:[#allocation4 + $0x7d8] sm:$0xff]
    %v4050 = vld [vmem:[#allocation4 + $0x7e0] sm:$0xff]
    %v4051 = vld [vmem:[#allocation4 + $0x7e8] sm:$0xff]
    %v4052 = vld [vmem:[#allocation4 + $0x7f0] sm:$0xff]
    %v4053 = vld [vmem:[#allocation4 + $0x7f8] sm:$0xff]
    %v4054 = vld [vmem:[#allocation4 + $0x800] sm:$0xff]
    %v4055 = vld [vmem:[#allocation4 + $0x808] sm:$0xff]
    %v4056 = vld [vmem:[#allocation4 + $0x810] sm:$0xff]
    %v4057 = vld [vmem:[#allocation4 + $0x818] sm:$0xff]
    %v4058 = vld [vmem:[#allocation4 + $0x820] sm:$0xff]
    %v4059 = vld [vmem:[#allocation4 + $0x828] sm:$0xff]
    %v4060 = vld [vmem:[#allocation4 + $0x830] sm:$0xff]
    %v4061 = vld [vmem:[#allocation4 + $0x838] sm:$0xff]
    %v4062 = vld [vmem:[#allocation4 + $0x840] sm:$0xff]
    %v4063 = vld [vmem:[#allocation4 + $0x848] sm:$0xff]
    %v4064 = vld [vmem:[#allocation4 + $0x850] sm:$0xff]
    %v4065 = vld [vmem:[#allocation4 + $0x858] sm:$0xff]
    %v4066 = vld [vmem:[#allocation4 + $0x860] sm:$0xff]
    %v4067 = vld [vmem:[#allocation4 + $0x868] sm:$0xff]
    %v4068 = vld [vmem:[#allocation4 + $0x870] sm:$0xff]
    %v4069 = vld [vmem:[#allocation4 + $0x878] sm:$0xff]
    %v4070 = vld [vmem:[#allocation4 + $0x880] sm:$0xff]
    %v4071 = vld [vmem:[#allocation4 + $0x888] sm:$0xff]
    %v4072 = vld [vmem:[#allocation4 + $0x890] sm:$0xff]
    %v4073 = vld [vmem:[#allocation4 + $0x898] sm:$0xff]
    %v4074 = vld [vmem:[#allocation4 + $0x8a0] sm:$0xff]
    %v4075 = vld [vmem:[#allocation4 + $0x8a8] sm:$0xff]
    %v4076 = vld [vmem:[#allocation4 + $0x8b0] sm:$0xff]
    %v4077 = vld [vmem:[#allocation4 + $0x8b8] sm:$0xff]
    %v4078 = vld [vmem:[#allocation4 + $0x8c0] sm:$0xff]
    %v4079 = vld [vmem:[#allocation4 + $0x8c8] sm:$0xff]
    %v4080 = vld [vmem:[#allocation4 + $0x8d0] sm:$0xff]
    %v4081 = vld [vmem:[#allocation4 + $0x8d8] sm:$0xff]
    %v4082 = vld [vmem:[#allocation4 + $0x8e0] sm:$0xff]
    %v4083 = vld [vmem:[#allocation4 + $0x8e8] sm:$0xff]
    %v4084 = vld [vmem:[#allocation4 + $0x8f0] sm:$0xff]
    %v4085 = vld [vmem:[#allocation4 + $0x8f8] sm:$0xff]
    %v4086 = vld [vmem:[#allocation4 + $0x900] sm:$0xff]
    %v4087 = vld [vmem:[#allocation4 + $0x908] sm:$0xff]
    %v4088 = vld [vmem:[#allocation4 + $0x910] sm:$0xff]
    %v4089 = vld [vmem:[#allocation4 + $0x918] sm:$0xff]
    %v4090 = vld [vmem:[#allocation4 + $0x920] sm:$0xff]
    %v4091 = vld [vmem:[#allocation4 + $0x928] sm:$0xff]
    %v4092 = vld [vmem:[#allocation4 + $0x930] sm:$0xff]
    %v4093 = vld [vmem:[#allocation4 + $0x938] sm:$0xff]
    %v4094 = vld [vmem:[#allocation4 + $0x940] sm:$0xff]
    %v4095 = vld [vmem:[#allocation4 + $0x948] sm:$0xff]
    %v4096 = vld [vmem:[#allocation4 + $0x950] sm:$0xff]
    %v4097 = vld [vmem:[#allocation4 + $0x958] sm:$0xff]
    %v4098 = vld [vmem:[#allocation4 + $0x960] sm:$0xff]
    %v4099 = vld [vmem:[#allocation4 + $0x968] sm:$0xff]
    %v4100 = vld [vmem:[#allocation4 + $0x970] sm:$0xff]
    %v4101 = vld [vmem:[#allocation4 + $0x978] sm:$0xff]
    %v4102 = vld [vmem:[#allocation4 + $0x980] sm:$0xff]
    %v4103 = vld [vmem:[#allocation4 + $0x988] sm:$0xff]
    %v4104 = vld [vmem:[#allocation4 + $0x990] sm:$0xff]
    %v4105 = vld [vmem:[#allocation4 + $0x998] sm:$0xff]
    %v4106 = vld [vmem:[#allocation4 + $0x9a0] sm:$0xff]
    %v4107 = vld [vmem:[#allocation4 + $0x9a8] sm:$0xff]
    %v4108 = vld [vmem:[#allocation4 + $0x9b0] sm:$0xff]
    %v4109 = vld [vmem:[#allocation4 + $0x9b8] sm:$0xff]
    %v4110 = vld [vmem:[#allocation4 + $0x9c0] sm:$0xff]
    %v4111 = vld [vmem:[#allocation4 + $0x9c8] sm:$0xff]
    %v4112 = vld [vmem:[#allocation4 + $0x9d0] sm:$0xff]
    %v4113 = vld [vmem:[#allocation4 + $0x9d8] sm:$0xff]
    %v4114 = vld [vmem:[#allocation4 + $0x9e0] sm:$0xff]
    %v4115 = vld [vmem:[#allocation4 + $0x9e8] sm:$0xff]
    %v4116 = vld [vmem:[#allocation4 + $0x9f0] sm:$0xff]
    %v4117 = vld [vmem:[#allocation4 + $0x9f8] sm:$0xff]
    %v4118 = vld [vmem:[#allocation4 + $0xa00] sm:$0xff]
    %v4119 = vld [vmem:[#allocation4 + $0xa08] sm:$0xff]
    %v4120 = vld [vmem:[#allocation4 + $0xa10] sm:$0xff]
    %v4121 = vld [vmem:[#allocation4 + $0xa18] sm:$0xff]
    %v4122 = vld [vmem:[#allocation4 + $0xa20] sm:$0xff]
    %v4123 = vld [vmem:[#allocation4 + $0xa28] sm:$0xff]
    %v4124 = vld [vmem:[#allocation4 + $0xa30] sm:$0xff]
    %v4125 = vld [vmem:[#allocation4 + $0xa38] sm:$0xff]
    %v4126 = vld [vmem:[#allocation4 + $0xa40] sm:$0xff]
    %v4127 = vld [vmem:[#allocation4 + $0xa48] sm:$0xff]
    %v4128 = vld [vmem:[#allocation4 + $0xa50] sm:$0xff]
    %v4129 = vld [vmem:[#allocation4 + $0xa58] sm:$0xff]
    %v4130 = vld [vmem:[#allocation4 + $0xa60] sm:$0xff]
    %v4131 = vld [vmem:[#allocation4 + $0xa68] sm:$0xff]
    %v4132 = vld [vmem:[#allocation4 + $0xa70] sm:$0xff]
    %v4133 = vld [vmem:[#allocation4 + $0xa78] sm:$0xff]
    %v4134 = vld [vmem:[#allocation4 + $0xa80] sm:$0xff]
    %v4135 = vld [vmem:[#allocation4 + $0xa88] sm:$0xff]
    %v4136 = vld [vmem:[#allocation4 + $0xa90] sm:$0xff]
    %v4137 = vld [vmem:[#allocation4 + $0xa98] sm:$0xff]
    %v4138 = vld [vmem:[#allocation4 + $0xaa0] sm:$0xff]
    %v4139 = vld [vmem:[#allocation4 + $0xaa8] sm:$0xff]
    %v4140 = vld [vmem:[#allocation4 + $0xab0] sm:$0xff]
    %v4141 = vld [vmem:[#allocation4 + $0xab8] sm:$0xff]
    %v4142 = vld [vmem:[#allocation4 + $0xac0] sm:$0xff]
    %v4143 = vld [vmem:[#allocation4 + $0xac8] sm:$0xff]
    %v4144 = vld [vmem:[#allocation4 + $0xad0] sm:$0xff]
    %v4145 = vld [vmem:[#allocation4 + $0xad8] sm:$0xff]
    %v4146 = vld [vmem:[#allocation4 + $0xae0] sm:$0xff]
    %v4147 = vld [vmem:[#allocation4 + $0xae8] sm:$0xff]
    %v4148 = vld [vmem:[#allocation4 + $0xaf0] sm:$0xff]
    %v4149 = vld [vmem:[#allocation4 + $0xaf8] sm:$0xff]
    %v4150 = vld [vmem:[#allocation4 + $0xb00] sm:$0xff]
    %v4151 = vld [vmem:[#allocation4 + $0xb08] sm:$0xff]
    %v4152 = vld [vmem:[#allocation4 + $0xb10] sm:$0xff]
    %v4153 = vld [vmem:[#allocation4 + $0xb18] sm:$0xff]
    %v4154 = vld [vmem:[#allocation4 + $0xb20] sm:$0xff]
    %v4155 = vld [vmem:[#allocation4 + $0xb28] sm:$0xff]
    %v4156 = vld [vmem:[#allocation4 + $0xb30] sm:$0xff]
    %v4157 = vld [vmem:[#allocation4 + $0xb38] sm:$0xff]
    %v4158 = vld [vmem:[#allocation4 + $0xb40] sm:$0xff]
    %v4159 = vld [vmem:[#allocation4 + $0xb48] sm:$0xff]
    %v4160 = vld [vmem:[#allocation4 + $0xb50] sm:$0xff]
    %v4161 = vld [vmem:[#allocation4 + $0xb58] sm:$0xff]
    %v4162 = vld [vmem:[#allocation4 + $0xb60] sm:$0xff]
    %v4163 = vld [vmem:[#allocation4 + $0xb68] sm:$0xff]
    %v4164 = vld [vmem:[#allocation4 + $0xb70] sm:$0xff]
    %v4165 = vld [vmem:[#allocation4 + $0xb78] sm:$0xff]
    %v4166 = vld [vmem:[#allocation4 + $0xb80] sm:$0xff]
    %v4167 = vld [vmem:[#allocation4 + $0xb88] sm:$0xff]
    %v4168 = vld [vmem:[#allocation4 + $0xb90] sm:$0xff]
    %v4169 = vld [vmem:[#allocation4 + $0xb98] sm:$0xff]
    %v4170 = vld [vmem:[#allocation4 + $0xba0] sm:$0xff]
    %v4171 = vld [vmem:[#allocation4 + $0xba8] sm:$0xff]
    %v4172 = vld [vmem:[#allocation4 + $0xbb0] sm:$0xff]
    %v4173 = vld [vmem:[#allocation4 + $0xbb8] sm:$0xff]
    %v4174 = vld [vmem:[#allocation4 + $0xbc0] sm:$0xff]
    %v4175 = vld [vmem:[#allocation4 + $0xbc8] sm:$0xff]
    %v4176 = vld [vmem:[#allocation4 + $0xbd0] sm:$0xff]
    %v4177 = vld [vmem:[#allocation4 + $0xbd8] sm:$0xff]
    %v4178 = vld [vmem:[#allocation4 + $0xbe0] sm:$0xff]
    %v4179 = vld [vmem:[#allocation4 + $0xbe8] sm:$0xff]
    %v4180 = vld [vmem:[#allocation4 + $0xbf0] sm:$0xff]
    %v4181 = vld [vmem:[#allocation4 + $0xbf8] sm:$0xff]
    %v4182 = vld [vmem:[#allocation4 + $0xc00] sm:$0xff]
    %v4183 = vld [vmem:[#allocation4 + $0xc08] sm:$0xff]
    %v4184 = vld [vmem:[#allocation4 + $0xc10] sm:$0xff]
    %v4185 = vld [vmem:[#allocation4 + $0xc18] sm:$0xff]
    %v4186 = vld [vmem:[#allocation4 + $0xc20] sm:$0xff]
    %v4187 = vld [vmem:[#allocation4 + $0xc28] sm:$0xff]
    %v4188 = vld [vmem:[#allocation4 + $0xc30] sm:$0xff]
    %v4189 = vld [vmem:[#allocation4 + $0xc38] sm:$0xff]
    %v4190 = vld [vmem:[#allocation4 + $0xc40] sm:$0xff]
    %v4191 = vld [vmem:[#allocation4 + $0xc48] sm:$0xff]
    %v4192 = vld [vmem:[#allocation4 + $0xc50] sm:$0xff]
    %v4193 = vld [vmem:[#allocation4 + $0xc58] sm:$0xff]
    %v4194 = vld [vmem:[#allocation4 + $0xc60] sm:$0xff]
    %v4195 = vld [vmem:[#allocation4 + $0xc68] sm:$0xff]
    %v4196 = vld [vmem:[#allocation4 + $0xc70] sm:$0xff]
    %v4197 = vld [vmem:[#allocation4 + $0xc78] sm:$0xff]
    %v4198 = vld [vmem:[#allocation4 + $0xc80] sm:$0xff]
    %v4199 = vld [vmem:[#allocation4 + $0xc88] sm:$0xff]
    %v4200 = vld [vmem:[#allocation4 + $0xc90] sm:$0xff]
    %v4201 = vld [vmem:[#allocation4 + $0xc98] sm:$0xff]
    %v4202 = vld [vmem:[#allocation4 + $0xca0] sm:$0xff]
    %v4203 = vld [vmem:[#allocation4 + $0xca8] sm:$0xff]
    %v4204 = vld [vmem:[#allocation4 + $0xcb0] sm:$0xff]
    %v4205 = vld [vmem:[#allocation4 + $0xcb8] sm:$0xff]
    %v4206 = vld [vmem:[#allocation4 + $0xcc0] sm:$0xff]
    %v4207 = vld [vmem:[#allocation4 + $0xcc8] sm:$0xff]
    %v4208 = vld [vmem:[#allocation4 + $0xcd0] sm:$0xff]
    %v4209 = vld [vmem:[#allocation4 + $0xcd8] sm:$0xff]
    %v4210 = vld [vmem:[#allocation4 + $0xce0] sm:$0xff]
    %v4211 = vld [vmem:[#allocation4 + $0xce8] sm:$0xff]
    %v4212 = vld [vmem:[#allocation4 + $0xcf0] sm:$0xff]
    %v4213 = vld [vmem:[#allocation4 + $0xcf8] sm:$0xff]
    %v4214 = vld [vmem:[#allocation4 + $0xd00] sm:$0xff]
    %v4215 = vld [vmem:[#allocation4 + $0xd08] sm:$0xff]
    %v4216 = vld [vmem:[#allocation4 + $0xd10] sm:$0xff]
    %v4217 = vld [vmem:[#allocation4 + $0xd18] sm:$0xff]
    %v4218 = vld [vmem:[#allocation4 + $0xd20] sm:$0xff]
    %v4219 = vld [vmem:[#allocation4 + $0xd28] sm:$0xff]
    %v4220 = vld [vmem:[#allocation4 + $0xd30] sm:$0xff]
    %v4221 = vld [vmem:[#allocation4 + $0xd38] sm:$0xff]
    %v4222 = vld [vmem:[#allocation4 + $0xd40] sm:$0xff]
    %v4223 = vld [vmem:[#allocation4 + $0xd48] sm:$0xff]
    %v4224 = vld [vmem:[#allocation4 + $0xd50] sm:$0xff]
    %v4225 = vld [vmem:[#allocation4 + $0xd58] sm:$0xff]
    %v4226 = vld [vmem:[#allocation4 + $0xd60] sm:$0xff]
    %v4227 = vld [vmem:[#allocation4 + $0xd68] sm:$0xff]
    %v4228 = vld [vmem:[#allocation4 + $0xd70] sm:$0xff]
    %v4229 = vld [vmem:[#allocation4 + $0xd78] sm:$0xff]
    %v4230 = vld [vmem:[#allocation4 + $0xd80] sm:$0xff]
    %v4231 = vld [vmem:[#allocation4 + $0xd88] sm:$0xff]
    %v4232 = vld [vmem:[#allocation4 + $0xd90] sm:$0xff]
    %v4233 = vld [vmem:[#allocation4 + $0xd98] sm:$0xff]
    %v4234 = vld [vmem:[#allocation4 + $0xda0] sm:$0xff]
    %v4235 = vld [vmem:[#allocation4 + $0xda8] sm:$0xff]
    %v4236 = vld [vmem:[#allocation4 + $0xdb0] sm:$0xff]
    %v4237 = vld [vmem:[#allocation4 + $0xdb8] sm:$0xff]
    %v4238 = vld [vmem:[#allocation4 + $0xdc0] sm:$0xff]
    %v4239 = vld [vmem:[#allocation4 + $0xdc8] sm:$0xff]
    %v4240 = vld [vmem:[#allocation4 + $0xdd0] sm:$0xff]
    %v4241 = vld [vmem:[#allocation4 + $0xdd8] sm:$0xff]
    %v4242 = vld [vmem:[#allocation4 + $0xde0] sm:$0xff]
    %v4243 = vld [vmem:[#allocation4 + $0xde8] sm:$0xff]
    %v4244 = vld [vmem:[#allocation4 + $0xdf0] sm:$0xff]
    %v4245 = vld [vmem:[#allocation4 + $0xdf8] sm:$0xff]
    %v4246 = vld [vmem:[#allocation4 + $0xe00] sm:$0xff]
    %v4247 = vld [vmem:[#allocation4 + $0xe08] sm:$0xff]
    %v4248 = vld [vmem:[#allocation4 + $0xe10] sm:$0xff]
    %v4249 = vld [vmem:[#allocation4 + $0xe18] sm:$0xff]
    %v4250 = vld [vmem:[#allocation4 + $0xe20] sm:$0xff]
    %v4251 = vld [vmem:[#allocation4 + $0xe28] sm:$0xff]
    %v4252 = vld [vmem:[#allocation4 + $0xe30] sm:$0xff]
    %v4253 = vld [vmem:[#allocation4 + $0xe38] sm:$0xff]
    %v4254 = vld [vmem:[#allocation4 + $0xe40] sm:$0xff]
    %v4255 = vld [vmem:[#allocation4 + $0xe48] sm:$0xff]
    %v4256 = vld [vmem:[#allocation4 + $0xe50] sm:$0xff]
    %v4257 = vld [vmem:[#allocation4 + $0xe58] sm:$0xff]
    %v4258 = vld [vmem:[#allocation4 + $0xe60] sm:$0xff]
    %v4259 = vld [vmem:[#allocation4 + $0xe68] sm:$0xff]
    %v4260 = vld [vmem:[#allocation4 + $0xe70] sm:$0xff]
    %v4261 = vld [vmem:[#allocation4 + $0xe78] sm:$0xff]
    %v4262 = vld [vmem:[#allocation4 + $0xe80] sm:$0xff]
    %v4263 = vld [vmem:[#allocation4 + $0xe88] sm:$0xff]
    %v4264 = vld [vmem:[#allocation4 + $0xe90] sm:$0xff]
    %v4265 = vld [vmem:[#allocation4 + $0xe98] sm:$0xff]
    %v4266 = vld [vmem:[#allocation4 + $0xea0] sm:$0xff]
    %v4267 = vld [vmem:[#allocation4 + $0xea8] sm:$0xff]
    %v4268 = vld [vmem:[#allocation4 + $0xeb0] sm:$0xff]
    %v4269 = vld [vmem:[#allocation4 + $0xeb8] sm:$0xff]
    %v4270 = vld [vmem:[#allocation4 + $0xec0] sm:$0xff]
    %v4271 = vld [vmem:[#allocation4 + $0xec8] sm:$0xff]
    %v4272 = vld [vmem:[#allocation4 + $0xed0] sm:$0xff]
    %v4273 = vld [vmem:[#allocation4 + $0xed8] sm:$0xff]
    %v4274 = vld [vmem:[#allocation4 + $0xee0] sm:$0xff]
    %v4275 = vld [vmem:[#allocation4 + $0xee8] sm:$0xff]
    %v4276 = vld [vmem:[#allocation4 + $0xef0] sm:$0xff]
    %v4277 = vld [vmem:[#allocation4 + $0xef8] sm:$0xff]
    %v4278 = vld [vmem:[#allocation4 + $0xf00] sm:$0xff]
    %v4279 = vld [vmem:[#allocation4 + $0xf08] sm:$0xff]
    %v4280 = vld [vmem:[#allocation4 + $0xf10] sm:$0xff]
    %v4281 = vld [vmem:[#allocation4 + $0xf18] sm:$0xff]
    %v4282 = vld [vmem:[#allocation4 + $0xf20] sm:$0xff]
    %v4283 = vld [vmem:[#allocation4 + $0xf28] sm:$0xff]
    %v4284 = vld [vmem:[#allocation4 + $0xf30] sm:$0xff]
    %v4285 = vld [vmem:[#allocation4 + $0xf38] sm:$0xff]
    %v4286 = vld [vmem:[#allocation4 + $0xf40] sm:$0xff]
    %v4287 = vld [vmem:[#allocation4 + $0xf48] sm:$0xff]
    %v4288 = vld [vmem:[#allocation4 + $0xf50] sm:$0xff]
    %v4289 = vld [vmem:[#allocation4 + $0xf58] sm:$0xff]
    %v4290 = vld [vmem:[#allocation4 + $0xf60] sm:$0xff]
    %v4291 = vld [vmem:[#allocation4 + $0xf68] sm:$0xff]
    %v4292 = vld [vmem:[#allocation4 + $0xf70] sm:$0xff]
    %v4293 = vld [vmem:[#allocation4 + $0xf78] sm:$0xff]
    %v4294 = vld [vmem:[#allocation4 + $0xf80] sm:$0xff]
    %v4295 = vld [vmem:[#allocation4 + $0xf88] sm:$0xff]
    %v4296 = vld [vmem:[#allocation4 + $0xf90] sm:$0xff]
    %v4297 = vld [vmem:[#allocation4 + $0xf98] sm:$0xff]
    %v4298 = vld [vmem:[#allocation4 + $0xfa0] sm:$0xff]
    %v4299 = vld [vmem:[#allocation4 + $0xfa8] sm:$0xff]
    %v4300 = vld [vmem:[#allocation4 + $0xfb0] sm:$0xff]
    %v4301 = vld [vmem:[#allocation4 + $0xfb8] sm:$0xff]
    %v4302 = vld [vmem:[#allocation4 + $0xfc0] sm:$0xff]
    %v4303 = vld [vmem:[#allocation4 + $0xfc8] sm:$0xff]
    %v4304 = vld [vmem:[#allocation4 + $0xfd0] sm:$0xff]
    %v4305 = vld [vmem:[#allocation4 + $0xfd8] sm:$0xff]
    %v4306 = vld [vmem:[#allocation4 + $0xfe0] sm:$0xff]
    %v4307 = vld [vmem:[#allocation4 + $0xfe8] sm:$0xff]
    %v4308 = vld [vmem:[#allocation4 + $0xff0] sm:$0xff]
    %v4309 = vld [vmem:[#allocation4 + $0xff8] sm:$0xff]
    %v4310 = vld [vmem:[#allocation4 + $0x1000] sm:$0xff]
    %v4311 = vld [vmem:[#allocation4 + $0x1008] sm:$0xff]
    %v4312 = vld [vmem:[#allocation4 + $0x1010] sm:$0xff]
    %v4313 = vld [vmem:[#allocation4 + $0x1018] sm:$0xff]
    %v4314 = vld [vmem:[#allocation4 + $0x1020] sm:$0xff]
    %v4315 = vld [vmem:[#allocation4 + $0x1028] sm:$0xff]
    %v4316 = vld [vmem:[#allocation4 + $0x1030] sm:$0xff]
    %v4317 = vld [vmem:[#allocation4 + $0x1038] sm:$0xff]
    %v4318 = vld [vmem:[#allocation4 + $0x1040] sm:$0xff]
    %v4319 = vld [vmem:[#allocation4 + $0x1048] sm:$0xff]
    %v4320 = vld [vmem:[#allocation4 + $0x1050] sm:$0xff]
    %v4321 = vld [vmem:[#allocation4 + $0x1058] sm:$0xff]
    %v4322 = vld [vmem:[#allocation4 + $0x1060] sm:$0xff]
    %v4323 = vld [vmem:[#allocation4 + $0x1068] sm:$0xff]
    %v4324 = vld [vmem:[#allocation4 + $0x1070] sm:$0xff]
    %v4325 = vld [vmem:[#allocation4 + $0x1078] sm:$0xff]
    %v4326 = vld [vmem:[#allocation4 + $0x1080] sm:$0xff]
    %v4327 = vld [vmem:[#allocation4 + $0x1088] sm:$0xff]
    %v4328 = vld [vmem:[#allocation4 + $0x1090] sm:$0xff]
    %v4329 = vld [vmem:[#allocation4 + $0x1098] sm:$0xff]
    %v4330 = vld [vmem:[#allocation4 + $0x10a0] sm:$0xff]
    %v4331 = vld [vmem:[#allocation4 + $0x10a8] sm:$0xff]
    %v4332 = vld [vmem:[#allocation4 + $0x10b0] sm:$0xff]
    %v4333 = vld [vmem:[#allocation4 + $0x10b8] sm:$0xff]
    %v4334 = vld [vmem:[#allocation4 + $0x10c0] sm:$0xff]
    %v4335 = vld [vmem:[#allocation4 + $0x10c8] sm:$0xff]
    %v4336 = vld [vmem:[#allocation4 + $0x10d0] sm:$0xff]
    %v4337 = vld [vmem:[#allocation4 + $0x10d8] sm:$0xff]
    %v4338 = vld [vmem:[#allocation4 + $0x10e0] sm:$0xff]
    %v4339 = vld [vmem:[#allocation4 + $0x10e8] sm:$0xff]
    %v4340 = vld [vmem:[#allocation4 + $0x10f0] sm:$0xff]
    %v4341 = vld [vmem:[#allocation4 + $0x10f8] sm:$0xff]
    %v4342 = vld [vmem:[#allocation4 + $0x1100] sm:$0xff]
    %v4343 = vld [vmem:[#allocation4 + $0x1108] sm:$0xff]
    %v4344 = vld [vmem:[#allocation4 + $0x1110] sm:$0xff]
    %v4345 = vld [vmem:[#allocation4 + $0x1118] sm:$0xff]
    %v4346 = vld [vmem:[#allocation4 + $0x1120] sm:$0xff]
    %v4347 = vld [vmem:[#allocation4 + $0x1128] sm:$0xff]
    %v4348 = vld [vmem:[#allocation4 + $0x1130] sm:$0xff]
    %v4349 = vld [vmem:[#allocation4 + $0x1138] sm:$0xff]
    %v4350 = vld [vmem:[#allocation4 + $0x1140] sm:$0xff]
    %v4351 = vld [vmem:[#allocation4 + $0x1148] sm:$0xff]
    %v4352 = vld [vmem:[#allocation4 + $0x1150] sm:$0xff]
    %v4353 = vld [vmem:[#allocation4 + $0x1158] sm:$0xff]
    %v4354 = vld [vmem:[#allocation4 + $0x1160] sm:$0xff]
    %v4355 = vld [vmem:[#allocation4 + $0x1168] sm:$0xff]
    %v4356 = vld [vmem:[#allocation4 + $0x1170] sm:$0xff]
    %v4357 = vld [vmem:[#allocation4 + $0x1178] sm:$0xff]
    %v4358 = vld [vmem:[#allocation4 + $0x1180] sm:$0xff]
    %v4359 = vld [vmem:[#allocation4 + $0x1188] sm:$0xff]
    %v4360 = vld [vmem:[#allocation4 + $0x1190] sm:$0xff]
    %v4361 = vld [vmem:[#allocation4 + $0x1198] sm:$0xff]
    %v4362 = vld [vmem:[#allocation4 + $0x11a0] sm:$0xff]
    %v4363 = vld [vmem:[#allocation4 + $0x11a8] sm:$0xff]
    %v4364 = vld [vmem:[#allocation4 + $0x11b0] sm:$0xff]
    %v4365 = vld [vmem:[#allocation4 + $0x11b8] sm:$0xff]
    %v4366 = vld [vmem:[#allocation4 + $0x11c0] sm:$0xff]
    %v4367 = vld [vmem:[#allocation4 + $0x11c8] sm:$0xff]
    %v4368 = vld [vmem:[#allocation4 + $0x11d0] sm:$0xff]
    %v4369 = vld [vmem:[#allocation4 + $0x11d8] sm:$0xff]
    %v4370 = vld [vmem:[#allocation4 + $0x11e0] sm:$0xff]
    %v4371 = vld [vmem:[#allocation4 + $0x11e8] sm:$0xff]
    %v4372 = vld [vmem:[#allocation4 + $0x11f0] sm:$0xff]
    %v4373 = vld [vmem:[#allocation4 + $0x11f8] sm:$0xff]
    %4374 = vmatprep.subr.bf16.mxu0 %v3799
    %4375 = vmatpush1.bf16.msra.mxu0 %v3798
    %4376 = vmatprep.subr.bf16.mxu0 %v3803
    %4377 = vmatpush1.bf16.msra.mxu0 %v3802
    %4378 = vmatprep.subr.bf16.mxu0 %v3807
    %4379 = vmatpush1.bf16.msra.mxu0 %v3806
    %4380 = vmatprep.subr.bf16.mxu0 %v3811
    %4381 = vmatpush1.bf16.msra.mxu0 %v3810
    %4382 = vmatprep.subr.bf16.mxu0 %v3815
    %4383 = vmatpush1.bf16.msra.mxu0 %v3814
    %4384 = vmatprep.subr.bf16.mxu0 %v3819
    %4385 = vmatpush1.bf16.msra.mxu0 %v3818
    %4386 = vmatprep.subr.bf16.mxu0 %v3823
    %4387 = vmatpush1.bf16.msra.mxu0 %v3822
    %4388 = vmatprep.subr.bf16.mxu0 %v3827
    %4389 = vmatpush1.bf16.msra.mxu0 %v3826
    %4390 = vmatprep.subr.bf16.mxu0 %v3831
    %4391 = vmatpush1.bf16.msra.mxu0 %v3830
    %4392 = vmatprep.subr.bf16.mxu0 %v3835
    %4393 = vmatpush1.bf16.msra.mxu0 %v3834
    %4394 = vmatprep.subr.bf16.mxu0 %v3839
    %4395 = vmatpush1.bf16.msra.mxu0 %v3838
    %4396 = vmatprep.subr.bf16.mxu0 %v3843
    %4397 = vmatpush1.bf16.msra.mxu0 %v3842
    %4398 = vmatprep.subr.bf16.mxu0 %v3847
    %4399 = vmatpush1.bf16.msra.mxu0 %v3846
    %4400 = vmatprep.subr.bf16.mxu0 %v3851
    %4401 = vmatpush1.bf16.msra.mxu0 %v3850
    %4402 = vmatprep.subr.bf16.mxu0 %v3855
    %4403 = vmatpush1.bf16.msra.mxu0 %v3854
    %4404 = vmatprep.subr.bf16.mxu0 %v3859
    %4405 = vmatpush1.bf16.msra.mxu0 %v3858
    %4406 = vmatprep.mubr.bf16.mxu0 %v3655
    %4407 = vmatmul.mubr.bf16.gmra.mrb[0].mxu0 %v3654
    %v4408 = vpop.f32.mrb[0].mxu0
    %v4409 = vadd.f32 0.0, %v4408
    %v4410 = vpop.f32.mrb[0].mxu0
    %v4411 = vadd.f32 0.0, %v4410
    %v4412 = vpop.f32.mrb[0].mxu0
    %v4413 = vadd.f32 0.0, %v4412
    %v4414 = vpop.f32.mrb[0].mxu0
    %v4415 = vadd.f32 0.0, %v4414
    %4416 = vmatprep.mubr.bf16.mxu0 %v3673
    %4417 = vmatmul.mubr.bf16.gmra.mrb[0].mxu0 %v3672
    %v4418 = vpop.f32.mrb[0].mxu0
    %v4419 = vadd.f32 0.0, %v4418
    %v4420 = vpop.f32.mrb[0].mxu0
    %v4421 = vadd.f32 0.0, %v4420
    %v4422 = vpop.f32.mrb[0].mxu0
    %v4423 = vadd.f32 0.0, %v4422
    %v4424 = vpop.f32.mrb[0].mxu0
    %v4425 = vadd.f32 0.0, %v4424
    %4426 = vmatprep.mubr.bf16.mxu0 %v3691
    %4427 = vmatmul.mubr.bf16.gmra.mrb[0].mxu0 %v3690
    %v4428 = vpop.f32.mrb[0].mxu0
    %v4429 = vadd.f32 0.0, %v4428
    %v4430 = vpop.f32.mrb[0].mxu0
    %v4431 = vadd.f32 0.0, %v4430
    %v4432 = vpop.f32.mrb[0].mxu0
    %v4433 = vadd.f32 0.0, %v4432
    %v4434 = vpop.f32.mrb[0].mxu0
    %v4435 = vadd.f32 0.0, %v4434
    %4436 = vmatprep.mubr.bf16.mxu0 %v3709
    %4437 = vmatmul.mubr.bf16.gmra.mrb[0].mxu0 %v3708
    %v4438 = vpop.f32.mrb[0].mxu0
    %v4439 = vadd.f32 0.0, %v4438
    %v4440 = vpop.f32.mrb[0].mxu0
    %v4441 = vadd.f32 0.0, %v4440
    %v4442 = vpop.f32.mrb[0].mxu0
    %v4443 = vadd.f32 0.0, %v4442
    %v4444 = vpop.f32.mrb[0].mxu0
    %v4445 = vadd.f32 0.0, %v4444
    %4446 = vmatprep.mubr.bf16.mxu0 %v3727
    %4447 = vmatmul.mubr.bf16.gmra.mrb[0].mxu0 %v3726
    %v4448 = vpop.f32.mrb[0].mxu0
    %v4449 = vadd.f32 0.0, %v4448
    %v4450 = vpop.f32.mrb[0].mxu0
    %v4451 = vadd.f32 0.0, %v4450
    %v4452 = vpop.f32.mrb[0].mxu0
    %v4453 = vadd.f32 0.0, %v4452
    %v4454 = vpop.f32.mrb[0].mxu0
    %v4455 = vadd.f32 0.0, %v4454
    %4456 = vmatprep.mubr.bf16.mxu0 %v3745
    %4457 = vmatmul.mubr.bf16.gmra.mrb[0].mxu0 %v3744
    %v4458 = vpop.f32.mrb[0].mxu0
    %v4459 = vadd.f32 0.0, %v4458
    %v4460 = vpop.f32.mrb[0].mxu0
    %v4461 = vadd.f32 0.0, %v4460
    %v4462 = vpop.f32.mrb[0].mxu0
    %v4463 = vadd.f32 0.0, %v4462
    %v4464 = vpop.f32.mrb[0].mxu0
    %v4465 = vadd.f32 0.0, %v4464
    %4466 = vmatprep.mubr.bf16.mxu0 %v3763
    %4467 = vmatmul.mubr.bf16.gmra.mrb[0].mxu0 %v3762
    %v4468 = vpop.f32.mrb[0].mxu0
    %v4469 = vadd.f32 0.0, %v4468
    %v4470 = vpop.f32.mrb[0].mxu0
    %v4471 = vadd.f32 0.0, %v4470
    %v4472 = vpop.f32.mrb[0].mxu0
    %v4473 = vadd.f32 0.0, %v4472
    %v4474 = vpop.f32.mrb[0].mxu0
    %v4475 = vadd.f32 0.0, %v4474
    %4476 = vmatprep.mubr.bf16.mxu0 %v3781
    %4477 = vmatmul.mubr.bf16.gmra.mrb[0].mxu0 %v3780
    %v4478 = vpop.f32.mrb[0].mxu0
    %v4479 = vadd.f32 0.0, %v4478
    %v4480 = vpop.f32.mrb[0].mxu0
    %v4481 = vadd.f32 0.0, %v4480
    %v4482 = vpop.f32.mrb[0].mxu0
    %v4483 = vadd.f32 0.0, %v4482
    %v4484 = vpop.f32.mrb[0].mxu0
    %v4485 = vadd.f32 0.0, %v4484
    %4486 = vdwg.mxu0
    %4487 = vmatprep.subr.bf16.mxu0 %v3863
    %4488 = vmatpush1.bf16.msra.mxu0 %v3862
    %4489 = vmatprep.subr.bf16.mxu0 %v3867
    %4490 = vmatpush1.bf16.msra.mxu0 %v3866
    %4491 = vmatprep.subr.bf16.mxu0 %v3871
    %4492 = vmatpush1.bf16.msra.mxu0 %v3870
    %4493 = vmatprep.subr.bf16.mxu0 %v3875
    %4494 = vmatpush1.bf16.msra.mxu0 %v3874
    %4495 = vmatprep.subr.bf16.mxu0 %v3879
    %4496 = vmatpush1.bf16.msra.mxu0 %v3878
    %4497 = vmatprep.subr.bf16.mxu0 %v3883
    %4498 = vmatpush1.bf16.msra.mxu0 %v3882
    %4499 = vmatprep.subr.bf16.mxu0 %v3887
    %4500 = vmatpush1.bf16.msra.mxu0 %v3886
    %4501 = vmatprep.subr.bf16.mxu0 %v3891
    %4502 = vmatpush1.bf16.msra.mxu0 %v3890
    %4503 = vmatprep.subr.bf16.mxu0 %v3895
    %4504 = vmatpush1.bf16.msra.mxu0 %v3894
    %4505 = vmatprep.subr.bf16.mxu0 %v3899
    %4506 = vmatpush1.bf16.msra.mxu0 %v3898
    %4507 = vmatprep.subr.bf16.mxu0 %v3903
    %4508 = vmatpush1.bf16.msra.mxu0 %v3902
    %4509 = vmatprep.subr.bf16.mxu0 %v3907
    %4510 = vmatpush1.bf16.msra.mxu0 %v3906
    %4511 = vmatprep.subr.bf16.mxu0 %v3911
    %4512 = vmatpush1.bf16.msra.mxu0 %v3910
    %4513 = vmatprep.subr.bf16.mxu0 %v3915
    %4514 = vmatpush1.bf16.msra.mxu0 %v3914
    %4515 = vmatprep.subr.bf16.mxu0 %v3919
    %4516 = vmatpush1.bf16.msra.mxu0 %v3918
    %4517 = vmatprep.subr.bf16.mxu0 %v3923
    %4518 = vmatpush1.bf16.msra.mxu0 %v3922
    %4519 = vmatprep.mubr.bf16.mxu0 %v3657
    %4520 = vmatmul.mubr.bf16.gmra.mrb[0].mxu0 %v3656
    %v4521 = vpop.f32.mrb[0].mxu0
    %v4522 = vadd.f32 %v4409, %v4521
    %v4523 = vpop.f32.mrb[0].mxu0
    %v4524 = vadd.f32 %v4411, %v4523
    %v4525 = vpop.f32.mrb[0].mxu0
    %v4526 = vadd.f32 %v4413, %v4525
    %v4527 = vpop.f32.mrb[0].mxu0
    %v4528 = vadd.f32 %v4415, %v4527
    %4529 = vmatprep.mubr.bf16.mxu0 %v3675
    %4530 = vmatmul.mubr.bf16.gmra.mrb[0].mxu0 %v3674
    %v4531 = vpop.f32.mrb[0].mxu0
    %v4532 = vadd.f32 %v4419, %v4531
    %v4533 = vpop.f32.mrb[0].mxu0
    %v4534 = vadd.f32 %v4421, %v4533
    %v4535 = vpop.f32.mrb[0].mxu0
    %v4536 = vadd.f32 %v4423, %v4535
    %v4537 = vpop.f32.mrb[0].mxu0
    %v4538 = vadd.f32 %v4425, %v4537
    %4539 = vmatprep.mubr.bf16.mxu0 %v3693
    %4540 = vmatmul.mubr.bf16.gmra.mrb[0].mxu0 %v3692
    %v4541 = vpop.f32.mrb[0].mxu0
    %v4542 = vadd.f32 %v4429, %v4541
    %v4543 = vpop.f32.mrb[0].mxu0
    %v4544 = vadd.f32 %v4431, %v4543
    %v4545 = vpop.f32.mrb[0].mxu0
    %v4546 = vadd.f32 %v4433, %v4545
    %v4547 = vpop.f32.mrb[0].mxu0
    %v4548 = vadd.f32 %v4435, %v4547
    %4549 = vmatprep.mubr.bf16.mxu0 %v3711
    %4550 = vmatmul.mubr.bf16.gmra.mrb[0].mxu0 %v3710
    %v4551 = vpop.f32.mrb[0].mxu0
    %v4552 = vadd.f32 %v4439, %v4551
    %v4553 = vpop.f32.mrb[0].mxu0
    %v4554 = vadd.f32 %v4441, %v4553
    %v4555 = vpop.f32.mrb[0].mxu0
    %v4556 = vadd.f32 %v4443, %v4555
    %v4557 = vpop.f32.mrb[0].mxu0
    %v4558 = vadd.f32 %v4445, %v4557
    %4559 = vmatprep.mubr.bf16.mxu0 %v3729
    %4560 = vmatmul.mubr.bf16.gmra.mrb[0].mxu0 %v3728
    %v4561 = vpop.f32.mrb[0].mxu0
    %v4562 = vadd.f32 %v4449, %v4561
    %v4563 = vpop.f32.mrb[0].mxu0
    %v4564 = vadd.f32 %v4451, %v4563
    %v4565 = vpop.f32.mrb[0].mxu0
    %v4566 = vadd.f32 %v4453, %v4565
    %v4567 = vpop.f32.mrb[0].mxu0
    %v4568 = vadd.f32 %v4455, %v4567
    %4569 = vmatprep.mubr.bf16.mxu0 %v3747
    %4570 = vmatmul.mubr.bf16.gmra.mrb[0].mxu0 %v3746
    %v4571 = vpop.f32.mrb[0].mxu0
    %v4572 = vadd.f32 %v4459, %v4571
    %v4573 = vpop.f32.mrb[0].mxu0
    %v4574 = vadd.f32 %v4461, %v4573
    %v4575 = vpop.f32.mrb[0].mxu0
    %v4576 = vadd.f32 %v4463, %v4575
    %v4577 = vpop.f32.mrb[0].mxu0
    %v4578 = vadd.f32 %v4465, %v4577
    %4579 = vmatprep.mubr.bf16.mxu0 %v3765
    %4580 = vmatmul.mubr.bf16.gmra.mrb[0].mxu0 %v3764
    %v4581 = vpop.f32.mrb[0].mxu0
    %v4582 = vadd.f32 %v4469, %v4581
    %v4583 = vpop.f32.mrb[0].mxu0
    %v4584 = vadd.f32 %v4471, %v4583
    %v4585 = vpop.f32.mrb[0].mxu0
    %v4586 = vadd.f32 %v4473, %v4585
    %v4587 = vpop.f32.mrb[0].mxu0
    %v4588 = vadd.f32 %v4475, %v4587
    %4589 = vmatprep.mubr.bf16.mxu0 %v3783
    %4590 = vmatmul.mubr.bf16.gmra.mrb[0].mxu0 %v3782
    %v4591 = vpop.f32.mrb[0].mxu0
    %v4592 = vadd.f32 %v4479, %v4591
    %v4593 = vpop.f32.mrb[0].mxu0
    %v4594 = vadd.f32 %v4481, %v4593
    %v4595 = vpop.f32.mrb[0].mxu0
    %v4596 = vadd.f32 %v4483, %v4595
    %v4597 = vpop.f32.mrb[0].mxu0
    %v4598 = vadd.f32 %v4485, %v4597
    %4599 = vdwg.mxu0
    %4600 = vmatprep.subr.bf16.mxu0 %v3927
    %4601 = vmatpush1.bf16.msra.mxu0 %v3926
    %4602 = vmatprep.subr.bf16.mxu0 %v3931
    %4603 = vmatpush1.bf16.msra.mxu0 %v3930
    %4604 = vmatprep.subr.bf16.mxu0 %v3935
    %4605 = vmatpush1.bf16.msra.mxu0 %v3934
    %4606 = vmatprep.subr.bf16.mxu0 %v3939
    %4607 = vmatpush1.bf16.msra.mxu0 %v3938
    %4608 = vmatprep.subr.bf16.mxu0 %v3943
    %4609 = vmatpush1.bf16.msra.mxu0 %v3942
    %4610 = vmatprep.subr.bf16.mxu0 %v3947
    %4611 = vmatpush1.bf16.msra.mxu0 %v3946
    %4612 = vmatprep.subr.bf16.mxu0 %v3951
    %4613 = vmatpush1.bf16.msra.mxu0 %v3950
    %4614 = vmatprep.subr.bf16.mxu0 %v3955
    %4615 = vmatpush1.bf16.msra.mxu0 %v3954
    %4616 = vmatprep.subr.bf16.mxu0 %v3959
    %4617 = vmatpush1.bf16.msra.mxu0 %v3958
    %4618 = vmatprep.subr.bf16.mxu0 %v3963
    %4619 = vmatpush1.bf16.msra.mxu0 %v3962
    %4620 = vmatprep.subr.bf16.mxu0 %v3967
    %4621 = vmatpush1.bf16.msra.mxu0 %v3966
    %4622 = vmatprep.subr.bf16.mxu0 %v3971
    %4623 = vmatpush1.bf16.msra.mxu0 %v3970
    %4624 = vmatprep.subr.bf16.mxu0 %v3975
    %4625 = vmatpush1.bf16.msra.mxu0 %v3974
    %4626 = vmatprep.subr.bf16.mxu0 %v3979
    %4627 = vmatpush1.bf16.msra.mxu0 %v3978
    %4628 = vmatprep.subr.bf16.mxu0 %v3983
    %4629 = vmatpush1.bf16.msra.mxu0 %v3982
    %4630 = vmatprep.subr.bf16.mxu0 %v3987
    %4631 = vmatpush1.bf16.msra.mxu0 %v3986
    %4632 = vmatprep.mubr.bf16.mxu0 %v3659
    %4633 = vmatmul.mubr.bf16.gmra.mrb[0].mxu0 %v3658
    %v4634 = vpop.f32.mrb[0].mxu0
    %v4635 = vadd.f32 %v4522, %v4634
    %v4636 = vpop.f32.mrb[0].mxu0
    %v4637 = vadd.f32 %v4524, %v4636
    %v4638 = vpop.f32.mrb[0].mxu0
    %v4639 = vadd.f32 %v4526, %v4638
    %v4640 = vpop.f32.mrb[0].mxu0
    %v4641 = vadd.f32 %v4528, %v4640
    %4642 = vmatprep.mubr.bf16.mxu0 %v3677
    %4643 = vmatmul.mubr.bf16.gmra.mrb[0].mxu0 %v3676
    %v4644 = vpop.f32.mrb[0].mxu0
    %v4645 = vadd.f32 %v4532, %v4644
    %v4646 = vpop.f32.mrb[0].mxu0
    %v4647 = vadd.f32 %v4534, %v4646
    %v4648 = vpop.f32.mrb[0].mxu0
    %v4649 = vadd.f32 %v4536, %v4648
    %v4650 = vpop.f32.mrb[0].mxu0
    %v4651 = vadd.f32 %v4538, %v4650
    %4652 = vmatprep.mubr.bf16.mxu0 %v3695
    %4653 = vmatmul.mubr.bf16.gmra.mrb[0].mxu0 %v3694
    %v4654 = vpop.f32.mrb[0].mxu0
    %v4655 = vadd.f32 %v4542, %v4654
    %v4656 = vpop.f32.mrb[0].mxu0
    %v4657 = vadd.f32 %v4544, %v4656
    %v4658 = vpop.f32.mrb[0].mxu0
    %v4659 = vadd.f32 %v4546, %v4658
    %v4660 = vpop.f32.mrb[0].mxu0
    %v4661 = vadd.f32 %v4548, %v4660
    %4662 = vmatprep.mubr.bf16.mxu0 %v3713
    %4663 = vmatmul.mubr.bf16.gmra.mrb[0].mxu0 %v3712
    %v4664 = vpop.f32.mrb[0].mxu0
    %v4665 = vadd.f32 %v4552, %v4664
    %v4666 = vpop.f32.mrb[0].mxu0
    %v4667 = vadd.f32 %v4554, %v4666
    %v4668 = vpop.f32.mrb[0].mxu0
    %v4669 = vadd.f32 %v4556, %v4668
    %v4670 = vpop.f32.mrb[0].mxu0
    %v4671 = vadd.f32 %v4558, %v4670
    %4672 = vmatprep.mubr.bf16.mxu0 %v3731
    %4673 = vmatmul.mubr.bf16.gmra.mrb[0].mxu0 %v3730
    %v4674 = vpop.f32.mrb[0].mxu0
    %v4675 = vadd.f32 %v4562, %v4674
    %v4676 = vpop.f32.mrb[0].mxu0
    %v4677 = vadd.f32 %v4564, %v4676
    %v4678 = vpop.f32.mrb[0].mxu0
    %v4679 = vadd.f32 %v4566, %v4678
    %v4680 = vpop.f32.mrb[0].mxu0
    %v4681 = vadd.f32 %v4568, %v4680
    %4682 = vmatprep.mubr.bf16.mxu0 %v3749
    %4683 = vmatmul.mubr.bf16.gmra.mrb[0].mxu0 %v3748
    %v4684 = vpop.f32.mrb[0].mxu0
    %v4685 = vadd.f32 %v4572, %v4684
    %v4686 = vpop.f32.mrb[0].mxu0
    %v4687 = vadd.f32 %v4574, %v4686
    %v4688 = vpop.f32.mrb[0].mxu0
    %v4689 = vadd.f32 %v4576, %v4688
    %v4690 = vpop.f32.mrb[0].mxu0
    %v4691 = vadd.f32 %v4578, %v4690
    %4692 = vmatprep.mubr.bf16.mxu0 %v3767
    %4693 = vmatmul.mubr.bf16.gmra.mrb[0].mxu0 %v3766
    %v4694 = vpop.f32.mrb[0].mxu0
    %v4695 = vadd.f32 %v4582, %v4694
    %v4696 = vpop.f32.mrb[0].mxu0
    %v4697 = vadd.f32 %v4584, %v4696
    %v4698 = vpop.f32.mrb[0].mxu0
    %v4699 = vadd.f32 %v4586, %v4698
    %v4700 = vpop.f32.mrb[0].mxu0
    %v4701 = vadd.f32 %v4588, %v4700
    %4702 = vmatprep.mubr.bf16.mxu0 %v3785
    %4703 = vmatmul.mubr.bf16.gmra.mrb[0].mxu0 %v3784
    %v4704 = vpop.f32.mrb[0].mxu0
    %v4705 = vadd.f32 %v4592, %v4704
    %v4706 = vpop.f32.mrb[0].mxu0
    %v4707 = vadd.f32 %v4594, %v4706
    %v4708 = vpop.f32.mrb[0].mxu0
    %v4709 = vadd.f32 %v4596, %v4708
    %v4710 = vpop.f32.mrb[0].mxu0
    %v4711 = vadd.f32 %v4598, %v4710
    %4712 = vdwg.mxu0
    %4713 = vmatprep.subr.bf16.mxu0 %v3991
    %4714 = vmatpush1.bf16.msra.mxu0 %v3990
    %4715 = vmatprep.subr.bf16.mxu0 %v3995
    %4716 = vmatpush1.bf16.msra.mxu0 %v3994
    %4717 = vmatprep.subr.bf16.mxu0 %v3999
    %4718 = vmatpush1.bf16.msra.mxu0 %v3998
    %4719 = vmatprep.subr.bf16.mxu0 %v4003
    %4720 = vmatpush1.bf16.msra.mxu0 %v4002
    %4721 = vmatprep.subr.bf16.mxu0 %v4007
    %4722 = vmatpush1.bf16.msra.mxu0 %v4006
    %4723 = vmatprep.subr.bf16.mxu0 %v4011
    %4724 = vmatpush1.bf16.msra.mxu0 %v4010
    %4725 = vmatprep.subr.bf16.mxu0 %v4015
    %4726 = vmatpush1.bf16.msra.mxu0 %v4014
    %4727 = vmatprep.subr.bf16.mxu0 %v4019
    %4728 = vmatpush1.bf16.msra.mxu0 %v4018
    %4729 = vmatprep.subr.bf16.mxu0 %v4023
    %4730 = vmatpush1.bf16.msra.mxu0 %v4022
    %4731 = vmatprep.subr.bf16.mxu0 %v4027
    %4732 = vmatpush1.bf16.msra.mxu0 %v4026
    %4733 = vmatprep.subr.bf16.mxu0 %v4031
    %4734 = vmatpush1.bf16.msra.mxu0 %v4030
    %4735 = vmatprep.subr.bf16.mxu0 %v4035
    %4736 = vmatpush1.bf16.msra.mxu0 %v4034
    %4737 = vmatprep.subr.bf16.mxu0 %v4039
    %4738 = vmatpush1.bf16.msra.mxu0 %v4038
    %4739 = vmatprep.subr.bf16.mxu0 %v4043
    %4740 = vmatpush1.bf16.msra.mxu0 %v4042
    %4741 = vmatprep.subr.bf16.mxu0 %v4047
    %4742 = vmatpush1.bf16.msra.mxu0 %v4046
    %4743 = vmatprep.subr.bf16.mxu0 %v4051
    %4744 = vmatpush1.bf16.msra.mxu0 %v4050
    %4745 = vmatprep.mubr.bf16.mxu0 %v3661
    %4746 = vmatmul.mubr.bf16.gmra.mrb[0].mxu0 %v3660
    %v4747 = vpop.f32.mrb[0].mxu0
    %v4748 = vadd.f32 %v4635, %v4747
    %v4749 = vpop.f32.mrb[0].mxu0
    %v4750 = vadd.f32 %v4637, %v4749
    %v4751 = vpop.f32.mrb[0].mxu0
    %v4752 = vadd.f32 %v4639, %v4751
    %v4753 = vpop.f32.mrb[0].mxu0
    %v4754 = vadd.f32 %v4641, %v4753
    %4755 = vmatprep.mubr.bf16.mxu0 %v3679
    %4756 = vmatmul.mubr.bf16.gmra.mrb[0].mxu0 %v3678
    %v4757 = vpop.f32.mrb[0].mxu0
    %v4758 = vadd.f32 %v4645, %v4757
    %v4759 = vpop.f32.mrb[0].mxu0
    %v4760 = vadd.f32 %v4647, %v4759
    %v4761 = vpop.f32.mrb[0].mxu0
    %v4762 = vadd.f32 %v4649, %v4761
    %v4763 = vpop.f32.mrb[0].mxu0
    %v4764 = vadd.f32 %v4651, %v4763
    %4765 = vmatprep.mubr.bf16.mxu0 %v3697
    %4766 = vmatmul.mubr.bf16.gmra.mrb[0].mxu0 %v3696
    %v4767 = vpop.f32.mrb[0].mxu0
    %v4768 = vadd.f32 %v4655, %v4767
    %v4769 = vpop.f32.mrb[0].mxu0
    %v4770 = vadd.f32 %v4657, %v4769
    %v4771 = vpop.f32.mrb[0].mxu0
    %v4772 = vadd.f32 %v4659, %v4771
    %v4773 = vpop.f32.mrb[0].mxu0
    %v4774 = vadd.f32 %v4661, %v4773
    %4775 = vmatprep.mubr.bf16.mxu0 %v3715
    %4776 = vmatmul.mubr.bf16.gmra.mrb[0].mxu0 %v3714
    %v4777 = vpop.f32.mrb[0].mxu0
    %v4778 = vadd.f32 %v4665, %v4777
    %v4779 = vpop.f32.mrb[0].mxu0
    %v4780 = vadd.f32 %v4667, %v4779
    %v4781 = vpop.f32.mrb[0].mxu0
    %v4782 = vadd.f32 %v4669, %v4781
    %v4783 = vpop.f32.mrb[0].mxu0
    %v4784 = vadd.f32 %v4671, %v4783
    %4785 = vmatprep.mubr.bf16.mxu0 %v3733
    %4786 = vmatmul.mubr.bf16.gmra.mrb[0].mxu0 %v3732
    %v4787 = vpop.f32.mrb[0].mxu0
    %v4788 = vadd.f32 %v4675, %v4787
    %v4789 = vpop.f32.mrb[0].mxu0
    %v4790 = vadd.f32 %v4677, %v4789
    %v4791 = vpop.f32.mrb[0].mxu0
    %v4792 = vadd.f32 %v4679, %v4791
    %v4793 = vpop.f32.mrb[0].mxu0
    %v4794 = vadd.f32 %v4681, %v4793
    %4795 = vmatprep.mubr.bf16.mxu0 %v3751
    %4796 = vmatmul.mubr.bf16.gmra.mrb[0].mxu0 %v3750
    %v4797 = vpop.f32.mrb[0].mxu0
    %v4798 = vadd.f32 %v4685, %v4797
    %v4799 = vpop.f32.mrb[0].mxu0
    %v4800 = vadd.f32 %v4687, %v4799
    %v4801 = vpop.f32.mrb[0].mxu0
    %v4802 = vadd.f32 %v4689, %v4801
    %v4803 = vpop.f32.mrb[0].mxu0
    %v4804 = vadd.f32 %v4691, %v4803
    %4805 = vmatprep.mubr.bf16.mxu0 %v3769
    %4806 = vmatmul.mubr.bf16.gmra.mrb[0].mxu0 %v3768
    %v4807 = vpop.f32.mrb[0].mxu0
    %v4808 = vadd.f32 %v4695, %v4807
    %v4809 = vpop.f32.mrb[0].mxu0
    %v4810 = vadd.f32 %v4697, %v4809
    %v4811 = vpop.f32.mrb[0].mxu0
    %v4812 = vadd.f32 %v4699, %v4811
    %v4813 = vpop.f32.mrb[0].mxu0
    %v4814 = vadd.f32 %v4701, %v4813
    %4815 = vmatprep.mubr.bf16.mxu0 %v3787
    %4816 = vmatmul.mubr.bf16.gmra.mrb[0].mxu0 %v3786
    %v4817 = vpop.f32.mrb[0].mxu0
    %v4818 = vadd.f32 %v4705, %v4817
    %v4819 = vpop.f32.mrb[0].mxu0
    %v4820 = vadd.f32 %v4707, %v4819
    %v4821 = vpop.f32.mrb[0].mxu0
    %v4822 = vadd.f32 %v4709, %v4821
    %v4823 = vpop.f32.mrb[0].mxu0
    %v4824 = vadd.f32 %v4711, %v4823
    %4825 = vdwg.mxu0
    %4826 = vmatprep.subr.bf16.mxu0 %v4055
    %4827 = vmatpush1.bf16.msra.mxu0 %v4054
    %4828 = vmatprep.subr.bf16.mxu0 %v4059
    %4829 = vmatpush1.bf16.msra.mxu0 %v4058
    %4830 = vmatprep.subr.bf16.mxu0 %v4063
    %4831 = vmatpush1.bf16.msra.mxu0 %v4062
    %4832 = vmatprep.subr.bf16.mxu0 %v4067
    %4833 = vmatpush1.bf16.msra.mxu0 %v4066
    %4834 = vmatprep.subr.bf16.mxu0 %v4071
    %4835 = vmatpush1.bf16.msra.mxu0 %v4070
    %4836 = vmatprep.subr.bf16.mxu0 %v4075
    %4837 = vmatpush1.bf16.msra.mxu0 %v4074
    %4838 = vmatprep.subr.bf16.mxu0 %v4079
    %4839 = vmatpush1.bf16.msra.mxu0 %v4078
    %4840 = vmatprep.subr.bf16.mxu0 %v4083
    %4841 = vmatpush1.bf16.msra.mxu0 %v4082
    %4842 = vmatprep.subr.bf16.mxu0 %v4087
    %4843 = vmatpush1.bf16.msra.mxu0 %v4086
    %4844 = vmatprep.subr.bf16.mxu0 %v4091
    %4845 = vmatpush1.bf16.msra.mxu0 %v4090
    %4846 = vmatprep.subr.bf16.mxu0 %v4095
    %4847 = vmatpush1.bf16.msra.mxu0 %v4094
    %4848 = vmatprep.subr.bf16.mxu0 %v4099
    %4849 = vmatpush1.bf16.msra.mxu0 %v4098
    %4850 = vmatprep.subr.bf16.mxu0 %v4103
    %4851 = vmatpush1.bf16.msra.mxu0 %v4102
    %4852 = vmatprep.subr.bf16.mxu0 %v4107
    %4853 = vmatpush1.bf16.msra.mxu0 %v4106
    %4854 = vmatprep.subr.bf16.mxu0 %v4111
    %4855 = vmatpush1.bf16.msra.mxu0 %v4110
    %4856 = vmatprep.subr.bf16.mxu0 %v4115
    %4857 = vmatpush1.bf16.msra.mxu0 %v4114
    %4858 = vmatprep.mubr.bf16.mxu0 %v3663
    %4859 = vmatmul.mubr.bf16.gmra.mrb[0].mxu0 %v3662
    %v4860 = vpop.f32.mrb[0].mxu0
    %v4861 = vadd.f32 %v4748, %v4860
    %v4862 = vpop.f32.mrb[0].mxu0
    %v4863 = vadd.f32 %v4750, %v4862
    %v4864 = vpop.f32.mrb[0].mxu0
    %v4865 = vadd.f32 %v4752, %v4864
    %v4866 = vpop.f32.mrb[0].mxu0
    %v4867 = vadd.f32 %v4754, %v4866
    %4868 = vmatprep.mubr.bf16.mxu0 %v3681
    %4869 = vmatmul.mubr.bf16.gmra.mrb[0].mxu0 %v3680
    %v4870 = vpop.f32.mrb[0].mxu0
    %v4871 = vadd.f32 %v4758, %v4870
    %v4872 = vpop.f32.mrb[0].mxu0
    %v4873 = vadd.f32 %v4760, %v4872
    %v4874 = vpop.f32.mrb[0].mxu0
    %v4875 = vadd.f32 %v4762, %v4874
    %v4876 = vpop.f32.mrb[0].mxu0
    %v4877 = vadd.f32 %v4764, %v4876
    %4878 = vmatprep.mubr.bf16.mxu0 %v3699
    %4879 = vmatmul.mubr.bf16.gmra.mrb[0].mxu0 %v3698
    %v4880 = vpop.f32.mrb[0].mxu0
    %v4881 = vadd.f32 %v4768, %v4880
    %v4882 = vpop.f32.mrb[0].mxu0
    %v4883 = vadd.f32 %v4770, %v4882
    %v4884 = vpop.f32.mrb[0].mxu0
    %v4885 = vadd.f32 %v4772, %v4884
    %v4886 = vpop.f32.mrb[0].mxu0
    %v4887 = vadd.f32 %v4774, %v4886
    %4888 = vmatprep.mubr.bf16.mxu0 %v3717
    %4889 = vmatmul.mubr.bf16.gmra.mrb[0].mxu0 %v3716
    %v4890 = vpop.f32.mrb[0].mxu0
    %v4891 = vadd.f32 %v4778, %v4890
    %v4892 = vpop.f32.mrb[0].mxu0
    %v4893 = vadd.f32 %v4780, %v4892
    %v4894 = vpop.f32.mrb[0].mxu0
    %v4895 = vadd.f32 %v4782, %v4894
    %v4896 = vpop.f32.mrb[0].mxu0
    %v4897 = vadd.f32 %v4784, %v4896
    %4898 = vmatprep.mubr.bf16.mxu0 %v3735
    %4899 = vmatmul.mubr.bf16.gmra.mrb[0].mxu0 %v3734
    %v4900 = vpop.f32.mrb[0].mxu0
    %v4901 = vadd.f32 %v4788, %v4900
    %v4902 = vpop.f32.mrb[0].mxu0
    %v4903 = vadd.f32 %v4790, %v4902
    %v4904 = vpop.f32.mrb[0].mxu0
    %v4905 = vadd.f32 %v4792, %v4904
    %v4906 = vpop.f32.mrb[0].mxu0
    %v4907 = vadd.f32 %v4794, %v4906
    %4908 = vmatprep.mubr.bf16.mxu0 %v3753
    %4909 = vmatmul.mubr.bf16.gmra.mrb[0].mxu0 %v3752
    %v4910 = vpop.f32.mrb[0].mxu0
    %v4911 = vadd.f32 %v4798, %v4910
    %v4912 = vpop.f32.mrb[0].mxu0
    %v4913 = vadd.f32 %v4800, %v4912
    %v4914 = vpop.f32.mrb[0].mxu0
    %v4915 = vadd.f32 %v4802, %v4914
    %v4916 = vpop.f32.mrb[0].mxu0
    %v4917 = vadd.f32 %v4804, %v4916
    %4918 = vmatprep.mubr.bf16.mxu0 %v3771
    %4919 = vmatmul.mubr.bf16.gmra.mrb[0].mxu0 %v3770
    %v4920 = vpop.f32.mrb[0].mxu0
    %v4921 = vadd.f32 %v4808, %v4920
    %v4922 = vpop.f32.mrb[0].mxu0
    %v4923 = vadd.f32 %v4810, %v4922
    %v4924 = vpop.f32.mrb[0].mxu0
    %v4925 = vadd.f32 %v4812, %v4924
    %v4926 = vpop.f32.mrb[0].mxu0
    %v4927 = vadd.f32 %v4814, %v4926
    %4928 = vmatprep.mubr.bf16.mxu0 %v3789
    %4929 = vmatmul.mubr.bf16.gmra.mrb[0].mxu0 %v3788
    %v4930 = vpop.f32.mrb[0].mxu0
    %v4931 = vadd.f32 %v4818, %v4930
    %v4932 = vpop.f32.mrb[0].mxu0
    %v4933 = vadd.f32 %v4820, %v4932
    %v4934 = vpop.f32.mrb[0].mxu0
    %v4935 = vadd.f32 %v4822, %v4934
    %v4936 = vpop.f32.mrb[0].mxu0
    %v4937 = vadd.f32 %v4824, %v4936
    %4938 = vdwg.mxu0
    %4939 = vmatprep.subr.bf16.mxu0 %v4119
    %4940 = vmatpush1.bf16.msra.mxu0 %v4118
    %4941 = vmatprep.subr.bf16.mxu0 %v4123
    %4942 = vmatpush1.bf16.msra.mxu0 %v4122
    %4943 = vmatprep.subr.bf16.mxu0 %v4127
    %4944 = vmatpush1.bf16.msra.mxu0 %v4126
    %4945 = vmatprep.subr.bf16.mxu0 %v4131
    %4946 = vmatpush1.bf16.msra.mxu0 %v4130
    %4947 = vmatprep.subr.bf16.mxu0 %v4135
    %4948 = vmatpush1.bf16.msra.mxu0 %v4134
    %4949 = vmatprep.subr.bf16.mxu0 %v4139
    %4950 = vmatpush1.bf16.msra.mxu0 %v4138
    %4951 = vmatprep.subr.bf16.mxu0 %v4143
    %4952 = vmatpush1.bf16.msra.mxu0 %v4142
    %4953 = vmatprep.subr.bf16.mxu0 %v4147
    %4954 = vmatpush1.bf16.msra.mxu0 %v4146
    %4955 = vmatprep.subr.bf16.mxu0 %v4151
    %4956 = vmatpush1.bf16.msra.mxu0 %v4150
    %4957 = vmatprep.subr.bf16.mxu0 %v4155
    %4958 = vmatpush1.bf16.msra.mxu0 %v4154
    %4959 = vmatprep.subr.bf16.mxu0 %v4159
    %4960 = vmatpush1.bf16.msra.mxu0 %v4158
    %4961 = vmatprep.subr.bf16.mxu0 %v4163
    %4962 = vmatpush1.bf16.msra.mxu0 %v4162
    %4963 = vmatprep.subr.bf16.mxu0 %v4167
    %4964 = vmatpush1.bf16.msra.mxu0 %v4166
    %4965 = vmatprep.subr.bf16.mxu0 %v4171
    %4966 = vmatpush1.bf16.msra.mxu0 %v4170
    %4967 = vmatprep.subr.bf16.mxu0 %v4175
    %4968 = vmatpush1.bf16.msra.mxu0 %v4174
    %4969 = vmatprep.subr.bf16.mxu0 %v4179
    %4970 = vmatpush1.bf16.msra.mxu0 %v4178
    %4971 = vmatprep.mubr.bf16.mxu0 %v3665
    %4972 = vmatmul.mubr.bf16.gmra.mrb[0].mxu0 %v3664
    %v4973 = vpop.f32.mrb[0].mxu0
    %v4974 = vadd.f32 %v4861, %v4973
    %v4975 = vpop.f32.mrb[0].mxu0
    %v4976 = vadd.f32 %v4863, %v4975
    %v4977 = vpop.f32.mrb[0].mxu0
    %v4978 = vadd.f32 %v4865, %v4977
    %v4979 = vpop.f32.mrb[0].mxu0
    %v4980 = vadd.f32 %v4867, %v4979
    %4981 = vmatprep.mubr.bf16.mxu0 %v3683
    %4982 = vmatmul.mubr.bf16.gmra.mrb[0].mxu0 %v3682
    %v4983 = vpop.f32.mrb[0].mxu0
    %v4984 = vadd.f32 %v4871, %v4983
    %v4985 = vpop.f32.mrb[0].mxu0
    %v4986 = vadd.f32 %v4873, %v4985
    %v4987 = vpop.f32.mrb[0].mxu0
    %v4988 = vadd.f32 %v4875, %v4987
    %v4989 = vpop.f32.mrb[0].mxu0
    %v4990 = vadd.f32 %v4877, %v4989
    %4991 = vmatprep.mubr.bf16.mxu0 %v3701
    %4992 = vmatmul.mubr.bf16.gmra.mrb[0].mxu0 %v3700
    %v4993 = vpop.f32.mrb[0].mxu0
    %v4994 = vadd.f32 %v4881, %v4993
    %v4995 = vpop.f32.mrb[0].mxu0
    %v4996 = vadd.f32 %v4883, %v4995
    %v4997 = vpop.f32.mrb[0].mxu0
    %v4998 = vadd.f32 %v4885, %v4997
    %v4999 = vpop.f32.mrb[0].mxu0
    %v5000 = vadd.f32 %v4887, %v4999
    %5001 = vmatprep.mubr.bf16.mxu0 %v3719
    %5002 = vmatmul.mubr.bf16.gmra.mrb[0].mxu0 %v3718
    %v5003 = vpop.f32.mrb[0].mxu0
    %v5004 = vadd.f32 %v4891, %v5003
    %v5005 = vpop.f32.mrb[0].mxu0
    %v5006 = vadd.f32 %v4893, %v5005
    %v5007 = vpop.f32.mrb[0].mxu0
    %v5008 = vadd.f32 %v4895, %v5007
    %v5009 = vpop.f32.mrb[0].mxu0
    %v5010 = vadd.f32 %v4897, %v5009
    %5011 = vmatprep.mubr.bf16.mxu0 %v3737
    %5012 = vmatmul.mubr.bf16.gmra.mrb[0].mxu0 %v3736
    %v5013 = vpop.f32.mrb[0].mxu0
    %v5014 = vadd.f32 %v4901, %v5013
    %v5015 = vpop.f32.mrb[0].mxu0
    %v5016 = vadd.f32 %v4903, %v5015
    %v5017 = vpop.f32.mrb[0].mxu0
    %v5018 = vadd.f32 %v4905, %v5017
    %v5019 = vpop.f32.mrb[0].mxu0
    %v5020 = vadd.f32 %v4907, %v5019
    %5021 = vmatprep.mubr.bf16.mxu0 %v3755
    %5022 = vmatmul.mubr.bf16.gmra.mrb[0].mxu0 %v3754
    %v5023 = vpop.f32.mrb[0].mxu0
    %v5024 = vadd.f32 %v4911, %v5023
    %v5025 = vpop.f32.mrb[0].mxu0
    %v5026 = vadd.f32 %v4913, %v5025
    %v5027 = vpop.f32.mrb[0].mxu0
    %v5028 = vadd.f32 %v4915, %v5027
    %v5029 = vpop.f32.mrb[0].mxu0
    %v5030 = vadd.f32 %v4917, %v5029
    %5031 = vmatprep.mubr.bf16.mxu0 %v3773
    %5032 = vmatmul.mubr.bf16.gmra.mrb[0].mxu0 %v3772
    %v5033 = vpop.f32.mrb[0].mxu0
    %v5034 = vadd.f32 %v4921, %v5033
    %v5035 = vpop.f32.mrb[0].mxu0
    %v5036 = vadd.f32 %v4923, %v5035
    %v5037 = vpop.f32.mrb[0].mxu0
    %v5038 = vadd.f32 %v4925, %v5037
    %v5039 = vpop.f32.mrb[0].mxu0
    %v5040 = vadd.f32 %v4927, %v5039
    %5041 = vmatprep.mubr.bf16.mxu0 %v3791
    %5042 = vmatmul.mubr.bf16.gmra.mrb[0].mxu0 %v3790
    %v5043 = vpop.f32.mrb[0].mxu0
    %v5044 = vadd.f32 %v4931, %v5043
    %v5045 = vpop.f32.mrb[0].mxu0
    %v5046 = vadd.f32 %v4933, %v5045
    %v5047 = vpop.f32.mrb[0].mxu0
    %v5048 = vadd.f32 %v4935, %v5047
    %v5049 = vpop.f32.mrb[0].mxu0
    %v5050 = vadd.f32 %v4937, %v5049
    %5051 = vdwg.mxu0
    %5052 = vmatprep.subr.bf16.mxu0 %v4183
    %5053 = vmatpush1.bf16.msra.mxu0 %v4182
    %5054 = vmatprep.subr.bf16.mxu0 %v4187
    %5055 = vmatpush1.bf16.msra.mxu0 %v4186
    %5056 = vmatprep.subr.bf16.mxu0 %v4191
    %5057 = vmatpush1.bf16.msra.mxu0 %v4190
    %5058 = vmatprep.subr.bf16.mxu0 %v4195
    %5059 = vmatpush1.bf16.msra.mxu0 %v4194
    %5060 = vmatprep.subr.bf16.mxu0 %v4199
    %5061 = vmatpush1.bf16.msra.mxu0 %v4198
    %5062 = vmatprep.subr.bf16.mxu0 %v4203
    %5063 = vmatpush1.bf16.msra.mxu0 %v4202
    %5064 = vmatprep.subr.bf16.mxu0 %v4207
    %5065 = vmatpush1.bf16.msra.mxu0 %v4206
    %5066 = vmatprep.subr.bf16.mxu0 %v4211
    %5067 = vmatpush1.bf16.msra.mxu0 %v4210
    %5068 = vmatprep.subr.bf16.mxu0 %v4215
    %5069 = vmatpush1.bf16.msra.mxu0 %v4214
    %5070 = vmatprep.subr.bf16.mxu0 %v4219
    %5071 = vmatpush1.bf16.msra.mxu0 %v4218
    %5072 = vmatprep.subr.bf16.mxu0 %v4223
    %5073 = vmatpush1.bf16.msra.mxu0 %v4222
    %5074 = vmatprep.subr.bf16.mxu0 %v4227
    %5075 = vmatpush1.bf16.msra.mxu0 %v4226
    %5076 = vmatprep.subr.bf16.mxu0 %v4231
    %5077 = vmatpush1.bf16.msra.mxu0 %v4230
    %5078 = vmatprep.subr.bf16.mxu0 %v4235
    %5079 = vmatpush1.bf16.msra.mxu0 %v4234
    %5080 = vmatprep.subr.bf16.mxu0 %v4239
    %5081 = vmatpush1.bf16.msra.mxu0 %v4238
    %5082 = vmatprep.subr.bf16.mxu0 %v4243
    %5083 = vmatpush1.bf16.msra.mxu0 %v4242
    %5084 = vmatprep.mubr.bf16.mxu0 %v3667
    %5085 = vmatmul.mubr.bf16.gmra.mrb[0].mxu0 %v3666
    %v5086 = vpop.f32.mrb[0].mxu0
    %v5087 = vadd.f32 %v4974, %v5086
    %v5088 = vpop.f32.mrb[0].mxu0
    %v5089 = vadd.f32 %v4976, %v5088
    %v5090 = vpop.f32.mrb[0].mxu0
    %v5091 = vadd.f32 %v4978, %v5090
    %v5092 = vpop.f32.mrb[0].mxu0
    %v5093 = vadd.f32 %v4980, %v5092
    %5094 = vmatprep.mubr.bf16.mxu0 %v3685
    %5095 = vmatmul.mubr.bf16.gmra.mrb[0].mxu0 %v3684
    %v5096 = vpop.f32.mrb[0].mxu0
    %v5097 = vadd.f32 %v4984, %v5096
    %v5098 = vpop.f32.mrb[0].mxu0
    %v5099 = vadd.f32 %v4986, %v5098
    %v5100 = vpop.f32.mrb[0].mxu0
    %v5101 = vadd.f32 %v4988, %v5100
    %v5102 = vpop.f32.mrb[0].mxu0
    %v5103 = vadd.f32 %v4990, %v5102
    %5104 = vmatprep.mubr.bf16.mxu0 %v3703
    %5105 = vmatmul.mubr.bf16.gmra.mrb[0].mxu0 %v3702
    %v5106 = vpop.f32.mrb[0].mxu0
    %v5107 = vadd.f32 %v4994, %v5106
    %v5108 = vpop.f32.mrb[0].mxu0
    %v5109 = vadd.f32 %v4996, %v5108
    %v5110 = vpop.f32.mrb[0].mxu0
    %v5111 = vadd.f32 %v4998, %v5110
    %v5112 = vpop.f32.mrb[0].mxu0
    %v5113 = vadd.f32 %v5000, %v5112
    %5114 = vmatprep.mubr.bf16.mxu0 %v3721
    %5115 = vmatmul.mubr.bf16.gmra.mrb[0].mxu0 %v3720
    %v5116 = vpop.f32.mrb[0].mxu0
    %v5117 = vadd.f32 %v5004, %v5116
    %v5118 = vpop.f32.mrb[0].mxu0
    %v5119 = vadd.f32 %v5006, %v5118
    %v5120 = vpop.f32.mrb[0].mxu0
    %v5121 = vadd.f32 %v5008, %v5120
    %v5122 = vpop.f32.mrb[0].mxu0
    %v5123 = vadd.f32 %v5010, %v5122
    %5124 = vmatprep.mubr.bf16.mxu0 %v3739
    %5125 = vmatmul.mubr.bf16.gmra.mrb[0].mxu0 %v3738
    %v5126 = vpop.f32.mrb[0].mxu0
    %v5127 = vadd.f32 %v5014, %v5126
    %v5128 = vpop.f32.mrb[0].mxu0
    %v5129 = vadd.f32 %v5016, %v5128
    %v5130 = vpop.f32.mrb[0].mxu0
    %v5131 = vadd.f32 %v5018, %v5130
    %v5132 = vpop.f32.mrb[0].mxu0
    %v5133 = vadd.f32 %v5020, %v5132
    %5134 = vmatprep.mubr.bf16.mxu0 %v3757
    %5135 = vmatmul.mubr.bf16.gmra.mrb[0].mxu0 %v3756
    %v5136 = vpop.f32.mrb[0].mxu0
    %v5137 = vadd.f32 %v5024, %v5136
    %v5138 = vpop.f32.mrb[0].mxu0
    %v5139 = vadd.f32 %v5026, %v5138
    %v5140 = vpop.f32.mrb[0].mxu0
    %v5141 = vadd.f32 %v5028, %v5140
    %v5142 = vpop.f32.mrb[0].mxu0
    %v5143 = vadd.f32 %v5030, %v5142
    %5144 = vmatprep.mubr.bf16.mxu0 %v3775
    %5145 = vmatmul.mubr.bf16.gmra.mrb[0].mxu0 %v3774
    %v5146 = vpop.f32.mrb[0].mxu0
    %v5147 = vadd.f32 %v5034, %v5146
    %v5148 = vpop.f32.mrb[0].mxu0
    %v5149 = vadd.f32 %v5036, %v5148
    %v5150 = vpop.f32.mrb[0].mxu0
    %v5151 = vadd.f32 %v5038, %v5150
    %v5152 = vpop.f32.mrb[0].mxu0
    %v5153 = vadd.f32 %v5040, %v5152
    %5154 = vmatprep.mubr.bf16.mxu0 %v3793
    %5155 = vmatmul.mubr.bf16.gmra.mrb[0].mxu0 %v3792
    %v5156 = vpop.f32.mrb[0].mxu0
    %v5157 = vadd.f32 %v5044, %v5156
    %v5158 = vpop.f32.mrb[0].mxu0
    %v5159 = vadd.f32 %v5046, %v5158
    %v5160 = vpop.f32.mrb[0].mxu0
    %v5161 = vadd.f32 %v5048, %v5160
    %v5162 = vpop.f32.mrb[0].mxu0
    %v5163 = vadd.f32 %v5050, %v5162
    %5164 = vdwg.mxu0
    %5165 = vmatprep.subr.bf16.mxu0 %v4247
    %5166 = vmatpush1.bf16.msra.mxu0 %v4246
    %5167 = vmatprep.subr.bf16.mxu0 %v4251
    %5168 = vmatpush1.bf16.msra.mxu0 %v4250
    %5169 = vmatprep.subr.bf16.mxu0 %v4255
    %5170 = vmatpush1.bf16.msra.mxu0 %v4254
    %5171 = vmatprep.subr.bf16.mxu0 %v4259
    %5172 = vmatpush1.bf16.msra.mxu0 %v4258
    %5173 = vmatprep.subr.bf16.mxu0 %v4263
    %5174 = vmatpush1.bf16.msra.mxu0 %v4262
    %5175 = vmatprep.subr.bf16.mxu0 %v4267
    %5176 = vmatpush1.bf16.msra.mxu0 %v4266
    %5177 = vmatprep.subr.bf16.mxu0 %v4271
    %5178 = vmatpush1.bf16.msra.mxu0 %v4270
    %5179 = vmatprep.subr.bf16.mxu0 %v4275
    %5180 = vmatpush1.bf16.msra.mxu0 %v4274
    %5181 = vmatprep.subr.bf16.mxu0 %v4279
    %5182 = vmatpush1.bf16.msra.mxu0 %v4278
    %5183 = vmatprep.subr.bf16.mxu0 %v4283
    %5184 = vmatpush1.bf16.msra.mxu0 %v4282
    %5185 = vmatprep.subr.bf16.mxu0 %v4287
    %5186 = vmatpush1.bf16.msra.mxu0 %v4286
    %5187 = vmatprep.subr.bf16.mxu0 %v4291
    %5188 = vmatpush1.bf16.msra.mxu0 %v4290
    %5189 = vmatprep.subr.bf16.mxu0 %v4295
    %5190 = vmatpush1.bf16.msra.mxu0 %v4294
    %5191 = vmatprep.subr.bf16.mxu0 %v4299
    %5192 = vmatpush1.bf16.msra.mxu0 %v4298
    %5193 = vmatprep.subr.bf16.mxu0 %v4303
    %5194 = vmatpush1.bf16.msra.mxu0 %v4302
    %5195 = vmatprep.subr.bf16.mxu0 %v4307
    %5196 = vmatpush1.bf16.msra.mxu0 %v4306
    %5197 = vmatprep.mubr.bf16.mxu0 %v3669
    %5198 = vmatmul.mubr.bf16.gmra.mrb[0].mxu0 %v3668
    %v5199 = vpop.f32.mrb[0].mxu0
    %v5200 = vadd.f32 %v5087, %v5199
    %v5201 = vpop.f32.mrb[0].mxu0
    %v5202 = vadd.f32 %v5089, %v5201
    %v5203 = vpop.f32.mrb[0].mxu0
    %v5204 = vadd.f32 %v5091, %v5203
    %v5205 = vpop.f32.mrb[0].mxu0
    %v5206 = vadd.f32 %v5093, %v5205
    %5207 = vmatprep.mubr.bf16.mxu0 %v3687
    %5208 = vmatmul.mubr.bf16.gmra.mrb[0].mxu0 %v3686
    %v5209 = vpop.f32.mrb[0].mxu0
    %v5210 = vadd.f32 %v5097, %v5209
    %v5211 = vpop.f32.mrb[0].mxu0
    %v5212 = vadd.f32 %v5099, %v5211
    %v5213 = vpop.f32.mrb[0].mxu0
    %v5214 = vadd.f32 %v5101, %v5213
    %v5215 = vpop.f32.mrb[0].mxu0
    %v5216 = vadd.f32 %v5103, %v5215
    %5217 = vmatprep.mubr.bf16.mxu0 %v3705
    %5218 = vmatmul.mubr.bf16.gmra.mrb[0].mxu0 %v3704
    %v5219 = vpop.f32.mrb[0].mxu0
    %v5220 = vadd.f32 %v5107, %v5219
    %v5221 = vpop.f32.mrb[0].mxu0
    %v5222 = vadd.f32 %v5109, %v5221
    %v5223 = vpop.f32.mrb[0].mxu0
    %v5224 = vadd.f32 %v5111, %v5223
    %v5225 = vpop.f32.mrb[0].mxu0
    %v5226 = vadd.f32 %v5113, %v5225
    %5227 = vmatprep.mubr.bf16.mxu0 %v3723
    %5228 = vmatmul.mubr.bf16.gmra.mrb[0].mxu0 %v3722
    %v5229 = vpop.f32.mrb[0].mxu0
    %v5230 = vadd.f32 %v5117, %v5229
    %v5231 = vpop.f32.mrb[0].mxu0
    %v5232 = vadd.f32 %v5119, %v5231
    %v5233 = vpop.f32.mrb[0].mxu0
    %v5234 = vadd.f32 %v5121, %v5233
    %v5235 = vpop.f32.mrb[0].mxu0
    %v5236 = vadd.f32 %v5123, %v5235
    %5237 = vmatprep.mubr.bf16.mxu0 %v3741
    %5238 = vmatmul.mubr.bf16.gmra.mrb[0].mxu0 %v3740
    %v5239 = vpop.f32.mrb[0].mxu0
    %v5240 = vadd.f32 %v5127, %v5239
    %v5241 = vpop.f32.mrb[0].mxu0
    %v5242 = vadd.f32 %v5129, %v5241
    %v5243 = vpop.f32.mrb[0].mxu0
    %v5244 = vadd.f32 %v5131, %v5243
    %v5245 = vpop.f32.mrb[0].mxu0
    %v5246 = vadd.f32 %v5133, %v5245
    %5247 = vmatprep.mubr.bf16.mxu0 %v3759
    %5248 = vmatmul.mubr.bf16.gmra.mrb[0].mxu0 %v3758
    %v5249 = vpop.f32.mrb[0].mxu0
    %v5250 = vadd.f32 %v5137, %v5249
    %v5251 = vpop.f32.mrb[0].mxu0
    %v5252 = vadd.f32 %v5139, %v5251
    %v5253 = vpop.f32.mrb[0].mxu0
    %v5254 = vadd.f32 %v5141, %v5253
    %v5255 = vpop.f32.mrb[0].mxu0
    %v5256 = vadd.f32 %v5143, %v5255
    %5257 = vmatprep.mubr.bf16.mxu0 %v3777
    %5258 = vmatmul.mubr.bf16.gmra.mrb[0].mxu0 %v3776
    %v5259 = vpop.f32.mrb[0].mxu0
    %v5260 = vadd.f32 %v5147, %v5259
    %v5261 = vpop.f32.mrb[0].mxu0
    %v5262 = vadd.f32 %v5149, %v5261
    %v5263 = vpop.f32.mrb[0].mxu0
    %v5264 = vadd.f32 %v5151, %v5263
    %v5265 = vpop.f32.mrb[0].mxu0
    %v5266 = vadd.f32 %v5153, %v5265
    %5267 = vmatprep.mubr.bf16.mxu0 %v3795
    %5268 = vmatmul.mubr.bf16.gmra.mrb[0].mxu0 %v3794
    %v5269 = vpop.f32.mrb[0].mxu0
    %v5270 = vadd.f32 %v5157, %v5269
    %v5271 = vpop.f32.mrb[0].mxu0
    %v5272 = vadd.f32 %v5159, %v5271
    %v5273 = vpop.f32.mrb[0].mxu0
    %v5274 = vadd.f32 %v5161, %v5273
    %v5275 = vpop.f32.mrb[0].mxu0
    %v5276 = vadd.f32 %v5163, %v5275
    %5277 = vdwg.mxu0
    %5278 = vmatprep.subr.bf16.mxu0 %v4311
    %5279 = vmatpush1.bf16.msra.mxu0 %v4310
    %5280 = vmatprep.subr.bf16.mxu0 %v4315
    %5281 = vmatpush1.bf16.msra.mxu0 %v4314
    %5282 = vmatprep.subr.bf16.mxu0 %v4319
    %5283 = vmatpush1.bf16.msra.mxu0 %v4318
    %5284 = vmatprep.subr.bf16.mxu0 %v4323
    %5285 = vmatpush1.bf16.msra.mxu0 %v4322
    %5286 = vmatprep.subr.bf16.mxu0 %v4327
    %5287 = vmatpush1.bf16.msra.mxu0 %v4326
    %5288 = vmatprep.subr.bf16.mxu0 %v4331
    %5289 = vmatpush1.bf16.msra.mxu0 %v4330
    %5290 = vmatprep.subr.bf16.mxu0 %v4335
    %5291 = vmatpush1.bf16.msra.mxu0 %v4334
    %5292 = vmatprep.subr.bf16.mxu0 %v4339
    %5293 = vmatpush1.bf16.msra.mxu0 %v4338
    %5294 = vmatprep.subr.bf16.mxu0 %v4343
    %5295 = vmatpush1.bf16.msra.mxu0 %v4342
    %5296 = vmatprep.subr.bf16.mxu0 %v4347
    %5297 = vmatpush1.bf16.msra.mxu0 %v4346
    %5298 = vmatprep.subr.bf16.mxu0 %v4351
    %5299 = vmatpush1.bf16.msra.mxu0 %v4350
    %5300 = vmatprep.subr.bf16.mxu0 %v4355
    %5301 = vmatpush1.bf16.msra.mxu0 %v4354
    %5302 = vmatprep.subr.bf16.mxu0 %v4359
    %5303 = vmatpush1.bf16.msra.mxu0 %v4358
    %5304 = vmatprep.subr.bf16.mxu0 %v4363
    %5305 = vmatpush1.bf16.msra.mxu0 %v4362
    %5306 = vmatprep.subr.bf16.mxu0 %v4367
    %5307 = vmatpush1.bf16.msra.mxu0 %v4366
    %5308 = vmatprep.subr.bf16.mxu0 %v4371
    %5309 = vmatpush1.bf16.msra.mxu0 %v4370
    %5310 = vmatprep.mubr.bf16.mxu0 %v3671
    %5311 = vmatmul.mubr.bf16.gmra.mrb[0].mxu0 %v3670
    %v5312 = vpop.f32.mrb[0].mxu0
    %v5313 = vadd.f32 %v5200, %v5312
    %v5314 = vpop.f32.mrb[0].mxu0
    %v5315 = vadd.f32 %v5202, %v5314
    %v5316 = vpop.f32.mrb[0].mxu0
    %v5317 = vadd.f32 %v5204, %v5316
    %v5318 = vpop.f32.mrb[0].mxu0
    %v5319 = vadd.f32 %v5206, %v5318
    %5320 = vmatprep.mubr.bf16.mxu0 %v3689
    %5321 = vmatmul.mubr.bf16.gmra.mrb[0].mxu0 %v3688
    %v5322 = vpop.f32.mrb[0].mxu0
    %v5323 = vadd.f32 %v5210, %v5322
    %v5324 = vpop.f32.mrb[0].mxu0
    %v5325 = vadd.f32 %v5212, %v5324
    %v5326 = vpop.f32.mrb[0].mxu0
    %v5327 = vadd.f32 %v5214, %v5326
    %v5328 = vpop.f32.mrb[0].mxu0
    %v5329 = vadd.f32 %v5216, %v5328
    %5330 = vmatprep.mubr.bf16.mxu0 %v3707
    %5331 = vmatmul.mubr.bf16.gmra.mrb[0].mxu0 %v3706
    %v5332 = vpop.f32.mrb[0].mxu0
    %v5333 = vadd.f32 %v5220, %v5332
    %v5334 = vpop.f32.mrb[0].mxu0
    %v5335 = vadd.f32 %v5222, %v5334
    %v5336 = vpop.f32.mrb[0].mxu0
    %v5337 = vadd.f32 %v5224, %v5336
    %v5338 = vpop.f32.mrb[0].mxu0
    %v5339 = vadd.f32 %v5226, %v5338
    %5340 = vmatprep.mubr.bf16.mxu0 %v3725
    %5341 = vmatmul.mubr.bf16.gmra.mrb[0].mxu0 %v3724
    %v5342 = vpop.f32.mrb[0].mxu0
    %v5343 = vadd.f32 %v5230, %v5342
    %v5344 = vpop.f32.mrb[0].mxu0
    %v5345 = vadd.f32 %v5232, %v5344
    %v5346 = vpop.f32.mrb[0].mxu0
    %v5347 = vadd.f32 %v5234, %v5346
    %v5348 = vpop.f32.mrb[0].mxu0
    %v5349 = vadd.f32 %v5236, %v5348
    %5350 = vmatprep.mubr.bf16.mxu0 %v3743
    %5351 = vmatmul.mubr.bf16.gmra.mrb[0].mxu0 %v3742
    %v5352 = vpop.f32.mrb[0].mxu0
    %v5353 = vadd.f32 %v5240, %v5352
    %v5354 = vpop.f32.mrb[0].mxu0
    %v5355 = vadd.f32 %v5242, %v5354
    %v5356 = vpop.f32.mrb[0].mxu0
    %v5357 = vadd.f32 %v5244, %v5356
    %v5358 = vpop.f32.mrb[0].mxu0
    %v5359 = vadd.f32 %v5246, %v5358
    %5360 = vmatprep.mubr.bf16.mxu0 %v3761
    %5361 = vmatmul.mubr.bf16.gmra.mrb[0].mxu0 %v3760
    %v5362 = vpop.f32.mrb[0].mxu0
    %v5363 = vadd.f32 %v5250, %v5362
    %v5364 = vpop.f32.mrb[0].mxu0
    %v5365 = vadd.f32 %v5252, %v5364
    %v5366 = vpop.f32.mrb[0].mxu0
    %v5367 = vadd.f32 %v5254, %v5366
    %v5368 = vpop.f32.mrb[0].mxu0
    %v5369 = vadd.f32 %v5256, %v5368
    %5370 = vmatprep.mubr.bf16.mxu0 %v3779
    %5371 = vmatmul.mubr.bf16.gmra.mrb[0].mxu0 %v3778
    %v5372 = vpop.f32.mrb[0].mxu0
    %v5373 = vadd.f32 %v5260, %v5372
    %v5374 = vpop.f32.mrb[0].mxu0
    %v5375 = vadd.f32 %v5262, %v5374
    %v5376 = vpop.f32.mrb[0].mxu0
    %v5377 = vadd.f32 %v5264, %v5376
    %v5378 = vpop.f32.mrb[0].mxu0
    %v5379 = vadd.f32 %v5266, %v5378
    %5380 = vmatprep.mubr.bf16.mxu0 %v3797
    %5381 = vmatmul.mubr.bf16.gmra.mrb[0].mxu0 %v3796
    %v5382 = vpop.f32.mrb[0].mxu0
    %v5383 = vadd.f32 %v5270, %v5382
    %v5384 = vpop.f32.mrb[0].mxu0
    %v5385 = vadd.f32 %v5272, %v5384
    %v5386 = vpop.f32.mrb[0].mxu0
    %v5387 = vadd.f32 %v5274, %v5386
    %v5388 = vpop.f32.mrb[0].mxu0
    %v5389 = vadd.f32 %v5276, %v5388
    %5390 = vdwg.mxu0
    %5391 = vmatprep.subr.bf16.mxu0 %v3801
    %5392 = vmatpush1.bf16.msra.mxu0 %v3800
    %5393 = vmatprep.subr.bf16.mxu0 %v3805
    %5394 = vmatpush1.bf16.msra.mxu0 %v3804
    %5395 = vmatprep.subr.bf16.mxu0 %v3809
    %5396 = vmatpush1.bf16.msra.mxu0 %v3808
    %5397 = vmatprep.subr.bf16.mxu0 %v3813
    %5398 = vmatpush1.bf16.msra.mxu0 %v3812
    %5399 = vmatprep.subr.bf16.mxu0 %v3817
    %5400 = vmatpush1.bf16.msra.mxu0 %v3816
    %5401 = vmatprep.subr.bf16.mxu0 %v3821
    %5402 = vmatpush1.bf16.msra.mxu0 %v3820
    %5403 = vmatprep.subr.bf16.mxu0 %v3825
    %5404 = vmatpush1.bf16.msra.mxu0 %v3824
    %5405 = vmatprep.subr.bf16.mxu0 %v3829
    %5406 = vmatpush1.bf16.msra.mxu0 %v3828
    %5407 = vmatprep.subr.bf16.mxu0 %v3833
    %5408 = vmatpush1.bf16.msra.mxu0 %v3832
    %5409 = vmatprep.subr.bf16.mxu0 %v3837
    %5410 = vmatpush1.bf16.msra.mxu0 %v3836
    %5411 = vmatprep.subr.bf16.mxu0 %v3841
    %5412 = vmatpush1.bf16.msra.mxu0 %v3840
    %5413 = vmatprep.subr.bf16.mxu0 %v3845
    %5414 = vmatpush1.bf16.msra.mxu0 %v3844
    %5415 = vmatprep.subr.bf16.mxu0 %v3849
    %5416 = vmatpush1.bf16.msra.mxu0 %v3848
    %5417 = vmatprep.subr.bf16.mxu0 %v3853
    %5418 = vmatpush1.bf16.msra.mxu0 %v3852
    %5419 = vmatprep.subr.bf16.mxu0 %v3857
    %5420 = vmatpush1.bf16.msra.mxu0 %v3856
    %5421 = vmatprep.subr.bf16.mxu0 %v3861
    %5422 = vmatpush1.bf16.msra.mxu0 %v3860
    %5423 = vmatprep.mubr.bf16.mxu0 %v3655
    %5424 = vmatmul.mubr.bf16.gmra.mrb[0].mxu0 %v3654
    %v5425 = vpop.f32.mrb[0].mxu0
    %v5426 = vadd.f32 0.0, %v5425
    %v5427 = vpop.f32.mrb[0].mxu0
    %v5428 = vadd.f32 0.0, %v5427
    %v5429 = vpop.f32.mrb[0].mxu0
    %v5430 = vadd.f32 0.0, %v5429
    %v5431 = vpop.f32.mrb[0].mxu0
    %v5432 = vadd.f32 0.0, %v5431
    %5433 = vmatprep.mubr.bf16.mxu0 %v3673
    %5434 = vmatmul.mubr.bf16.gmra.mrb[0].mxu0 %v3672
    %v5435 = vpop.f32.mrb[0].mxu0
    %v5436 = vadd.f32 0.0, %v5435
    %v5437 = vpop.f32.mrb[0].mxu0
    %v5438 = vadd.f32 0.0, %v5437
    %v5439 = vpop.f32.mrb[0].mxu0
    %v5440 = vadd.f32 0.0, %v5439
    %v5441 = vpop.f32.mrb[0].mxu0
    %v5442 = vadd.f32 0.0, %v5441
    %5443 = vmatprep.mubr.bf16.mxu0 %v3691
    %5444 = vmatmul.mubr.bf16.gmra.mrb[0].mxu0 %v3690
    %v5445 = vpop.f32.mrb[0].mxu0
    %v5446 = vadd.f32 0.0, %v5445
    %v5447 = vpop.f32.mrb[0].mxu0
    %v5448 = vadd.f32 0.0, %v5447
    %v5449 = vpop.f32.mrb[0].mxu0
    %v5450 = vadd.f32 0.0, %v5449
    %v5451 = vpop.f32.mrb[0].mxu0
    %v5452 = vadd.f32 0.0, %v5451
    %5453 = vmatprep.mubr.bf16.mxu0 %v3709
    %5454 = vmatmul.mubr.bf16.gmra.mrb[0].mxu0 %v3708
    %v5455 = vpop.f32.mrb[0].mxu0
    %v5456 = vadd.f32 0.0, %v5455
    %v5457 = vpop.f32.mrb[0].mxu0
    %v5458 = vadd.f32 0.0, %v5457
    %v5459 = vpop.f32.mrb[0].mxu0
    %v5460 = vadd.f32 0.0, %v5459
    %v5461 = vpop.f32.mrb[0].mxu0
    %v5462 = vadd.f32 0.0, %v5461
    %5463 = vmatprep.mubr.bf16.mxu0 %v3727
    %5464 = vmatmul.mubr.bf16.gmra.mrb[0].mxu0 %v3726
    %v5465 = vpop.f32.mrb[0].mxu0
    %v5466 = vadd.f32 0.0, %v5465
    %v5467 = vpop.f32.mrb[0].mxu0
    %v5468 = vadd.f32 0.0, %v5467
    %v5469 = vpop.f32.mrb[0].mxu0
    %v5470 = vadd.f32 0.0, %v5469
    %v5471 = vpop.f32.mrb[0].mxu0
    %v5472 = vadd.f32 0.0, %v5471
    %5473 = vmatprep.mubr.bf16.mxu0 %v3745
    %5474 = vmatmul.mubr.bf16.gmra.mrb[0].mxu0 %v3744
    %v5475 = vpop.f32.mrb[0].mxu0
    %v5476 = vadd.f32 0.0, %v5475
    %v5477 = vpop.f32.mrb[0].mxu0
    %v5478 = vadd.f32 0.0, %v5477
    %v5479 = vpop.f32.mrb[0].mxu0
    %v5480 = vadd.f32 0.0, %v5479
    %v5481 = vpop.f32.mrb[0].mxu0
    %v5482 = vadd.f32 0.0, %v5481
    %5483 = vmatprep.mubr.bf16.mxu0 %v3763
    %5484 = vmatmul.mubr.bf16.gmra.mrb[0].mxu0 %v3762
    %v5485 = vpop.f32.mrb[0].mxu0
    %v5486 = vadd.f32 0.0, %v5485
    %v5487 = vpop.f32.mrb[0].mxu0
    %v5488 = vadd.f32 0.0, %v5487
    %v5489 = vpop.f32.mrb[0].mxu0
    %v5490 = vadd.f32 0.0, %v5489
    %v5491 = vpop.f32.mrb[0].mxu0
    %v5492 = vadd.f32 0.0, %v5491
    %5493 = vmatprep.mubr.bf16.mxu0 %v3781
    %5494 = vmatmul.mubr.bf16.gmra.mrb[0].mxu0 %v3780
    %v5495 = vpop.f32.mrb[0].mxu0
    %v5496 = vadd.f32 0.0, %v5495
    %v5497 = vpop.f32.mrb[0].mxu0
    %v5498 = vadd.f32 0.0, %v5497
    %v5499 = vpop.f32.mrb[0].mxu0
    %v5500 = vadd.f32 0.0, %v5499
    %v5501 = vpop.f32.mrb[0].mxu0
    %v5502 = vadd.f32 0.0, %v5501
    %5503 = vdwg.mxu0
    %5504 = vmatprep.subr.bf16.mxu0 %v3865
    %5505 = vmatpush1.bf16.msra.mxu0 %v3864
    %5506 = vmatprep.subr.bf16.mxu0 %v3869
    %5507 = vmatpush1.bf16.msra.mxu0 %v3868
    %5508 = vmatprep.subr.bf16.mxu0 %v3873
    %5509 = vmatpush1.bf16.msra.mxu0 %v3872
    %5510 = vmatprep.subr.bf16.mxu0 %v3877
    %5511 = vmatpush1.bf16.msra.mxu0 %v3876
    %5512 = vmatprep.subr.bf16.mxu0 %v3881
    %5513 = vmatpush1.bf16.msra.mxu0 %v3880
    %5514 = vmatprep.subr.bf16.mxu0 %v3885
    %5515 = vmatpush1.bf16.msra.mxu0 %v3884
    %5516 = vmatprep.subr.bf16.mxu0 %v3889
    %5517 = vmatpush1.bf16.msra.mxu0 %v3888
    %5518 = vmatprep.subr.bf16.mxu0 %v3893
    %5519 = vmatpush1.bf16.msra.mxu0 %v3892
    %5520 = vmatprep.subr.bf16.mxu0 %v3897
    %5521 = vmatpush1.bf16.msra.mxu0 %v3896
    %5522 = vmatprep.subr.bf16.mxu0 %v3901
    %5523 = vmatpush1.bf16.msra.mxu0 %v3900
    %5524 = vmatprep.subr.bf16.mxu0 %v3905
    %5525 = vmatpush1.bf16.msra.mxu0 %v3904
    %5526 = vmatprep.subr.bf16.mxu0 %v3909
    %5527 = vmatpush1.bf16.msra.mxu0 %v3908
    %5528 = vmatprep.subr.bf16.mxu0 %v3913
    %5529 = vmatpush1.bf16.msra.mxu0 %v3912
    %5530 = vmatprep.subr.bf16.mxu0 %v3917
    %5531 = vmatpush1.bf16.msra.mxu0 %v3916
    %5532 = vmatprep.subr.bf16.mxu0 %v3921
    %5533 = vmatpush1.bf16.msra.mxu0 %v3920
    %5534 = vmatprep.subr.bf16.mxu0 %v3925
    %5535 = vmatpush1.bf16.msra.mxu0 %v3924
    %5536 = vmatprep.mubr.bf16.mxu0 %v3657
    %5537 = vmatmul.mubr.bf16.gmra.mrb[0].mxu0 %v3656
    %v5538 = vpop.f32.mrb[0].mxu0
    %v5539 = vadd.f32 %v5426, %v5538
    %v5540 = vpop.f32.mrb[0].mxu0
    %v5541 = vadd.f32 %v5428, %v5540
    %v5542 = vpop.f32.mrb[0].mxu0
    %v5543 = vadd.f32 %v5430, %v5542
    %v5544 = vpop.f32.mrb[0].mxu0
    %v5545 = vadd.f32 %v5432, %v5544
    %5546 = vmatprep.mubr.bf16.mxu0 %v3675
    %5547 = vmatmul.mubr.bf16.gmra.mrb[0].mxu0 %v3674
    %v5548 = vpop.f32.mrb[0].mxu0
    %v5549 = vadd.f32 %v5436, %v5548
    %v5550 = vpop.f32.mrb[0].mxu0
    %v5551 = vadd.f32 %v5438, %v5550
    %v5552 = vpop.f32.mrb[0].mxu0
    %v5553 = vadd.f32 %v5440, %v5552
    %v5554 = vpop.f32.mrb[0].mxu0
    %v5555 = vadd.f32 %v5442, %v5554
    %5556 = vmatprep.mubr.bf16.mxu0 %v3693
    %5557 = vmatmul.mubr.bf16.gmra.mrb[0].mxu0 %v3692
    %v5558 = vpop.f32.mrb[0].mxu0
    %v5559 = vadd.f32 %v5446, %v5558
    %v5560 = vpop.f32.mrb[0].mxu0
    %v5561 = vadd.f32 %v5448, %v5560
    %v5562 = vpop.f32.mrb[0].mxu0
    %v5563 = vadd.f32 %v5450, %v5562
    %v5564 = vpop.f32.mrb[0].mxu0
    %v5565 = vadd.f32 %v5452, %v5564
    %5566 = vmatprep.mubr.bf16.mxu0 %v3711
    %5567 = vmatmul.mubr.bf16.gmra.mrb[0].mxu0 %v3710
    %v5568 = vpop.f32.mrb[0].mxu0
    %v5569 = vadd.f32 %v5456, %v5568
    %v5570 = vpop.f32.mrb[0].mxu0
    %v5571 = vadd.f32 %v5458, %v5570
    %v5572 = vpop.f32.mrb[0].mxu0
    %v5573 = vadd.f32 %v5460, %v5572
    %v5574 = vpop.f32.mrb[0].mxu0
    %v5575 = vadd.f32 %v5462, %v5574
    %5576 = vmatprep.mubr.bf16.mxu0 %v3729
    %5577 = vmatmul.mubr.bf16.gmra.mrb[0].mxu0 %v3728
    %v5578 = vpop.f32.mrb[0].mxu0
    %v5579 = vadd.f32 %v5466, %v5578
    %v5580 = vpop.f32.mrb[0].mxu0
    %v5581 = vadd.f32 %v5468, %v5580
    %v5582 = vpop.f32.mrb[0].mxu0
    %v5583 = vadd.f32 %v5470, %v5582
    %v5584 = vpop.f32.mrb[0].mxu0
    %v5585 = vadd.f32 %v5472, %v5584
    %5586 = vmatprep.mubr.bf16.mxu0 %v3747
    %5587 = vmatmul.mubr.bf16.gmra.mrb[0].mxu0 %v3746
    %v5588 = vpop.f32.mrb[0].mxu0
    %v5589 = vadd.f32 %v5476, %v5588
    %v5590 = vpop.f32.mrb[0].mxu0
    %v5591 = vadd.f32 %v5478, %v5590
    %v5592 = vpop.f32.mrb[0].mxu0
    %v5593 = vadd.f32 %v5480, %v5592
    %v5594 = vpop.f32.mrb[0].mxu0
    %v5595 = vadd.f32 %v5482, %v5594
    %5596 = vmatprep.mubr.bf16.mxu0 %v3765
    %5597 = vmatmul.mubr.bf16.gmra.mrb[0].mxu0 %v3764
    %v5598 = vpop.f32.mrb[0].mxu0
    %v5599 = vadd.f32 %v5486, %v5598
    %v5600 = vpop.f32.mrb[0].mxu0
    %v5601 = vadd.f32 %v5488, %v5600
    %v5602 = vpop.f32.mrb[0].mxu0
    %v5603 = vadd.f32 %v5490, %v5602
    %v5604 = vpop.f32.mrb[0].mxu0
    %v5605 = vadd.f32 %v5492, %v5604
    %5606 = vmatprep.mubr.bf16.mxu0 %v3783
    %5607 = vmatmul.mubr.bf16.gmra.mrb[0].mxu0 %v3782
    %v5608 = vpop.f32.mrb[0].mxu0
    %v5609 = vadd.f32 %v5496, %v5608
    %v5610 = vpop.f32.mrb[0].mxu0
    %v5611 = vadd.f32 %v5498, %v5610
    %v5612 = vpop.f32.mrb[0].mxu0
    %v5613 = vadd.f32 %v5500, %v5612
    %v5614 = vpop.f32.mrb[0].mxu0
    %v5615 = vadd.f32 %v5502, %v5614
    %5616 = vdwg.mxu0
    %5617 = vmatprep.subr.bf16.mxu0 %v3929
    %5618 = vmatpush1.bf16.msra.mxu0 %v3928
    %5619 = vmatprep.subr.bf16.mxu0 %v3933
    %5620 = vmatpush1.bf16.msra.mxu0 %v3932
    %5621 = vmatprep.subr.bf16.mxu0 %v3937
    %5622 = vmatpush1.bf16.msra.mxu0 %v3936
    %5623 = vmatprep.subr.bf16.mxu0 %v3941
    %5624 = vmatpush1.bf16.msra.mxu0 %v3940
    %5625 = vmatprep.subr.bf16.mxu0 %v3945
    %5626 = vmatpush1.bf16.msra.mxu0 %v3944
    %5627 = vmatprep.subr.bf16.mxu0 %v3949
    %5628 = vmatpush1.bf16.msra.mxu0 %v3948
    %5629 = vmatprep.subr.bf16.mxu0 %v3953
    %5630 = vmatpush1.bf16.msra.mxu0 %v3952
    %5631 = vmatprep.subr.bf16.mxu0 %v3957
    %5632 = vmatpush1.bf16.msra.mxu0 %v3956
    %5633 = vmatprep.subr.bf16.mxu0 %v3961
    %5634 = vmatpush1.bf16.msra.mxu0 %v3960
    %5635 = vmatprep.subr.bf16.mxu0 %v3965
    %5636 = vmatpush1.bf16.msra.mxu0 %v3964
    %5637 = vmatprep.subr.bf16.mxu0 %v3969
    %5638 = vmatpush1.bf16.msra.mxu0 %v3968
    %5639 = vmatprep.subr.bf16.mxu0 %v3973
    %5640 = vmatpush1.bf16.msra.mxu0 %v3972
    %5641 = vmatprep.subr.bf16.mxu0 %v3977
    %5642 = vmatpush1.bf16.msra.mxu0 %v3976
    %5643 = vmatprep.subr.bf16.mxu0 %v3981
    %5644 = vmatpush1.bf16.msra.mxu0 %v3980
    %5645 = vmatprep.subr.bf16.mxu0 %v3985
    %5646 = vmatpush1.bf16.msra.mxu0 %v3984
    %5647 = vmatprep.subr.bf16.mxu0 %v3989
    %5648 = vmatpush1.bf16.msra.mxu0 %v3988
    %5649 = vmatprep.mubr.bf16.mxu0 %v3659
    %5650 = vmatmul.mubr.bf16.gmra.mrb[0].mxu0 %v3658
    %v5651 = vpop.f32.mrb[0].mxu0
    %v5652 = vadd.f32 %v5539, %v5651
    %v5653 = vpop.f32.mrb[0].mxu0
    %v5654 = vadd.f32 %v5541, %v5653
    %v5655 = vpop.f32.mrb[0].mxu0
    %v5656 = vadd.f32 %v5543, %v5655
    %v5657 = vpop.f32.mrb[0].mxu0
    %v5658 = vadd.f32 %v5545, %v5657
    %5659 = vmatprep.mubr.bf16.mxu0 %v3677
    %5660 = vmatmul.mubr.bf16.gmra.mrb[0].mxu0 %v3676
    %v5661 = vpop.f32.mrb[0].mxu0
    %v5662 = vadd.f32 %v5549, %v5661
    %v5663 = vpop.f32.mrb[0].mxu0
    %v5664 = vadd.f32 %v5551, %v5663
    %v5665 = vpop.f32.mrb[0].mxu0
    %v5666 = vadd.f32 %v5553, %v5665
    %v5667 = vpop.f32.mrb[0].mxu0
    %v5668 = vadd.f32 %v5555, %v5667
    %5669 = vmatprep.mubr.bf16.mxu0 %v3695
    %5670 = vmatmul.mubr.bf16.gmra.mrb[0].mxu0 %v3694
    %v5671 = vpop.f32.mrb[0].mxu0
    %v5672 = vadd.f32 %v5559, %v5671
    %v5673 = vpop.f32.mrb[0].mxu0
    %v5674 = vadd.f32 %v5561, %v5673
    %v5675 = vpop.f32.mrb[0].mxu0
    %v5676 = vadd.f32 %v5563, %v5675
    %v5677 = vpop.f32.mrb[0].mxu0
    %v5678 = vadd.f32 %v5565, %v5677
    %5679 = vmatprep.mubr.bf16.mxu0 %v3713
    %5680 = vmatmul.mubr.bf16.gmra.mrb[0].mxu0 %v3712
    %v5681 = vpop.f32.mrb[0].mxu0
    %v5682 = vadd.f32 %v5569, %v5681
    %v5683 = vpop.f32.mrb[0].mxu0
    %v5684 = vadd.f32 %v5571, %v5683
    %v5685 = vpop.f32.mrb[0].mxu0
    %v5686 = vadd.f32 %v5573, %v5685
    %v5687 = vpop.f32.mrb[0].mxu0
    %v5688 = vadd.f32 %v5575, %v5687
    %5689 = vmatprep.mubr.bf16.mxu0 %v3731
    %5690 = vmatmul.mubr.bf16.gmra.mrb[0].mxu0 %v3730
    %v5691 = vpop.f32.mrb[0].mxu0
    %v5692 = vadd.f32 %v5579, %v5691
    %v5693 = vpop.f32.mrb[0].mxu0
    %v5694 = vadd.f32 %v5581, %v5693
    %v5695 = vpop.f32.mrb[0].mxu0
    %v5696 = vadd.f32 %v5583, %v5695
    %v5697 = vpop.f32.mrb[0].mxu0
    %v5698 = vadd.f32 %v5585, %v5697
    %5699 = vmatprep.mubr.bf16.mxu0 %v3749
    %5700 = vmatmul.mubr.bf16.gmra.mrb[0].mxu0 %v3748
    %v5701 = vpop.f32.mrb[0].mxu0
    %v5702 = vadd.f32 %v5589, %v5701
    %v5703 = vpop.f32.mrb[0].mxu0
    %v5704 = vadd.f32 %v5591, %v5703
    %v5705 = vpop.f32.mrb[0].mxu0
    %v5706 = vadd.f32 %v5593, %v5705
    %v5707 = vpop.f32.mrb[0].mxu0
    %v5708 = vadd.f32 %v5595, %v5707
    %5709 = vmatprep.mubr.bf16.mxu0 %v3767
    %5710 = vmatmul.mubr.bf16.gmra.mrb[0].mxu0 %v3766
    %v5711 = vpop.f32.mrb[0].mxu0
    %v5712 = vadd.f32 %v5599, %v5711
    %v5713 = vpop.f32.mrb[0].mxu0
    %v5714 = vadd.f32 %v5601, %v5713
    %v5715 = vpop.f32.mrb[0].mxu0
    %v5716 = vadd.f32 %v5603, %v5715
    %v5717 = vpop.f32.mrb[0].mxu0
    %v5718 = vadd.f32 %v5605, %v5717
    %5719 = vmatprep.mubr.bf16.mxu0 %v3785
    %5720 = vmatmul.mubr.bf16.gmra.mrb[0].mxu0 %v3784
    %v5721 = vpop.f32.mrb[0].mxu0
    %v5722 = vadd.f32 %v5609, %v5721
    %v5723 = vpop.f32.mrb[0].mxu0
    %v5724 = vadd.f32 %v5611, %v5723
    %v5725 = vpop.f32.mrb[0].mxu0
    %v5726 = vadd.f32 %v5613, %v5725
    %v5727 = vpop.f32.mrb[0].mxu0
    %v5728 = vadd.f32 %v5615, %v5727
    %5729 = vdwg.mxu0
    %5730 = vmatprep.subr.bf16.mxu0 %v3993
    %5731 = vmatpush1.bf16.msra.mxu0 %v3992
    %5732 = vmatprep.subr.bf16.mxu0 %v3997
    %5733 = vmatpush1.bf16.msra.mxu0 %v3996
    %5734 = vmatprep.subr.bf16.mxu0 %v4001
    %5735 = vmatpush1.bf16.msra.mxu0 %v4000
    %5736 = vmatprep.subr.bf16.mxu0 %v4005
    %5737 = vmatpush1.bf16.msra.mxu0 %v4004
    %5738 = vmatprep.subr.bf16.mxu0 %v4009
    %5739 = vmatpush1.bf16.msra.mxu0 %v4008
    %5740 = vmatprep.subr.bf16.mxu0 %v4013
    %5741 = vmatpush1.bf16.msra.mxu0 %v4012
    %5742 = vmatprep.subr.bf16.mxu0 %v4017
    %5743 = vmatpush1.bf16.msra.mxu0 %v4016
    %5744 = vmatprep.subr.bf16.mxu0 %v4021
    %5745 = vmatpush1.bf16.msra.mxu0 %v4020
    %5746 = vmatprep.subr.bf16.mxu0 %v4025
    %5747 = vmatpush1.bf16.msra.mxu0 %v4024
    %5748 = vmatprep.subr.bf16.mxu0 %v4029
    %5749 = vmatpush1.bf16.msra.mxu0 %v4028
    %5750 = vmatprep.subr.bf16.mxu0 %v4033
    %5751 = vmatpush1.bf16.msra.mxu0 %v4032
    %5752 = vmatprep.subr.bf16.mxu0 %v4037
    %5753 = vmatpush1.bf16.msra.mxu0 %v4036
    %5754 = vmatprep.subr.bf16.mxu0 %v4041
    %5755 = vmatpush1.bf16.msra.mxu0 %v4040
    %5756 = vmatprep.subr.bf16.mxu0 %v4045
    %5757 = vmatpush1.bf16.msra.mxu0 %v4044
    %5758 = vmatprep.subr.bf16.mxu0 %v4049
    %5759 = vmatpush1.bf16.msra.mxu0 %v4048
    %5760 = vmatprep.subr.bf16.mxu0 %v4053
    %5761 = vmatpush1.bf16.msra.mxu0 %v4052
    %5762 = vmatprep.mubr.bf16.mxu0 %v3661
    %5763 = vmatmul.mubr.bf16.gmra.mrb[0].mxu0 %v3660
    %v5764 = vpop.f32.mrb[0].mxu0
    %v5765 = vadd.f32 %v5652, %v5764
    %v5766 = vpop.f32.mrb[0].mxu0
    %v5767 = vadd.f32 %v5654, %v5766
    %v5768 = vpop.f32.mrb[0].mxu0
    %v5769 = vadd.f32 %v5656, %v5768
    %v5770 = vpop.f32.mrb[0].mxu0
    %v5771 = vadd.f32 %v5658, %v5770
    %5772 = vmatprep.mubr.bf16.mxu0 %v3679
    %5773 = vmatmul.mubr.bf16.gmra.mrb[0].mxu0 %v3678
    %v5774 = vpop.f32.mrb[0].mxu0
    %v5775 = vadd.f32 %v5662, %v5774
    %v5776 = vpop.f32.mrb[0].mxu0
    %v5777 = vadd.f32 %v5664, %v5776
    %v5778 = vpop.f32.mrb[0].mxu0
    %v5779 = vadd.f32 %v5666, %v5778
    %v5780 = vpop.f32.mrb[0].mxu0
    %v5781 = vadd.f32 %v5668, %v5780
    %5782 = vmatprep.mubr.bf16.mxu0 %v3697
    %5783 = vmatmul.mubr.bf16.gmra.mrb[0].mxu0 %v3696
    %v5784 = vpop.f32.mrb[0].mxu0
    %v5785 = vadd.f32 %v5672, %v5784
    %v5786 = vpop.f32.mrb[0].mxu0
    %v5787 = vadd.f32 %v5674, %v5786
    %v5788 = vpop.f32.mrb[0].mxu0
    %v5789 = vadd.f32 %v5676, %v5788
    %v5790 = vpop.f32.mrb[0].mxu0
    %v5791 = vadd.f32 %v5678, %v5790
    %5792 = vmatprep.mubr.bf16.mxu0 %v3715
    %5793 = vmatmul.mubr.bf16.gmra.mrb[0].mxu0 %v3714
    %v5794 = vpop.f32.mrb[0].mxu0
    %v5795 = vadd.f32 %v5682, %v5794
    %v5796 = vpop.f32.mrb[0].mxu0
    %v5797 = vadd.f32 %v5684, %v5796
    %v5798 = vpop.f32.mrb[0].mxu0
    %v5799 = vadd.f32 %v5686, %v5798
    %v5800 = vpop.f32.mrb[0].mxu0
    %v5801 = vadd.f32 %v5688, %v5800
    %5802 = vmatprep.mubr.bf16.mxu0 %v3733
    %5803 = vmatmul.mubr.bf16.gmra.mrb[0].mxu0 %v3732
    %v5804 = vpop.f32.mrb[0].mxu0
    %v5805 = vadd.f32 %v5692, %v5804
    %v5806 = vpop.f32.mrb[0].mxu0
    %v5807 = vadd.f32 %v5694, %v5806
    %v5808 = vpop.f32.mrb[0].mxu0
    %v5809 = vadd.f32 %v5696, %v5808
    %v5810 = vpop.f32.mrb[0].mxu0
    %v5811 = vadd.f32 %v5698, %v5810
    %5812 = vmatprep.mubr.bf16.mxu0 %v3751
    %5813 = vmatmul.mubr.bf16.gmra.mrb[0].mxu0 %v3750
    %v5814 = vpop.f32.mrb[0].mxu0
    %v5815 = vadd.f32 %v5702, %v5814
    %v5816 = vpop.f32.mrb[0].mxu0
    %v5817 = vadd.f32 %v5704, %v5816
    %v5818 = vpop.f32.mrb[0].mxu0
    %v5819 = vadd.f32 %v5706, %v5818
    %v5820 = vpop.f32.mrb[0].mxu0
    %v5821 = vadd.f32 %v5708, %v5820
    %5822 = vmatprep.mubr.bf16.mxu0 %v3769
    %5823 = vmatmul.mubr.bf16.gmra.mrb[0].mxu0 %v3768
    %v5824 = vpop.f32.mrb[0].mxu0
    %v5825 = vadd.f32 %v5712, %v5824
    %v5826 = vpop.f32.mrb[0].mxu0
    %v5827 = vadd.f32 %v5714, %v5826
    %v5828 = vpop.f32.mrb[0].mxu0
    %v5829 = vadd.f32 %v5716, %v5828
    %v5830 = vpop.f32.mrb[0].mxu0
    %v5831 = vadd.f32 %v5718, %v5830
    %5832 = vmatprep.mubr.bf16.mxu0 %v3787
    %5833 = vmatmul.mubr.bf16.gmra.mrb[0].mxu0 %v3786
    %v5834 = vpop.f32.mrb[0].mxu0
    %v5835 = vadd.f32 %v5722, %v5834
    %v5836 = vpop.f32.mrb[0].mxu0
    %v5837 = vadd.f32 %v5724, %v5836
    %v5838 = vpop.f32.mrb[0].mxu0
    %v5839 = vadd.f32 %v5726, %v5838
    %v5840 = vpop.f32.mrb[0].mxu0
    %v5841 = vadd.f32 %v5728, %v5840
    %5842 = vdwg.mxu0
    %5843 = vmatprep.subr.bf16.mxu0 %v4057
    %5844 = vmatpush1.bf16.msra.mxu0 %v4056
    %5845 = vmatprep.subr.bf16.mxu0 %v4061
    %5846 = vmatpush1.bf16.msra.mxu0 %v4060
    %5847 = vmatprep.subr.bf16.mxu0 %v4065
    %5848 = vmatpush1.bf16.msra.mxu0 %v4064
    %5849 = vmatprep.subr.bf16.mxu0 %v4069
    %5850 = vmatpush1.bf16.msra.mxu0 %v4068
    %5851 = vmatprep.subr.bf16.mxu0 %v4073
    %5852 = vmatpush1.bf16.msra.mxu0 %v4072
    %5853 = vmatprep.subr.bf16.mxu0 %v4077
    %5854 = vmatpush1.bf16.msra.mxu0 %v4076
    %5855 = vmatprep.subr.bf16.mxu0 %v4081
    %5856 = vmatpush1.bf16.msra.mxu0 %v4080
    %5857 = vmatprep.subr.bf16.mxu0 %v4085
    %5858 = vmatpush1.bf16.msra.mxu0 %v4084
    %5859 = vmatprep.subr.bf16.mxu0 %v4089
    %5860 = vmatpush1.bf16.msra.mxu0 %v4088
    %5861 = vmatprep.subr.bf16.mxu0 %v4093
    %5862 = vmatpush1.bf16.msra.mxu0 %v4092
    %5863 = vmatprep.subr.bf16.mxu0 %v4097
    %5864 = vmatpush1.bf16.msra.mxu0 %v4096
    %5865 = vmatprep.subr.bf16.mxu0 %v4101
    %5866 = vmatpush1.bf16.msra.mxu0 %v4100
    %5867 = vmatprep.subr.bf16.mxu0 %v4105
    %5868 = vmatpush1.bf16.msra.mxu0 %v4104
    %5869 = vmatprep.subr.bf16.mxu0 %v4109
    %5870 = vmatpush1.bf16.msra.mxu0 %v4108
    %5871 = vmatprep.subr.bf16.mxu0 %v4113
    %5872 = vmatpush1.bf16.msra.mxu0 %v4112
    %5873 = vmatprep.subr.bf16.mxu0 %v4117
    %5874 = vmatpush1.bf16.msra.mxu0 %v4116
    %5875 = vmatprep.mubr.bf16.mxu0 %v3663
    %5876 = vmatmul.mubr.bf16.gmra.mrb[0].mxu0 %v3662
    %v5877 = vpop.f32.mrb[0].mxu0
    %v5878 = vadd.f32 %v5765, %v5877
    %v5879 = vpop.f32.mrb[0].mxu0
    %v5880 = vadd.f32 %v5767, %v5879
    %v5881 = vpop.f32.mrb[0].mxu0
    %v5882 = vadd.f32 %v5769, %v5881
    %v5883 = vpop.f32.mrb[0].mxu0
    %v5884 = vadd.f32 %v5771, %v5883
    %5885 = vmatprep.mubr.bf16.mxu0 %v3681
    %5886 = vmatmul.mubr.bf16.gmra.mrb[0].mxu0 %v3680
    %v5887 = vpop.f32.mrb[0].mxu0
    %v5888 = vadd.f32 %v5775, %v5887
    %v5889 = vpop.f32.mrb[0].mxu0
    %v5890 = vadd.f32 %v5777, %v5889
    %v5891 = vpop.f32.mrb[0].mxu0
    %v5892 = vadd.f32 %v5779, %v5891
    %v5893 = vpop.f32.mrb[0].mxu0
    %v5894 = vadd.f32 %v5781, %v5893
    %5895 = vmatprep.mubr.bf16.mxu0 %v3699
    %5896 = vmatmul.mubr.bf16.gmra.mrb[0].mxu0 %v3698
    %v5897 = vpop.f32.mrb[0].mxu0
    %v5898 = vadd.f32 %v5785, %v5897
    %v5899 = vpop.f32.mrb[0].mxu0
    %v5900 = vadd.f32 %v5787, %v5899
    %v5901 = vpop.f32.mrb[0].mxu0
    %v5902 = vadd.f32 %v5789, %v5901
    %v5903 = vpop.f32.mrb[0].mxu0
    %v5904 = vadd.f32 %v5791, %v5903
    %5905 = vmatprep.mubr.bf16.mxu0 %v3717
    %5906 = vmatmul.mubr.bf16.gmra.mrb[0].mxu0 %v3716
    %v5907 = vpop.f32.mrb[0].mxu0
    %v5908 = vadd.f32 %v5795, %v5907
    %v5909 = vpop.f32.mrb[0].mxu0
    %v5910 = vadd.f32 %v5797, %v5909
    %v5911 = vpop.f32.mrb[0].mxu0
    %v5912 = vadd.f32 %v5799, %v5911
    %v5913 = vpop.f32.mrb[0].mxu0
    %v5914 = vadd.f32 %v5801, %v5913
    %5915 = vmatprep.mubr.bf16.mxu0 %v3735
    %5916 = vmatmul.mubr.bf16.gmra.mrb[0].mxu0 %v3734
    %v5917 = vpop.f32.mrb[0].mxu0
    %v5918 = vadd.f32 %v5805, %v5917
    %v5919 = vpop.f32.mrb[0].mxu0
    %v5920 = vadd.f32 %v5807, %v5919
    %v5921 = vpop.f32.mrb[0].mxu0
    %v5922 = vadd.f32 %v5809, %v5921
    %v5923 = vpop.f32.mrb[0].mxu0
    %v5924 = vadd.f32 %v5811, %v5923
    %5925 = vmatprep.mubr.bf16.mxu0 %v3753
    %5926 = vmatmul.mubr.bf16.gmra.mrb[0].mxu0 %v3752
    %v5927 = vpop.f32.mrb[0].mxu0
    %v5928 = vadd.f32 %v5815, %v5927
    %v5929 = vpop.f32.mrb[0].mxu0
    %v5930 = vadd.f32 %v5817, %v5929
    %v5931 = vpop.f32.mrb[0].mxu0
    %v5932 = vadd.f32 %v5819, %v5931
    %v5933 = vpop.f32.mrb[0].mxu0
    %v5934 = vadd.f32 %v5821, %v5933
    %5935 = vmatprep.mubr.bf16.mxu0 %v3771
    %5936 = vmatmul.mubr.bf16.gmra.mrb[0].mxu0 %v3770
    %v5937 = vpop.f32.mrb[0].mxu0
    %v5938 = vadd.f32 %v5825, %v5937
    %v5939 = vpop.f32.mrb[0].mxu0
    %v5940 = vadd.f32 %v5827, %v5939
    %v5941 = vpop.f32.mrb[0].mxu0
    %v5942 = vadd.f32 %v5829, %v5941
    %v5943 = vpop.f32.mrb[0].mxu0
    %v5944 = vadd.f32 %v5831, %v5943
    %5945 = vmatprep.mubr.bf16.mxu0 %v3789
    %5946 = vmatmul.mubr.bf16.gmra.mrb[0].mxu0 %v3788
    %v5947 = vpop.f32.mrb[0].mxu0
    %v5948 = vadd.f32 %v5835, %v5947
    %v5949 = vpop.f32.mrb[0].mxu0
    %v5950 = vadd.f32 %v5837, %v5949
    %v5951 = vpop.f32.mrb[0].mxu0
    %v5952 = vadd.f32 %v5839, %v5951
    %v5953 = vpop.f32.mrb[0].mxu0
    %v5954 = vadd.f32 %v5841, %v5953
    %5955 = vdwg.mxu0
    %5956 = vmatprep.subr.bf16.mxu0 %v4121
    %5957 = vmatpush1.bf16.msra.mxu0 %v4120
    %5958 = vmatprep.subr.bf16.mxu0 %v4125
    %5959 = vmatpush1.bf16.msra.mxu0 %v4124
    %5960 = vmatprep.subr.bf16.mxu0 %v4129
    %5961 = vmatpush1.bf16.msra.mxu0 %v4128
    %5962 = vmatprep.subr.bf16.mxu0 %v4133
    %5963 = vmatpush1.bf16.msra.mxu0 %v4132
    %5964 = vmatprep.subr.bf16.mxu0 %v4137
    %5965 = vmatpush1.bf16.msra.mxu0 %v4136
    %5966 = vmatprep.subr.bf16.mxu0 %v4141
    %5967 = vmatpush1.bf16.msra.mxu0 %v4140
    %5968 = vmatprep.subr.bf16.mxu0 %v4145
    %5969 = vmatpush1.bf16.msra.mxu0 %v4144
    %5970 = vmatprep.subr.bf16.mxu0 %v4149
    %5971 = vmatpush1.bf16.msra.mxu0 %v4148
    %5972 = vmatprep.subr.bf16.mxu0 %v4153
    %5973 = vmatpush1.bf16.msra.mxu0 %v4152
    %5974 = vmatprep.subr.bf16.mxu0 %v4157
    %5975 = vmatpush1.bf16.msra.mxu0 %v4156
    %5976 = vmatprep.subr.bf16.mxu0 %v4161
    %5977 = vmatpush1.bf16.msra.mxu0 %v4160
    %5978 = vmatprep.subr.bf16.mxu0 %v4165
    %5979 = vmatpush1.bf16.msra.mxu0 %v4164
    %5980 = vmatprep.subr.bf16.mxu0 %v4169
    %5981 = vmatpush1.bf16.msra.mxu0 %v4168
    %5982 = vmatprep.subr.bf16.mxu0 %v4173
    %5983 = vmatpush1.bf16.msra.mxu0 %v4172
    %5984 = vmatprep.subr.bf16.mxu0 %v4177
    %5985 = vmatpush1.bf16.msra.mxu0 %v4176
    %5986 = vmatprep.subr.bf16.mxu0 %v4181
    %5987 = vmatpush1.bf16.msra.mxu0 %v4180
    %5988 = vmatprep.mubr.bf16.mxu0 %v3665
    %5989 = vmatmul.mubr.bf16.gmra.mrb[0].mxu0 %v3664
    %v5990 = vpop.f32.mrb[0].mxu0
    %v5991 = vadd.f32 %v5878, %v5990
    %v5992 = vpop.f32.mrb[0].mxu0
    %v5993 = vadd.f32 %v5880, %v5992
    %v5994 = vpop.f32.mrb[0].mxu0
    %v5995 = vadd.f32 %v5882, %v5994
    %v5996 = vpop.f32.mrb[0].mxu0
    %v5997 = vadd.f32 %v5884, %v5996
    %5998 = vmatprep.mubr.bf16.mxu0 %v3683
    %5999 = vmatmul.mubr.bf16.gmra.mrb[0].mxu0 %v3682
    %v6000 = vpop.f32.mrb[0].mxu0
    %v6001 = vadd.f32 %v5888, %v6000
    %v6002 = vpop.f32.mrb[0].mxu0
    %v6003 = vadd.f32 %v5890, %v6002
    %v6004 = vpop.f32.mrb[0].mxu0
    %v6005 = vadd.f32 %v5892, %v6004
    %v6006 = vpop.f32.mrb[0].mxu0
    %v6007 = vadd.f32 %v5894, %v6006
    %6008 = vmatprep.mubr.bf16.mxu0 %v3701
    %6009 = vmatmul.mubr.bf16.gmra.mrb[0].mxu0 %v3700
    %v6010 = vpop.f32.mrb[0].mxu0
    %v6011 = vadd.f32 %v5898, %v6010
    %v6012 = vpop.f32.mrb[0].mxu0
    %v6013 = vadd.f32 %v5900, %v6012
    %v6014 = vpop.f32.mrb[0].mxu0
    %v6015 = vadd.f32 %v5902, %v6014
    %v6016 = vpop.f32.mrb[0].mxu0
    %v6017 = vadd.f32 %v5904, %v6016
    %6018 = vmatprep.mubr.bf16.mxu0 %v3719
    %6019 = vmatmul.mubr.bf16.gmra.mrb[0].mxu0 %v3718
    %v6020 = vpop.f32.mrb[0].mxu0
    %v6021 = vadd.f32 %v5908, %v6020
    %v6022 = vpop.f32.mrb[0].mxu0
    %v6023 = vadd.f32 %v5910, %v6022
    %v6024 = vpop.f32.mrb[0].mxu0
    %v6025 = vadd.f32 %v5912, %v6024
    %v6026 = vpop.f32.mrb[0].mxu0
    %v6027 = vadd.f32 %v5914, %v6026
    %6028 = vmatprep.mubr.bf16.mxu0 %v3737
    %6029 = vmatmul.mubr.bf16.gmra.mrb[0].mxu0 %v3736
    %v6030 = vpop.f32.mrb[0].mxu0
    %v6031 = vadd.f32 %v5918, %v6030
    %v6032 = vpop.f32.mrb[0].mxu0
    %v6033 = vadd.f32 %v5920, %v6032
    %v6034 = vpop.f32.mrb[0].mxu0
    %v6035 = vadd.f32 %v5922, %v6034
    %v6036 = vpop.f32.mrb[0].mxu0
    %v6037 = vadd.f32 %v5924, %v6036
    %6038 = vmatprep.mubr.bf16.mxu0 %v3755
    %6039 = vmatmul.mubr.bf16.gmra.mrb[0].mxu0 %v3754
    %v6040 = vpop.f32.mrb[0].mxu0
    %v6041 = vadd.f32 %v5928, %v6040
    %v6042 = vpop.f32.mrb[0].mxu0
    %v6043 = vadd.f32 %v5930, %v6042
    %v6044 = vpop.f32.mrb[0].mxu0
    %v6045 = vadd.f32 %v5932, %v6044
    %v6046 = vpop.f32.mrb[0].mxu0
    %v6047 = vadd.f32 %v5934, %v6046
    %6048 = vmatprep.mubr.bf16.mxu0 %v3773
    %6049 = vmatmul.mubr.bf16.gmra.mrb[0].mxu0 %v3772
    %v6050 = vpop.f32.mrb[0].mxu0
    %v6051 = vadd.f32 %v5938, %v6050
    %v6052 = vpop.f32.mrb[0].mxu0
    %v6053 = vadd.f32 %v5940, %v6052
    %v6054 = vpop.f32.mrb[0].mxu0
    %v6055 = vadd.f32 %v5942, %v6054
    %v6056 = vpop.f32.mrb[0].mxu0
    %v6057 = vadd.f32 %v5944, %v6056
    %6058 = vmatprep.mubr.bf16.mxu0 %v3791
    %6059 = vmatmul.mubr.bf16.gmra.mrb[0].mxu0 %v3790
    %v6060 = vpop.f32.mrb[0].mxu0
    %v6061 = vadd.f32 %v5948, %v6060
    %v6062 = vpop.f32.mrb[0].mxu0
    %v6063 = vadd.f32 %v5950, %v6062
    %v6064 = vpop.f32.mrb[0].mxu0
    %v6065 = vadd.f32 %v5952, %v6064
    %v6066 = vpop.f32.mrb[0].mxu0
    %v6067 = vadd.f32 %v5954, %v6066
    %6068 = vdwg.mxu0
    %6069 = vmatprep.subr.bf16.mxu0 %v4185
    %6070 = vmatpush1.bf16.msra.mxu0 %v4184
    %6071 = vmatprep.subr.bf16.mxu0 %v4189
    %6072 = vmatpush1.bf16.msra.mxu0 %v4188
    %6073 = vmatprep.subr.bf16.mxu0 %v4193
    %6074 = vmatpush1.bf16.msra.mxu0 %v4192
    %6075 = vmatprep.subr.bf16.mxu0 %v4197
    %6076 = vmatpush1.bf16.msra.mxu0 %v4196
    %6077 = vmatprep.subr.bf16.mxu0 %v4201
    %6078 = vmatpush1.bf16.msra.mxu0 %v4200
    %6079 = vmatprep.subr.bf16.mxu0 %v4205
    %6080 = vmatpush1.bf16.msra.mxu0 %v4204
    %6081 = vmatprep.subr.bf16.mxu0 %v4209
    %6082 = vmatpush1.bf16.msra.mxu0 %v4208
    %6083 = vmatprep.subr.bf16.mxu0 %v4213
    %6084 = vmatpush1.bf16.msra.mxu0 %v4212
    %6085 = vmatprep.subr.bf16.mxu0 %v4217
    %6086 = vmatpush1.bf16.msra.mxu0 %v4216
    %6087 = vmatprep.subr.bf16.mxu0 %v4221
    %6088 = vmatpush1.bf16.msra.mxu0 %v4220
    %6089 = vmatprep.subr.bf16.mxu0 %v4225
    %6090 = vmatpush1.bf16.msra.mxu0 %v4224
    %6091 = vmatprep.subr.bf16.mxu0 %v4229
    %6092 = vmatpush1.bf16.msra.mxu0 %v4228
    %6093 = vmatprep.subr.bf16.mxu0 %v4233
    %6094 = vmatpush1.bf16.msra.mxu0 %v4232
    %6095 = vmatprep.subr.bf16.mxu0 %v4237
    %6096 = vmatpush1.bf16.msra.mxu0 %v4236
    %6097 = vmatprep.subr.bf16.mxu0 %v4241
    %6098 = vmatpush1.bf16.msra.mxu0 %v4240
    %6099 = vmatprep.subr.bf16.mxu0 %v4245
    %6100 = vmatpush1.bf16.msra.mxu0 %v4244
    %6101 = vmatprep.mubr.bf16.mxu0 %v3667
    %6102 = vmatmul.mubr.bf16.gmra.mrb[0].mxu0 %v3666
    %v6103 = vpop.f32.mrb[0].mxu0
    %v6104 = vadd.f32 %v5991, %v6103
    %v6105 = vpop.f32.mrb[0].mxu0
    %v6106 = vadd.f32 %v5993, %v6105
    %v6107 = vpop.f32.mrb[0].mxu0
    %v6108 = vadd.f32 %v5995, %v6107
    %v6109 = vpop.f32.mrb[0].mxu0
    %v6110 = vadd.f32 %v5997, %v6109
    %6111 = vmatprep.mubr.bf16.mxu0 %v3685
    %6112 = vmatmul.mubr.bf16.gmra.mrb[0].mxu0 %v3684
    %v6113 = vpop.f32.mrb[0].mxu0
    %v6114 = vadd.f32 %v6001, %v6113
    %v6115 = vpop.f32.mrb[0].mxu0
    %v6116 = vadd.f32 %v6003, %v6115
    %v6117 = vpop.f32.mrb[0].mxu0
    %v6118 = vadd.f32 %v6005, %v6117
    %v6119 = vpop.f32.mrb[0].mxu0
    %v6120 = vadd.f32 %v6007, %v6119
    %6121 = vmatprep.mubr.bf16.mxu0 %v3703
    %6122 = vmatmul.mubr.bf16.gmra.mrb[0].mxu0 %v3702
    %v6123 = vpop.f32.mrb[0].mxu0
    %v6124 = vadd.f32 %v6011, %v6123
    %v6125 = vpop.f32.mrb[0].mxu0
    %v6126 = vadd.f32 %v6013, %v6125
    %v6127 = vpop.f32.mrb[0].mxu0
    %v6128 = vadd.f32 %v6015, %v6127
    %v6129 = vpop.f32.mrb[0].mxu0
    %v6130 = vadd.f32 %v6017, %v6129
    %6131 = vmatprep.mubr.bf16.mxu0 %v3721
    %6132 = vmatmul.mubr.bf16.gmra.mrb[0].mxu0 %v3720
    %v6133 = vpop.f32.mrb[0].mxu0
    %v6134 = vadd.f32 %v6021, %v6133
    %v6135 = vpop.f32.mrb[0].mxu0
    %v6136 = vadd.f32 %v6023, %v6135
    %v6137 = vpop.f32.mrb[0].mxu0
    %v6138 = vadd.f32 %v6025, %v6137
    %v6139 = vpop.f32.mrb[0].mxu0
    %v6140 = vadd.f32 %v6027, %v6139
    %6141 = vmatprep.mubr.bf16.mxu0 %v3739
    %6142 = vmatmul.mubr.bf16.gmra.mrb[0].mxu0 %v3738
    %v6143 = vpop.f32.mrb[0].mxu0
    %v6144 = vadd.f32 %v6031, %v6143
    %v6145 = vpop.f32.mrb[0].mxu0
    %v6146 = vadd.f32 %v6033, %v6145
    %v6147 = vpop.f32.mrb[0].mxu0
    %v6148 = vadd.f32 %v6035, %v6147
    %v6149 = vpop.f32.mrb[0].mxu0
    %v6150 = vadd.f32 %v6037, %v6149
    %6151 = vmatprep.mubr.bf16.mxu0 %v3757
    %6152 = vmatmul.mubr.bf16.gmra.mrb[0].mxu0 %v3756
    %v6153 = vpop.f32.mrb[0].mxu0
    %v6154 = vadd.f32 %v6041, %v6153
    %v6155 = vpop.f32.mrb[0].mxu0
    %v6156 = vadd.f32 %v6043, %v6155
    %v6157 = vpop.f32.mrb[0].mxu0
    %v6158 = vadd.f32 %v6045, %v6157
    %v6159 = vpop.f32.mrb[0].mxu0
    %v6160 = vadd.f32 %v6047, %v6159
    %6161 = vmatprep.mubr.bf16.mxu0 %v3775
    %6162 = vmatmul.mubr.bf16.gmra.mrb[0].mxu0 %v3774
    %v6163 = vpop.f32.mrb[0].mxu0
    %v6164 = vadd.f32 %v6051, %v6163
    %v6165 = vpop.f32.mrb[0].mxu0
    %v6166 = vadd.f32 %v6053, %v6165
    %v6167 = vpop.f32.mrb[0].mxu0
    %v6168 = vadd.f32 %v6055, %v6167
    %v6169 = vpop.f32.mrb[0].mxu0
    %v6170 = vadd.f32 %v6057, %v6169
    %6171 = vmatprep.mubr.bf16.mxu0 %v3793
    %6172 = vmatmul.mubr.bf16.gmra.mrb[0].mxu0 %v3792
    %v6173 = vpop.f32.mrb[0].mxu0
    %v6174 = vadd.f32 %v6061, %v6173
    %v6175 = vpop.f32.mrb[0].mxu0
    %v6176 = vadd.f32 %v6063, %v6175
    %v6177 = vpop.f32.mrb[0].mxu0
    %v6178 = vadd.f32 %v6065, %v6177
    %v6179 = vpop.f32.mrb[0].mxu0
    %v6180 = vadd.f32 %v6067, %v6179
    %6181 = vdwg.mxu0
    %6182 = vmatprep.subr.bf16.mxu0 %v4249
    %6183 = vmatpush1.bf16.msra.mxu0 %v4248
    %6184 = vmatprep.subr.bf16.mxu0 %v4253
    %6185 = vmatpush1.bf16.msra.mxu0 %v4252
    %6186 = vmatprep.subr.bf16.mxu0 %v4257
    %6187 = vmatpush1.bf16.msra.mxu0 %v4256
    %6188 = vmatprep.subr.bf16.mxu0 %v4261
    %6189 = vmatpush1.bf16.msra.mxu0 %v4260
    %6190 = vmatprep.subr.bf16.mxu0 %v4265
    %6191 = vmatpush1.bf16.msra.mxu0 %v4264
    %6192 = vmatprep.subr.bf16.mxu0 %v4269
    %6193 = vmatpush1.bf16.msra.mxu0 %v4268
    %6194 = vmatprep.subr.bf16.mxu0 %v4273
    %6195 = vmatpush1.bf16.msra.mxu0 %v4272
    %6196 = vmatprep.subr.bf16.mxu0 %v4277
    %6197 = vmatpush1.bf16.msra.mxu0 %v4276
    %6198 = vmatprep.subr.bf16.mxu0 %v4281
    %6199 = vmatpush1.bf16.msra.mxu0 %v4280
    %6200 = vmatprep.subr.bf16.mxu0 %v4285
    %6201 = vmatpush1.bf16.msra.mxu0 %v4284
    %6202 = vmatprep.subr.bf16.mxu0 %v4289
    %6203 = vmatpush1.bf16.msra.mxu0 %v4288
    %6204 = vmatprep.subr.bf16.mxu0 %v4293
    %6205 = vmatpush1.bf16.msra.mxu0 %v4292
    %6206 = vmatprep.subr.bf16.mxu0 %v4297
    %6207 = vmatpush1.bf16.msra.mxu0 %v4296
    %6208 = vmatprep.subr.bf16.mxu0 %v4301
    %6209 = vmatpush1.bf16.msra.mxu0 %v4300
    %6210 = vmatprep.subr.bf16.mxu0 %v4305
    %6211 = vmatpush1.bf16.msra.mxu0 %v4304
    %6212 = vmatprep.subr.bf16.mxu0 %v4309
    %6213 = vmatpush1.bf16.msra.mxu0 %v4308
    %6214 = vmatprep.mubr.bf16.mxu0 %v3669
    %6215 = vmatmul.mubr.bf16.gmra.mrb[0].mxu0 %v3668
    %v6216 = vpop.f32.mrb[0].mxu0
    %v6217 = vadd.f32 %v6104, %v6216
    %v6218 = vpop.f32.mrb[0].mxu0
    %v6219 = vadd.f32 %v6106, %v6218
    %v6220 = vpop.f32.mrb[0].mxu0
    %v6221 = vadd.f32 %v6108, %v6220
    %v6222 = vpop.f32.mrb[0].mxu0
    %v6223 = vadd.f32 %v6110, %v6222
    %6224 = vmatprep.mubr.bf16.mxu0 %v3687
    %6225 = vmatmul.mubr.bf16.gmra.mrb[0].mxu0 %v3686
    %v6226 = vpop.f32.mrb[0].mxu0
    %v6227 = vadd.f32 %v6114, %v6226
    %v6228 = vpop.f32.mrb[0].mxu0
    %v6229 = vadd.f32 %v6116, %v6228
    %v6230 = vpop.f32.mrb[0].mxu0
    %v6231 = vadd.f32 %v6118, %v6230
    %v6232 = vpop.f32.mrb[0].mxu0
    %v6233 = vadd.f32 %v6120, %v6232
    %6234 = vmatprep.mubr.bf16.mxu0 %v3705
    %6235 = vmatmul.mubr.bf16.gmra.mrb[0].mxu0 %v3704
    %v6236 = vpop.f32.mrb[0].mxu0
    %v6237 = vadd.f32 %v6124, %v6236
    %v6238 = vpop.f32.mrb[0].mxu0
    %v6239 = vadd.f32 %v6126, %v6238
    %v6240 = vpop.f32.mrb[0].mxu0
    %v6241 = vadd.f32 %v6128, %v6240
    %v6242 = vpop.f32.mrb[0].mxu0
    %v6243 = vadd.f32 %v6130, %v6242
    %6244 = vmatprep.mubr.bf16.mxu0 %v3723
    %6245 = vmatmul.mubr.bf16.gmra.mrb[0].mxu0 %v3722
    %v6246 = vpop.f32.mrb[0].mxu0
    %v6247 = vadd.f32 %v6134, %v6246
    %v6248 = vpop.f32.mrb[0].mxu0
    %v6249 = vadd.f32 %v6136, %v6248
    %v6250 = vpop.f32.mrb[0].mxu0
    %v6251 = vadd.f32 %v6138, %v6250
    %v6252 = vpop.f32.mrb[0].mxu0
    %v6253 = vadd.f32 %v6140, %v6252
    %6254 = vmatprep.mubr.bf16.mxu0 %v3741
    %6255 = vmatmul.mubr.bf16.gmra.mrb[0].mxu0 %v3740
    %v6256 = vpop.f32.mrb[0].mxu0
    %v6257 = vadd.f32 %v6144, %v6256
    %v6258 = vpop.f32.mrb[0].mxu0
    %v6259 = vadd.f32 %v6146, %v6258
    %v6260 = vpop.f32.mrb[0].mxu0
    %v6261 = vadd.f32 %v6148, %v6260
    %v6262 = vpop.f32.mrb[0].mxu0
    %v6263 = vadd.f32 %v6150, %v6262
    %6264 = vmatprep.mubr.bf16.mxu0 %v3759
    %6265 = vmatmul.mubr.bf16.gmra.mrb[0].mxu0 %v3758
    %v6266 = vpop.f32.mrb[0].mxu0
    %v6267 = vadd.f32 %v6154, %v6266
    %v6268 = vpop.f32.mrb[0].mxu0
    %v6269 = vadd.f32 %v6156, %v6268
    %v6270 = vpop.f32.mrb[0].mxu0
    %v6271 = vadd.f32 %v6158, %v6270
    %v6272 = vpop.f32.mrb[0].mxu0
    %v6273 = vadd.f32 %v6160, %v6272
    %6274 = vmatprep.mubr.bf16.mxu0 %v3777
    %6275 = vmatmul.mubr.bf16.gmra.mrb[0].mxu0 %v3776
    %v6276 = vpop.f32.mrb[0].mxu0
    %v6277 = vadd.f32 %v6164, %v6276
    %v6278 = vpop.f32.mrb[0].mxu0
    %v6279 = vadd.f32 %v6166, %v6278
    %v6280 = vpop.f32.mrb[0].mxu0
    %v6281 = vadd.f32 %v6168, %v6280
    %v6282 = vpop.f32.mrb[0].mxu0
    %v6283 = vadd.f32 %v6170, %v6282
    %6284 = vmatprep.mubr.bf16.mxu0 %v3795
    %6285 = vmatmul.mubr.bf16.gmra.mrb[0].mxu0 %v3794
    %v6286 = vpop.f32.mrb[0].mxu0
    %v6287 = vadd.f32 %v6174, %v6286
    %v6288 = vpop.f32.mrb[0].mxu0
    %v6289 = vadd.f32 %v6176, %v6288
    %v6290 = vpop.f32.mrb[0].mxu0
    %v6291 = vadd.f32 %v6178, %v6290
    %v6292 = vpop.f32.mrb[0].mxu0
    %v6293 = vadd.f32 %v6180, %v6292
    %6294 = vdwg.mxu0
    %6295 = vmatprep.subr.bf16.mxu0 %v4313
    %6296 = vmatpush1.bf16.msra.mxu0 %v4312
    %6297 = vmatprep.subr.bf16.mxu0 %v4317
    %6298 = vmatpush1.bf16.msra.mxu0 %v4316
    %6299 = vmatprep.subr.bf16.mxu0 %v4321
    %6300 = vmatpush1.bf16.msra.mxu0 %v4320
    %6301 = vmatprep.subr.bf16.mxu0 %v4325
    %6302 = vmatpush1.bf16.msra.mxu0 %v4324
    %6303 = vmatprep.subr.bf16.mxu0 %v4329
    %6304 = vmatpush1.bf16.msra.mxu0 %v4328
    %6305 = vmatprep.subr.bf16.mxu0 %v4333
    %6306 = vmatpush1.bf16.msra.mxu0 %v4332
    %6307 = vmatprep.subr.bf16.mxu0 %v4337
    %6308 = vmatpush1.bf16.msra.mxu0 %v4336
    %6309 = vmatprep.subr.bf16.mxu0 %v4341
    %6310 = vmatpush1.bf16.msra.mxu0 %v4340
    %6311 = vmatprep.subr.bf16.mxu0 %v4345
    %6312 = vmatpush1.bf16.msra.mxu0 %v4344
    %6313 = vmatprep.subr.bf16.mxu0 %v4349
    %6314 = vmatpush1.bf16.msra.mxu0 %v4348
    %6315 = vmatprep.subr.bf16.mxu0 %v4353
    %6316 = vmatpush1.bf16.msra.mxu0 %v4352
    %6317 = vmatprep.subr.bf16.mxu0 %v4357
    %6318 = vmatpush1.bf16.msra.mxu0 %v4356
    %6319 = vmatprep.subr.bf16.mxu0 %v4361
    %6320 = vmatpush1.bf16.msra.mxu0 %v4360
    %6321 = vmatprep.subr.bf16.mxu0 %v4365
    %6322 = vmatpush1.bf16.msra.mxu0 %v4364
    %6323 = vmatprep.subr.bf16.mxu0 %v4369
    %6324 = vmatpush1.bf16.msra.mxu0 %v4368
    %6325 = vmatprep.subr.bf16.mxu0 %v4373
    %6326 = vmatpush1.bf16.msra.mxu0 %v4372
    %6327 = vmatprep.mubr.bf16.mxu0 %v3671
    %6328 = vmatmul.mubr.bf16.gmra.mrb[0].mxu0 %v3670
    %v6329 = vpop.f32.mrb[0].mxu0
    %v6330 = vadd.f32 %v6217, %v6329
    %v6331 = vpop.f32.mrb[0].mxu0
    %v6332 = vadd.f32 %v6219, %v6331
    %v6333 = vpop.f32.mrb[0].mxu0
    %v6334 = vadd.f32 %v6221, %v6333
    %v6335 = vpop.f32.mrb[0].mxu0
    %v6336 = vadd.f32 %v6223, %v6335
    %6337 = vmatprep.mubr.bf16.mxu0 %v3689
    %6338 = vmatmul.mubr.bf16.gmra.mrb[0].mxu0 %v3688
    %v6339 = vpop.f32.mrb[0].mxu0
    %v6340 = vadd.f32 %v6227, %v6339
    %v6341 = vpop.f32.mrb[0].mxu0
    %v6342 = vadd.f32 %v6229, %v6341
    %v6343 = vpop.f32.mrb[0].mxu0
    %v6344 = vadd.f32 %v6231, %v6343
    %v6345 = vpop.f32.mrb[0].mxu0
    %v6346 = vadd.f32 %v6233, %v6345
    %6347 = vmatprep.mubr.bf16.mxu0 %v3707
    %6348 = vmatmul.mubr.bf16.gmra.mrb[0].mxu0 %v3706
    %v6349 = vpop.f32.mrb[0].mxu0
    %v6350 = vadd.f32 %v6237, %v6349
    %v6351 = vpop.f32.mrb[0].mxu0
    %v6352 = vadd.f32 %v6239, %v6351
    %v6353 = vpop.f32.mrb[0].mxu0
    %v6354 = vadd.f32 %v6241, %v6353
    %v6355 = vpop.f32.mrb[0].mxu0
    %v6356 = vadd.f32 %v6243, %v6355
    %6357 = vmatprep.mubr.bf16.mxu0 %v3725
    %6358 = vmatmul.mubr.bf16.gmra.mrb[0].mxu0 %v3724
    %v6359 = vpop.f32.mrb[0].mxu0
    %v6360 = vadd.f32 %v6247, %v6359
    %v6361 = vpop.f32.mrb[0].mxu0
    %v6362 = vadd.f32 %v6249, %v6361
    %v6363 = vpop.f32.mrb[0].mxu0
    %v6364 = vadd.f32 %v6251, %v6363
    %v6365 = vpop.f32.mrb[0].mxu0
    %v6366 = vadd.f32 %v6253, %v6365
    %6367 = vmatprep.mubr.bf16.mxu0 %v3743
    %6368 = vmatmul.mubr.bf16.gmra.mrb[0].mxu0 %v3742
    %v6369 = vpop.f32.mrb[0].mxu0
    %v6370 = vadd.f32 %v6257, %v6369
    %v6371 = vpop.f32.mrb[0].mxu0
    %v6372 = vadd.f32 %v6259, %v6371
    %v6373 = vpop.f32.mrb[0].mxu0
    %v6374 = vadd.f32 %v6261, %v6373
    %v6375 = vpop.f32.mrb[0].mxu0
    %v6376 = vadd.f32 %v6263, %v6375
    %6377 = vmatprep.mubr.bf16.mxu0 %v3761
    %6378 = vmatmul.mubr.bf16.gmra.mrb[0].mxu0 %v3760
    %v6379 = vpop.f32.mrb[0].mxu0
    %v6380 = vadd.f32 %v6267, %v6379
    %v6381 = vpop.f32.mrb[0].mxu0
    %v6382 = vadd.f32 %v6269, %v6381
    %v6383 = vpop.f32.mrb[0].mxu0
    %v6384 = vadd.f32 %v6271, %v6383
    %v6385 = vpop.f32.mrb[0].mxu0
    %v6386 = vadd.f32 %v6273, %v6385
    %6387 = vmatprep.mubr.bf16.mxu0 %v3779
    %6388 = vmatmul.mubr.bf16.gmra.mrb[0].mxu0 %v3778
    %v6389 = vpop.f32.mrb[0].mxu0
    %v6390 = vadd.f32 %v6277, %v6389
    %v6391 = vpop.f32.mrb[0].mxu0
    %v6392 = vadd.f32 %v6279, %v6391
    %v6393 = vpop.f32.mrb[0].mxu0
    %v6394 = vadd.f32 %v6281, %v6393
    %v6395 = vpop.f32.mrb[0].mxu0
    %v6396 = vadd.f32 %v6283, %v6395
    %6397 = vmatprep.mubr.bf16.mxu0 %v3797
    %6398 = vmatmul.mubr.bf16.gmra.mrb[0].mxu0 %v3796
    %v6399 = vpop.f32.mrb[0].mxu0
    %v6400 = vadd.f32 %v6287, %v6399
    %v6401 = vpop.f32.mrb[0].mxu0
    %v6402 = vadd.f32 %v6289, %v6401
    %v6403 = vpop.f32.mrb[0].mxu0
    %v6404 = vadd.f32 %v6291, %v6403
    %v6405 = vpop.f32.mrb[0].mxu0
    %v6406 = vadd.f32 %v6293, %v6405
    %6407 = vdwg.mxu0
    %v6408 = vld [vmem:[#allocation14] sm:$0xf]
    %v6409 = vld [vmem:[#allocation15] sm:$0xf]
    %v6410 = vadd.f32 %v5313, %v5317
    %v6411 = vadd.f32 %v6410, %v5323
    %v6412 = vadd.f32 %v6411, %v5327
    %v6413 = vadd.f32 %v6412, %v5333
    %v6414 = vadd.f32 %v6413, %v5337
    %v6415 = vadd.f32 %v6414, %v5343
    %v6416 = vadd.f32 %v6415, %v5347
    %v6417 = vadd.f32 %v6416, %v5353
    %v6418 = vadd.f32 %v6417, %v5357
    %v6419 = vadd.f32 %v6418, %v5363
    %v6420 = vadd.f32 %v6419, %v5367
    %v6421 = vadd.f32 %v6420, %v5373
    %v6422 = vadd.f32 %v6421, %v5377
    %v6423 = vadd.f32 %v6422, %v5383
    %v6424 = vadd.f32 %v6423, %v5387
    %v6425 = vrot.slane %v6424, 4
    %v6426 = vadd.f32 %v6424, %v6425
    %v6427 = vrot.slane %v6426, 2
    %v6428 = vadd.f32 %v6426, %v6427
    %v6429 = vrot.slane %v6428, 1
    %v6430 = vadd.f32 %v6428, %v6429
    %v6431 = vadd.f32 %v5315, %v5319
    %v6432 = vadd.f32 %v6431, %v5325
    %v6433 = vadd.f32 %v6432, %v5329
    %v6434 = vadd.f32 %v6433, %v5335
    %v6435 = vadd.f32 %v6434, %v5339
    %v6436 = vadd.f32 %v6435, %v5345
    %v6437 = vadd.f32 %v6436, %v5349
    %v6438 = vadd.f32 %v6437, %v5355
    %v6439 = vadd.f32 %v6438, %v5359
    %v6440 = vadd.f32 %v6439, %v5365
    %v6441 = vadd.f32 %v6440, %v5369
    %v6442 = vadd.f32 %v6441, %v5375
    %v6443 = vadd.f32 %v6442, %v5379
    %v6444 = vadd.f32 %v6443, %v5385
    %v6445 = vadd.f32 %v6444, %v5389
    %v6446 = vrot.slane %v6445, 4
    %v6447 = vadd.f32 %v6445, %v6446
    %v6448 = vrot.slane %v6447, 2
    %v6449 = vadd.f32 %v6447, %v6448
    %v6450 = vrot.slane %v6449, 1
    %v6451 = vadd.f32 %v6449, %v6450
    %v6452 = vadd.f32 %v6330, %v6334
    %v6453 = vadd.f32 %v6452, %v6340
    %v6454 = vadd.f32 %v6453, %v6344
    %v6455 = vadd.f32 %v6454, %v6350
    %v6456 = vadd.f32 %v6455, %v6354
    %v6457 = vadd.f32 %v6456, %v6360
    %v6458 = vadd.f32 %v6457, %v6364
    %v6459 = vadd.f32 %v6458, %v6370
    %v6460 = vadd.f32 %v6459, %v6374
    %v6461 = vadd.f32 %v6460, %v6380
    %v6462 = vadd.f32 %v6461, %v6384
    %v6463 = vadd.f32 %v6462, %v6390
    %v6464 = vadd.f32 %v6463, %v6394
    %v6465 = vadd.f32 %v6464, %v6400
    %v6466 = vadd.f32 %v6465, %v6404
    %v6467 = vrot.slane %v6466, 4
    %v6468 = vadd.f32 %v6466, %v6467
    %v6469 = vrot.slane %v6468, 2
    %v6470 = vadd.f32 %v6468, %v6469
    %v6471 = vrot.slane %v6470, 1
    %v6472 = vadd.f32 %v6470, %v6471
    %v6473 = vadd.f32 %v6332, %v6336
    %v6474 = vadd.f32 %v6473, %v6342
    %v6475 = vadd.f32 %v6474, %v6346
    %v6476 = vadd.f32 %v6475, %v6352
    %v6477 = vadd.f32 %v6476, %v6356
    %v6478 = vadd.f32 %v6477, %v6362
    %v6479 = vadd.f32 %v6478, %v6366
    %v6480 = vadd.f32 %v6479, %v6372
    %v6481 = vadd.f32 %v6480, %v6376
    %v6482 = vadd.f32 %v6481, %v6382
    %v6483 = vadd.f32 %v6482, %v6386
    %v6484 = vadd.f32 %v6483, %v6392
    %v6485 = vadd.f32 %v6484, %v6396
    %v6486 = vadd.f32 %v6485, %v6402
    %v6487 = vadd.f32 %v6486, %v6406
    %v6488 = vrot.slane %v6487, 4
    %v6489 = vadd.f32 %v6487, %v6488
    %v6490 = vrot.slane %v6489, 2
    %v6491 = vadd.f32 %v6489, %v6490
    %v6492 = vrot.slane %v6491, 1
    %v6493 = vadd.f32 %v6491, %v6492
    %v6494 = vmul.f32 %v5313, %v5313
    %v6495 = vmul.f32 %v5315, %v5315
    %v6496 = vmul.f32 %v6330, %v6330
    %v6497 = vmul.f32 %v6332, %v6332
    %v6498 = vmul.f32 %v5317, %v5317
    %v6499 = vmul.f32 %v5319, %v5319
    %v6500 = vmul.f32 %v6334, %v6334
    %v6501 = vmul.f32 %v6336, %v6336
    %v6502 = vmul.f32 %v5323, %v5323
    %v6503 = vmul.f32 %v5325, %v5325
    %v6504 = vmul.f32 %v6340, %v6340
    %v6505 = vmul.f32 %v6342, %v6342
    %v6506 = vmul.f32 %v5327, %v5327
    %v6507 = vmul.f32 %v5329, %v5329
    %v6508 = vmul.f32 %v6344, %v6344
    %v6509 = vmul.f32 %v6346, %v6346
    %v6510 = vmul.f32 %v5333, %v5333
    %v6511 = vmul.f32 %v5335, %v5335
    %v6512 = vmul.f32 %v6350, %v6350
    %v6513 = vmul.f32 %v6352, %v6352
    %v6514 = vmul.f32 %v5337, %v5337
    %v6515 = vmul.f32 %v5339, %v5339
    %v6516 = vmul.f32 %v6354, %v6354
    %v6517 = vmul.f32 %v6356, %v6356
    %v6518 = vmul.f32 %v5343, %v5343
    %v6519 = vmul.f32 %v5345, %v5345
    %v6520 = vmul.f32 %v6360, %v6360
    %v6521 = vmul.f32 %v6362, %v6362
    %v6522 = vmul.f32 %v5347, %v5347
    %v6523 = vmul.f32 %v5349, %v5349
    %v6524 = vmul.f32 %v6364, %v6364
    %v6525 = vmul.f32 %v6366, %v6366
    %v6526 = vmul.f32 %v5353, %v5353
    %v6527 = vmul.f32 %v5355, %v5355
    %v6528 = vmul.f32 %v6370, %v6370
    %v6529 = vmul.f32 %v6372, %v6372
    %v6530 = vmul.f32 %v5357, %v5357
    %v6531 = vmul.f32 %v5359, %v5359
    %v6532 = vmul.f32 %v6374, %v6374
    %v6533 = vmul.f32 %v6376, %v6376
    %v6534 = vmul.f32 %v5363, %v5363
    %v6535 = vmul.f32 %v5365, %v5365
    %v6536 = vmul.f32 %v6380, %v6380
    %v6537 = vmul.f32 %v6382, %v6382
    %v6538 = vmul.f32 %v5367, %v5367
    %v6539 = vmul.f32 %v5369, %v5369
    %v6540 = vmul.f32 %v6384, %v6384
    %v6541 = vmul.f32 %v6386, %v6386
    %v6542 = vmul.f32 %v5373, %v5373
    %v6543 = vmul.f32 %v5375, %v5375
    %v6544 = vmul.f32 %v6390, %v6390
    %v6545 = vmul.f32 %v6392, %v6392
    %v6546 = vmul.f32 %v5377, %v5377
    %v6547 = vmul.f32 %v5379, %v5379
    %v6548 = vmul.f32 %v6394, %v6394
    %v6549 = vmul.f32 %v6396, %v6396
    %v6550 = vmul.f32 %v5383, %v5383
    %v6551 = vmul.f32 %v5385, %v5385
    %v6552 = vmul.f32 %v6400, %v6400
    %v6553 = vmul.f32 %v6402, %v6402
    %v6554 = vmul.f32 %v5387, %v5387
    %v6555 = vmul.f32 %v5389, %v5389
    %v6556 = vmul.f32 %v6404, %v6404
    %v6557 = vmul.f32 %v6406, %v6406
    %v6558 = vadd.f32 %v6494, %v6498
    %v6559 = vadd.f32 %v6558, %v6502
    %v6560 = vadd.f32 %v6559, %v6506
    %v6561 = vadd.f32 %v6560, %v6510
    %v6562 = vadd.f32 %v6561, %v6514
    %v6563 = vadd.f32 %v6562, %v6518
    %v6564 = vadd.f32 %v6563, %v6522
    %v6565 = vadd.f32 %v6564, %v6526
    %v6566 = vadd.f32 %v6565, %v6530
    %v6567 = vadd.f32 %v6566, %v6534
    %v6568 = vadd.f32 %v6567, %v6538
    %v6569 = vadd.f32 %v6568, %v6542
    %v6570 = vadd.f32 %v6569, %v6546
    %v6571 = vadd.f32 %v6570, %v6550
    %v6572 = vadd.f32 %v6571, %v6554
    %v6573 = vrot.slane %v6572, 4
    %v6574 = vadd.f32 %v6572, %v6573
    %v6575 = vrot.slane %v6574, 2
    %v6576 = vadd.f32 %v6574, %v6575
    %v6577 = vrot.slane %v6576, 1
    %v6578 = vadd.f32 %v6576, %v6577
    %v6579 = vadd.f32 %v6495, %v6499
    %v6580 = vadd.f32 %v6579, %v6503
    %v6581 = vadd.f32 %v6580, %v6507
    %v6582 = vadd.f32 %v6581, %v6511
    %v6583 = vadd.f32 %v6582, %v6515
    %v6584 = vadd.f32 %v6583, %v6519
    %v6585 = vadd.f32 %v6584, %v6523
    %v6586 = vadd.f32 %v6585, %v6527
    %v6587 = vadd.f32 %v6586, %v6531
    %v6588 = vadd.f32 %v6587, %v6535
    %v6589 = vadd.f32 %v6588, %v6539
    %v6590 = vadd.f32 %v6589, %v6543
    %v6591 = vadd.f32 %v6590, %v6547
    %v6592 = vadd.f32 %v6591, %v6551
    %v6593 = vadd.f32 %v6592, %v6555
    %v6594 = vrot.slane %v6593, 4
    %v6595 = vadd.f32 %v6593, %v6594
    %v6596 = vrot.slane %v6595, 2
    %v6597 = vadd.f32 %v6595, %v6596
    %v6598 = vrot.slane %v6597, 1
    %v6599 = vadd.f32 %v6597, %v6598
    %v6600 = vadd.f32 %v6496, %v6500
    %v6601 = vadd.f32 %v6600, %v6504
    %v6602 = vadd.f32 %v6601, %v6508
    %v6603 = vadd.f32 %v6602, %v6512
    %v6604 = vadd.f32 %v6603, %v6516
    %v6605 = vadd.f32 %v6604, %v6520
    %v6606 = vadd.f32 %v6605, %v6524
    %v6607 = vadd.f32 %v6606, %v6528
    %v6608 = vadd.f32 %v6607, %v6532
    %v6609 = vadd.f32 %v6608, %v6536
    %v6610 = vadd.f32 %v6609, %v6540
    %v6611 = vadd.f32 %v6610, %v6544
    %v6612 = vadd.f32 %v6611, %v6548
    %v6613 = vadd.f32 %v6612, %v6552
    %v6614 = vadd.f32 %v6613, %v6556
    %v6615 = vrot.slane %v6614, 4
    %v6616 = vadd.f32 %v6614, %v6615
    %v6617 = vrot.slane %v6616, 2
    %v6618 = vadd.f32 %v6616, %v6617
    %v6619 = vrot.slane %v6618, 1
    %v6620 = vadd.f32 %v6618, %v6619
    %v6621 = vadd.f32 %v6497, %v6501
    %v6622 = vadd.f32 %v6621, %v6505
    %v6623 = vadd.f32 %v6622, %v6509
    %v6624 = vadd.f32 %v6623, %v6513
    %v6625 = vadd.f32 %v6624, %v6517
    %v6626 = vadd.f32 %v6625, %v6521
    %v6627 = vadd.f32 %v6626, %v6525
    %v6628 = vadd.f32 %v6627, %v6529
    %v6629 = vadd.f32 %v6628, %v6533
    %v6630 = vadd.f32 %v6629, %v6537
    %v6631 = vadd.f32 %v6630, %v6541
    %v6632 = vadd.f32 %v6631, %v6545
    %v6633 = vadd.f32 %v6632, %v6549
    %v6634 = vadd.f32 %v6633, %v6553
    %v6635 = vadd.f32 %v6634, %v6557
    %v6636 = vrot.slane %v6635, 4
    %v6637 = vadd.f32 %v6635, %v6636
    %v6638 = vrot.slane %v6637, 2
    %v6639 = vadd.f32 %v6637, %v6638
    %v6640 = vrot.slane %v6639, 1
    %v6641 = vadd.f32 %v6639, %v6640
    %v6642 = vmul.f32 %v6430, 0.0078125
    %v6643 = vmul.f32 %v6451, 0.0078125
    %v6644 = vmul.f32 %v6472, 0.0078125
    %v6645 = vmul.f32 %v6493, 0.0078125
    %v6646 = vmul.f32 %v6578, 0.0078125
    %v6647 = vmul.f32 %v6599, 0.0078125
    %v6648 = vmul.f32 %v6620, 0.0078125
    %v6649 = vmul.f32 %v6641, 0.0078125
    %v6650 = vmul.f32 %v6642, %v6642
    %v6651 = vmul.f32 %v6643, %v6643
    %v6652 = vmul.f32 %v6644, %v6644
    %v6653 = vmul.f32 %v6645, %v6645
    %v6654 = vsub.f32 %v6646, %v6650
    %v6655 = vsub.f32 %v6647, %v6651
    %v6656 = vsub.f32 %v6648, %v6652
    %v6657 = vsub.f32 %v6649, %v6653
    %v6658 = vadd.f32 %v6654, 1e-05
    %v6659 = vadd.f32 %v6655, 1e-05
    %v6660 = vadd.f32 %v6656, 1e-05
    %v6661 = vadd.f32 %v6657, 1e-05
    %v6662 = vrsqrt.pop %v6658
    %v6663 = vrsqrt.pop %v6659
    %v6664 = vrsqrt.pop %v6660
    %v6665 = vrsqrt.pop %v6661
    %v6667 = vlaneseq
    %v6668 = vshrl.u32 %v6667, 7
    %v6669 = vsub.s32 0, %v6668
    %v6670 = vrot.slane %v6408, %v6669
    %v6671 = vlaneseq
    %v6672 = vshrl.u32 %v6671, 7
    %v6673 = vsub.s32 1, %v6672
    %v6674 = vrot.slane %v6408, %v6673
    %v6675 = vlaneseq
    %v6676 = vshrl.u32 %v6675, 7
    %v6677 = vsub.s32 2, %v6676
    %v6678 = vrot.slane %v6408, %v6677
    %v6679 = vlaneseq
    %v6680 = vshrl.u32 %v6679, 7
    %v6681 = vsub.s32 3, %v6680
    %v6682 = vrot.slane %v6408, %v6681
    %v6687 = vmul.f32 %v6662, %v6670
    %v6688 = vmul.f32 %v6663, %v6674
    %v6689 = vmul.f32 %v6664, %v6678
    %v6690 = vmul.f32 %v6665, %v6682
    %v6691 = vmul.f32 %v6642, %v6687
    %v6692 = vmul.f32 %v6643, %v6688
    %v6693 = vmul.f32 %v6644, %v6689
    %v6694 = vmul.f32 %v6645, %v6690
    %v6699 = vcombine.low %v6691, %v6692
    %v6700 = vcombine.low %v6693, %v6694
    %v6702 = vunpack.c.l.s4 1966171168
    %v6703 = vunpack.c.0.s8 %v6702
    %v6704 = vlaneseq
    %v6705 = vshrl.u32 %v6704, 7
    %v6706 = vsub.s32 %v6703, %v6705
    %v6707 = vrot.slane %v6699, %v6706
    %v6709 = vunpack.c.l.s4 1966171168
    %v6710 = vunpack.c.0.s8 %v6709
    %v6711 = vlaneseq
    %v6712 = vshrl.u32 %v6711, 7
    %v6713 = vsub.s32 %v6710, %v6712
    %v6714 = vrot.slane %v6700, %v6713
    %v6715 = vcombine.low %v6707, %v6714
    %v6717 = vunpack.c.l.s4 1966171168
    %v6718 = vunpack.c.0.s8 %v6717
    %v6719 = vlaneseq
    %v6720 = vshrl.u32 %v6719, 7
    %v6721 = vsub.s32 %v6718, %v6720
    %v6722 = vrot.slane %v6715, %v6721
    %v6724 = vsub.f32 %v6409, %v6722
    %v6725 = vlaneseq
    %v6726 = vshrl.u32 %v6725, 7
    %v6727 = vsub.s32 0, %v6726
    %v6728 = vrot.slane %v6687, %v6727
    %v6729 = vlaneseq
    %v6730 = vshrl.u32 %v6729, 7
    %v6731 = vsub.s32 0, %v6730
    %v6732 = vrot.slane %v6688, %v6731
    %v6733 = vlaneseq
    %v6734 = vshrl.u32 %v6733, 7
    %v6735 = vsub.s32 0, %v6734
    %v6736 = vrot.slane %v6689, %v6735
    %v6737 = vlaneseq
    %v6738 = vshrl.u32 %v6737, 7
    %v6739 = vsub.s32 0, %v6738
    %v6740 = vrot.slane %v6690, %v6739
    %v6741 = vmul.f32 %v5313, %v6728
    %v6742 = vmul.f32 %v5315, %v6732
    %v6743 = vmul.f32 %v6330, %v6736
    %v6744 = vmul.f32 %v6332, %v6740
    %v6745 = vmul.f32 %v5317, %v6728
    %v6746 = vmul.f32 %v5319, %v6732
    %v6747 = vmul.f32 %v6334, %v6736
    %v6748 = vmul.f32 %v6336, %v6740
    %v6749 = vmul.f32 %v5323, %v6728
    %v6750 = vmul.f32 %v5325, %v6732
    %v6751 = vmul.f32 %v6340, %v6736
    %v6752 = vmul.f32 %v6342, %v6740
    %v6753 = vmul.f32 %v5327, %v6728
    %v6754 = vmul.f32 %v5329, %v6732
    %v6755 = vmul.f32 %v6344, %v6736
    %v6756 = vmul.f32 %v6346, %v6740
    %v6757 = vmul.f32 %v5333, %v6728
    %v6758 = vmul.f32 %v5335, %v6732
    %v6759 = vmul.f32 %v6350, %v6736
    %v6760 = vmul.f32 %v6352, %v6740
    %v6761 = vmul.f32 %v5337, %v6728
    %v6762 = vmul.f32 %v5339, %v6732
    %v6763 = vmul.f32 %v6354, %v6736
    %v6764 = vmul.f32 %v6356, %v6740
    %v6765 = vmul.f32 %v5343, %v6728
    %v6766 = vmul.f32 %v5345, %v6732
    %v6767 = vmul.f32 %v6360, %v6736
    %v6768 = vmul.f32 %v6362, %v6740
    %v6769 = vmul.f32 %v5347, %v6728
    %v6770 = vmul.f32 %v5349, %v6732
    %v6771 = vmul.f32 %v6364, %v6736
    %v6772 = vmul.f32 %v6366, %v6740
    %v6773 = vmul.f32 %v5353, %v6728
    %v6774 = vmul.f32 %v5355, %v6732
    %v6775 = vmul.f32 %v6370, %v6736
    %v6776 = vmul.f32 %v6372, %v6740
    %v6777 = vmul.f32 %v5357, %v6728
    %v6778 = vmul.f32 %v5359, %v6732
    %v6779 = vmul.f32 %v6374, %v6736
    %v6780 = vmul.f32 %v6376, %v6740
    %v6781 = vmul.f32 %v5363, %v6728
    %v6782 = vmul.f32 %v5365, %v6732
    %v6783 = vmul.f32 %v6380, %v6736
    %v6784 = vmul.f32 %v6382, %v6740
    %v6785 = vmul.f32 %v5367, %v6728
    %v6786 = vmul.f32 %v5369, %v6732
    %v6787 = vmul.f32 %v6384, %v6736
    %v6788 = vmul.f32 %v6386, %v6740
    %v6789 = vmul.f32 %v5373, %v6728
    %v6790 = vmul.f32 %v5375, %v6732
    %v6791 = vmul.f32 %v6390, %v6736
    %v6792 = vmul.f32 %v6392, %v6740
    %v6793 = vmul.f32 %v5377, %v6728
    %v6794 = vmul.f32 %v5379, %v6732
    %v6795 = vmul.f32 %v6394, %v6736
    %v6796 = vmul.f32 %v6396, %v6740
    %v6797 = vmul.f32 %v5383, %v6728
    %v6798 = vmul.f32 %v5385, %v6732
    %v6799 = vmul.f32 %v6400, %v6736
    %v6800 = vmul.f32 %v6402, %v6740
    %v6801 = vmul.f32 %v5387, %v6728
    %v6802 = vmul.f32 %v5389, %v6732
    %v6803 = vmul.f32 %v6404, %v6736
    %v6804 = vmul.f32 %v6406, %v6740
    %v6806 = vlaneseq
    %v6807 = vshrl.u32 %v6806, 7
    %v6808 = vsub.s32 0, %v6807
    %v6809 = vrot.slane %v6724, %v6808
    %v6810 = vlaneseq
    %v6811 = vshrl.u32 %v6810, 7
    %v6812 = vsub.s32 1, %v6811
    %v6813 = vrot.slane %v6724, %v6812
    %v6814 = vlaneseq
    %v6815 = vshrl.u32 %v6814, 7
    %v6816 = vsub.s32 2, %v6815
    %v6817 = vrot.slane %v6724, %v6816
    %v6818 = vlaneseq
    %v6819 = vshrl.u32 %v6818, 7
    %v6820 = vsub.s32 3, %v6819
    %v6821 = vrot.slane %v6724, %v6820
    %v6826 = vadd.f32 %v6741, %v6809
    %v6827 = vadd.f32 %v6742, %v6813
    %v6828 = vadd.f32 %v6743, %v6817
    %v6829 = vadd.f32 %v6744, %v6821
    %v6830 = vadd.f32 %v6745, %v6809
    %v6831 = vadd.f32 %v6746, %v6813
    %v6832 = vadd.f32 %v6747, %v6817
    %v6833 = vadd.f32 %v6748, %v6821
    %v6834 = vadd.f32 %v6749, %v6809
    %v6835 = vadd.f32 %v6750, %v6813
    %v6836 = vadd.f32 %v6751, %v6817
    %v6837 = vadd.f32 %v6752, %v6821
    %v6838 = vadd.f32 %v6753, %v6809
    %v6839 = vadd.f32 %v6754, %v6813
    %v6840 = vadd.f32 %v6755, %v6817
    %v6841 = vadd.f32 %v6756, %v6821
    %v6842 = vadd.f32 %v6757, %v6809
    %v6843 = vadd.f32 %v6758, %v6813
    %v6844 = vadd.f32 %v6759, %v6817
    %v6845 = vadd.f32 %v6760, %v6821
    %v6846 = vadd.f32 %v6761, %v6809
    %v6847 = vadd.f32 %v6762, %v6813
    %v6848 = vadd.f32 %v6763, %v6817
    %v6849 = vadd.f32 %v6764, %v6821
    %v6850 = vadd.f32 %v6765, %v6809
    %v6851 = vadd.f32 %v6766, %v6813
    %v6852 = vadd.f32 %v6767, %v6817
    %v6853 = vadd.f32 %v6768, %v6821
    %v6854 = vadd.f32 %v6769, %v6809
    %v6855 = vadd.f32 %v6770, %v6813
    %v6856 = vadd.f32 %v6771, %v6817
    %v6857 = vadd.f32 %v6772, %v6821
    %v6858 = vadd.f32 %v6773, %v6809
    %v6859 = vadd.f32 %v6774, %v6813
    %v6860 = vadd.f32 %v6775, %v6817
    %v6861 = vadd.f32 %v6776, %v6821
    %v6862 = vadd.f32 %v6777, %v6809
    %v6863 = vadd.f32 %v6778, %v6813
    %v6864 = vadd.f32 %v6779, %v6817
    %v6865 = vadd.f32 %v6780, %v6821
    %v6866 = vadd.f32 %v6781, %v6809
    %v6867 = vadd.f32 %v6782, %v6813
    %v6868 = vadd.f32 %v6783, %v6817
    %v6869 = vadd.f32 %v6784, %v6821
    %v6870 = vadd.f32 %v6785, %v6809
    %v6871 = vadd.f32 %v6786, %v6813
    %v6872 = vadd.f32 %v6787, %v6817
    %v6873 = vadd.f32 %v6788, %v6821
    %v6874 = vadd.f32 %v6789, %v6809
    %v6875 = vadd.f32 %v6790, %v6813
    %v6876 = vadd.f32 %v6791, %v6817
    %v6877 = vadd.f32 %v6792, %v6821
    %v6878 = vadd.f32 %v6793, %v6809
    %v6879 = vadd.f32 %v6794, %v6813
    %v6880 = vadd.f32 %v6795, %v6817
    %v6881 = vadd.f32 %v6796, %v6821
    %v6882 = vadd.f32 %v6797, %v6809
    %v6883 = vadd.f32 %v6798, %v6813
    %v6884 = vadd.f32 %v6799, %v6817
    %v6885 = vadd.f32 %v6800, %v6821
    %v6886 = vadd.f32 %v6801, %v6809
    %v6887 = vadd.f32 %v6802, %v6813
    %v6888 = vadd.f32 %v6803, %v6817
    %v6889 = vadd.f32 %v6804, %v6821
    %vm6890 = vcmp.gt.f32.partialorder %v6826, 0.0
    %vm6891 = vcmp.gt.f32.partialorder %v6827, 0.0
    %vm6892 = vcmp.gt.f32.partialorder %v6828, 0.0
    %vm6893 = vcmp.gt.f32.partialorder %v6829, 0.0
    %vm6894 = vcmp.gt.f32.partialorder %v6830, 0.0
    %vm6895 = vcmp.gt.f32.partialorder %v6831, 0.0
    %vm6896 = vcmp.gt.f32.partialorder %v6832, 0.0
    %vm6897 = vcmp.gt.f32.partialorder %v6833, 0.0
    %vm6898 = vcmp.gt.f32.partialorder %v6834, 0.0
    %vm6899 = vcmp.gt.f32.partialorder %v6835, 0.0
    %vm6900 = vcmp.gt.f32.partialorder %v6836, 0.0
    %vm6901 = vcmp.gt.f32.partialorder %v6837, 0.0
    %vm6902 = vcmp.gt.f32.partialorder %v6838, 0.0
    %vm6903 = vcmp.gt.f32.partialorder %v6839, 0.0
    %vm6904 = vcmp.gt.f32.partialorder %v6840, 0.0
    %vm6905 = vcmp.gt.f32.partialorder %v6841, 0.0
    %vm6906 = vcmp.gt.f32.partialorder %v6842, 0.0
    %vm6907 = vcmp.gt.f32.partialorder %v6843, 0.0
    %vm6908 = vcmp.gt.f32.partialorder %v6844, 0.0
    %vm6909 = vcmp.gt.f32.partialorder %v6845, 0.0
    %vm6910 = vcmp.gt.f32.partialorder %v6846, 0.0
    %vm6911 = vcmp.gt.f32.partialorder %v6847, 0.0
    %vm6912 = vcmp.gt.f32.partialorder %v6848, 0.0
    %vm6913 = vcmp.gt.f32.partialorder %v6849, 0.0
    %vm6914 = vcmp.gt.f32.partialorder %v6850, 0.0
    %vm6915 = vcmp.gt.f32.partialorder %v6851, 0.0
    %vm6916 = vcmp.gt.f32.partialorder %v6852, 0.0
    %vm6917 = vcmp.gt.f32.partialorder %v6853, 0.0
    %vm6918 = vcmp.gt.f32.partialorder %v6854, 0.0
    %vm6919 = vcmp.gt.f32.partialorder %v6855, 0.0
    %vm6920 = vcmp.gt.f32.partialorder %v6856, 0.0
    %vm6921 = vcmp.gt.f32.partialorder %v6857, 0.0
    %vm6922 = vcmp.gt.f32.partialorder %v6858, 0.0
    %vm6923 = vcmp.gt.f32.partialorder %v6859, 0.0
    %vm6924 = vcmp.gt.f32.partialorder %v6860, 0.0
    %vm6925 = vcmp.gt.f32.partialorder %v6861, 0.0
    %vm6926 = vcmp.gt.f32.partialorder %v6862, 0.0
    %vm6927 = vcmp.gt.f32.partialorder %v6863, 0.0
    %vm6928 = vcmp.gt.f32.partialorder %v6864, 0.0
    %vm6929 = vcmp.gt.f32.partialorder %v6865, 0.0
    %vm6930 = vcmp.gt.f32.partialorder %v6866, 0.0
    %vm6931 = vcmp.gt.f32.partialorder %v6867, 0.0
    %vm6932 = vcmp.gt.f32.partialorder %v6868, 0.0
    %vm6933 = vcmp.gt.f32.partialorder %v6869, 0.0
    %vm6934 = vcmp.gt.f32.partialorder %v6870, 0.0
    %vm6935 = vcmp.gt.f32.partialorder %v6871, 0.0
    %vm6936 = vcmp.gt.f32.partialorder %v6872, 0.0
    %vm6937 = vcmp.gt.f32.partialorder %v6873, 0.0
    %vm6938 = vcmp.gt.f32.partialorder %v6874, 0.0
    %vm6939 = vcmp.gt.f32.partialorder %v6875, 0.0
    %vm6940 = vcmp.gt.f32.partialorder %v6876, 0.0
    %vm6941 = vcmp.gt.f32.partialorder %v6877, 0.0
    %vm6942 = vcmp.gt.f32.partialorder %v6878, 0.0
    %vm6943 = vcmp.gt.f32.partialorder %v6879, 0.0
    %vm6944 = vcmp.gt.f32.partialorder %v6880, 0.0
    %vm6945 = vcmp.gt.f32.partialorder %v6881, 0.0
    %vm6946 = vcmp.gt.f32.partialorder %v6882, 0.0
    %vm6947 = vcmp.gt.f32.partialorder %v6883, 0.0
    %vm6948 = vcmp.gt.f32.partialorder %v6884, 0.0
    %vm6949 = vcmp.gt.f32.partialorder %v6885, 0.0
    %vm6950 = vcmp.gt.f32.partialorder %v6886, 0.0
    %vm6951 = vcmp.gt.f32.partialorder %v6887, 0.0
    %vm6952 = vcmp.gt.f32.partialorder %v6888, 0.0
    %vm6953 = vcmp.gt.f32.partialorder %v6889, 0.0
    %v6954 = vmul.f32 %v6826, 0.1
    %v6955 = vmul.f32 %v6827, 0.1
    %v6956 = vmul.f32 %v6828, 0.1
    %v6957 = vmul.f32 %v6829, 0.1
    %v6958 = vmul.f32 %v6830, 0.1
    %v6959 = vmul.f32 %v6831, 0.1
    %v6960 = vmul.f32 %v6832, 0.1
    %v6961 = vmul.f32 %v6833, 0.1
    %v6962 = vmul.f32 %v6834, 0.1
    %v6963 = vmul.f32 %v6835, 0.1
    %v6964 = vmul.f32 %v6836, 0.1
    %v6965 = vmul.f32 %v6837, 0.1
    %v6966 = vmul.f32 %v6838, 0.1
    %v6967 = vmul.f32 %v6839, 0.1
    %v6968 = vmul.f32 %v6840, 0.1
    %v6969 = vmul.f32 %v6841, 0.1
    %v6970 = vmul.f32 %v6842, 0.1
    %v6971 = vmul.f32 %v6843, 0.1
    %v6972 = vmul.f32 %v6844, 0.1
    %v6973 = vmul.f32 %v6845, 0.1
    %v6974 = vmul.f32 %v6846, 0.1
    %v6975 = vmul.f32 %v6847, 0.1
    %v6976 = vmul.f32 %v6848, 0.1
    %v6977 = vmul.f32 %v6849, 0.1
    %v6978 = vmul.f32 %v6850, 0.1
    %v6979 = vmul.f32 %v6851, 0.1
    %v6980 = vmul.f32 %v6852, 0.1
    %v6981 = vmul.f32 %v6853, 0.1
    %v6982 = vmul.f32 %v6854, 0.1
    %v6983 = vmul.f32 %v6855, 0.1
    %v6984 = vmul.f32 %v6856, 0.1
    %v6985 = vmul.f32 %v6857, 0.1
    %v6986 = vmul.f32 %v6858, 0.1
    %v6987 = vmul.f32 %v6859, 0.1
    %v6988 = vmul.f32 %v6860, 0.1
    %v6989 = vmul.f32 %v6861, 0.1
    %v6990 = vmul.f32 %v6862, 0.1
    %v6991 = vmul.f32 %v6863, 0.1
    %v6992 = vmul.f32 %v6864, 0.1
    %v6993 = vmul.f32 %v6865, 0.1
    %v6994 = vmul.f32 %v6866, 0.1
    %v6995 = vmul.f32 %v6867, 0.1
    %v6996 = vmul.f32 %v6868, 0.1
    %v6997 = vmul.f32 %v6869, 0.1
    %v6998 = vmul.f32 %v6870, 0.1
    %v6999 = vmul.f32 %v6871, 0.1
    %v7000 = vmul.f32 %v6872, 0.1
    %v7001 = vmul.f32 %v6873, 0.1
    %v7002 = vmul.f32 %v6874, 0.1
    %v7003 = vmul.f32 %v6875, 0.1
    %v7004 = vmul.f32 %v6876, 0.1
    %v7005 = vmul.f32 %v6877, 0.1
    %v7006 = vmul.f32 %v6878, 0.1
    %v7007 = vmul.f32 %v6879, 0.1
    %v7008 = vmul.f32 %v6880, 0.1
    %v7009 = vmul.f32 %v6881, 0.1
    %v7010 = vmul.f32 %v6882, 0.1
    %v7011 = vmul.f32 %v6883, 0.1
    %v7012 = vmul.f32 %v6884, 0.1
    %v7013 = vmul.f32 %v6885, 0.1
    %v7014 = vmul.f32 %v6886, 0.1
    %v7015 = vmul.f32 %v6887, 0.1
    %v7016 = vmul.f32 %v6888, 0.1
    %v7017 = vmul.f32 %v6889, 0.1
    %v7018 = vsel %vm6890, %v6826, %v6954
    %v7019 = vsel %vm6891, %v6827, %v6955
    %v7020 = vsel %vm6892, %v6828, %v6956
    %v7021 = vsel %vm6893, %v6829, %v6957
    %v7022 = vsel %vm6894, %v6830, %v6958
    %v7023 = vsel %vm6895, %v6831, %v6959
    %v7024 = vsel %vm6896, %v6832, %v6960
    %v7025 = vsel %vm6897, %v6833, %v6961
    %v7026 = vsel %vm6898, %v6834, %v6962
    %v7027 = vsel %vm6899, %v6835, %v6963
    %v7028 = vsel %vm6900, %v6836, %v6964
    %v7029 = vsel %vm6901, %v6837, %v6965
    %v7030 = vsel %vm6902, %v6838, %v6966
    %v7031 = vsel %vm6903, %v6839, %v6967
    %v7032 = vsel %vm6904, %v6840, %v6968
    %v7033 = vsel %vm6905, %v6841, %v6969
    %v7034 = vsel %vm6906, %v6842, %v6970
    %v7035 = vsel %vm6907, %v6843, %v6971
    %v7036 = vsel %vm6908, %v6844, %v6972
    %v7037 = vsel %vm6909, %v6845, %v6973
    %v7038 = vsel %vm6910, %v6846, %v6974
    %v7039 = vsel %vm6911, %v6847, %v6975
    %v7040 = vsel %vm6912, %v6848, %v6976
    %v7041 = vsel %vm6913, %v6849, %v6977
    %v7042 = vsel %vm6914, %v6850, %v6978
    %v7043 = vsel %vm6915, %v6851, %v6979
    %v7044 = vsel %vm6916, %v6852, %v6980
    %v7045 = vsel %vm6917, %v6853, %v6981
    %v7046 = vsel %vm6918, %v6854, %v6982
    %v7047 = vsel %vm6919, %v6855, %v6983
    %v7048 = vsel %vm6920, %v6856, %v6984
    %v7049 = vsel %vm6921, %v6857, %v6985
    %v7050 = vsel %vm6922, %v6858, %v6986
    %v7051 = vsel %vm6923, %v6859, %v6987
    %v7052 = vsel %vm6924, %v6860, %v6988
    %v7053 = vsel %vm6925, %v6861, %v6989
    %v7054 = vsel %vm6926, %v6862, %v6990
    %v7055 = vsel %vm6927, %v6863, %v6991
    %v7056 = vsel %vm6928, %v6864, %v6992
    %v7057 = vsel %vm6929, %v6865, %v6993
    %v7058 = vsel %vm6930, %v6866, %v6994
    %v7059 = vsel %vm6931, %v6867, %v6995
    %v7060 = vsel %vm6932, %v6868, %v6996
    %v7061 = vsel %vm6933, %v6869, %v6997
    %v7062 = vsel %vm6934, %v6870, %v6998
    %v7063 = vsel %vm6935, %v6871, %v6999
    %v7064 = vsel %vm6936, %v6872, %v7000
    %v7065 = vsel %vm6937, %v6873, %v7001
    %v7066 = vsel %vm6938, %v6874, %v7002
    %v7067 = vsel %vm6939, %v6875, %v7003
    %v7068 = vsel %vm6940, %v6876, %v7004
    %v7069 = vsel %vm6941, %v6877, %v7005
    %v7070 = vsel %vm6942, %v6878, %v7006
    %v7071 = vsel %vm6943, %v6879, %v7007
    %v7072 = vsel %vm6944, %v6880, %v7008
    %v7073 = vsel %vm6945, %v6881, %v7009
    %v7074 = vsel %vm6946, %v6882, %v7010
    %v7075 = vsel %vm6947, %v6883, %v7011
    %v7076 = vsel %vm6948, %v6884, %v7012
    %v7077 = vsel %vm6949, %v6885, %v7013
    %v7078 = vsel %vm6950, %v6886, %v7014
    %v7079 = vsel %vm6951, %v6887, %v7015
    %v7080 = vsel %vm6952, %v6888, %v7016
    %v7081 = vsel %vm6953, %v6889, %v7017
    %v7082 = vld [vmem:[#allocation6] sm:$0xff]
    %v7083 = vld [vmem:[#allocation6 + $0x8] sm:$0xff]
    %v7084 = vld [vmem:[#allocation6 + $0x10] sm:$0xff]
    %v7085 = vld [vmem:[#allocation6 + $0x18] sm:$0xff]
    %v7086 = vld [vmem:[#allocation6 + $0x20] sm:$0xff]
    %v7087 = vld [vmem:[#allocation6 + $0x28] sm:$0xff]
    %v7088 = vld [vmem:[#allocation6 + $0x30] sm:$0xff]
    %v7089 = vld [vmem:[#allocation6 + $0x38] sm:$0xff]
    %v7090 = vld [vmem:[#allocation6 + $0x40] sm:$0xff]
    %v7091 = vld [vmem:[#allocation6 + $0x48] sm:$0xff]
    %v7092 = vld [vmem:[#allocation6 + $0x50] sm:$0xff]
    %v7093 = vld [vmem:[#allocation6 + $0x58] sm:$0xff]
    %v7094 = vld [vmem:[#allocation6 + $0x60] sm:$0xff]
    %v7095 = vld [vmem:[#allocation6 + $0x68] sm:$0xff]
    %v7096 = vld [vmem:[#allocation6 + $0x70] sm:$0xff]
    %v7097 = vld [vmem:[#allocation6 + $0x78] sm:$0xff]
    %v7098 = vld [vmem:[#allocation6 + $0x80] sm:$0xff]
    %v7099 = vld [vmem:[#allocation6 + $0x88] sm:$0xff]
    %v7100 = vld [vmem:[#allocation6 + $0x90] sm:$0xff]
    %v7101 = vld [vmem:[#allocation6 + $0x98] sm:$0xff]
    %v7102 = vld [vmem:[#allocation6 + $0xa0] sm:$0xff]
    %v7103 = vld [vmem:[#allocation6 + $0xa8] sm:$0xff]
    %v7104 = vld [vmem:[#allocation6 + $0xb0] sm:$0xff]
    %v7105 = vld [vmem:[#allocation6 + $0xb8] sm:$0xff]
    %v7106 = vld [vmem:[#allocation6 + $0xc0] sm:$0xff]
    %v7107 = vld [vmem:[#allocation6 + $0xc8] sm:$0xff]
    %v7108 = vld [vmem:[#allocation6 + $0xd0] sm:$0xff]
    %v7109 = vld [vmem:[#allocation6 + $0xd8] sm:$0xff]
    %v7110 = vld [vmem:[#allocation6 + $0xe0] sm:$0xff]
    %v7111 = vld [vmem:[#allocation6 + $0xe8] sm:$0xff]
    %v7112 = vld [vmem:[#allocation6 + $0xf0] sm:$0xff]
    %v7113 = vld [vmem:[#allocation6 + $0xf8] sm:$0xff]
    %v7114 = vld [vmem:[#allocation6 + $0x100] sm:$0xff]
    %v7115 = vld [vmem:[#allocation6 + $0x108] sm:$0xff]
    %v7116 = vld [vmem:[#allocation6 + $0x110] sm:$0xff]
    %v7117 = vld [vmem:[#allocation6 + $0x118] sm:$0xff]
    %v7118 = vld [vmem:[#allocation6 + $0x120] sm:$0xff]
    %v7119 = vld [vmem:[#allocation6 + $0x128] sm:$0xff]
    %v7120 = vld [vmem:[#allocation6 + $0x130] sm:$0xff]
    %v7121 = vld [vmem:[#allocation6 + $0x138] sm:$0xff]
    %v7122 = vld [vmem:[#allocation6 + $0x140] sm:$0xff]
    %v7123 = vld [vmem:[#allocation6 + $0x148] sm:$0xff]
    %v7124 = vld [vmem:[#allocation6 + $0x150] sm:$0xff]
    %v7125 = vld [vmem:[#allocation6 + $0x158] sm:$0xff]
    %v7126 = vld [vmem:[#allocation6 + $0x160] sm:$0xff]
    %v7127 = vld [vmem:[#allocation6 + $0x168] sm:$0xff]
    %v7128 = vld [vmem:[#allocation6 + $0x170] sm:$0xff]
    %v7129 = vld [vmem:[#allocation6 + $0x178] sm:$0xff]
    %v7130 = vld [vmem:[#allocation6 + $0x180] sm:$0xff]
    %v7131 = vld [vmem:[#allocation6 + $0x188] sm:$0xff]
    %v7132 = vld [vmem:[#allocation6 + $0x190] sm:$0xff]
    %v7133 = vld [vmem:[#allocation6 + $0x198] sm:$0xff]
    %v7134 = vld [vmem:[#allocation6 + $0x1a0] sm:$0xff]
    %v7135 = vld [vmem:[#allocation6 + $0x1a8] sm:$0xff]
    %v7136 = vld [vmem:[#allocation6 + $0x1b0] sm:$0xff]
    %v7137 = vld [vmem:[#allocation6 + $0x1b8] sm:$0xff]
    %v7138 = vld [vmem:[#allocation6 + $0x1c0] sm:$0xff]
    %v7139 = vld [vmem:[#allocation6 + $0x1c8] sm:$0xff]
    %v7140 = vld [vmem:[#allocation6 + $0x1d0] sm:$0xff]
    %v7141 = vld [vmem:[#allocation6 + $0x1d8] sm:$0xff]
    %v7142 = vld [vmem:[#allocation6 + $0x1e0] sm:$0xff]
    %v7143 = vld [vmem:[#allocation6 + $0x1e8] sm:$0xff]
    %v7144 = vld [vmem:[#allocation6 + $0x1f0] sm:$0xff]
    %v7145 = vld [vmem:[#allocation6 + $0x1f8] sm:$0xff]
    %v7146 = vadd.f32 %v7082, %v7018
    %v7147 = vadd.f32 %v7083, %v7019
    %v7148 = vadd.f32 %v7084, %v7020
    %v7149 = vadd.f32 %v7085, %v7021
    %v7150 = vadd.f32 %v7086, %v7022
    %v7151 = vadd.f32 %v7087, %v7023
    %v7152 = vadd.f32 %v7088, %v7024
    %v7153 = vadd.f32 %v7089, %v7025
    %v7154 = vadd.f32 %v7090, %v7026
    %v7155 = vadd.f32 %v7091, %v7027
    %v7156 = vadd.f32 %v7092, %v7028
    %v7157 = vadd.f32 %v7093, %v7029
    %v7158 = vadd.f32 %v7094, %v7030
    %v7159 = vadd.f32 %v7095, %v7031
    %v7160 = vadd.f32 %v7096, %v7032
    %v7161 = vadd.f32 %v7097, %v7033
    %v7162 = vadd.f32 %v7098, %v7034
    %v7163 = vadd.f32 %v7099, %v7035
    %v7164 = vadd.f32 %v7100, %v7036
    %v7165 = vadd.f32 %v7101, %v7037
    %v7166 = vadd.f32 %v7102, %v7038
    %v7167 = vadd.f32 %v7103, %v7039
    %v7168 = vadd.f32 %v7104, %v7040
    %v7169 = vadd.f32 %v7105, %v7041
    %v7170 = vadd.f32 %v7106, %v7042
    %v7171 = vadd.f32 %v7107, %v7043
    %v7172 = vadd.f32 %v7108, %v7044
    %v7173 = vadd.f32 %v7109, %v7045
    %v7174 = vadd.f32 %v7110, %v7046
    %v7175 = vadd.f32 %v7111, %v7047
    %v7176 = vadd.f32 %v7112, %v7048
    %v7177 = vadd.f32 %v7113, %v7049
    %v7178 = vadd.f32 %v7114, %v7050
    %v7179 = vadd.f32 %v7115, %v7051
    %v7180 = vadd.f32 %v7116, %v7052
    %v7181 = vadd.f32 %v7117, %v7053
    %v7182 = vadd.f32 %v7118, %v7054
    %v7183 = vadd.f32 %v7119, %v7055
    %v7184 = vadd.f32 %v7120, %v7056
    %v7185 = vadd.f32 %v7121, %v7057
    %v7186 = vadd.f32 %v7122, %v7058
    %v7187 = vadd.f32 %v7123, %v7059
    %v7188 = vadd.f32 %v7124, %v7060
    %v7189 = vadd.f32 %v7125, %v7061
    %v7190 = vadd.f32 %v7126, %v7062
    %v7191 = vadd.f32 %v7127, %v7063
    %v7192 = vadd.f32 %v7128, %v7064
    %v7193 = vadd.f32 %v7129, %v7065
    %v7194 = vadd.f32 %v7130, %v7066
    %v7195 = vadd.f32 %v7131, %v7067
    %v7196 = vadd.f32 %v7132, %v7068
    %v7197 = vadd.f32 %v7133, %v7069
    %v7198 = vadd.f32 %v7134, %v7070
    %v7199 = vadd.f32 %v7135, %v7071
    %v7200 = vadd.f32 %v7136, %v7072
    %v7201 = vadd.f32 %v7137, %v7073
    %v7202 = vadd.f32 %v7138, %v7074
    %v7203 = vadd.f32 %v7139, %v7075
    %v7204 = vadd.f32 %v7140, %v7076
    %v7205 = vadd.f32 %v7141, %v7077
    %v7206 = vadd.f32 %v7142, %v7078
    %v7207 = vadd.f32 %v7143, %v7079
    %v7208 = vadd.f32 %v7144, %v7080
    %v7209 = vadd.f32 %v7145, %v7081
    %7210 = vst [vmem:[#allocation17] sm:$0xff] %v7146
    %7211 = vst [vmem:[#allocation17 + $0x8] sm:$0xff] %v7147
    %7212 = vst [vmem:[#allocation17 + $0x10] sm:$0xff] %v7148
    %7213 = vst [vmem:[#allocation17 + $0x18] sm:$0xff] %v7149
    %7214 = vst [vmem:[#allocation17 + $0x20] sm:$0xff] %v7150
    %7215 = vst [vmem:[#allocation17 + $0x28] sm:$0xff] %v7151
    %7216 = vst [vmem:[#allocation17 + $0x30] sm:$0xff] %v7152
    %7217 = vst [vmem:[#allocation17 + $0x38] sm:$0xff] %v7153
    %7218 = vst [vmem:[#allocation17 + $0x40] sm:$0xff] %v7154
    %7219 = vst [vmem:[#allocation17 + $0x48] sm:$0xff] %v7155
    %7220 = vst [vmem:[#allocation17 + $0x50] sm:$0xff] %v7156
    %7221 = vst [vmem:[#allocation17 + $0x58] sm:$0xff] %v7157
    %7222 = vst [vmem:[#allocation17 + $0x60] sm:$0xff] %v7158
    %7223 = vst [vmem:[#allocation17 + $0x68] sm:$0xff] %v7159
    %7224 = vst [vmem:[#allocation17 + $0x70] sm:$0xff] %v7160
    %7225 = vst [vmem:[#allocation17 + $0x78] sm:$0xff] %v7161
    %7226 = vst [vmem:[#allocation17 + $0x80] sm:$0xff] %v7162
    %7227 = vst [vmem:[#allocation17 + $0x88] sm:$0xff] %v7163
    %7228 = vst [vmem:[#allocation17 + $0x90] sm:$0xff] %v7164
    %7229 = vst [vmem:[#allocation17 + $0x98] sm:$0xff] %v7165
    %7230 = vst [vmem:[#allocation17 + $0xa0] sm:$0xff] %v7166
    %7231 = vst [vmem:[#allocation17 + $0xa8] sm:$0xff] %v7167
    %7232 = vst [vmem:[#allocation17 + $0xb0] sm:$0xff] %v7168
    %7233 = vst [vmem:[#allocation17 + $0xb8] sm:$0xff] %v7169
    %7234 = vst [vmem:[#allocation17 + $0xc0] sm:$0xff] %v7170
    %7235 = vst [vmem:[#allocation17 + $0xc8] sm:$0xff] %v7171
    %7236 = vst [vmem:[#allocation17 + $0xd0] sm:$0xff] %v7172
    %7237 = vst [vmem:[#allocation17 + $0xd8] sm:$0xff] %v7173
    %7238 = vst [vmem:[#allocation17 + $0xe0] sm:$0xff] %v7174
    %7239 = vst [vmem:[#allocation17 + $0xe8] sm:$0xff] %v7175
    %7240 = vst [vmem:[#allocation17 + $0xf0] sm:$0xff] %v7176
    %7241 = vst [vmem:[#allocation17 + $0xf8] sm:$0xff] %v7177
    %7242 = vst [vmem:[#allocation17 + $0x100] sm:$0xff] %v7178
    %7243 = vst [vmem:[#allocation17 + $0x108] sm:$0xff] %v7179
    %7244 = vst [vmem:[#allocation17 + $0x110] sm:$0xff] %v7180
    %7245 = vst [vmem:[#allocation17 + $0x118] sm:$0xff] %v7181
    %7246 = vst [vmem:[#allocation17 + $0x120] sm:$0xff] %v7182
    %7247 = vst [vmem:[#allocation17 + $0x128] sm:$0xff] %v7183
    %7248 = vst [vmem:[#allocation17 + $0x130] sm:$0xff] %v7184
    %7249 = vst [vmem:[#allocation17 + $0x138] sm:$0xff] %v7185
    %7250 = vst [vmem:[#allocation17 + $0x140] sm:$0xff] %v7186
    %7251 = vst [vmem:[#allocation17 + $0x148] sm:$0xff] %v7187
    %7252 = vst [vmem:[#allocation17 + $0x150] sm:$0xff] %v7188
    %7253 = vst [vmem:[#allocation17 + $0x158] sm:$0xff] %v7189
    %7254 = vst [vmem:[#allocation17 + $0x160] sm:$0xff] %v7190
    %7255 = vst [vmem:[#allocation17 + $0x168] sm:$0xff] %v7191
    %7256 = vst [vmem:[#allocation17 + $0x170] sm:$0xff] %v7192
    %7257 = vst [vmem:[#allocation17 + $0x178] sm:$0xff] %v7193
    %7258 = vst [vmem:[#allocation17 + $0x180] sm:$0xff] %v7194
    %7259 = vst [vmem:[#allocation17 + $0x188] sm:$0xff] %v7195
    %7260 = vst [vmem:[#allocation17 + $0x190] sm:$0xff] %v7196
    %7261 = vst [vmem:[#allocation17 + $0x198] sm:$0xff] %v7197
    %7262 = vst [vmem:[#allocation17 + $0x1a0] sm:$0xff] %v7198
    %7263 = vst [vmem:[#allocation17 + $0x1a8] sm:$0xff] %v7199
    %7264 = vst [vmem:[#allocation17 + $0x1b0] sm:$0xff] %v7200
    %7265 = vst [vmem:[#allocation17 + $0x1b8] sm:$0xff] %v7201
    %7266 = vst [vmem:[#allocation17 + $0x1c0] sm:$0xff] %v7202
    %7267 = vst [vmem:[#allocation17 + $0x1c8] sm:$0xff] %v7203
    %7268 = vst [vmem:[#allocation17 + $0x1d0] sm:$0xff] %v7204
    %7269 = vst [vmem:[#allocation17 + $0x1d8] sm:$0xff] %v7205
    %7270 = vst [vmem:[#allocation17 + $0x1e0] sm:$0xff] %v7206
    %7271 = vst [vmem:[#allocation17 + $0x1e8] sm:$0xff] %v7207
    %7272 = vst [vmem:[#allocation17 + $0x1f0] sm:$0xff] %v7208
    %7273 = vst [vmem:[#allocation17 + $0x1f8] sm:$0xff] %v7209
    // Predicated region
    $region50: #{tpu_custom_call.1} parent=1 // pred_check
      _
    $region51: #{tpu_custom_call.1} parent=1 // pred_check_branch
      %7275 = sbr.rel (0) target = $region53
    $region52: #{tpu_custom_call.1} parent=1 // pred_region
      %s7277 = ssub.s32 8192, 8192
      %7278 = vsyncadd [#allocation8], %s7277
      %s7279 = sshll.u32 [#allocation17], 4
      %s7280 = int_to_ptr.vmem [resolvable:$true] %s7279
      %7285 = dma.vmem_to_hbm [thread:$0]  %s7280, 8192, %s7, [#allocation8], 512, 512, 32
    $region53: #{tpu_custom_call.1} parent=1 // pred_fallthru
      _
    // Predicated region
    $region54: #{tpu_custom_call.1} parent=1 // pred_check
      _
    $region55: #{tpu_custom_call.1} parent=1 // pred_check_branch
      %7287 = sbr.rel (0) target = $region57
    $region56: #{tpu_custom_call.1} parent=1 // pred_region
      %7288 = dma.done [#allocation8], 8192
    $region57: #{tpu_custom_call.1} parent=1 // pred_fallthru
      _
    %7289 = vsyncpa [#allocation7], 1
    %7290 = vsyncpa [#allocation10], 1
    %7291 = vsyncpa [#allocation13], 1
    %7292 = vsyncpa [#allocation16], 1
    %7293 = vsyncpa [#allocation8], 1
  %7294 = vsyncmov [#allocation5]
  %s7295 = vpop.sfrf %7294
  %p7296 = scmp.eq.s32.totalorder %s7295, 0
  %p7297 = pneg %p7296
  %7299 = shalt.err (%p7297)

</llo_original>
